<compile_context>
chip_gen: v5e
topology: v5e:2x2
jax: 0.10.0
libtpu: 0.0.40
codegen_flags: <defaults>
</compile_context>

<pallas_src>
import jax
import jax.numpy as jnp
import numpy as np
from jax import lax
from jax.experimental import pallas as pl
from jax.experimental.pallas import tpu as pltpu

C_IN, C_OUT = 1, 11
KH, KW = 4, 5
SH, SW = 3, 2
PH, PW = 2, 1


def convt_kernel(u_ref, w_ref, o_ref, taps_ref):
    """Single invocation computes every output channel.

    u_ref:    (N, Ho+KH-1, Wo+KW-1) f32 VMEM -- dilated + edge-padded input plane.
    w_ref:    (C_OUT*KH*KW,)        f32 SMEM -- spatially flipped weights, flat.
    o_ref:    (N, C_OUT, Ho, Wo)    f32 VMEM -- exact-shape output.
    taps_ref: (KH*KW, N, Ho, Wo)    f32 VMEM scratch -- staged shifted taps.
    """
    N, _c, Ho, Wo = o_ref.shape
    u = u_ref[...]

    # Stage the KH*KW shifted taps once in VMEM scratch (written once,
    # re-read C_OUT times) so at most ~2 taps + 1 accumulator are live in vregs.
    for kh in range(KH):
        u_kh = u[:, kh:kh + Ho, :]                       # sublane slice, once per kh
        for kw in range(KW):
            taps_ref[kh * KW + kw] = u_kh[:, :, kw:kw + Wo]   # in-tile lane slice

    nk = KH * KW
    for c in range(C_OUT):
        acc = None
        for k in range(nk):
            w = w_ref[c * nk + k]                        # scalar read from SMEM
            term = taps_ref[k] * w
            acc = term if acc is None else acc + term    # vreg-resident accumulator
        # fused epilogue: torch.where(v1 > 0, v1, v1 * -0.1)
        o_ref[:, c] = jnp.where(acc > 0, acc, acc * -0.1).astype(o_ref.dtype)


@jax.jit
def conv_transpose_model(x, weight):
    """x: (N, 1, H, W) f32; weight: (1, C_OUT, KH, KW) f32 (PyTorch IOHW)."""
    N, _, H, W = x.shape
    Ho = (H - 1) * SH - 2 * PH + KH
    Wo = (W - 1) * SW - 2 * PW + KW
    ph, pw = KH - 1 - PH, KW - 1 - PW

    # One lax.pad: interior (stride-1) zero dilation + (k-1-p) edge padding.
    # Result: (N, Ho+KH-1, Wo+KW-1) = the zero-upsampled, edge-padded plane.
    u = lax.pad(x[:, 0], jnp.zeros((), x.dtype),
                ((0, 0, 0), (ph, ph, SH - 1), (pw, pw, SW - 1)))

    # Spatially flipped kernel, flattened 1-D for SMEM (avoids 2-D SMEM padding).
    wf = weight[0, :, ::-1, ::-1].reshape(-1)            # (C_OUT*KH*KW,)

    out = pl.pallas_call(
        convt_kernel,
        out_shape=jax.ShapeDtypeStruct((N, C_OUT, Ho, Wo), x.dtype),
        in_specs=[
            pl.BlockSpec(memory_space=pltpu.MemorySpace.VMEM),
            pl.BlockSpec(memory_space=pltpu.MemorySpace.SMEM),
        ],
        out_specs=pl.BlockSpec(memory_space=pltpu.MemorySpace.VMEM),
        scratch_shapes=[pltpu.VMEM((KH * KW, N, Ho, Wo), jnp.float32)],
    )(u, wf)
    return out


def reference(x, weight):
    # transposed conv == lhs-dilated conv with flipped, channel-transposed kernel
    rhs = jnp.transpose(weight[:, :, ::-1, ::-1], (1, 0, 2, 3))  # (O, I, KH, KW)
    v1 = lax.conv_general_dilated(
        x, rhs,
        window_strides=(1, 1),
        padding=((KH - 1 - PH, KH - 1 - PH), (KW - 1 - PW, KW - 1 - PW)),
        lhs_dilation=(SH, SW),
        dimension_numbers=("NCHW", "OIHW", "NCHW"))
    return jnp.where(v1 > 0, v1, v1 * -0.1)


if __name__ == "__main__":
    key = jax.random.PRNGKey(0)
    kx, kw = jax.random.split(key)

    # Small NCHW input consistent with in_channels=1.
    N, H, W = 2, 8, 10
    x = jax.random.normal(kx, (N, C_IN, H, W), dtype=jnp.float32)

    # Deterministic ConvTranspose2d weight, PyTorch layout (in, out, kh, kw).
    fan = C_OUT * KH * KW
    bound = 1.0 / np.sqrt(fan)
    weight = jax.random.uniform(kw, (C_IN, C_OUT, KH, KW),
                                dtype=jnp.float32, minval=-bound, maxval=bound)

    out = conv_transpose_model(x, weight)
    out = jax.block_until_ready(out)

    ref = reference(x, weight)
    assert out.shape == ref.shape == (N, C_OUT, 21, 21)
    np.testing.assert_allclose(np.asarray(out), np.asarray(ref),
                               rtol=1e-5, atol=1e-5)
    print("KERNEL_OK")
</pallas_src>

<mosaic_0001>
module attributes {stable_mosaic.version = 11 : i64} {
  func.func @convt_kernel(%arg0: memref<2x24x25xf32, #tpu.memory_space<vmem>>, %arg1: memref<220xf32, #tpu.memory_space<smem>>, %arg2: memref<2x11x21x21xf32, #tpu.memory_space<vmem>>, %arg3: memref<20x2x21x21xf32, #tpu.memory_space<vmem>>) attributes {dimension_semantics = [], scalar_prefetch = 0 : i64, scratch_operands = 1 : i64, tpu.core_type = #tpu.core_type<tc>} {
    %c0 = arith.constant 0 : index
    %c0_0 = arith.constant 0 : index
    %c0_1 = arith.constant 0 : index
    %0 = vector.load %arg0[%c0, %c0_0, %c0_1] : memref<2x24x25xf32, #tpu.memory_space<vmem>>, vector<2x24x25xf32>
    %1 = vector.extract_strided_slice %0 {offsets = [0, 0, 0], sizes = [2, 21, 25], strides = [1, 1, 1]} : vector<2x24x25xf32> to vector<2x21x25xf32>
    %2 = vector.extract_strided_slice %1 {offsets = [0, 0, 0], sizes = [2, 21, 21], strides = [1, 1, 1]} : vector<2x21x25xf32> to vector<2x21x21xf32>
    %c0_2 = arith.constant 0 : index
    %c0_3 = arith.constant 0 : index
    %c0_4 = arith.constant 0 : index
    %c0_5 = arith.constant 0 : index
    %3 = vector.load %arg3[%c0_2, %c0_3, %c0_4, %c0_5] : memref<20x2x21x21xf32, #tpu.memory_space<vmem>>, vector<1x2x21x21xf32>
    %4 = vector.shape_cast %3 : vector<1x2x21x21xf32> to vector<2x21x21xf32>
    %5 = vector.shape_cast %2 : vector<2x21x21xf32> to vector<1x2x21x21xf32>
    tpu.vector_store %arg3[%c0_2, %c0_3, %c0_4, %c0_5], %5 {strides = array<i32>} : memref<20x2x21x21xf32, #tpu.memory_space<vmem>>, vector<1x2x21x21xf32>,
    %6 = vector.extract_strided_slice %1 {offsets = [0, 0, 1], sizes = [2, 21, 21], strides = [1, 1, 1]} : vector<2x21x25xf32> to vector<2x21x21xf32>
    %c1 = arith.constant 1 : index
    %c0_6 = arith.constant 0 : index
    %c0_7 = arith.constant 0 : index
    %c0_8 = arith.constant 0 : index
    %7 = vector.load %arg3[%c1, %c0_6, %c0_7, %c0_8] : memref<20x2x21x21xf32, #tpu.memory_space<vmem>>, vector<1x2x21x21xf32>
    %8 = vector.shape_cast %7 : vector<1x2x21x21xf32> to vector<2x21x21xf32>
    %9 = vector.shape_cast %6 : vector<2x21x21xf32> to vector<1x2x21x21xf32>
    tpu.vector_store %arg3[%c1, %c0_6, %c0_7, %c0_8], %9 {strides = array<i32>} : memref<20x2x21x21xf32, #tpu.memory_space<vmem>>, vector<1x2x21x21xf32>,
    %10 = vector.extract_strided_slice %1 {offsets = [0, 0, 2], sizes = [2, 21, 21], strides = [1, 1, 1]} : vector<2x21x25xf32> to vector<2x21x21xf32>
    %c2 = arith.constant 2 : index
    %c0_9 = arith.constant 0 : index
    %c0_10 = arith.constant 0 : index
    %c0_11 = arith.constant 0 : index
    %11 = vector.load %arg3[%c2, %c0_9, %c0_10, %c0_11] : memref<20x2x21x21xf32, #tpu.memory_space<vmem>>, vector<1x2x21x21xf32>
    %12 = vector.shape_cast %11 : vector<1x2x21x21xf32> to vector<2x21x21xf32>
    %13 = vector.shape_cast %10 : vector<2x21x21xf32> to vector<1x2x21x21xf32>
    tpu.vector_store %arg3[%c2, %c0_9, %c0_10, %c0_11], %13 {strides = array<i32>} : memref<20x2x21x21xf32, #tpu.memory_space<vmem>>, vector<1x2x21x21xf32>,
    %14 = vector.extract_strided_slice %1 {offsets = [0, 0, 3], sizes = [2, 21, 21], strides = [1, 1, 1]} : vector<2x21x25xf32> to vector<2x21x21xf32>
    %c3 = arith.constant 3 : index
    %c0_12 = arith.constant 0 : index
    %c0_13 = arith.constant 0 : index
    %c0_14 = arith.constant 0 : index
    %15 = vector.load %arg3[%c3, %c0_12, %c0_13, %c0_14] : memref<20x2x21x21xf32, #tpu.memory_space<vmem>>, vector<1x2x21x21xf32>
    %16 = vector.shape_cast %15 : vector<1x2x21x21xf32> to vector<2x21x21xf32>
    %17 = vector.shape_cast %14 : vector<2x21x21xf32> to vector<1x2x21x21xf32>
    tpu.vector_store %arg3[%c3, %c0_12, %c0_13, %c0_14], %17 {strides = array<i32>} : memref<20x2x21x21xf32, #tpu.memory_space<vmem>>, vector<1x2x21x21xf32>,
    %18 = vector.extract_strided_slice %1 {offsets = [0, 0, 4], sizes = [2, 21, 21], strides = [1, 1, 1]} : vector<2x21x25xf32> to vector<2x21x21xf32>
    %c4 = arith.constant 4 : index
    %c0_15 = arith.constant 0 : index
    %c0_16 = arith.constant 0 : index
    %c0_17 = arith.constant 0 : index
    %19 = vector.load %arg3[%c4, %c0_15, %c0_16, %c0_17] : memref<20x2x21x21xf32, #tpu.memory_space<vmem>>, vector<1x2x21x21xf32>
    %20 = vector.shape_cast %19 : vector<1x2x21x21xf32> to vector<2x21x21xf32>
    %21 = vector.shape_cast %18 : vector<2x21x21xf32> to vector<1x2x21x21xf32>
    tpu.vector_store %arg3[%c4, %c0_15, %c0_16, %c0_17], %21 {strides = array<i32>} : memref<20x2x21x21xf32, #tpu.memory_space<vmem>>, vector<1x2x21x21xf32>,
    %22 = vector.extract_strided_slice %0 {offsets = [0, 1, 0], sizes = [2, 21, 25], strides = [1, 1, 1]} : vector<2x24x25xf32> to vector<2x21x25xf32>
    %23 = vector.extract_strided_slice %22 {offsets = [0, 0, 0], sizes = [2, 21, 21], strides = [1, 1, 1]} : vector<2x21x25xf32> to vector<2x21x21xf32>
    %c5 = arith.constant 5 : index
    %c0_18 = arith.constant 0 : index
    %c0_19 = arith.constant 0 : index
    %c0_20 = arith.constant 0 : index
    %24 = vector.load %arg3[%c5, %c0_18, %c0_19, %c0_20] : memref<20x2x21x21xf32, #tpu.memory_space<vmem>>, vector<1x2x21x21xf32>
    %25 = vector.shape_cast %24 : vector<1x2x21x21xf32> to vector<2x21x21xf32>
    %26 = vector.shape_cast %23 : vector<2x21x21xf32> to vector<1x2x21x21xf32>
    tpu.vector_store %arg3[%c5, %c0_18, %c0_19, %c0_20], %26 {strides = array<i32>} : memref<20x2x21x21xf32, #tpu.memory_space<vmem>>, vector<1x2x21x21xf32>,
    %27 = vector.extract_strided_slice %22 {offsets = [0, 0, 1], sizes = [2, 21, 21], strides = [1, 1, 1]} : vector<2x21x25xf32> to vector<2x21x21xf32>
    %c6 = arith.constant 6 : index
    %c0_21 = arith.constant 0 : index
    %c0_22 = arith.constant 0 : index
    %c0_23 = arith.constant 0 : index
    %28 = vector.load %arg3[%c6, %c0_21, %c0_22, %c0_23] : memref<20x2x21x21xf32, #tpu.memory_space<vmem>>, vector<1x2x21x21xf32>
    %29 = vector.shape_cast %28 : vector<1x2x21x21xf32> to vector<2x21x21xf32>
    %30 = vector.shape_cast %27 : vector<2x21x21xf32> to vector<1x2x21x21xf32>
    tpu.vector_store %arg3[%c6, %c0_21, %c0_22, %c0_23], %30 {strides = array<i32>} : memref<20x2x21x21xf32, #tpu.memory_space<vmem>>, vector<1x2x21x21xf32>,
    %31 = vector.extract_strided_slice %22 {offsets = [0, 0, 2], sizes = [2, 21, 21], strides = [1, 1, 1]} : vector<2x21x25xf32> to vector<2x21x21xf32>
    %c7 = arith.constant 7 : index
    %c0_24 = arith.constant 0 : index
    %c0_25 = arith.constant 0 : index
    %c0_26 = arith.constant 0 : index
    %32 = vector.load %arg3[%c7, %c0_24, %c0_25, %c0_26] : memref<20x2x21x21xf32, #tpu.memory_space<vmem>>, vector<1x2x21x21xf32>
    %33 = vector.shape_cast %32 : vector<1x2x21x21xf32> to vector<2x21x21xf32>
    %34 = vector.shape_cast %31 : vector<2x21x21xf32> to vector<1x2x21x21xf32>
    tpu.vector_store %arg3[%c7, %c0_24, %c0_25, %c0_26], %34 {strides = array<i32>} : memref<20x2x21x21xf32, #tpu.memory_space<vmem>>, vector<1x2x21x21xf32>,
    %35 = vector.extract_strided_slice %22 {offsets = [0, 0, 3], sizes = [2, 21, 21], strides = [1, 1, 1]} : vector<2x21x25xf32> to vector<2x21x21xf32>
    %c8 = arith.constant 8 : index
    %c0_27 = arith.constant 0 : index
    %c0_28 = arith.constant 0 : index
    %c0_29 = arith.constant 0 : index
    %36 = vector.load %arg3[%c8, %c0_27, %c0_28, %c0_29] : memref<20x2x21x21xf32, #tpu.memory_space<vmem>>, vector<1x2x21x21xf32>
    %37 = vector.shape_cast %36 : vector<1x2x21x21xf32> to vector<2x21x21xf32>
    %38 = vector.shape_cast %35 : vector<2x21x21xf32> to vector<1x2x21x21xf32>
    tpu.vector_store %arg3[%c8, %c0_27, %c0_28, %c0_29], %38 {strides = array<i32>} : memref<20x2x21x21xf32, #tpu.memory_space<vmem>>, vector<1x2x21x21xf32>,
    %39 = vector.extract_strided_slice %22 {offsets = [0, 0, 4], sizes = [2, 21, 21], strides = [1, 1, 1]} : vector<2x21x25xf32> to vector<2x21x21xf32>
    %c9 = arith.constant 9 : index
    %c0_30 = arith.constant 0 : index
    %c0_31 = arith.constant 0 : index
    %c0_32 = arith.constant 0 : index
    %40 = vector.load %arg3[%c9, %c0_30, %c0_31, %c0_32] : memref<20x2x21x21xf32, #tpu.memory_space<vmem>>, vector<1x2x21x21xf32>
    %41 = vector.shape_cast %40 : vector<1x2x21x21xf32> to vector<2x21x21xf32>
    %42 = vector.shape_cast %39 : vector<2x21x21xf32> to vector<1x2x21x21xf32>
    tpu.vector_store %arg3[%c9, %c0_30, %c0_31, %c0_32], %42 {strides = array<i32>} : memref<20x2x21x21xf32, #tpu.memory_space<vmem>>, vector<1x2x21x21xf32>,
    %43 = vector.extract_strided_slice %0 {offsets = [0, 2, 0], sizes = [2, 21, 25], strides = [1, 1, 1]} : vector<2x24x25xf32> to vector<2x21x25xf32>
    %44 = vector.extract_strided_slice %43 {offsets = [0, 0, 0], sizes = [2, 21, 21], strides = [1, 1, 1]} : vector<2x21x25xf32> to vector<2x21x21xf32>
    %c10 = arith.constant 10 : index
    %c0_33 = arith.constant 0 : index
    %c0_34 = arith.constant 0 : index
    %c0_35 = arith.constant 0 : index
    %45 = vector.load %arg3[%c10, %c0_33, %c0_34, %c0_35] : memref<20x2x21x21xf32, #tpu.memory_space<vmem>>, vector<1x2x21x21xf32>
    %46 = vector.shape_cast %45 : vector<1x2x21x21xf32> to vector<2x21x21xf32>
    %47 = vector.shape_cast %44 : vector<2x21x21xf32> to vector<1x2x21x21xf32>
    tpu.vector_store %arg3[%c10, %c0_33, %c0_34, %c0_35], %47 {strides = array<i32>} : memref<20x2x21x21xf32, #tpu.memory_space<vmem>>, vector<1x2x21x21xf32>,
    %48 = vector.extract_strided_slice %43 {offsets = [0, 0, 1], sizes = [2, 21, 21], strides = [1, 1, 1]} : vector<2x21x25xf32> to vector<2x21x21xf32>
    %c11 = arith.constant 11 : index
    %c0_36 = arith.constant 0 : index
    %c0_37 = arith.constant 0 : index
    %c0_38 = arith.constant 0 : index
    %49 = vector.load %arg3[%c11, %c0_36, %c0_37, %c0_38] : memref<20x2x21x21xf32, #tpu.memory_space<vmem>>, vector<1x2x21x21xf32>
    %50 = vector.shape_cast %49 : vector<1x2x21x21xf32> to vector<2x21x21xf32>
    %51 = vector.shape_cast %48 : vector<2x21x21xf32> to vector<1x2x21x21xf32>
    tpu.vector_store %arg3[%c11, %c0_36, %c0_37, %c0_38], %51 {strides = array<i32>} : memref<20x2x21x21xf32, #tpu.memory_space<vmem>>, vector<1x2x21x21xf32>,
    %52 = vector.extract_strided_slice %43 {offsets = [0, 0, 2], sizes = [2, 21, 21], strides = [1, 1, 1]} : vector<2x21x25xf32> to vector<2x21x21xf32>
    %c12 = arith.constant 12 : index
    %c0_39 = arith.constant 0 : index
    %c0_40 = arith.constant 0 : index
    %c0_41 = arith.constant 0 : index
    %53 = vector.load %arg3[%c12, %c0_39, %c0_40, %c0_41] : memref<20x2x21x21xf32, #tpu.memory_space<vmem>>, vector<1x2x21x21xf32>
    %54 = vector.shape_cast %53 : vector<1x2x21x21xf32> to vector<2x21x21xf32>
    %55 = vector.shape_cast %52 : vector<2x21x21xf32> to vector<1x2x21x21xf32>
    tpu.vector_store %arg3[%c12, %c0_39, %c0_40, %c0_41], %55 {strides = array<i32>} : memref<20x2x21x21xf32, #tpu.memory_space<vmem>>, vector<1x2x21x21xf32>,
    %56 = vector.extract_strided_slice %43 {offsets = [0, 0, 3], sizes = [2, 21, 21], strides = [1, 1, 1]} : vector<2x21x25xf32> to vector<2x21x21xf32>
    %c13 = arith.constant 13 : index
    %c0_42 = arith.constant 0 : index
    %c0_43 = arith.constant 0 : index
    %c0_44 = arith.constant 0 : index
    %57 = vector.load %arg3[%c13, %c0_42, %c0_43, %c0_44] : memref<20x2x21x21xf32, #tpu.memory_space<vmem>>, vector<1x2x21x21xf32>
    %58 = vector.shape_cast %57 : vector<1x2x21x21xf32> to vector<2x21x21xf32>
    %59 = vector.shape_cast %56 : vector<2x21x21xf32> to vector<1x2x21x21xf32>
    tpu.vector_store %arg3[%c13, %c0_42, %c0_43, %c0_44], %59 {strides = array<i32>} : memref<20x2x21x21xf32, #tpu.memory_space<vmem>>, vector<1x2x21x21xf32>,
    %60 = vector.extract_strided_slice %43 {offsets = [0, 0, 4], sizes = [2, 21, 21], strides = [1, 1, 1]} : vector<2x21x25xf32> to vector<2x21x21xf32>
    %c14 = arith.constant 14 : index
    %c0_45 = arith.constant 0 : index
    %c0_46 = arith.constant 0 : index
    %c0_47 = arith.constant 0 : index
    %61 = vector.load %arg3[%c14, %c0_45, %c0_46, %c0_47] : memref<20x2x21x21xf32, #tpu.memory_space<vmem>>, vector<1x2x21x21xf32>
    %62 = vector.shape_cast %61 : vector<1x2x21x21xf32> to vector<2x21x21xf32>
    %63 = vector.shape_cast %60 : vector<2x21x21xf32> to vector<1x2x21x21xf32>
    tpu.vector_store %arg3[%c14, %c0_45, %c0_46, %c0_47], %63 {strides = array<i32>} : memref<20x2x21x21xf32, #tpu.memory_space<vmem>>, vector<1x2x21x21xf32>,
    %64 = vector.extract_strided_slice %0 {offsets = [0, 3, 0], sizes = [2, 21, 25], strides = [1, 1, 1]} : vector<2x24x25xf32> to vector<2x21x25xf32>
    %65 = vector.extract_strided_slice %64 {offsets = [0, 0, 0], sizes = [2, 21, 21], strides = [1, 1, 1]} : vector<2x21x25xf32> to vector<2x21x21xf32>
    %c15 = arith.constant 15 : index
    %c0_48 = arith.constant 0 : index
    %c0_49 = arith.constant 0 : index
    %c0_50 = arith.constant 0 : index
    %66 = vector.load %arg3[%c15, %c0_48, %c0_49, %c0_50] : memref<20x2x21x21xf32, #tpu.memory_space<vmem>>, vector<1x2x21x21xf32>
    %67 = vector.shape_cast %66 : vector<1x2x21x21xf32> to vector<2x21x21xf32>
    %68 = vector.shape_cast %65 : vector<2x21x21xf32> to vector<1x2x21x21xf32>
    tpu.vector_store %arg3[%c15, %c0_48, %c0_49, %c0_50], %68 {strides = array<i32>} : memref<20x2x21x21xf32, #tpu.memory_space<vmem>>, vector<1x2x21x21xf32>,
    %69 = vector.extract_strided_slice %64 {offsets = [0, 0, 1], sizes = [2, 21, 21], strides = [1, 1, 1]} : vector<2x21x25xf32> to vector<2x21x21xf32>
    %c16 = arith.constant 16 : index
    %c0_51 = arith.constant 0 : index
    %c0_52 = arith.constant 0 : index
    %c0_53 = arith.constant 0 : index
    %70 = vector.load %arg3[%c16, %c0_51, %c0_52, %c0_53] : memref<20x2x21x21xf32, #tpu.memory_space<vmem>>, vector<1x2x21x21xf32>
    %71 = vector.shape_cast %70 : vector<1x2x21x21xf32> to vector<2x21x21xf32>
    %72 = vector.shape_cast %69 : vector<2x21x21xf32> to vector<1x2x21x21xf32>
    tpu.vector_store %arg3[%c16, %c0_51, %c0_52, %c0_53], %72 {strides = array<i32>} : memref<20x2x21x21xf32, #tpu.memory_space<vmem>>, vector<1x2x21x21xf32>,
    %73 = vector.extract_strided_slice %64 {offsets = [0, 0, 2], sizes = [2, 21, 21], strides = [1, 1, 1]} : vector<2x21x25xf32> to vector<2x21x21xf32>
    %c17 = arith.constant 17 : index
    %c0_54 = arith.constant 0 : index
    %c0_55 = arith.constant 0 : index
    %c0_56 = arith.constant 0 : index
    %74 = vector.load %arg3[%c17, %c0_54, %c0_55, %c0_56] : memref<20x2x21x21xf32, #tpu.memory_space<vmem>>, vector<1x2x21x21xf32>
    %75 = vector.shape_cast %74 : vector<1x2x21x21xf32> to vector<2x21x21xf32>
    %76 = vector.shape_cast %73 : vector<2x21x21xf32> to vector<1x2x21x21xf32>
    tpu.vector_store %arg3[%c17, %c0_54, %c0_55, %c0_56], %76 {strides = array<i32>} : memref<20x2x21x21xf32, #tpu.memory_space<vmem>>, vector<1x2x21x21xf32>,
    %77 = vector.extract_strided_slice %64 {offsets = [0, 0, 3], sizes = [2, 21, 21], strides = [1, 1, 1]} : vector<2x21x25xf32> to vector<2x21x21xf32>
    %c18 = arith.constant 18 : index
    %c0_57 = arith.constant 0 : index
    %c0_58 = arith.constant 0 : index
    %c0_59 = arith.constant 0 : index
    %78 = vector.load %arg3[%c18, %c0_57, %c0_58, %c0_59] : memref<20x2x21x21xf32, #tpu.memory_space<vmem>>, vector<1x2x21x21xf32>
    %79 = vector.shape_cast %78 : vector<1x2x21x21xf32> to vector<2x21x21xf32>
    %80 = vector.shape_cast %77 : vector<2x21x21xf32> to vector<1x2x21x21xf32>
    tpu.vector_store %arg3[%c18, %c0_57, %c0_58, %c0_59], %80 {strides = array<i32>} : memref<20x2x21x21xf32, #tpu.memory_space<vmem>>, vector<1x2x21x21xf32>,
    %81 = vector.extract_strided_slice %64 {offsets = [0, 0, 4], sizes = [2, 21, 21], strides = [1, 1, 1]} : vector<2x21x25xf32> to vector<2x21x21xf32>
    %c19 = arith.constant 19 : index
    %c0_60 = arith.constant 0 : index
    %c0_61 = arith.constant 0 : index
    %c0_62 = arith.constant 0 : index
    %82 = vector.load %arg3[%c19, %c0_60, %c0_61, %c0_62] : memref<20x2x21x21xf32, #tpu.memory_space<vmem>>, vector<1x2x21x21xf32>
    %83 = vector.shape_cast %82 : vector<1x2x21x21xf32> to vector<2x21x21xf32>
    %84 = vector.shape_cast %81 : vector<2x21x21xf32> to vector<1x2x21x21xf32>
    tpu.vector_store %arg3[%c19, %c0_60, %c0_61, %c0_62], %84 {strides = array<i32>} : memref<20x2x21x21xf32, #tpu.memory_space<vmem>>, vector<1x2x21x21xf32>,
    %c0_63 = arith.constant 0 : index
    %85 = memref.load %arg1[%c0_63] : memref<220xf32, #tpu.memory_space<smem>>
    %c0_64 = arith.constant 0 : index
    %c0_65 = arith.constant 0 : index
    %c0_66 = arith.constant 0 : index
    %c0_67 = arith.constant 0 : index
    %86 = vector.load %arg3[%c0_64, %c0_65, %c0_66, %c0_67] : memref<20x2x21x21xf32, #tpu.memory_space<vmem>>, vector<1x2x21x21xf32>
    %87 = vector.shape_cast %86 : vector<1x2x21x21xf32> to vector<2x21x21xf32>
    %88 = vector.broadcast %85 : f32 to vector<2x21x21xf32>
    %89 = arith.mulf %87, %88 : vector<2x21x21xf32>
    %c1_68 = arith.constant 1 : index
    %90 = memref.load %arg1[%c1_68] : memref<220xf32, #tpu.memory_space<smem>>
    %c1_69 = arith.constant 1 : index
    %c0_70 = arith.constant 0 : index
    %c0_71 = arith.constant 0 : index
    %c0_72 = arith.constant 0 : index
    %91 = vector.load %arg3[%c1_69, %c0_70, %c0_71, %c0_72] : memref<20x2x21x21xf32, #tpu.memory_space<vmem>>, vector<1x2x21x21xf32>
    %92 = vector.shape_cast %91 : vector<1x2x21x21xf32> to vector<2x21x21xf32>
    %93 = vector.broadcast %90 : f32 to vector<2x21x21xf32>
    %94 = arith.mulf %92, %93 : vector<2x21x21xf32>
    %95 = arith.addf %89, %94 : vector<2x21x21xf32>
    %c2_73 = arith.constant 2 : index
    %96 = memref.load %arg1[%c2_73] : memref<220xf32, #tpu.memory_space<smem>>
    %c2_74 = arith.constant 2 : index
    %c0_75 = arith.constant 0 : index
    %c0_76 = arith.constant 0 : index
    %c0_77 = arith.constant 0 : index
    %97 = vector.load %arg3[%c2_74, %c0_75, %c0_76, %c0_77] : memref<20x2x21x21xf32, #tpu.memory_space<vmem>>, vector<1x2x21x21xf32>
    %98 = vector.shape_cast %97 : vector<1x2x21x21xf32> to vector<2x21x21xf32>
    %99 = vector.broadcast %96 : f32 to vector<2x21x21xf32>
    %100 = arith.mulf %98, %99 : vector<2x21x21xf32>
    %101 = arith.addf %95, %100 : vector<2x21x21xf32>
    %c3_78 = arith.constant 3 : index
    %102 = memref.load %arg1[%c3_78] : memref<220xf32, #tpu.memory_space<smem>>
    %c3_79 = arith.constant 3 : index
    %c0_80 = arith.constant 0 : index
    %c0_81 = arith.constant 0 : index
    %c0_82 = arith.constant 0 : index
    %103 = vector.load %arg3[%c3_79, %c0_80, %c0_81, %c0_82] : memref<20x2x21x21xf32, #tpu.memory_space<vmem>>, vector<1x2x21x21xf32>
    %104 = vector.shape_cast %103 : vector<1x2x21x21xf32> to vector<2x21x21xf32>
    %105 = vector.broadcast %102 : f32 to vector<2x21x21xf32>
    %106 = arith.mulf %104, %105 : vector<2x21x21xf32>
    %107 = arith.addf %101, %106 : vector<2x21x21xf32>
    %c4_83 = arith.constant 4 : index
    %108 = memref.load %arg1[%c4_83] : memref<220xf32, #tpu.memory_space<smem>>
    %c4_84 = arith.constant 4 : index
    %c0_85 = arith.constant 0 : index
    %c0_86 = arith.constant 0 : index
    %c0_87 = arith.constant 0 : index
    %109 = vector.load %arg3[%c4_84, %c0_85, %c0_86, %c0_87] : memref<20x2x21x21xf32, #tpu.memory_space<vmem>>, vector<1x2x21x21xf32>
    %110 = vector.shape_cast %109 : vector<1x2x21x21xf32> to vector<2x21x21xf32>
    %111 = vector.broadcast %108 : f32 to vector<2x21x21xf32>
    %112 = arith.mulf %110, %111 : vector<2x21x21xf32>
    %113 = arith.addf %107, %112 : vector<2x21x21xf32>
    %c5_88 = arith.constant 5 : index
    %114 = memref.load %arg1[%c5_88] : memref<220xf32, #tpu.memory_space<smem>>
    %c5_89 = arith.constant 5 : index
    %c0_90 = arith.constant 0 : index
    %c0_91 = arith.constant 0 : index
    %c0_92 = arith.constant 0 : index
    %115 = vector.load %arg3[%c5_89, %c0_90, %c0_91, %c0_92] : memref<20x2x21x21xf32, #tpu.memory_space<vmem>>, vector<1x2x21x21xf32>
    %116 = vector.shape_cast %115 : vector<1x2x21x21xf32> to vector<2x21x21xf32>
    %117 = vector.broadcast %114 : f32 to vector<2x21x21xf32>
    %118 = arith.mulf %116, %117 : vector<2x21x21xf32>
    %119 = arith.addf %113, %118 : vector<2x21x21xf32>
    %c6_93 = arith.constant 6 : index
    %120 = memref.load %arg1[%c6_93] : memref<220xf32, #tpu.memory_space<smem>>
    %c6_94 = arith.constant 6 : index
    %c0_95 = arith.constant 0 : index
    %c0_96 = arith.constant 0 : index
    %c0_97 = arith.constant 0 : index
    %121 = vector.load %arg3[%c6_94, %c0_95, %c0_96, %c0_97] : memref<20x2x21x21xf32, #tpu.memory_space<vmem>>, vector<1x2x21x21xf32>
    %122 = vector.shape_cast %121 : vector<1x2x21x21xf32> to vector<2x21x21xf32>
    %123 = vector.broadcast %120 : f32 to vector<2x21x21xf32>
    %124 = arith.mulf %122, %123 : vector<2x21x21xf32>
    %125 = arith.addf %119, %124 : vector<2x21x21xf32>
    %c7_98 = arith.constant 7 : index
    %126 = memref.load %arg1[%c7_98] : memref<220xf32, #tpu.memory_space<smem>>
    %c7_99 = arith.constant 7 : index
    %c0_100 = arith.constant 0 : index
    %c0_101 = arith.constant 0 : index
    %c0_102 = arith.constant 0 : index
    %127 = vector.load %arg3[%c7_99, %c0_100, %c0_101, %c0_102] : memref<20x2x21x21xf32, #tpu.memory_space<vmem>>, vector<1x2x21x21xf32>
    %128 = vector.shape_cast %127 : vector<1x2x21x21xf32> to vector<2x21x21xf32>
    %129 = vector.broadcast %126 : f32 to vector<2x21x21xf32>
    %130 = arith.mulf %128, %129 : vector<2x21x21xf32>
    %131 = arith.addf %125, %130 : vector<2x21x21xf32>
    %c8_103 = arith.constant 8 : index
    %132 = memref.load %arg1[%c8_103] : memref<220xf32, #tpu.memory_space<smem>>
    %c8_104 = arith.constant 8 : index
    %c0_105 = arith.constant 0 : index
    %c0_106 = arith.constant 0 : index
    %c0_107 = arith.constant 0 : index
    %133 = vector.load %arg3[%c8_104, %c0_105, %c0_106, %c0_107] : memref<20x2x21x21xf32, #tpu.memory_space<vmem>>, vector<1x2x21x21xf32>
    %134 = vector.shape_cast %133 : vector<1x2x21x21xf32> to vector<2x21x21xf32>
    %135 = vector.broadcast %132 : f32 to vector<2x21x21xf32>
    %136 = arith.mulf %134, %135 : vector<2x21x21xf32>
    %137 = arith.addf %131, %136 : vector<2x21x21xf32>
    %c9_108 = arith.constant 9 : index
    %138 = memref.load %arg1[%c9_108] : memref<220xf32, #tpu.memory_space<smem>>
    %c9_109 = arith.constant 9 : index
    %c0_110 = arith.constant 0 : index
    %c0_111 = arith.constant 0 : index
    %c0_112 = arith.constant 0 : index
    %139 = vector.load %arg3[%c9_109, %c0_110, %c0_111, %c0_112] : memref<20x2x21x21xf32, #tpu.memory_space<vmem>>, vector<1x2x21x21xf32>
    %140 = vector.shape_cast %139 : vector<1x2x21x21xf32> to vector<2x21x21xf32>
    %141 = vector.broadcast %138 : f32 to vector<2x21x21xf32>
    %142 = arith.mulf %140, %141 : vector<2x21x21xf32>
    %143 = arith.addf %137, %142 : vector<2x21x21xf32>
    %c10_113 = arith.constant 10 : index
    %144 = memref.load %arg1[%c10_113] : memref<220xf32, #tpu.memory_space<smem>>
    %c10_114 = arith.constant 10 : index
    %c0_115 = arith.constant 0 : index
    %c0_116 = arith.constant 0 : index
    %c0_117 = arith.constant 0 : index
    %145 = vector.load %arg3[%c10_114, %c0_115, %c0_116, %c0_117] : memref<20x2x21x21xf32, #tpu.memory_space<vmem>>, vector<1x2x21x21xf32>
    %146 = vector.shape_cast %145 : vector<1x2x21x21xf32> to vector<2x21x21xf32>
    %147 = vector.broadcast %144 : f32 to vector<2x21x21xf32>
    %148 = arith.mulf %146, %147 : vector<2x21x21xf32>
    %149 = arith.addf %143, %148 : vector<2x21x21xf32>
    %c11_118 = arith.constant 11 : index
    %150 = memref.load %arg1[%c11_118] : memref<220xf32, #tpu.memory_space<smem>>
    %c11_119 = arith.constant 11 : index
    %c0_120 = arith.constant 0 : index
    %c0_121 = arith.constant 0 : index
    %c0_122 = arith.constant 0 : index
    %151 = vector.load %arg3[%c11_119, %c0_120, %c0_121, %c0_122] : memref<20x2x21x21xf32, #tpu.memory_space<vmem>>, vector<1x2x21x21xf32>
    %152 = vector.shape_cast %151 : vector<1x2x21x21xf32> to vector<2x21x21xf32>
    %153 = vector.broadcast %150 : f32 to vector<2x21x21xf32>
    %154 = arith.mulf %152, %153 : vector<2x21x21xf32>
    %155 = arith.addf %149, %154 : vector<2x21x21xf32>
    %c12_123 = arith.constant 12 : index
    %156 = memref.load %arg1[%c12_123] : memref<220xf32, #tpu.memory_space<smem>>
    %c12_124 = arith.constant 12 : index
    %c0_125 = arith.constant 0 : index
    %c0_126 = arith.constant 0 : index
    %c0_127 = arith.constant 0 : index
    %157 = vector.load %arg3[%c12_124, %c0_125, %c0_126, %c0_127] : memref<20x2x21x21xf32, #tpu.memory_space<vmem>>, vector<1x2x21x21xf32>
    %158 = vector.shape_cast %157 : vector<1x2x21x21xf32> to vector<2x21x21xf32>
    %159 = vector.broadcast %156 : f32 to vector<2x21x21xf32>
    %160 = arith.mulf %158, %159 : vector<2x21x21xf32>
    %161 = arith.addf %155, %160 : vector<2x21x21xf32>
    %c13_128 = arith.constant 13 : index
    %162 = memref.load %arg1[%c13_128] : memref<220xf32, #tpu.memory_space<smem>>
    %c13_129 = arith.constant 13 : index
    %c0_130 = arith.constant 0 : index
    %c0_131 = arith.constant 0 : index
    %c0_132 = arith.constant 0 : index
    %163 = vector.load %arg3[%c13_129, %c0_130, %c0_131, %c0_132] : memref<20x2x21x21xf32, #tpu.memory_space<vmem>>, vector<1x2x21x21xf32>
    %164 = vector.shape_cast %163 : vector<1x2x21x21xf32> to vector<2x21x21xf32>
    %165 = vector.broadcast %162 : f32 to vector<2x21x21xf32>
    %166 = arith.mulf %164, %165 : vector<2x21x21xf32>
    %167 = arith.addf %161, %166 : vector<2x21x21xf32>
    %c14_133 = arith.constant 14 : index
    %168 = memref.load %arg1[%c14_133] : memref<220xf32, #tpu.memory_space<smem>>
    %c14_134 = arith.constant 14 : index
    %c0_135 = arith.constant 0 : index
    %c0_136 = arith.constant 0 : index
    %c0_137 = arith.constant 0 : index
    %169 = vector.load %arg3[%c14_134, %c0_135, %c0_136, %c0_137] : memref<20x2x21x21xf32, #tpu.memory_space<vmem>>, vector<1x2x21x21xf32>
    %170 = vector.shape_cast %169 : vector<1x2x21x21xf32> to vector<2x21x21xf32>
    %171 = vector.broadcast %168 : f32 to vector<2x21x21xf32>
    %172 = arith.mulf %170, %171 : vector<2x21x21xf32>
    %173 = arith.addf %167, %172 : vector<2x21x21xf32>
    %c15_138 = arith.constant 15 : index
    %174 = memref.load %arg1[%c15_138] : memref<220xf32, #tpu.memory_space<smem>>
    %c15_139 = arith.constant 15 : index
    %c0_140 = arith.constant 0 : index
    %c0_141 = arith.constant 0 : index
    %c0_142 = arith.constant 0 : index
    %175 = vector.load %arg3[%c15_139, %c0_140, %c0_141, %c0_142] : memref<20x2x21x21xf32, #tpu.memory_space<vmem>>, vector<1x2x21x21xf32>
    %176 = vector.shape_cast %175 : vector<1x2x21x21xf32> to vector<2x21x21xf32>
    %177 = vector.broadcast %174 : f32 to vector<2x21x21xf32>
    %178 = arith.mulf %176, %177 : vector<2x21x21xf32>
    %179 = arith.addf %173, %178 : vector<2x21x21xf32>
    %c16_143 = arith.constant 16 : index
    %180 = memref.load %arg1[%c16_143] : memref<220xf32, #tpu.memory_space<smem>>
    %c16_144 = arith.constant 16 : index
    %c0_145 = arith.constant 0 : index
    %c0_146 = arith.constant 0 : index
    %c0_147 = arith.constant 0 : index
    %181 = vector.load %arg3[%c16_144, %c0_145, %c0_146, %c0_147] : memref<20x2x21x21xf32, #tpu.memory_space<vmem>>, vector<1x2x21x21xf32>
    %182 = vector.shape_cast %181 : vector<1x2x21x21xf32> to vector<2x21x21xf32>
    %183 = vector.broadcast %180 : f32 to vector<2x21x21xf32>
    %184 = arith.mulf %182, %183 : vector<2x21x21xf32>
    %185 = arith.addf %179, %184 : vector<2x21x21xf32>
    %c17_148 = arith.constant 17 : index
    %186 = memref.load %arg1[%c17_148] : memref<220xf32, #tpu.memory_space<smem>>
    %c17_149 = arith.constant 17 : index
    %c0_150 = arith.constant 0 : index
    %c0_151 = arith.constant 0 : index
    %c0_152 = arith.constant 0 : index
    %187 = vector.load %arg3[%c17_149, %c0_150, %c0_151, %c0_152] : memref<20x2x21x21xf32, #tpu.memory_space<vmem>>, vector<1x2x21x21xf32>
    %188 = vector.shape_cast %187 : vector<1x2x21x21xf32> to vector<2x21x21xf32>
    %189 = vector.broadcast %186 : f32 to vector<2x21x21xf32>
    %190 = arith.mulf %188, %189 : vector<2x21x21xf32>
    %191 = arith.addf %185, %190 : vector<2x21x21xf32>
    %c18_153 = arith.constant 18 : index
    %192 = memref.load %arg1[%c18_153] : memref<220xf32, #tpu.memory_space<smem>>
    %c18_154 = arith.constant 18 : index
    %c0_155 = arith.constant 0 : index
    %c0_156 = arith.constant 0 : index
    %c0_157 = arith.constant 0 : index
    %193 = vector.load %arg3[%c18_154, %c0_155, %c0_156, %c0_157] : memref<20x2x21x21xf32, #tpu.memory_space<vmem>>, vector<1x2x21x21xf32>
    %194 = vector.shape_cast %193 : vector<1x2x21x21xf32> to vector<2x21x21xf32>
    %195 = vector.broadcast %192 : f32 to vector<2x21x21xf32>
    %196 = arith.mulf %194, %195 : vector<2x21x21xf32>
    %197 = arith.addf %191, %196 : vector<2x21x21xf32>
    %c19_158 = arith.constant 19 : index
    %198 = memref.load %arg1[%c19_158] : memref<220xf32, #tpu.memory_space<smem>>
    %c19_159 = arith.constant 19 : index
    %c0_160 = arith.constant 0 : index
    %c0_161 = arith.constant 0 : index
    %c0_162 = arith.constant 0 : index
    %199 = vector.load %arg3[%c19_159, %c0_160, %c0_161, %c0_162] : memref<20x2x21x21xf32, #tpu.memory_space<vmem>>, vector<1x2x21x21xf32>
    %200 = vector.shape_cast %199 : vector<1x2x21x21xf32> to vector<2x21x21xf32>
    %201 = vector.broadcast %198 : f32 to vector<2x21x21xf32>
    %202 = arith.mulf %200, %201 : vector<2x21x21xf32>
    %203 = arith.addf %197, %202 : vector<2x21x21xf32>
    %cst = arith.constant 0.000000e+00 : f32
    %204 = vector.broadcast %cst : f32 to vector<2x21x21xf32>
    %205 = arith.cmpf ogt, %203, %204 : vector<2x21x21xf32>
    %cst_163 = arith.constant -1.000000e-01 : f32
    %206 = vector.broadcast %cst_163 : f32 to vector<2x21x21xf32>
    %207 = arith.mulf %203, %206 : vector<2x21x21xf32>
    %208 = arith.select %205, %203, %207 : vector<2x21x21xi1>, vector<2x21x21xf32>
    %c0_164 = arith.constant 0 : index
    %c0_165 = arith.constant 0 : index
    %c0_166 = arith.constant 0 : index
    %c0_167 = arith.constant 0 : index
    %209 = vector.load %arg2[%c0_164, %c0_165, %c0_166, %c0_167] : memref<2x11x21x21xf32, #tpu.memory_space<vmem>>, vector<2x1x21x21xf32>
    %210 = vector.shape_cast %209 : vector<2x1x21x21xf32> to vector<2x21x21xf32>
    %211 = vector.shape_cast %208 : vector<2x21x21xf32> to vector<2x1x21x21xf32>
    tpu.vector_store %arg2[%c0_164, %c0_165, %c0_166, %c0_167], %211 {strides = array<i32>} : memref<2x11x21x21xf32, #tpu.memory_space<vmem>>, vector<2x1x21x21xf32>,
    %c20 = arith.constant 20 : index
    %212 = memref.load %arg1[%c20] : memref<220xf32, #tpu.memory_space<smem>>
    %c0_168 = arith.constant 0 : index
    %c0_169 = arith.constant 0 : index
    %c0_170 = arith.constant 0 : index
    %c0_171 = arith.constant 0 : index
    %213 = vector.load %arg3[%c0_168, %c0_169, %c0_170, %c0_171] : memref<20x2x21x21xf32, #tpu.memory_space<vmem>>, vector<1x2x21x21xf32>
    %214 = vector.shape_cast %213 : vector<1x2x21x21xf32> to vector<2x21x21xf32>
    %215 = vector.broadcast %212 : f32 to vector<2x21x21xf32>
    %216 = arith.mulf %214, %215 : vector<2x21x21xf32>
    %c21 = arith.constant 21 : index
    %217 = memref.load %arg1[%c21] : memref<220xf32, #tpu.memory_space<smem>>
    %c1_172 = arith.constant 1 : index
    %c0_173 = arith.constant 0 : index
    %c0_174 = arith.constant 0 : index
    %c0_175 = arith.constant 0 : index
    %218 = vector.load %arg3[%c1_172, %c0_173, %c0_174, %c0_175] : memref<20x2x21x21xf32, #tpu.memory_space<vmem>>, vector<1x2x21x21xf32>
    %219 = vector.shape_cast %218 : vector<1x2x21x21xf32> to vector<2x21x21xf32>
    %220 = vector.broadcast %217 : f32 to vector<2x21x21xf32>
    %221 = arith.mulf %219, %220 : vector<2x21x21xf32>
    %222 = arith.addf %216, %221 : vector<2x21x21xf32>
    %c22 = arith.constant 22 : index
    %223 = memref.load %arg1[%c22] : memref<220xf32, #tpu.memory_space<smem>>
    %c2_176 = arith.constant 2 : index
    %c0_177 = arith.constant 0 : index
    %c0_178 = arith.constant 0 : index
    %c0_179 = arith.constant 0 : index
    %224 = vector.load %arg3[%c2_176, %c0_177, %c0_178, %c0_179] : memref<20x2x21x21xf32, #tpu.memory_space<vmem>>, vector<1x2x21x21xf32>
    %225 = vector.shape_cast %224 : vector<1x2x21x21xf32> to vector<2x21x21xf32>
    %226 = vector.broadcast %223 : f32 to vector<2x21x21xf32>
    %227 = arith.mulf %225, %226 : vector<2x21x21xf32>
    %228 = arith.addf %222, %227 : vector<2x21x21xf32>
    %c23 = arith.constant 23 : index
    %229 = memref.load %arg1[%c23] : memref<220xf32, #tpu.memory_space<smem>>
    %c3_180 = arith.constant 3 : index
    %c0_181 = arith.constant 0 : index
    %c0_182 = arith.constant 0 : index
    %c0_183 = arith.constant 0 : index
    %230 = vector.load %arg3[%c3_180, %c0_181, %c0_182, %c0_183] : memref<20x2x21x21xf32, #tpu.memory_space<vmem>>, vector<1x2x21x21xf32>
    %231 = vector.shape_cast %230 : vector<1x2x21x21xf32> to vector<2x21x21xf32>
    %232 = vector.broadcast %229 : f32 to vector<2x21x21xf32>
    %233 = arith.mulf %231, %232 : vector<2x21x21xf32>
    %234 = arith.addf %228, %233 : vector<2x21x21xf32>
    %c24 = arith.constant 24 : index
    %235 = memref.load %arg1[%c24] : memref<220xf32, #tpu.memory_space<smem>>
    %c4_184 = arith.constant 4 : index
    %c0_185 = arith.constant 0 : index
    %c0_186 = arith.constant 0 : index
    %c0_187 = arith.constant 0 : index
    %236 = vector.load %arg3[%c4_184, %c0_185, %c0_186, %c0_187] : memref<20x2x21x21xf32, #tpu.memory_space<vmem>>, vector<1x2x21x21xf32>
    %237 = vector.shape_cast %236 : vector<1x2x21x21xf32> to vector<2x21x21xf32>
    %238 = vector.broadcast %235 : f32 to vector<2x21x21xf32>
    %239 = arith.mulf %237, %238 : vector<2x21x21xf32>
    %240 = arith.addf %234, %239 : vector<2x21x21xf32>
    %c25 = arith.constant 25 : index
    %241 = memref.load %arg1[%c25] : memref<220xf32, #tpu.memory_space<smem>>
    %c5_188 = arith.constant 5 : index
    %c0_189 = arith.constant 0 : index
    %c0_190 = arith.constant 0 : index
    %c0_191 = arith.constant 0 : index
    %242 = vector.load %arg3[%c5_188, %c0_189, %c0_190, %c0_191] : memref<20x2x21x21xf32, #tpu.memory_space<vmem>>, vector<1x2x21x21xf32>
    %243 = vector.shape_cast %242 : vector<1x2x21x21xf32> to vector<2x21x21xf32>
    %244 = vector.broadcast %241 : f32 to vector<2x21x21xf32>
    %245 = arith.mulf %243, %244 : vector<2x21x21xf32>
    %246 = arith.addf %240, %245 : vector<2x21x21xf32>
    %c26 = arith.constant 26 : index
    %247 = memref.load %arg1[%c26] : memref<220xf32, #tpu.memory_space<smem>>
    %c6_192 = arith.constant 6 : index
    %c0_193 = arith.constant 0 : index
    %c0_194 = arith.constant 0 : index
    %c0_195 = arith.constant 0 : index
    %248 = vector.load %arg3[%c6_192, %c0_193, %c0_194, %c0_195] : memref<20x2x21x21xf32, #tpu.memory_space<vmem>>, vector<1x2x21x21xf32>
    %249 = vector.shape_cast %248 : vector<1x2x21x21xf32> to vector<2x21x21xf32>
    %250 = vector.broadcast %247 : f32 to vector<2x21x21xf32>
    %251 = arith.mulf %249, %250 : vector<2x21x21xf32>
    %252 = arith.addf %246, %251 : vector<2x21x21xf32>
    %c27 = arith.constant 27 : index
    %253 = memref.load %arg1[%c27] : memref<220xf32, #tpu.memory_space<smem>>
    %c7_196 = arith.constant 7 : index
    %c0_197 = arith.constant 0 : index
    %c0_198 = arith.constant 0 : index
    %c0_199 = arith.constant 0 : index
    %254 = vector.load %arg3[%c7_196, %c0_197, %c0_198, %c0_199] : memref<20x2x21x21xf32, #tpu.memory_space<vmem>>, vector<1x2x21x21xf32>
    %255 = vector.shape_cast %254 : vector<1x2x21x21xf32> to vector<2x21x21xf32>
    %256 = vector.broadcast %253 : f32 to vector<2x21x21xf32>
    %257 = arith.mulf %255, %256 : vector<2x21x21xf32>
    %258 = arith.addf %252, %257 : vector<2x21x21xf32>
    %c28 = arith.constant 28 : index
    %259 = memref.load %arg1[%c28] : memref<220xf32, #tpu.memory_space<smem>>
    %c8_200 = arith.constant 8 : index
    %c0_201 = arith.constant 0 : index
    %c0_202 = arith.constant 0 : index
    %c0_203 = arith.constant 0 : index
    %260 = vector.load %arg3[%c8_200, %c0_201, %c0_202, %c0_203] : memref<20x2x21x21xf32, #tpu.memory_space<vmem>>, vector<1x2x21x21xf32>
    %261 = vector.shape_cast %260 : vector<1x2x21x21xf32> to vector<2x21x21xf32>
    %262 = vector.broadcast %259 : f32 to vector<2x21x21xf32>
    %263 = arith.mulf %261, %262 : vector<2x21x21xf32>
    %264 = arith.addf %258, %263 : vector<2x21x21xf32>
    %c29 = arith.constant 29 : index
    %265 = memref.load %arg1[%c29] : memref<220xf32, #tpu.memory_space<smem>>
    %c9_204 = arith.constant 9 : index
    %c0_205 = arith.constant 0 : index
    %c0_206 = arith.constant 0 : index
    %c0_207 = arith.constant 0 : index
    %266 = vector.load %arg3[%c9_204, %c0_205, %c0_206, %c0_207] : memref<20x2x21x21xf32, #tpu.memory_space<vmem>>, vector<1x2x21x21xf32>
    %267 = vector.shape_cast %266 : vector<1x2x21x21xf32> to vector<2x21x21xf32>
    %268 = vector.broadcast %265 : f32 to vector<2x21x21xf32>
    %269 = arith.mulf %267, %268 : vector<2x21x21xf32>
    %270 = arith.addf %264, %269 : vector<2x21x21xf32>
    %c30 = arith.constant 30 : index
    %271 = memref.load %arg1[%c30] : memref<220xf32, #tpu.memory_space<smem>>
    %c10_208 = arith.constant 10 : index
    %c0_209 = arith.constant 0 : index
    %c0_210 = arith.constant 0 : index
    %c0_211 = arith.constant 0 : index
    %272 = vector.load %arg3[%c10_208, %c0_209, %c0_210, %c0_211] : memref<20x2x21x21xf32, #tpu.memory_space<vmem>>, vector<1x2x21x21xf32>
    %273 = vector.shape_cast %272 : vector<1x2x21x21xf32> to vector<2x21x21xf32>
    %274 = vector.broadcast %271 : f32 to vector<2x21x21xf32>
    %275 = arith.mulf %273, %274 : vector<2x21x21xf32>
    %276 = arith.addf %270, %275 : vector<2x21x21xf32>
    %c31 = arith.constant 31 : index
    %277 = memref.load %arg1[%c31] : memref<220xf32, #tpu.memory_space<smem>>
    %c11_212 = arith.constant 11 : index
    %c0_213 = arith.constant 0 : index
    %c0_214 = arith.constant 0 : index
    %c0_215 = arith.constant 0 : index
    %278 = vector.load %arg3[%c11_212, %c0_213, %c0_214, %c0_215] : memref<20x2x21x21xf32, #tpu.memory_space<vmem>>, vector<1x2x21x21xf32>
    %279 = vector.shape_cast %278 : vector<1x2x21x21xf32> to vector<2x21x21xf32>
    %280 = vector.broadcast %277 : f32 to vector<2x21x21xf32>
    %281 = arith.mulf %279, %280 : vector<2x21x21xf32>
    %282 = arith.addf %276, %281 : vector<2x21x21xf32>
    %c32 = arith.constant 32 : index
    %283 = memref.load %arg1[%c32] : memref<220xf32, #tpu.memory_space<smem>>
    %c12_216 = arith.constant 12 : index
    %c0_217 = arith.constant 0 : index
    %c0_218 = arith.constant 0 : index
    %c0_219 = arith.constant 0 : index
    %284 = vector.load %arg3[%c12_216, %c0_217, %c0_218, %c0_219] : memref<20x2x21x21xf32, #tpu.memory_space<vmem>>, vector<1x2x21x21xf32>
    %285 = vector.shape_cast %284 : vector<1x2x21x21xf32> to vector<2x21x21xf32>
    %286 = vector.broadcast %283 : f32 to vector<2x21x21xf32>
    %287 = arith.mulf %285, %286 : vector<2x21x21xf32>
    %288 = arith.addf %282, %287 : vector<2x21x21xf32>
    %c33 = arith.constant 33 : index
    %289 = memref.load %arg1[%c33] : memref<220xf32, #tpu.memory_space<smem>>
    %c13_220 = arith.constant 13 : index
    %c0_221 = arith.constant 0 : index
    %c0_222 = arith.constant 0 : index
    %c0_223 = arith.constant 0 : index
    %290 = vector.load %arg3[%c13_220, %c0_221, %c0_222, %c0_223] : memref<20x2x21x21xf32, #tpu.memory_space<vmem>>, vector<1x2x21x21xf32>
    %291 = vector.shape_cast %290 : vector<1x2x21x21xf32> to vector<2x21x21xf32>
    %292 = vector.broadcast %289 : f32 to vector<2x21x21xf32>
    %293 = arith.mulf %291, %292 : vector<2x21x21xf32>
    %294 = arith.addf %288, %293 : vector<2x21x21xf32>
    %c34 = arith.constant 34 : index
    %295 = memref.load %arg1[%c34] : memref<220xf32, #tpu.memory_space<smem>>
    %c14_224 = arith.constant 14 : index
    %c0_225 = arith.constant 0 : index
    %c0_226 = arith.constant 0 : index
    %c0_227 = arith.constant 0 : index
    %296 = vector.load %arg3[%c14_224, %c0_225, %c0_226, %c0_227] : memref<20x2x21x21xf32, #tpu.memory_space<vmem>>, vector<1x2x21x21xf32>
    %297 = vector.shape_cast %296 : vector<1x2x21x21xf32> to vector<2x21x21xf32>
    %298 = vector.broadcast %295 : f32 to vector<2x21x21xf32>
    %299 = arith.mulf %297, %298 : vector<2x21x21xf32>
    %300 = arith.addf %294, %299 : vector<2x21x21xf32>
    %c35 = arith.constant 35 : index
    %301 = memref.load %arg1[%c35] : memref<220xf32, #tpu.memory_space<smem>>
    %c15_228 = arith.constant 15 : index
    %c0_229 = arith.constant 0 : index
    %c0_230 = arith.constant 0 : index
    %c0_231 = arith.constant 0 : index
    %302 = vector.load %arg3[%c15_228, %c0_229, %c0_230, %c0_231] : memref<20x2x21x21xf32, #tpu.memory_space<vmem>>, vector<1x2x21x21xf32>
    %303 = vector.shape_cast %302 : vector<1x2x21x21xf32> to vector<2x21x21xf32>
    %304 = vector.broadcast %301 : f32 to vector<2x21x21xf32>
    %305 = arith.mulf %303, %304 : vector<2x21x21xf32>
    %306 = arith.addf %300, %305 : vector<2x21x21xf32>
    %c36 = arith.constant 36 : index
    %307 = memref.load %arg1[%c36] : memref<220xf32, #tpu.memory_space<smem>>
    %c16_232 = arith.constant 16 : index
    %c0_233 = arith.constant 0 : index
    %c0_234 = arith.constant 0 : index
    %c0_235 = arith.constant 0 : index
    %308 = vector.load %arg3[%c16_232, %c0_233, %c0_234, %c0_235] : memref<20x2x21x21xf32, #tpu.memory_space<vmem>>, vector<1x2x21x21xf32>
    %309 = vector.shape_cast %308 : vector<1x2x21x21xf32> to vector<2x21x21xf32>
    %310 = vector.broadcast %307 : f32 to vector<2x21x21xf32>
    %311 = arith.mulf %309, %310 : vector<2x21x21xf32>
    %312 = arith.addf %306, %311 : vector<2x21x21xf32>
    %c37 = arith.constant 37 : index
    %313 = memref.load %arg1[%c37] : memref<220xf32, #tpu.memory_space<smem>>
    %c17_236 = arith.constant 17 : index
    %c0_237 = arith.constant 0 : index
    %c0_238 = arith.constant 0 : index
    %c0_239 = arith.constant 0 : index
    %314 = vector.load %arg3[%c17_236, %c0_237, %c0_238, %c0_239] : memref<20x2x21x21xf32, #tpu.memory_space<vmem>>, vector<1x2x21x21xf32>
    %315 = vector.shape_cast %314 : vector<1x2x21x21xf32> to vector<2x21x21xf32>
    %316 = vector.broadcast %313 : f32 to vector<2x21x21xf32>
    %317 = arith.mulf %315, %316 : vector<2x21x21xf32>
    %318 = arith.addf %312, %317 : vector<2x21x21xf32>
    %c38 = arith.constant 38 : index
    %319 = memref.load %arg1[%c38] : memref<220xf32, #tpu.memory_space<smem>>
    %c18_240 = arith.constant 18 : index
    %c0_241 = arith.constant 0 : index
    %c0_242 = arith.constant 0 : index
    %c0_243 = arith.constant 0 : index
    %320 = vector.load %arg3[%c18_240, %c0_241, %c0_242, %c0_243] : memref<20x2x21x21xf32, #tpu.memory_space<vmem>>, vector<1x2x21x21xf32>
    %321 = vector.shape_cast %320 : vector<1x2x21x21xf32> to vector<2x21x21xf32>
    %322 = vector.broadcast %319 : f32 to vector<2x21x21xf32>
    %323 = arith.mulf %321, %322 : vector<2x21x21xf32>
    %324 = arith.addf %318, %323 : vector<2x21x21xf32>
    %c39 = arith.constant 39 : index
    %325 = memref.load %arg1[%c39] : memref<220xf32, #tpu.memory_space<smem>>
    %c19_244 = arith.constant 19 : index
    %c0_245 = arith.constant 0 : index
    %c0_246 = arith.constant 0 : index
    %c0_247 = arith.constant 0 : index
    %326 = vector.load %arg3[%c19_244, %c0_245, %c0_246, %c0_247] : memref<20x2x21x21xf32, #tpu.memory_space<vmem>>, vector<1x2x21x21xf32>
    %327 = vector.shape_cast %326 : vector<1x2x21x21xf32> to vector<2x21x21xf32>
    %328 = vector.broadcast %325 : f32 to vector<2x21x21xf32>
    %329 = arith.mulf %327, %328 : vector<2x21x21xf32>
    %330 = arith.addf %324, %329 : vector<2x21x21xf32>
    %cst_248 = arith.constant 0.000000e+00 : f32
    %331 = vector.broadcast %cst_248 : f32 to vector<2x21x21xf32>
    %332 = arith.cmpf ogt, %330, %331 : vector<2x21x21xf32>
    %cst_249 = arith.constant -1.000000e-01 : f32
    %333 = vector.broadcast %cst_249 : f32 to vector<2x21x21xf32>
    %334 = arith.mulf %330, %333 : vector<2x21x21xf32>
    %335 = arith.select %332, %330, %334 : vector<2x21x21xi1>, vector<2x21x21xf32>
    %c0_250 = arith.constant 0 : index
    %c1_251 = arith.constant 1 : index
    %c0_252 = arith.constant 0 : index
    %c0_253 = arith.constant 0 : index
    %336 = vector.load %arg2[%c0_250, %c1_251, %c0_252, %c0_253] : memref<2x11x21x21xf32, #tpu.memory_space<vmem>>, vector<2x1x21x21xf32>
    %337 = vector.shape_cast %336 : vector<2x1x21x21xf32> to vector<2x21x21xf32>
    %338 = vector.shape_cast %335 : vector<2x21x21xf32> to vector<2x1x21x21xf32>
    tpu.vector_store %arg2[%c0_250, %c1_251, %c0_252, %c0_253], %338 {strides = array<i32>} : memref<2x11x21x21xf32, #tpu.memory_space<vmem>>, vector<2x1x21x21xf32>,
    %c40 = arith.constant 40 : index
    %339 = memref.load %arg1[%c40] : memref<220xf32, #tpu.memory_space<smem>>
    %c0_254 = arith.constant 0 : index
    %c0_255 = arith.constant 0 : index
    %c0_256 = arith.constant 0 : index
    %c0_257 = arith.constant 0 : index
    %340 = vector.load %arg3[%c0_254, %c0_255, %c0_256, %c0_257] : memref<20x2x21x21xf32, #tpu.memory_space<vmem>>, vector<1x2x21x21xf32>
    %341 = vector.shape_cast %340 : vector<1x2x21x21xf32> to vector<2x21x21xf32>
    %342 = vector.broadcast %339 : f32 to vector<2x21x21xf32>
    %343 = arith.mulf %341, %342 : vector<2x21x21xf32>
    %c41 = arith.constant 41 : index
    %344 = memref.load %arg1[%c41] : memref<220xf32, #tpu.memory_space<smem>>
    %c1_258 = arith.constant 1 : index
    %c0_259 = arith.constant 0 : index
    %c0_260 = arith.constant 0 : index
    %c0_261 = arith.constant 0 : index
    %345 = vector.load %arg3[%c1_258, %c0_259, %c0_260, %c0_261] : memref<20x2x21x21xf32, #tpu.memory_space<vmem>>, vector<1x2x21x21xf32>
    %346 = vector.shape_cast %345 : vector<1x2x21x21xf32> to vector<2x21x21xf32>
    %347 = vector.broadcast %344 : f32 to vector<2x21x21xf32>
    %348 = arith.mulf %346, %347 : vector<2x21x21xf32>
    %349 = arith.addf %343, %348 : vector<2x21x21xf32>
    %c42 = arith.constant 42 : index
    %350 = memref.load %arg1[%c42] : memref<220xf32, #tpu.memory_space<smem>>
    %c2_262 = arith.constant 2 : index
    %c0_263 = arith.constant 0 : index
    %c0_264 = arith.constant 0 : index
    %c0_265 = arith.constant 0 : index
    %351 = vector.load %arg3[%c2_262, %c0_263, %c0_264, %c0_265] : memref<20x2x21x21xf32, #tpu.memory_space<vmem>>, vector<1x2x21x21xf32>
    %352 = vector.shape_cast %351 : vector<1x2x21x21xf32> to vector<2x21x21xf32>
    %353 = vector.broadcast %350 : f32 to vector<2x21x21xf32>
    %354 = arith.mulf %352, %353 : vector<2x21x21xf32>
    %355 = arith.addf %349, %354 : vector<2x21x21xf32>
    %c43 = arith.constant 43 : index
    %356 = memref.load %arg1[%c43] : memref<220xf32, #tpu.memory_space<smem>>
    %c3_266 = arith.constant 3 : index
    %c0_267 = arith.constant 0 : index
    %c0_268 = arith.constant 0 : index
    %c0_269 = arith.constant 0 : index
    %357 = vector.load %arg3[%c3_266, %c0_267, %c0_268, %c0_269] : memref<20x2x21x21xf32, #tpu.memory_space<vmem>>, vector<1x2x21x21xf32>
    %358 = vector.shape_cast %357 : vector<1x2x21x21xf32> to vector<2x21x21xf32>
    %359 = vector.broadcast %356 : f32 to vector<2x21x21xf32>
    %360 = arith.mulf %358, %359 : vector<2x21x21xf32>
    %361 = arith.addf %355, %360 : vector<2x21x21xf32>
    %c44 = arith.constant 44 : index
    %362 = memref.load %arg1[%c44] : memref<220xf32, #tpu.memory_space<smem>>
    %c4_270 = arith.constant 4 : index
    %c0_271 = arith.constant 0 : index
    %c0_272 = arith.constant 0 : index
    %c0_273 = arith.constant 0 : index
    %363 = vector.load %arg3[%c4_270, %c0_271, %c0_272, %c0_273] : memref<20x2x21x21xf32, #tpu.memory_space<vmem>>, vector<1x2x21x21xf32>
    %364 = vector.shape_cast %363 : vector<1x2x21x21xf32> to vector<2x21x21xf32>
    %365 = vector.broadcast %362 : f32 to vector<2x21x21xf32>
    %366 = arith.mulf %364, %365 : vector<2x21x21xf32>
    %367 = arith.addf %361, %366 : vector<2x21x21xf32>
    %c45 = arith.constant 45 : index
    %368 = memref.load %arg1[%c45] : memref<220xf32, #tpu.memory_space<smem>>
    %c5_274 = arith.constant 5 : index
    %c0_275 = arith.constant 0 : index
    %c0_276 = arith.constant 0 : index
    %c0_277 = arith.constant 0 : index
    %369 = vector.load %arg3[%c5_274, %c0_275, %c0_276, %c0_277] : memref<20x2x21x21xf32, #tpu.memory_space<vmem>>, vector<1x2x21x21xf32>
    %370 = vector.shape_cast %369 : vector<1x2x21x21xf32> to vector<2x21x21xf32>
    %371 = vector.broadcast %368 : f32 to vector<2x21x21xf32>
    %372 = arith.mulf %370, %371 : vector<2x21x21xf32>
    %373 = arith.addf %367, %372 : vector<2x21x21xf32>
    %c46 = arith.constant 46 : index
    %374 = memref.load %arg1[%c46] : memref<220xf32, #tpu.memory_space<smem>>
    %c6_278 = arith.constant 6 : index
    %c0_279 = arith.constant 0 : index
    %c0_280 = arith.constant 0 : index
    %c0_281 = arith.constant 0 : index
    %375 = vector.load %arg3[%c6_278, %c0_279, %c0_280, %c0_281] : memref<20x2x21x21xf32, #tpu.memory_space<vmem>>, vector<1x2x21x21xf32>
    %376 = vector.shape_cast %375 : vector<1x2x21x21xf32> to vector<2x21x21xf32>
    %377 = vector.broadcast %374 : f32 to vector<2x21x21xf32>
    %378 = arith.mulf %376, %377 : vector<2x21x21xf32>
    %379 = arith.addf %373, %378 : vector<2x21x21xf32>
    %c47 = arith.constant 47 : index
    %380 = memref.load %arg1[%c47] : memref<220xf32, #tpu.memory_space<smem>>
    %c7_282 = arith.constant 7 : index
    %c0_283 = arith.constant 0 : index
    %c0_284 = arith.constant 0 : index
    %c0_285 = arith.constant 0 : index
    %381 = vector.load %arg3[%c7_282, %c0_283, %c0_284, %c0_285] : memref<20x2x21x21xf32, #tpu.memory_space<vmem>>, vector<1x2x21x21xf32>
    %382 = vector.shape_cast %381 : vector<1x2x21x21xf32> to vector<2x21x21xf32>
    %383 = vector.broadcast %380 : f32 to vector<2x21x21xf32>
    %384 = arith.mulf %382, %383 : vector<2x21x21xf32>
    %385 = arith.addf %379, %384 : vector<2x21x21xf32>
    %c48 = arith.constant 48 : index
    %386 = memref.load %arg1[%c48] : memref<220xf32, #tpu.memory_space<smem>>
    %c8_286 = arith.constant 8 : index
    %c0_287 = arith.constant 0 : index
    %c0_288 = arith.constant 0 : index
    %c0_289 = arith.constant 0 : index
    %387 = vector.load %arg3[%c8_286, %c0_287, %c0_288, %c0_289] : memref<20x2x21x21xf32, #tpu.memory_space<vmem>>, vector<1x2x21x21xf32>
    %388 = vector.shape_cast %387 : vector<1x2x21x21xf32> to vector<2x21x21xf32>
    %389 = vector.broadcast %386 : f32 to vector<2x21x21xf32>
    %390 = arith.mulf %388, %389 : vector<2x21x21xf32>
    %391 = arith.addf %385, %390 : vector<2x21x21xf32>
    %c49 = arith.constant 49 : index
    %392 = memref.load %arg1[%c49] : memref<220xf32, #tpu.memory_space<smem>>
    %c9_290 = arith.constant 9 : index
    %c0_291 = arith.constant 0 : index
    %c0_292 = arith.constant 0 : index
    %c0_293 = arith.constant 0 : index
    %393 = vector.load %arg3[%c9_290, %c0_291, %c0_292, %c0_293] : memref<20x2x21x21xf32, #tpu.memory_space<vmem>>, vector<1x2x21x21xf32>
    %394 = vector.shape_cast %393 : vector<1x2x21x21xf32> to vector<2x21x21xf32>
    %395 = vector.broadcast %392 : f32 to vector<2x21x21xf32>
    %396 = arith.mulf %394, %395 : vector<2x21x21xf32>
    %397 = arith.addf %391, %396 : vector<2x21x21xf32>
    %c50 = arith.constant 50 : index
    %398 = memref.load %arg1[%c50] : memref<220xf32, #tpu.memory_space<smem>>
    %c10_294 = arith.constant 10 : index
    %c0_295 = arith.constant 0 : index
    %c0_296 = arith.constant 0 : index
    %c0_297 = arith.constant 0 : index
    %399 = vector.load %arg3[%c10_294, %c0_295, %c0_296, %c0_297] : memref<20x2x21x21xf32, #tpu.memory_space<vmem>>, vector<1x2x21x21xf32>
    %400 = vector.shape_cast %399 : vector<1x2x21x21xf32> to vector<2x21x21xf32>
    %401 = vector.broadcast %398 : f32 to vector<2x21x21xf32>
    %402 = arith.mulf %400, %401 : vector<2x21x21xf32>
    %403 = arith.addf %397, %402 : vector<2x21x21xf32>
    %c51 = arith.constant 51 : index
    %404 = memref.load %arg1[%c51] : memref<220xf32, #tpu.memory_space<smem>>
    %c11_298 = arith.constant 11 : index
    %c0_299 = arith.constant 0 : index
    %c0_300 = arith.constant 0 : index
    %c0_301 = arith.constant 0 : index
    %405 = vector.load %arg3[%c11_298, %c0_299, %c0_300, %c0_301] : memref<20x2x21x21xf32, #tpu.memory_space<vmem>>, vector<1x2x21x21xf32>
    %406 = vector.shape_cast %405 : vector<1x2x21x21xf32> to vector<2x21x21xf32>
    %407 = vector.broadcast %404 : f32 to vector<2x21x21xf32>
    %408 = arith.mulf %406, %407 : vector<2x21x21xf32>
    %409 = arith.addf %403, %408 : vector<2x21x21xf32>
    %c52 = arith.constant 52 : index
    %410 = memref.load %arg1[%c52] : memref<220xf32, #tpu.memory_space<smem>>
    %c12_302 = arith.constant 12 : index
    %c0_303 = arith.constant 0 : index
    %c0_304 = arith.constant 0 : index
    %c0_305 = arith.constant 0 : index
    %411 = vector.load %arg3[%c12_302, %c0_303, %c0_304, %c0_305] : memref<20x2x21x21xf32, #tpu.memory_space<vmem>>, vector<1x2x21x21xf32>
    %412 = vector.shape_cast %411 : vector<1x2x21x21xf32> to vector<2x21x21xf32>
    %413 = vector.broadcast %410 : f32 to vector<2x21x21xf32>
    %414 = arith.mulf %412, %413 : vector<2x21x21xf32>
    %415 = arith.addf %409, %414 : vector<2x21x21xf32>
    %c53 = arith.constant 53 : index
    %416 = memref.load %arg1[%c53] : memref<220xf32, #tpu.memory_space<smem>>
    %c13_306 = arith.constant 13 : index
    %c0_307 = arith.constant 0 : index
    %c0_308 = arith.constant 0 : index
    %c0_309 = arith.constant 0 : index
    %417 = vector.load %arg3[%c13_306, %c0_307, %c0_308, %c0_309] : memref<20x2x21x21xf32, #tpu.memory_space<vmem>>, vector<1x2x21x21xf32>
    %418 = vector.shape_cast %417 : vector<1x2x21x21xf32> to vector<2x21x21xf32>
    %419 = vector.broadcast %416 : f32 to vector<2x21x21xf32>
    %420 = arith.mulf %418, %419 : vector<2x21x21xf32>
    %421 = arith.addf %415, %420 : vector<2x21x21xf32>
    %c54 = arith.constant 54 : index
    %422 = memref.load %arg1[%c54] : memref<220xf32, #tpu.memory_space<smem>>
    %c14_310 = arith.constant 14 : index
    %c0_311 = arith.constant 0 : index
    %c0_312 = arith.constant 0 : index
    %c0_313 = arith.constant 0 : index
    %423 = vector.load %arg3[%c14_310, %c0_311, %c0_312, %c0_313] : memref<20x2x21x21xf32, #tpu.memory_space<vmem>>, vector<1x2x21x21xf32>
    %424 = vector.shape_cast %423 : vector<1x2x21x21xf32> to vector<2x21x21xf32>
    %425 = vector.broadcast %422 : f32 to vector<2x21x21xf32>
    %426 = arith.mulf %424, %425 : vector<2x21x21xf32>
    %427 = arith.addf %421, %426 : vector<2x21x21xf32>
    %c55 = arith.constant 55 : index
    %428 = memref.load %arg1[%c55] : memref<220xf32, #tpu.memory_space<smem>>
    %c15_314 = arith.constant 15 : index
    %c0_315 = arith.constant 0 : index
    %c0_316 = arith.constant 0 : index
    %c0_317 = arith.constant 0 : index
    %429 = vector.load %arg3[%c15_314, %c0_315, %c0_316, %c0_317] : memref<20x2x21x21xf32, #tpu.memory_space<vmem>>, vector<1x2x21x21xf32>
    %430 = vector.shape_cast %429 : vector<1x2x21x21xf32> to vector<2x21x21xf32>
    %431 = vector.broadcast %428 : f32 to vector<2x21x21xf32>
    %432 = arith.mulf %430, %431 : vector<2x21x21xf32>
    %433 = arith.addf %427, %432 : vector<2x21x21xf32>
    %c56 = arith.constant 56 : index
    %434 = memref.load %arg1[%c56] : memref<220xf32, #tpu.memory_space<smem>>
    %c16_318 = arith.constant 16 : index
    %c0_319 = arith.constant 0 : index
    %c0_320 = arith.constant 0 : index
    %c0_321 = arith.constant 0 : index
    %435 = vector.load %arg3[%c16_318, %c0_319, %c0_320, %c0_321] : memref<20x2x21x21xf32, #tpu.memory_space<vmem>>, vector<1x2x21x21xf32>
    %436 = vector.shape_cast %435 : vector<1x2x21x21xf32> to vector<2x21x21xf32>
    %437 = vector.broadcast %434 : f32 to vector<2x21x21xf32>
    %438 = arith.mulf %436, %437 : vector<2x21x21xf32>
    %439 = arith.addf %433, %438 : vector<2x21x21xf32>
    %c57 = arith.constant 57 : index
    %440 = memref.load %arg1[%c57] : memref<220xf32, #tpu.memory_space<smem>>
    %c17_322 = arith.constant 17 : index
    %c0_323 = arith.constant 0 : index
    %c0_324 = arith.constant 0 : index
    %c0_325 = arith.constant 0 : index
    %441 = vector.load %arg3[%c17_322, %c0_323, %c0_324, %c0_325] : memref<20x2x21x21xf32, #tpu.memory_space<vmem>>, vector<1x2x21x21xf32>
    %442 = vector.shape_cast %441 : vector<1x2x21x21xf32> to vector<2x21x21xf32>
    %443 = vector.broadcast %440 : f32 to vector<2x21x21xf32>
    %444 = arith.mulf %442, %443 : vector<2x21x21xf32>
    %445 = arith.addf %439, %444 : vector<2x21x21xf32>
    %c58 = arith.constant 58 : index
    %446 = memref.load %arg1[%c58] : memref<220xf32, #tpu.memory_space<smem>>
    %c18_326 = arith.constant 18 : index
    %c0_327 = arith.constant 0 : index
    %c0_328 = arith.constant 0 : index
    %c0_329 = arith.constant 0 : index
    %447 = vector.load %arg3[%c18_326, %c0_327, %c0_328, %c0_329] : memref<20x2x21x21xf32, #tpu.memory_space<vmem>>, vector<1x2x21x21xf32>
    %448 = vector.shape_cast %447 : vector<1x2x21x21xf32> to vector<2x21x21xf32>
    %449 = vector.broadcast %446 : f32 to vector<2x21x21xf32>
    %450 = arith.mulf %448, %449 : vector<2x21x21xf32>
    %451 = arith.addf %445, %450 : vector<2x21x21xf32>
    %c59 = arith.constant 59 : index
    %452 = memref.load %arg1[%c59] : memref<220xf32, #tpu.memory_space<smem>>
    %c19_330 = arith.constant 19 : index
    %c0_331 = arith.constant 0 : index
    %c0_332 = arith.constant 0 : index
    %c0_333 = arith.constant 0 : index
    %453 = vector.load %arg3[%c19_330, %c0_331, %c0_332, %c0_333] : memref<20x2x21x21xf32, #tpu.memory_space<vmem>>, vector<1x2x21x21xf32>
    %454 = vector.shape_cast %453 : vector<1x2x21x21xf32> to vector<2x21x21xf32>
    %455 = vector.broadcast %452 : f32 to vector<2x21x21xf32>
    %456 = arith.mulf %454, %455 : vector<2x21x21xf32>
    %457 = arith.addf %451, %456 : vector<2x21x21xf32>
    %cst_334 = arith.constant 0.000000e+00 : f32
    %458 = vector.broadcast %cst_334 : f32 to vector<2x21x21xf32>
    %459 = arith.cmpf ogt, %457, %458 : vector<2x21x21xf32>
    %cst_335 = arith.constant -1.000000e-01 : f32
    %460 = vector.broadcast %cst_335 : f32 to vector<2x21x21xf32>
    %461 = arith.mulf %457, %460 : vector<2x21x21xf32>
    %462 = arith.select %459, %457, %461 : vector<2x21x21xi1>, vector<2x21x21xf32>
    %c0_336 = arith.constant 0 : index
    %c2_337 = arith.constant 2 : index
    %c0_338 = arith.constant 0 : index
    %c0_339 = arith.constant 0 : index
    %463 = vector.load %arg2[%c0_336, %c2_337, %c0_338, %c0_339] : memref<2x11x21x21xf32, #tpu.memory_space<vmem>>, vector<2x1x21x21xf32>
    %464 = vector.shape_cast %463 : vector<2x1x21x21xf32> to vector<2x21x21xf32>
    %465 = vector.shape_cast %462 : vector<2x21x21xf32> to vector<2x1x21x21xf32>
    tpu.vector_store %arg2[%c0_336, %c2_337, %c0_338, %c0_339], %465 {strides = array<i32>} : memref<2x11x21x21xf32, #tpu.memory_space<vmem>>, vector<2x1x21x21xf32>,
    %c60 = arith.constant 60 : index
    %466 = memref.load %arg1[%c60] : memref<220xf32, #tpu.memory_space<smem>>
    %c0_340 = arith.constant 0 : index
    %c0_341 = arith.constant 0 : index
    %c0_342 = arith.constant 0 : index
    %c0_343 = arith.constant 0 : index
    %467 = vector.load %arg3[%c0_340, %c0_341, %c0_342, %c0_343] : memref<20x2x21x21xf32, #tpu.memory_space<vmem>>, vector<1x2x21x21xf32>
    %468 = vector.shape_cast %467 : vector<1x2x21x21xf32> to vector<2x21x21xf32>
    %469 = vector.broadcast %466 : f32 to vector<2x21x21xf32>
    %470 = arith.mulf %468, %469 : vector<2x21x21xf32>
    %c61 = arith.constant 61 : index
    %471 = memref.load %arg1[%c61] : memref<220xf32, #tpu.memory_space<smem>>
    %c1_344 = arith.constant 1 : index
    %c0_345 = arith.constant 0 : index
    %c0_346 = arith.constant 0 : index
    %c0_347 = arith.constant 0 : index
    %472 = vector.load %arg3[%c1_344, %c0_345, %c0_346, %c0_347] : memref<20x2x21x21xf32, #tpu.memory_space<vmem>>, vector<1x2x21x21xf32>
    %473 = vector.shape_cast %472 : vector<1x2x21x21xf32> to vector<2x21x21xf32>
    %474 = vector.broadcast %471 : f32 to vector<2x21x21xf32>
    %475 = arith.mulf %473, %474 : vector<2x21x21xf32>
    %476 = arith.addf %470, %475 : vector<2x21x21xf32>
    %c62 = arith.constant 62 : index
    %477 = memref.load %arg1[%c62] : memref<220xf32, #tpu.memory_space<smem>>
    %c2_348 = arith.constant 2 : index
    %c0_349 = arith.constant 0 : index
    %c0_350 = arith.constant 0 : index
    %c0_351 = arith.constant 0 : index
    %478 = vector.load %arg3[%c2_348, %c0_349, %c0_350, %c0_351] : memref<20x2x21x21xf32, #tpu.memory_space<vmem>>, vector<1x2x21x21xf32>
    %479 = vector.shape_cast %478 : vector<1x2x21x21xf32> to vector<2x21x21xf32>
    %480 = vector.broadcast %477 : f32 to vector<2x21x21xf32>
    %481 = arith.mulf %479, %480 : vector<2x21x21xf32>
    %482 = arith.addf %476, %481 : vector<2x21x21xf32>
    %c63 = arith.constant 63 : index
    %483 = memref.load %arg1[%c63] : memref<220xf32, #tpu.memory_space<smem>>
    %c3_352 = arith.constant 3 : index
    %c0_353 = arith.constant 0 : index
    %c0_354 = arith.constant 0 : index
    %c0_355 = arith.constant 0 : index
    %484 = vector.load %arg3[%c3_352, %c0_353, %c0_354, %c0_355] : memref<20x2x21x21xf32, #tpu.memory_space<vmem>>, vector<1x2x21x21xf32>
    %485 = vector.shape_cast %484 : vector<1x2x21x21xf32> to vector<2x21x21xf32>
    %486 = vector.broadcast %483 : f32 to vector<2x21x21xf32>
    %487 = arith.mulf %485, %486 : vector<2x21x21xf32>
    %488 = arith.addf %482, %487 : vector<2x21x21xf32>
    %c64 = arith.constant 64 : index
    %489 = memref.load %arg1[%c64] : memref<220xf32, #tpu.memory_space<smem>>
    %c4_356 = arith.constant 4 : index
    %c0_357 = arith.constant 0 : index
    %c0_358 = arith.constant 0 : index
    %c0_359 = arith.constant 0 : index
    %490 = vector.load %arg3[%c4_356, %c0_357, %c0_358, %c0_359] : memref<20x2x21x21xf32, #tpu.memory_space<vmem>>, vector<1x2x21x21xf32>
    %491 = vector.shape_cast %490 : vector<1x2x21x21xf32> to vector<2x21x21xf32>
    %492 = vector.broadcast %489 : f32 to vector<2x21x21xf32>
    %493 = arith.mulf %491, %492 : vector<2x21x21xf32>
    %494 = arith.addf %488, %493 : vector<2x21x21xf32>
    %c65 = arith.constant 65 : index
    %495 = memref.load %arg1[%c65] : memref<220xf32, #tpu.memory_space<smem>>
    %c5_360 = arith.constant 5 : index
    %c0_361 = arith.constant 0 : index
    %c0_362 = arith.constant 0 : index
    %c0_363 = arith.constant 0 : index
    %496 = vector.load %arg3[%c5_360, %c0_361, %c0_362, %c0_363] : memref<20x2x21x21xf32, #tpu.memory_space<vmem>>, vector<1x2x21x21xf32>
    %497 = vector.shape_cast %496 : vector<1x2x21x21xf32> to vector<2x21x21xf32>
    %498 = vector.broadcast %495 : f32 to vector<2x21x21xf32>
    %499 = arith.mulf %497, %498 : vector<2x21x21xf32>
    %500 = arith.addf %494, %499 : vector<2x21x21xf32>
    %c66 = arith.constant 66 : index
    %501 = memref.load %arg1[%c66] : memref<220xf32, #tpu.memory_space<smem>>
    %c6_364 = arith.constant 6 : index
    %c0_365 = arith.constant 0 : index
    %c0_366 = arith.constant 0 : index
    %c0_367 = arith.constant 0 : index
    %502 = vector.load %arg3[%c6_364, %c0_365, %c0_366, %c0_367] : memref<20x2x21x21xf32, #tpu.memory_space<vmem>>, vector<1x2x21x21xf32>
    %503 = vector.shape_cast %502 : vector<1x2x21x21xf32> to vector<2x21x21xf32>
    %504 = vector.broadcast %501 : f32 to vector<2x21x21xf32>
    %505 = arith.mulf %503, %504 : vector<2x21x21xf32>
    %506 = arith.addf %500, %505 : vector<2x21x21xf32>
    %c67 = arith.constant 67 : index
    %507 = memref.load %arg1[%c67] : memref<220xf32, #tpu.memory_space<smem>>
    %c7_368 = arith.constant 7 : index
    %c0_369 = arith.constant 0 : index
    %c0_370 = arith.constant 0 : index
    %c0_371 = arith.constant 0 : index
    %508 = vector.load %arg3[%c7_368, %c0_369, %c0_370, %c0_371] : memref<20x2x21x21xf32, #tpu.memory_space<vmem>>, vector<1x2x21x21xf32>
    %509 = vector.shape_cast %508 : vector<1x2x21x21xf32> to vector<2x21x21xf32>
    %510 = vector.broadcast %507 : f32 to vector<2x21x21xf32>
    %511 = arith.mulf %509, %510 : vector<2x21x21xf32>
    %512 = arith.addf %506, %511 : vector<2x21x21xf32>
    %c68 = arith.constant 68 : index
    %513 = memref.load %arg1[%c68] : memref<220xf32, #tpu.memory_space<smem>>
    %c8_372 = arith.constant 8 : index
    %c0_373 = arith.constant 0 : index
    %c0_374 = arith.constant 0 : index
    %c0_375 = arith.constant 0 : index
    %514 = vector.load %arg3[%c8_372, %c0_373, %c0_374, %c0_375] : memref<20x2x21x21xf32, #tpu.memory_space<vmem>>, vector<1x2x21x21xf32>
    %515 = vector.shape_cast %514 : vector<1x2x21x21xf32> to vector<2x21x21xf32>
    %516 = vector.broadcast %513 : f32 to vector<2x21x21xf32>
    %517 = arith.mulf %515, %516 : vector<2x21x21xf32>
    %518 = arith.addf %512, %517 : vector<2x21x21xf32>
    %c69 = arith.constant 69 : index
    %519 = memref.load %arg1[%c69] : memref<220xf32, #tpu.memory_space<smem>>
    %c9_376 = arith.constant 9 : index
    %c0_377 = arith.constant 0 : index
    %c0_378 = arith.constant 0 : index
    %c0_379 = arith.constant 0 : index
    %520 = vector.load %arg3[%c9_376, %c0_377, %c0_378, %c0_379] : memref<20x2x21x21xf32, #tpu.memory_space<vmem>>, vector<1x2x21x21xf32>
    %521 = vector.shape_cast %520 : vector<1x2x21x21xf32> to vector<2x21x21xf32>
    %522 = vector.broadcast %519 : f32 to vector<2x21x21xf32>
    %523 = arith.mulf %521, %522 : vector<2x21x21xf32>
    %524 = arith.addf %518, %523 : vector<2x21x21xf32>
    %c70 = arith.constant 70 : index
    %525 = memref.load %arg1[%c70] : memref<220xf32, #tpu.memory_space<smem>>
    %c10_380 = arith.constant 10 : index
    %c0_381 = arith.constant 0 : index
    %c0_382 = arith.constant 0 : index
    %c0_383 = arith.constant 0 : index
    %526 = vector.load %arg3[%c10_380, %c0_381, %c0_382, %c0_383] : memref<20x2x21x21xf32, #tpu.memory_space<vmem>>, vector<1x2x21x21xf32>
    %527 = vector.shape_cast %526 : vector<1x2x21x21xf32> to vector<2x21x21xf32>
    %528 = vector.broadcast %525 : f32 to vector<2x21x21xf32>
    %529 = arith.mulf %527, %528 : vector<2x21x21xf32>
    %530 = arith.addf %524, %529 : vector<2x21x21xf32>
    %c71 = arith.constant 71 : index
    %531 = memref.load %arg1[%c71] : memref<220xf32, #tpu.memory_space<smem>>
    %c11_384 = arith.constant 11 : index
    %c0_385 = arith.constant 0 : index
    %c0_386 = arith.constant 0 : index
    %c0_387 = arith.constant 0 : index
    %532 = vector.load %arg3[%c11_384, %c0_385, %c0_386, %c0_387] : memref<20x2x21x21xf32, #tpu.memory_space<vmem>>, vector<1x2x21x21xf32>
    %533 = vector.shape_cast %532 : vector<1x2x21x21xf32> to vector<2x21x21xf32>
    %534 = vector.broadcast %531 : f32 to vector<2x21x21xf32>
    %535 = arith.mulf %533, %534 : vector<2x21x21xf32>
    %536 = arith.addf %530, %535 : vector<2x21x21xf32>
    %c72 = arith.constant 72 : index
    %537 = memref.load %arg1[%c72] : memref<220xf32, #tpu.memory_space<smem>>
    %c12_388 = arith.constant 12 : index
    %c0_389 = arith.constant 0 : index
    %c0_390 = arith.constant 0 : index
    %c0_391 = arith.constant 0 : index
    %538 = vector.load %arg3[%c12_388, %c0_389, %c0_390, %c0_391] : memref<20x2x21x21xf32, #tpu.memory_space<vmem>>, vector<1x2x21x21xf32>
    %539 = vector.shape_cast %538 : vector<1x2x21x21xf32> to vector<2x21x21xf32>
    %540 = vector.broadcast %537 : f32 to vector<2x21x21xf32>
    %541 = arith.mulf %539, %540 : vector<2x21x21xf32>
    %542 = arith.addf %536, %541 : vector<2x21x21xf32>
    %c73 = arith.constant 73 : index
    %543 = memref.load %arg1[%c73] : memref<220xf32, #tpu.memory_space<smem>>
    %c13_392 = arith.constant 13 : index
    %c0_393 = arith.constant 0 : index
    %c0_394 = arith.constant 0 : index
    %c0_395 = arith.constant 0 : index
    %544 = vector.load %arg3[%c13_392, %c0_393, %c0_394, %c0_395] : memref<20x2x21x21xf32, #tpu.memory_space<vmem>>, vector<1x2x21x21xf32>
    %545 = vector.shape_cast %544 : vector<1x2x21x21xf32> to vector<2x21x21xf32>
    %546 = vector.broadcast %543 : f32 to vector<2x21x21xf32>
    %547 = arith.mulf %545, %546 : vector<2x21x21xf32>
    %548 = arith.addf %542, %547 : vector<2x21x21xf32>
    %c74 = arith.constant 74 : index
    %549 = memref.load %arg1[%c74] : memref<220xf32, #tpu.memory_space<smem>>
    %c14_396 = arith.constant 14 : index
    %c0_397 = arith.constant 0 : index
    %c0_398 = arith.constant 0 : index
    %c0_399 = arith.constant 0 : index
    %550 = vector.load %arg3[%c14_396, %c0_397, %c0_398, %c0_399] : memref<20x2x21x21xf32, #tpu.memory_space<vmem>>, vector<1x2x21x21xf32>
    %551 = vector.shape_cast %550 : vector<1x2x21x21xf32> to vector<2x21x21xf32>
    %552 = vector.broadcast %549 : f32 to vector<2x21x21xf32>
    %553 = arith.mulf %551, %552 : vector<2x21x21xf32>
    %554 = arith.addf %548, %553 : vector<2x21x21xf32>
    %c75 = arith.constant 75 : index
    %555 = memref.load %arg1[%c75] : memref<220xf32, #tpu.memory_space<smem>>
    %c15_400 = arith.constant 15 : index
    %c0_401 = arith.constant 0 : index
    %c0_402 = arith.constant 0 : index
    %c0_403 = arith.constant 0 : index
    %556 = vector.load %arg3[%c15_400, %c0_401, %c0_402, %c0_403] : memref<20x2x21x21xf32, #tpu.memory_space<vmem>>, vector<1x2x21x21xf32>
    %557 = vector.shape_cast %556 : vector<1x2x21x21xf32> to vector<2x21x21xf32>
    %558 = vector.broadcast %555 : f32 to vector<2x21x21xf32>
    %559 = arith.mulf %557, %558 : vector<2x21x21xf32>
    %560 = arith.addf %554, %559 : vector<2x21x21xf32>
    %c76 = arith.constant 76 : index
    %561 = memref.load %arg1[%c76] : memref<220xf32, #tpu.memory_space<smem>>
    %c16_404 = arith.constant 16 : index
    %c0_405 = arith.constant 0 : index
    %c0_406 = arith.constant 0 : index
    %c0_407 = arith.constant 0 : index
    %562 = vector.load %arg3[%c16_404, %c0_405, %c0_406, %c0_407] : memref<20x2x21x21xf32, #tpu.memory_space<vmem>>, vector<1x2x21x21xf32>
    %563 = vector.shape_cast %562 : vector<1x2x21x21xf32> to vector<2x21x21xf32>
    %564 = vector.broadcast %561 : f32 to vector<2x21x21xf32>
    %565 = arith.mulf %563, %564 : vector<2x21x21xf32>
    %566 = arith.addf %560, %565 : vector<2x21x21xf32>
    %c77 = arith.constant 77 : index
    %567 = memref.load %arg1[%c77] : memref<220xf32, #tpu.memory_space<smem>>
    %c17_408 = arith.constant 17 : index
    %c0_409 = arith.constant 0 : index
    %c0_410 = arith.constant 0 : index
    %c0_411 = arith.constant 0 : index
    %568 = vector.load %arg3[%c17_408, %c0_409, %c0_410, %c0_411] : memref<20x2x21x21xf32, #tpu.memory_space<vmem>>, vector<1x2x21x21xf32>
    %569 = vector.shape_cast %568 : vector<1x2x21x21xf32> to vector<2x21x21xf32>
    %570 = vector.broadcast %567 : f32 to vector<2x21x21xf32>
    %571 = arith.mulf %569, %570 : vector<2x21x21xf32>
    %572 = arith.addf %566, %571 : vector<2x21x21xf32>
    %c78 = arith.constant 78 : index
    %573 = memref.load %arg1[%c78] : memref<220xf32, #tpu.memory_space<smem>>
    %c18_412 = arith.constant 18 : index
    %c0_413 = arith.constant 0 : index
    %c0_414 = arith.constant 0 : index
    %c0_415 = arith.constant 0 : index
    %574 = vector.load %arg3[%c18_412, %c0_413, %c0_414, %c0_415] : memref<20x2x21x21xf32, #tpu.memory_space<vmem>>, vector<1x2x21x21xf32>
    %575 = vector.shape_cast %574 : vector<1x2x21x21xf32> to vector<2x21x21xf32>
    %576 = vector.broadcast %573 : f32 to vector<2x21x21xf32>
    %577 = arith.mulf %575, %576 : vector<2x21x21xf32>
    %578 = arith.addf %572, %577 : vector<2x21x21xf32>
    %c79 = arith.constant 79 : index
    %579 = memref.load %arg1[%c79] : memref<220xf32, #tpu.memory_space<smem>>
    %c19_416 = arith.constant 19 : index
    %c0_417 = arith.constant 0 : index
    %c0_418 = arith.constant 0 : index
    %c0_419 = arith.constant 0 : index
    %580 = vector.load %arg3[%c19_416, %c0_417, %c0_418, %c0_419] : memref<20x2x21x21xf32, #tpu.memory_space<vmem>>, vector<1x2x21x21xf32>
    %581 = vector.shape_cast %580 : vector<1x2x21x21xf32> to vector<2x21x21xf32>
    %582 = vector.broadcast %579 : f32 to vector<2x21x21xf32>
    %583 = arith.mulf %581, %582 : vector<2x21x21xf32>
    %584 = arith.addf %578, %583 : vector<2x21x21xf32>
    %cst_420 = arith.constant 0.000000e+00 : f32
    %585 = vector.broadcast %cst_420 : f32 to vector<2x21x21xf32>
    %586 = arith.cmpf ogt, %584, %585 : vector<2x21x21xf32>
    %cst_421 = arith.constant -1.000000e-01 : f32
    %587 = vector.broadcast %cst_421 : f32 to vector<2x21x21xf32>
    %588 = arith.mulf %584, %587 : vector<2x21x21xf32>
    %589 = arith.select %586, %584, %588 : vector<2x21x21xi1>, vector<2x21x21xf32>
    %c0_422 = arith.constant 0 : index
    %c3_423 = arith.constant 3 : index
    %c0_424 = arith.constant 0 : index
    %c0_425 = arith.constant 0 : index
    %590 = vector.load %arg2[%c0_422, %c3_423, %c0_424, %c0_425] : memref<2x11x21x21xf32, #tpu.memory_space<vmem>>, vector<2x1x21x21xf32>
    %591 = vector.shape_cast %590 : vector<2x1x21x21xf32> to vector<2x21x21xf32>
    %592 = vector.shape_cast %589 : vector<2x21x21xf32> to vector<2x1x21x21xf32>
    tpu.vector_store %arg2[%c0_422, %c3_423, %c0_424, %c0_425], %592 {strides = array<i32>} : memref<2x11x21x21xf32, #tpu.memory_space<vmem>>, vector<2x1x21x21xf32>,
    %c80 = arith.constant 80 : index
    %593 = memref.load %arg1[%c80] : memref<220xf32, #tpu.memory_space<smem>>
    %c0_426 = arith.constant 0 : index
    %c0_427 = arith.constant 0 : index
    %c0_428 = arith.constant 0 : index
    %c0_429 = arith.constant 0 : index
    %594 = vector.load %arg3[%c0_426, %c0_427, %c0_428, %c0_429] : memref<20x2x21x21xf32, #tpu.memory_space<vmem>>, vector<1x2x21x21xf32>
    %595 = vector.shape_cast %594 : vector<1x2x21x21xf32> to vector<2x21x21xf32>
    %596 = vector.broadcast %593 : f32 to vector<2x21x21xf32>
    %597 = arith.mulf %595, %596 : vector<2x21x21xf32>
    %c81 = arith.constant 81 : index
    %598 = memref.load %arg1[%c81] : memref<220xf32, #tpu.memory_space<smem>>
    %c1_430 = arith.constant 1 : index
    %c0_431 = arith.constant 0 : index
    %c0_432 = arith.constant 0 : index
    %c0_433 = arith.constant 0 : index
    %599 = vector.load %arg3[%c1_430, %c0_431, %c0_432, %c0_433] : memref<20x2x21x21xf32, #tpu.memory_space<vmem>>, vector<1x2x21x21xf32>
    %600 = vector.shape_cast %599 : vector<1x2x21x21xf32> to vector<2x21x21xf32>
    %601 = vector.broadcast %598 : f32 to vector<2x21x21xf32>
    %602 = arith.mulf %600, %601 : vector<2x21x21xf32>
    %603 = arith.addf %597, %602 : vector<2x21x21xf32>
    %c82 = arith.constant 82 : index
    %604 = memref.load %arg1[%c82] : memref<220xf32, #tpu.memory_space<smem>>
    %c2_434 = arith.constant 2 : index
    %c0_435 = arith.constant 0 : index
    %c0_436 = arith.constant 0 : index
    %c0_437 = arith.constant 0 : index
    %605 = vector.load %arg3[%c2_434, %c0_435, %c0_436, %c0_437] : memref<20x2x21x21xf32, #tpu.memory_space<vmem>>, vector<1x2x21x21xf32>
    %606 = vector.shape_cast %605 : vector<1x2x21x21xf32> to vector<2x21x21xf32>
    %607 = vector.broadcast %604 : f32 to vector<2x21x21xf32>
    %608 = arith.mulf %606, %607 : vector<2x21x21xf32>
    %609 = arith.addf %603, %608 : vector<2x21x21xf32>
    %c83 = arith.constant 83 : index
    %610 = memref.load %arg1[%c83] : memref<220xf32, #tpu.memory_space<smem>>
    %c3_438 = arith.constant 3 : index
    %c0_439 = arith.constant 0 : index
    %c0_440 = arith.constant 0 : index
    %c0_441 = arith.constant 0 : index
    %611 = vector.load %arg3[%c3_438, %c0_439, %c0_440, %c0_441] : memref<20x2x21x21xf32, #tpu.memory_space<vmem>>, vector<1x2x21x21xf32>
    %612 = vector.shape_cast %611 : vector<1x2x21x21xf32> to vector<2x21x21xf32>
    %613 = vector.broadcast %610 : f32 to vector<2x21x21xf32>
    %614 = arith.mulf %612, %613 : vector<2x21x21xf32>
    %615 = arith.addf %609, %614 : vector<2x21x21xf32>
    %c84 = arith.constant 84 : index
    %616 = memref.load %arg1[%c84] : memref<220xf32, #tpu.memory_space<smem>>
    %c4_442 = arith.constant 4 : index
    %c0_443 = arith.constant 0 : index
    %c0_444 = arith.constant 0 : index
    %c0_445 = arith.constant 0 : index
    %617 = vector.load %arg3[%c4_442, %c0_443, %c0_444, %c0_445] : memref<20x2x21x21xf32, #tpu.memory_space<vmem>>, vector<1x2x21x21xf32>
    %618 = vector.shape_cast %617 : vector<1x2x21x21xf32> to vector<2x21x21xf32>
    %619 = vector.broadcast %616 : f32 to vector<2x21x21xf32>
    %620 = arith.mulf %618, %619 : vector<2x21x21xf32>
    %621 = arith.addf %615, %620 : vector<2x21x21xf32>
    %c85 = arith.constant 85 : index
    %622 = memref.load %arg1[%c85] : memref<220xf32, #tpu.memory_space<smem>>
    %c5_446 = arith.constant 5 : index
    %c0_447 = arith.constant 0 : index
    %c0_448 = arith.constant 0 : index
    %c0_449 = arith.constant 0 : index
    %623 = vector.load %arg3[%c5_446, %c0_447, %c0_448, %c0_449] : memref<20x2x21x21xf32, #tpu.memory_space<vmem>>, vector<1x2x21x21xf32>
    %624 = vector.shape_cast %623 : vector<1x2x21x21xf32> to vector<2x21x21xf32>
    %625 = vector.broadcast %622 : f32 to vector<2x21x21xf32>
    %626 = arith.mulf %624, %625 : vector<2x21x21xf32>
    %627 = arith.addf %621, %626 : vector<2x21x21xf32>
    %c86 = arith.constant 86 : index
    %628 = memref.load %arg1[%c86] : memref<220xf32, #tpu.memory_space<smem>>
    %c6_450 = arith.constant 6 : index
    %c0_451 = arith.constant 0 : index
    %c0_452 = arith.constant 0 : index
    %c0_453 = arith.constant 0 : index
    %629 = vector.load %arg3[%c6_450, %c0_451, %c0_452, %c0_453] : memref<20x2x21x21xf32, #tpu.memory_space<vmem>>, vector<1x2x21x21xf32>
    %630 = vector.shape_cast %629 : vector<1x2x21x21xf32> to vector<2x21x21xf32>
    %631 = vector.broadcast %628 : f32 to vector<2x21x21xf32>
    %632 = arith.mulf %630, %631 : vector<2x21x21xf32>
    %633 = arith.addf %627, %632 : vector<2x21x21xf32>
    %c87 = arith.constant 87 : index
    %634 = memref.load %arg1[%c87] : memref<220xf32, #tpu.memory_space<smem>>
    %c7_454 = arith.constant 7 : index
    %c0_455 = arith.constant 0 : index
    %c0_456 = arith.constant 0 : index
    %c0_457 = arith.constant 0 : index
    %635 = vector.load %arg3[%c7_454, %c0_455, %c0_456, %c0_457] : memref<20x2x21x21xf32, #tpu.memory_space<vmem>>, vector<1x2x21x21xf32>
    %636 = vector.shape_cast %635 : vector<1x2x21x21xf32> to vector<2x21x21xf32>
    %637 = vector.broadcast %634 : f32 to vector<2x21x21xf32>
    %638 = arith.mulf %636, %637 : vector<2x21x21xf32>
    %639 = arith.addf %633, %638 : vector<2x21x21xf32>
    %c88 = arith.constant 88 : index
    %640 = memref.load %arg1[%c88] : memref<220xf32, #tpu.memory_space<smem>>
    %c8_458 = arith.constant 8 : index
    %c0_459 = arith.constant 0 : index
    %c0_460 = arith.constant 0 : index
    %c0_461 = arith.constant 0 : index
    %641 = vector.load %arg3[%c8_458, %c0_459, %c0_460, %c0_461] : memref<20x2x21x21xf32, #tpu.memory_space<vmem>>, vector<1x2x21x21xf32>
    %642 = vector.shape_cast %641 : vector<1x2x21x21xf32> to vector<2x21x21xf32>
    %643 = vector.broadcast %640 : f32 to vector<2x21x21xf32>
    %644 = arith.mulf %642, %643 : vector<2x21x21xf32>
    %645 = arith.addf %639, %644 : vector<2x21x21xf32>
    %c89 = arith.constant 89 : index
    %646 = memref.load %arg1[%c89] : memref<220xf32, #tpu.memory_space<smem>>
    %c9_462 = arith.constant 9 : index
    %c0_463 = arith.constant 0 : index
    %c0_464 = arith.constant 0 : index
    %c0_465 = arith.constant 0 : index
    %647 = vector.load %arg3[%c9_462, %c0_463, %c0_464, %c0_465] : memref<20x2x21x21xf32, #tpu.memory_space<vmem>>, vector<1x2x21x21xf32>
    %648 = vector.shape_cast %647 : vector<1x2x21x21xf32> to vector<2x21x21xf32>
    %649 = vector.broadcast %646 : f32 to vector<2x21x21xf32>
    %650 = arith.mulf %648, %649 : vector<2x21x21xf32>
    %651 = arith.addf %645, %650 : vector<2x21x21xf32>
    %c90 = arith.constant 90 : index
    %652 = memref.load %arg1[%c90] : memref<220xf32, #tpu.memory_space<smem>>
    %c10_466 = arith.constant 10 : index
    %c0_467 = arith.constant 0 : index
    %c0_468 = arith.constant 0 : index
    %c0_469 = arith.constant 0 : index
    %653 = vector.load %arg3[%c10_466, %c0_467, %c0_468, %c0_469] : memref<20x2x21x21xf32, #tpu.memory_space<vmem>>, vector<1x2x21x21xf32>
    %654 = vector.shape_cast %653 : vector<1x2x21x21xf32> to vector<2x21x21xf32>
    %655 = vector.broadcast %652 : f32 to vector<2x21x21xf32>
    %656 = arith.mulf %654, %655 : vector<2x21x21xf32>
    %657 = arith.addf %651, %656 : vector<2x21x21xf32>
    %c91 = arith.constant 91 : index
    %658 = memref.load %arg1[%c91] : memref<220xf32, #tpu.memory_space<smem>>
    %c11_470 = arith.constant 11 : index
    %c0_471 = arith.constant 0 : index
    %c0_472 = arith.constant 0 : index
    %c0_473 = arith.constant 0 : index
    %659 = vector.load %arg3[%c11_470, %c0_471, %c0_472, %c0_473] : memref<20x2x21x21xf32, #tpu.memory_space<vmem>>, vector<1x2x21x21xf32>
    %660 = vector.shape_cast %659 : vector<1x2x21x21xf32> to vector<2x21x21xf32>
    %661 = vector.broadcast %658 : f32 to vector<2x21x21xf32>
    %662 = arith.mulf %660, %661 : vector<2x21x21xf32>
    %663 = arith.addf %657, %662 : vector<2x21x21xf32>
    %c92 = arith.constant 92 : index
    %664 = memref.load %arg1[%c92] : memref<220xf32, #tpu.memory_space<smem>>
    %c12_474 = arith.constant 12 : index
    %c0_475 = arith.constant 0 : index
    %c0_476 = arith.constant 0 : index
    %c0_477 = arith.constant 0 : index
    %665 = vector.load %arg3[%c12_474, %c0_475, %c0_476, %c0_477] : memref<20x2x21x21xf32, #tpu.memory_space<vmem>>, vector<1x2x21x21xf32>
    %666 = vector.shape_cast %665 : vector<1x2x21x21xf32> to vector<2x21x21xf32>
    %667 = vector.broadcast %664 : f32 to vector<2x21x21xf32>
    %668 = arith.mulf %666, %667 : vector<2x21x21xf32>
    %669 = arith.addf %663, %668 : vector<2x21x21xf32>
    %c93 = arith.constant 93 : index
    %670 = memref.load %arg1[%c93] : memref<220xf32, #tpu.memory_space<smem>>
    %c13_478 = arith.constant 13 : index
    %c0_479 = arith.constant 0 : index
    %c0_480 = arith.constant 0 : index
    %c0_481 = arith.constant 0 : index
    %671 = vector.load %arg3[%c13_478, %c0_479, %c0_480, %c0_481] : memref<20x2x21x21xf32, #tpu.memory_space<vmem>>, vector<1x2x21x21xf32>
    %672 = vector.shape_cast %671 : vector<1x2x21x21xf32> to vector<2x21x21xf32>
    %673 = vector.broadcast %670 : f32 to vector<2x21x21xf32>
    %674 = arith.mulf %672, %673 : vector<2x21x21xf32>
    %675 = arith.addf %669, %674 : vector<2x21x21xf32>
    %c94 = arith.constant 94 : index
    %676 = memref.load %arg1[%c94] : memref<220xf32, #tpu.memory_space<smem>>
    %c14_482 = arith.constant 14 : index
    %c0_483 = arith.constant 0 : index
    %c0_484 = arith.constant 0 : index
    %c0_485 = arith.constant 0 : index
    %677 = vector.load %arg3[%c14_482, %c0_483, %c0_484, %c0_485] : memref<20x2x21x21xf32, #tpu.memory_space<vmem>>, vector<1x2x21x21xf32>
    %678 = vector.shape_cast %677 : vector<1x2x21x21xf32> to vector<2x21x21xf32>
    %679 = vector.broadcast %676 : f32 to vector<2x21x21xf32>
    %680 = arith.mulf %678, %679 : vector<2x21x21xf32>
    %681 = arith.addf %675, %680 : vector<2x21x21xf32>
    %c95 = arith.constant 95 : index
    %682 = memref.load %arg1[%c95] : memref<220xf32, #tpu.memory_space<smem>>
    %c15_486 = arith.constant 15 : index
    %c0_487 = arith.constant 0 : index
    %c0_488 = arith.constant 0 : index
    %c0_489 = arith.constant 0 : index
    %683 = vector.load %arg3[%c15_486, %c0_487, %c0_488, %c0_489] : memref<20x2x21x21xf32, #tpu.memory_space<vmem>>, vector<1x2x21x21xf32>
    %684 = vector.shape_cast %683 : vector<1x2x21x21xf32> to vector<2x21x21xf32>
    %685 = vector.broadcast %682 : f32 to vector<2x21x21xf32>
    %686 = arith.mulf %684, %685 : vector<2x21x21xf32>
    %687 = arith.addf %681, %686 : vector<2x21x21xf32>
    %c96 = arith.constant 96 : index
    %688 = memref.load %arg1[%c96] : memref<220xf32, #tpu.memory_space<smem>>
    %c16_490 = arith.constant 16 : index
    %c0_491 = arith.constant 0 : index
    %c0_492 = arith.constant 0 : index
    %c0_493 = arith.constant 0 : index
    %689 = vector.load %arg3[%c16_490, %c0_491, %c0_492, %c0_493] : memref<20x2x21x21xf32, #tpu.memory_space<vmem>>, vector<1x2x21x21xf32>
    %690 = vector.shape_cast %689 : vector<1x2x21x21xf32> to vector<2x21x21xf32>
    %691 = vector.broadcast %688 : f32 to vector<2x21x21xf32>
    %692 = arith.mulf %690, %691 : vector<2x21x21xf32>
    %693 = arith.addf %687, %692 : vector<2x21x21xf32>
    %c97 = arith.constant 97 : index
    %694 = memref.load %arg1[%c97] : memref<220xf32, #tpu.memory_space<smem>>
    %c17_494 = arith.constant 17 : index
    %c0_495 = arith.constant 0 : index
    %c0_496 = arith.constant 0 : index
    %c0_497 = arith.constant 0 : index
    %695 = vector.load %arg3[%c17_494, %c0_495, %c0_496, %c0_497] : memref<20x2x21x21xf32, #tpu.memory_space<vmem>>, vector<1x2x21x21xf32>
    %696 = vector.shape_cast %695 : vector<1x2x21x21xf32> to vector<2x21x21xf32>
    %697 = vector.broadcast %694 : f32 to vector<2x21x21xf32>
    %698 = arith.mulf %696, %697 : vector<2x21x21xf32>
    %699 = arith.addf %693, %698 : vector<2x21x21xf32>
    %c98 = arith.constant 98 : index
    %700 = memref.load %arg1[%c98] : memref<220xf32, #tpu.memory_space<smem>>
    %c18_498 = arith.constant 18 : index
    %c0_499 = arith.constant 0 : index
    %c0_500 = arith.constant 0 : index
    %c0_501 = arith.constant 0 : index
    %701 = vector.load %arg3[%c18_498, %c0_499, %c0_500, %c0_501] : memref<20x2x21x21xf32, #tpu.memory_space<vmem>>, vector<1x2x21x21xf32>
    %702 = vector.shape_cast %701 : vector<1x2x21x21xf32> to vector<2x21x21xf32>
    %703 = vector.broadcast %700 : f32 to vector<2x21x21xf32>
    %704 = arith.mulf %702, %703 : vector<2x21x21xf32>
    %705 = arith.addf %699, %704 : vector<2x21x21xf32>
    %c99 = arith.constant 99 : index
    %706 = memref.load %arg1[%c99] : memref<220xf32, #tpu.memory_space<smem>>
    %c19_502 = arith.constant 19 : index
    %c0_503 = arith.constant 0 : index
    %c0_504 = arith.constant 0 : index
    %c0_505 = arith.constant 0 : index
    %707 = vector.load %arg3[%c19_502, %c0_503, %c0_504, %c0_505] : memref<20x2x21x21xf32, #tpu.memory_space<vmem>>, vector<1x2x21x21xf32>
    %708 = vector.shape_cast %707 : vector<1x2x21x21xf32> to vector<2x21x21xf32>
    %709 = vector.broadcast %706 : f32 to vector<2x21x21xf32>
    %710 = arith.mulf %708, %709 : vector<2x21x21xf32>
    %711 = arith.addf %705, %710 : vector<2x21x21xf32>
    %cst_506 = arith.constant 0.000000e+00 : f32
    %712 = vector.broadcast %cst_506 : f32 to vector<2x21x21xf32>
    %713 = arith.cmpf ogt, %711, %712 : vector<2x21x21xf32>
    %cst_507 = arith.constant -1.000000e-01 : f32
    %714 = vector.broadcast %cst_507 : f32 to vector<2x21x21xf32>
    %715 = arith.mulf %711, %714 : vector<2x21x21xf32>
    %716 = arith.select %713, %711, %715 : vector<2x21x21xi1>, vector<2x21x21xf32>
    %c0_508 = arith.constant 0 : index
    %c4_509 = arith.constant 4 : index
    %c0_510 = arith.constant 0 : index
    %c0_511 = arith.constant 0 : index
    %717 = vector.load %arg2[%c0_508, %c4_509, %c0_510, %c0_511] : memref<2x11x21x21xf32, #tpu.memory_space<vmem>>, vector<2x1x21x21xf32>
    %718 = vector.shape_cast %717 : vector<2x1x21x21xf32> to vector<2x21x21xf32>
    %719 = vector.shape_cast %716 : vector<2x21x21xf32> to vector<2x1x21x21xf32>
    tpu.vector_store %arg2[%c0_508, %c4_509, %c0_510, %c0_511], %719 {strides = array<i32>} : memref<2x11x21x21xf32, #tpu.memory_space<vmem>>, vector<2x1x21x21xf32>,
    %c100 = arith.constant 100 : index
    %720 = memref.load %arg1[%c100] : memref<220xf32, #tpu.memory_space<smem>>
    %c0_512 = arith.constant 0 : index
    %c0_513 = arith.constant 0 : index
    %c0_514 = arith.constant 0 : index
    %c0_515 = arith.constant 0 : index
    %721 = vector.load %arg3[%c0_512, %c0_513, %c0_514, %c0_515] : memref<20x2x21x21xf32, #tpu.memory_space<vmem>>, vector<1x2x21x21xf32>
    %722 = vector.shape_cast %721 : vector<1x2x21x21xf32> to vector<2x21x21xf32>
    %723 = vector.broadcast %720 : f32 to vector<2x21x21xf32>
    %724 = arith.mulf %722, %723 : vector<2x21x21xf32>
    %c101 = arith.constant 101 : index
    %725 = memref.load %arg1[%c101] : memref<220xf32, #tpu.memory_space<smem>>
    %c1_516 = arith.constant 1 : index
    %c0_517 = arith.constant 0 : index
    %c0_518 = arith.constant 0 : index
    %c0_519 = arith.constant 0 : index
    %726 = vector.load %arg3[%c1_516, %c0_517, %c0_518, %c0_519] : memref<20x2x21x21xf32, #tpu.memory_space<vmem>>, vector<1x2x21x21xf32>
    %727 = vector.shape_cast %726 : vector<1x2x21x21xf32> to vector<2x21x21xf32>
    %728 = vector.broadcast %725 : f32 to vector<2x21x21xf32>
    %729 = arith.mulf %727, %728 : vector<2x21x21xf32>
    %730 = arith.addf %724, %729 : vector<2x21x21xf32>
    %c102 = arith.constant 102 : index
    %731 = memref.load %arg1[%c102] : memref<220xf32, #tpu.memory_space<smem>>
    %c2_520 = arith.constant 2 : index
    %c0_521 = arith.constant 0 : index
    %c0_522 = arith.constant 0 : index
    %c0_523 = arith.constant 0 : index
    %732 = vector.load %arg3[%c2_520, %c0_521, %c0_522, %c0_523] : memref<20x2x21x21xf32, #tpu.memory_space<vmem>>, vector<1x2x21x21xf32>
    %733 = vector.shape_cast %732 : vector<1x2x21x21xf32> to vector<2x21x21xf32>
    %734 = vector.broadcast %731 : f32 to vector<2x21x21xf32>
    %735 = arith.mulf %733, %734 : vector<2x21x21xf32>
    %736 = arith.addf %730, %735 : vector<2x21x21xf32>
    %c103 = arith.constant 103 : index
    %737 = memref.load %arg1[%c103] : memref<220xf32, #tpu.memory_space<smem>>
    %c3_524 = arith.constant 3 : index
    %c0_525 = arith.constant 0 : index
    %c0_526 = arith.constant 0 : index
    %c0_527 = arith.constant 0 : index
    %738 = vector.load %arg3[%c3_524, %c0_525, %c0_526, %c0_527] : memref<20x2x21x21xf32, #tpu.memory_space<vmem>>, vector<1x2x21x21xf32>
    %739 = vector.shape_cast %738 : vector<1x2x21x21xf32> to vector<2x21x21xf32>
    %740 = vector.broadcast %737 : f32 to vector<2x21x21xf32>
    %741 = arith.mulf %739, %740 : vector<2x21x21xf32>
    %742 = arith.addf %736, %741 : vector<2x21x21xf32>
    %c104 = arith.constant 104 : index
    %743 = memref.load %arg1[%c104] : memref<220xf32, #tpu.memory_space<smem>>
    %c4_528 = arith.constant 4 : index
    %c0_529 = arith.constant 0 : index
    %c0_530 = arith.constant 0 : index
    %c0_531 = arith.constant 0 : index
    %744 = vector.load %arg3[%c4_528, %c0_529, %c0_530, %c0_531] : memref<20x2x21x21xf32, #tpu.memory_space<vmem>>, vector<1x2x21x21xf32>
    %745 = vector.shape_cast %744 : vector<1x2x21x21xf32> to vector<2x21x21xf32>
    %746 = vector.broadcast %743 : f32 to vector<2x21x21xf32>
    %747 = arith.mulf %745, %746 : vector<2x21x21xf32>
    %748 = arith.addf %742, %747 : vector<2x21x21xf32>
    %c105 = arith.constant 105 : index
    %749 = memref.load %arg1[%c105] : memref<220xf32, #tpu.memory_space<smem>>
    %c5_532 = arith.constant 5 : index
    %c0_533 = arith.constant 0 : index
    %c0_534 = arith.constant 0 : index
    %c0_535 = arith.constant 0 : index
    %750 = vector.load %arg3[%c5_532, %c0_533, %c0_534, %c0_535] : memref<20x2x21x21xf32, #tpu.memory_space<vmem>>, vector<1x2x21x21xf32>
    %751 = vector.shape_cast %750 : vector<1x2x21x21xf32> to vector<2x21x21xf32>
    %752 = vector.broadcast %749 : f32 to vector<2x21x21xf32>
    %753 = arith.mulf %751, %752 : vector<2x21x21xf32>
    %754 = arith.addf %748, %753 : vector<2x21x21xf32>
    %c106 = arith.constant 106 : index
    %755 = memref.load %arg1[%c106] : memref<220xf32, #tpu.memory_space<smem>>
    %c6_536 = arith.constant 6 : index
    %c0_537 = arith.constant 0 : index
    %c0_538 = arith.constant 0 : index
    %c0_539 = arith.constant 0 : index
    %756 = vector.load %arg3[%c6_536, %c0_537, %c0_538, %c0_539] : memref<20x2x21x21xf32, #tpu.memory_space<vmem>>, vector<1x2x21x21xf32>
    %757 = vector.shape_cast %756 : vector<1x2x21x21xf32> to vector<2x21x21xf32>
    %758 = vector.broadcast %755 : f32 to vector<2x21x21xf32>
    %759 = arith.mulf %757, %758 : vector<2x21x21xf32>
    %760 = arith.addf %754, %759 : vector<2x21x21xf32>
    %c107 = arith.constant 107 : index
    %761 = memref.load %arg1[%c107] : memref<220xf32, #tpu.memory_space<smem>>
    %c7_540 = arith.constant 7 : index
    %c0_541 = arith.constant 0 : index
    %c0_542 = arith.constant 0 : index
    %c0_543 = arith.constant 0 : index
    %762 = vector.load %arg3[%c7_540, %c0_541, %c0_542, %c0_543] : memref<20x2x21x21xf32, #tpu.memory_space<vmem>>, vector<1x2x21x21xf32>
    %763 = vector.shape_cast %762 : vector<1x2x21x21xf32> to vector<2x21x21xf32>
    %764 = vector.broadcast %761 : f32 to vector<2x21x21xf32>
    %765 = arith.mulf %763, %764 : vector<2x21x21xf32>
    %766 = arith.addf %760, %765 : vector<2x21x21xf32>
    %c108 = arith.constant 108 : index
    %767 = memref.load %arg1[%c108] : memref<220xf32, #tpu.memory_space<smem>>
    %c8_544 = arith.constant 8 : index
    %c0_545 = arith.constant 0 : index
    %c0_546 = arith.constant 0 : index
    %c0_547 = arith.constant 0 : index
    %768 = vector.load %arg3[%c8_544, %c0_545, %c0_546, %c0_547] : memref<20x2x21x21xf32, #tpu.memory_space<vmem>>, vector<1x2x21x21xf32>
    %769 = vector.shape_cast %768 : vector<1x2x21x21xf32> to vector<2x21x21xf32>
    %770 = vector.broadcast %767 : f32 to vector<2x21x21xf32>
    %771 = arith.mulf %769, %770 : vector<2x21x21xf32>
    %772 = arith.addf %766, %771 : vector<2x21x21xf32>
    %c109 = arith.constant 109 : index
    %773 = memref.load %arg1[%c109] : memref<220xf32, #tpu.memory_space<smem>>
    %c9_548 = arith.constant 9 : index
    %c0_549 = arith.constant 0 : index
    %c0_550 = arith.constant 0 : index
    %c0_551 = arith.constant 0 : index
    %774 = vector.load %arg3[%c9_548, %c0_549, %c0_550, %c0_551] : memref<20x2x21x21xf32, #tpu.memory_space<vmem>>, vector<1x2x21x21xf32>
    %775 = vector.shape_cast %774 : vector<1x2x21x21xf32> to vector<2x21x21xf32>
    %776 = vector.broadcast %773 : f32 to vector<2x21x21xf32>
    %777 = arith.mulf %775, %776 : vector<2x21x21xf32>
    %778 = arith.addf %772, %777 : vector<2x21x21xf32>
    %c110 = arith.constant 110 : index
    %779 = memref.load %arg1[%c110] : memref<220xf32, #tpu.memory_space<smem>>
    %c10_552 = arith.constant 10 : index
    %c0_553 = arith.constant 0 : index
    %c0_554 = arith.constant 0 : index
    %c0_555 = arith.constant 0 : index
    %780 = vector.load %arg3[%c10_552, %c0_553, %c0_554, %c0_555] : memref<20x2x21x21xf32, #tpu.memory_space<vmem>>, vector<1x2x21x21xf32>
    %781 = vector.shape_cast %780 : vector<1x2x21x21xf32> to vector<2x21x21xf32>
    %782 = vector.broadcast %779 : f32 to vector<2x21x21xf32>
    %783 = arith.mulf %781, %782 : vector<2x21x21xf32>
    %784 = arith.addf %778, %783 : vector<2x21x21xf32>
    %c111 = arith.constant 111 : index
    %785 = memref.load %arg1[%c111] : memref<220xf32, #tpu.memory_space<smem>>
    %c11_556 = arith.constant 11 : index
    %c0_557 = arith.constant 0 : index
    %c0_558 = arith.constant 0 : index
    %c0_559 = arith.constant 0 : index
    %786 = vector.load %arg3[%c11_556, %c0_557, %c0_558, %c0_559] : memref<20x2x21x21xf32, #tpu.memory_space<vmem>>, vector<1x2x21x21xf32>
    %787 = vector.shape_cast %786 : vector<1x2x21x21xf32> to vector<2x21x21xf32>
    %788 = vector.broadcast %785 : f32 to vector<2x21x21xf32>
    %789 = arith.mulf %787, %788 : vector<2x21x21xf32>
    %790 = arith.addf %784, %789 : vector<2x21x21xf32>
    %c112 = arith.constant 112 : index
    %791 = memref.load %arg1[%c112] : memref<220xf32, #tpu.memory_space<smem>>
    %c12_560 = arith.constant 12 : index
    %c0_561 = arith.constant 0 : index
    %c0_562 = arith.constant 0 : index
    %c0_563 = arith.constant 0 : index
    %792 = vector.load %arg3[%c12_560, %c0_561, %c0_562, %c0_563] : memref<20x2x21x21xf32, #tpu.memory_space<vmem>>, vector<1x2x21x21xf32>
    %793 = vector.shape_cast %792 : vector<1x2x21x21xf32> to vector<2x21x21xf32>
    %794 = vector.broadcast %791 : f32 to vector<2x21x21xf32>
    %795 = arith.mulf %793, %794 : vector<2x21x21xf32>
    %796 = arith.addf %790, %795 : vector<2x21x21xf32>
    %c113 = arith.constant 113 : index
    %797 = memref.load %arg1[%c113] : memref<220xf32, #tpu.memory_space<smem>>
    %c13_564 = arith.constant 13 : index
    %c0_565 = arith.constant 0 : index
    %c0_566 = arith.constant 0 : index
    %c0_567 = arith.constant 0 : index
    %798 = vector.load %arg3[%c13_564, %c0_565, %c0_566, %c0_567] : memref<20x2x21x21xf32, #tpu.memory_space<vmem>>, vector<1x2x21x21xf32>
    %799 = vector.shape_cast %798 : vector<1x2x21x21xf32> to vector<2x21x21xf32>
    %800 = vector.broadcast %797 : f32 to vector<2x21x21xf32>
    %801 = arith.mulf %799, %800 : vector<2x21x21xf32>
    %802 = arith.addf %796, %801 : vector<2x21x21xf32>
    %c114 = arith.constant 114 : index
    %803 = memref.load %arg1[%c114] : memref<220xf32, #tpu.memory_space<smem>>
    %c14_568 = arith.constant 14 : index
    %c0_569 = arith.constant 0 : index
    %c0_570 = arith.constant 0 : index
    %c0_571 = arith.constant 0 : index
    %804 = vector.load %arg3[%c14_568, %c0_569, %c0_570, %c0_571] : memref<20x2x21x21xf32, #tpu.memory_space<vmem>>, vector<1x2x21x21xf32>
    %805 = vector.shape_cast %804 : vector<1x2x21x21xf32> to vector<2x21x21xf32>
    %806 = vector.broadcast %803 : f32 to vector<2x21x21xf32>
    %807 = arith.mulf %805, %806 : vector<2x21x21xf32>
    %808 = arith.addf %802, %807 : vector<2x21x21xf32>
    %c115 = arith.constant 115 : index
    %809 = memref.load %arg1[%c115] : memref<220xf32, #tpu.memory_space<smem>>
    %c15_572 = arith.constant 15 : index
    %c0_573 = arith.constant 0 : index
    %c0_574 = arith.constant 0 : index
    %c0_575 = arith.constant 0 : index
    %810 = vector.load %arg3[%c15_572, %c0_573, %c0_574, %c0_575] : memref<20x2x21x21xf32, #tpu.memory_space<vmem>>, vector<1x2x21x21xf32>
    %811 = vector.shape_cast %810 : vector<1x2x21x21xf32> to vector<2x21x21xf32>
    %812 = vector.broadcast %809 : f32 to vector<2x21x21xf32>
    %813 = arith.mulf %811, %812 : vector<2x21x21xf32>
    %814 = arith.addf %808, %813 : vector<2x21x21xf32>
    %c116 = arith.constant 116 : index
    %815 = memref.load %arg1[%c116] : memref<220xf32, #tpu.memory_space<smem>>
    %c16_576 = arith.constant 16 : index
    %c0_577 = arith.constant 0 : index
    %c0_578 = arith.constant 0 : index
    %c0_579 = arith.constant 0 : index
    %816 = vector.load %arg3[%c16_576, %c0_577, %c0_578, %c0_579] : memref<20x2x21x21xf32, #tpu.memory_space<vmem>>, vector<1x2x21x21xf32>
    %817 = vector.shape_cast %816 : vector<1x2x21x21xf32> to vector<2x21x21xf32>
    %818 = vector.broadcast %815 : f32 to vector<2x21x21xf32>
    %819 = arith.mulf %817, %818 : vector<2x21x21xf32>
    %820 = arith.addf %814, %819 : vector<2x21x21xf32>
    %c117 = arith.constant 117 : index
    %821 = memref.load %arg1[%c117] : memref<220xf32, #tpu.memory_space<smem>>
    %c17_580 = arith.constant 17 : index
    %c0_581 = arith.constant 0 : index
    %c0_582 = arith.constant 0 : index
    %c0_583 = arith.constant 0 : index
    %822 = vector.load %arg3[%c17_580, %c0_581, %c0_582, %c0_583] : memref<20x2x21x21xf32, #tpu.memory_space<vmem>>, vector<1x2x21x21xf32>
    %823 = vector.shape_cast %822 : vector<1x2x21x21xf32> to vector<2x21x21xf32>
    %824 = vector.broadcast %821 : f32 to vector<2x21x21xf32>
    %825 = arith.mulf %823, %824 : vector<2x21x21xf32>
    %826 = arith.addf %820, %825 : vector<2x21x21xf32>
    %c118 = arith.constant 118 : index
    %827 = memref.load %arg1[%c118] : memref<220xf32, #tpu.memory_space<smem>>
    %c18_584 = arith.constant 18 : index
    %c0_585 = arith.constant 0 : index
    %c0_586 = arith.constant 0 : index
    %c0_587 = arith.constant 0 : index
    %828 = vector.load %arg3[%c18_584, %c0_585, %c0_586, %c0_587] : memref<20x2x21x21xf32, #tpu.memory_space<vmem>>, vector<1x2x21x21xf32>
    %829 = vector.shape_cast %828 : vector<1x2x21x21xf32> to vector<2x21x21xf32>
    %830 = vector.broadcast %827 : f32 to vector<2x21x21xf32>
    %831 = arith.mulf %829, %830 : vector<2x21x21xf32>
    %832 = arith.addf %826, %831 : vector<2x21x21xf32>
    %c119 = arith.constant 119 : index
    %833 = memref.load %arg1[%c119] : memref<220xf32, #tpu.memory_space<smem>>
    %c19_588 = arith.constant 19 : index
    %c0_589 = arith.constant 0 : index
    %c0_590 = arith.constant 0 : index
    %c0_591 = arith.constant 0 : index
    %834 = vector.load %arg3[%c19_588, %c0_589, %c0_590, %c0_591] : memref<20x2x21x21xf32, #tpu.memory_space<vmem>>, vector<1x2x21x21xf32>
    %835 = vector.shape_cast %834 : vector<1x2x21x21xf32> to vector<2x21x21xf32>
    %836 = vector.broadcast %833 : f32 to vector<2x21x21xf32>
    %837 = arith.mulf %835, %836 : vector<2x21x21xf32>
    %838 = arith.addf %832, %837 : vector<2x21x21xf32>
    %cst_592 = arith.constant 0.000000e+00 : f32
    %839 = vector.broadcast %cst_592 : f32 to vector<2x21x21xf32>
    %840 = arith.cmpf ogt, %838, %839 : vector<2x21x21xf32>
    %cst_593 = arith.constant -1.000000e-01 : f32
    %841 = vector.broadcast %cst_593 : f32 to vector<2x21x21xf32>
    %842 = arith.mulf %838, %841 : vector<2x21x21xf32>
    %843 = arith.select %840, %838, %842 : vector<2x21x21xi1>, vector<2x21x21xf32>
    %c0_594 = arith.constant 0 : index
    %c5_595 = arith.constant 5 : index
    %c0_596 = arith.constant 0 : index
    %c0_597 = arith.constant 0 : index
    %844 = vector.load %arg2[%c0_594, %c5_595, %c0_596, %c0_597] : memref<2x11x21x21xf32, #tpu.memory_space<vmem>>, vector<2x1x21x21xf32>
    %845 = vector.shape_cast %844 : vector<2x1x21x21xf32> to vector<2x21x21xf32>
    %846 = vector.shape_cast %843 : vector<2x21x21xf32> to vector<2x1x21x21xf32>
    tpu.vector_store %arg2[%c0_594, %c5_595, %c0_596, %c0_597], %846 {strides = array<i32>} : memref<2x11x21x21xf32, #tpu.memory_space<vmem>>, vector<2x1x21x21xf32>,
    %c120 = arith.constant 120 : index
    %847 = memref.load %arg1[%c120] : memref<220xf32, #tpu.memory_space<smem>>
    %c0_598 = arith.constant 0 : index
    %c0_599 = arith.constant 0 : index
    %c0_600 = arith.constant 0 : index
    %c0_601 = arith.constant 0 : index
    %848 = vector.load %arg3[%c0_598, %c0_599, %c0_600, %c0_601] : memref<20x2x21x21xf32, #tpu.memory_space<vmem>>, vector<1x2x21x21xf32>
    %849 = vector.shape_cast %848 : vector<1x2x21x21xf32> to vector<2x21x21xf32>
    %850 = vector.broadcast %847 : f32 to vector<2x21x21xf32>
    %851 = arith.mulf %849, %850 : vector<2x21x21xf32>
    %c121 = arith.constant 121 : index
    %852 = memref.load %arg1[%c121] : memref<220xf32, #tpu.memory_space<smem>>
    %c1_602 = arith.constant 1 : index
    %c0_603 = arith.constant 0 : index
    %c0_604 = arith.constant 0 : index
    %c0_605 = arith.constant 0 : index
    %853 = vector.load %arg3[%c1_602, %c0_603, %c0_604, %c0_605] : memref<20x2x21x21xf32, #tpu.memory_space<vmem>>, vector<1x2x21x21xf32>
    %854 = vector.shape_cast %853 : vector<1x2x21x21xf32> to vector<2x21x21xf32>
    %855 = vector.broadcast %852 : f32 to vector<2x21x21xf32>
    %856 = arith.mulf %854, %855 : vector<2x21x21xf32>
    %857 = arith.addf %851, %856 : vector<2x21x21xf32>
    %c122 = arith.constant 122 : index
    %858 = memref.load %arg1[%c122] : memref<220xf32, #tpu.memory_space<smem>>
    %c2_606 = arith.constant 2 : index
    %c0_607 = arith.constant 0 : index
    %c0_608 = arith.constant 0 : index
    %c0_609 = arith.constant 0 : index
    %859 = vector.load %arg3[%c2_606, %c0_607, %c0_608, %c0_609] : memref<20x2x21x21xf32, #tpu.memory_space<vmem>>, vector<1x2x21x21xf32>
    %860 = vector.shape_cast %859 : vector<1x2x21x21xf32> to vector<2x21x21xf32>
    %861 = vector.broadcast %858 : f32 to vector<2x21x21xf32>
    %862 = arith.mulf %860, %861 : vector<2x21x21xf32>
    %863 = arith.addf %857, %862 : vector<2x21x21xf32>
    %c123 = arith.constant 123 : index
    %864 = memref.load %arg1[%c123] : memref<220xf32, #tpu.memory_space<smem>>
    %c3_610 = arith.constant 3 : index
    %c0_611 = arith.constant 0 : index
    %c0_612 = arith.constant 0 : index
    %c0_613 = arith.constant 0 : index
    %865 = vector.load %arg3[%c3_610, %c0_611, %c0_612, %c0_613] : memref<20x2x21x21xf32, #tpu.memory_space<vmem>>, vector<1x2x21x21xf32>
    %866 = vector.shape_cast %865 : vector<1x2x21x21xf32> to vector<2x21x21xf32>
    %867 = vector.broadcast %864 : f32 to vector<2x21x21xf32>
    %868 = arith.mulf %866, %867 : vector<2x21x21xf32>
    %869 = arith.addf %863, %868 : vector<2x21x21xf32>
    %c124 = arith.constant 124 : index
    %870 = memref.load %arg1[%c124] : memref<220xf32, #tpu.memory_space<smem>>
    %c4_614 = arith.constant 4 : index
    %c0_615 = arith.constant 0 : index
    %c0_616 = arith.constant 0 : index
    %c0_617 = arith.constant 0 : index
    %871 = vector.load %arg3[%c4_614, %c0_615, %c0_616, %c0_617] : memref<20x2x21x21xf32, #tpu.memory_space<vmem>>, vector<1x2x21x21xf32>
    %872 = vector.shape_cast %871 : vector<1x2x21x21xf32> to vector<2x21x21xf32>
    %873 = vector.broadcast %870 : f32 to vector<2x21x21xf32>
    %874 = arith.mulf %872, %873 : vector<2x21x21xf32>
    %875 = arith.addf %869, %874 : vector<2x21x21xf32>
    %c125 = arith.constant 125 : index
    %876 = memref.load %arg1[%c125] : memref<220xf32, #tpu.memory_space<smem>>
    %c5_618 = arith.constant 5 : index
    %c0_619 = arith.constant 0 : index
    %c0_620 = arith.constant 0 : index
    %c0_621 = arith.constant 0 : index
    %877 = vector.load %arg3[%c5_618, %c0_619, %c0_620, %c0_621] : memref<20x2x21x21xf32, #tpu.memory_space<vmem>>, vector<1x2x21x21xf32>
    %878 = vector.shape_cast %877 : vector<1x2x21x21xf32> to vector<2x21x21xf32>
    %879 = vector.broadcast %876 : f32 to vector<2x21x21xf32>
    %880 = arith.mulf %878, %879 : vector<2x21x21xf32>
    %881 = arith.addf %875, %880 : vector<2x21x21xf32>
    %c126 = arith.constant 126 : index
    %882 = memref.load %arg1[%c126] : memref<220xf32, #tpu.memory_space<smem>>
    %c6_622 = arith.constant 6 : index
    %c0_623 = arith.constant 0 : index
    %c0_624 = arith.constant 0 : index
    %c0_625 = arith.constant 0 : index
    %883 = vector.load %arg3[%c6_622, %c0_623, %c0_624, %c0_625] : memref<20x2x21x21xf32, #tpu.memory_space<vmem>>, vector<1x2x21x21xf32>
    %884 = vector.shape_cast %883 : vector<1x2x21x21xf32> to vector<2x21x21xf32>
    %885 = vector.broadcast %882 : f32 to vector<2x21x21xf32>
    %886 = arith.mulf %884, %885 : vector<2x21x21xf32>
    %887 = arith.addf %881, %886 : vector<2x21x21xf32>
    %c127 = arith.constant 127 : index
    %888 = memref.load %arg1[%c127] : memref<220xf32, #tpu.memory_space<smem>>
    %c7_626 = arith.constant 7 : index
    %c0_627 = arith.constant 0 : index
    %c0_628 = arith.constant 0 : index
    %c0_629 = arith.constant 0 : index
    %889 = vector.load %arg3[%c7_626, %c0_627, %c0_628, %c0_629] : memref<20x2x21x21xf32, #tpu.memory_space<vmem>>, vector<1x2x21x21xf32>
    %890 = vector.shape_cast %889 : vector<1x2x21x21xf32> to vector<2x21x21xf32>
    %891 = vector.broadcast %888 : f32 to vector<2x21x21xf32>
    %892 = arith.mulf %890, %891 : vector<2x21x21xf32>
    %893 = arith.addf %887, %892 : vector<2x21x21xf32>
    %c128 = arith.constant 128 : index
    %894 = memref.load %arg1[%c128] : memref<220xf32, #tpu.memory_space<smem>>
    %c8_630 = arith.constant 8 : index
    %c0_631 = arith.constant 0 : index
    %c0_632 = arith.constant 0 : index
    %c0_633 = arith.constant 0 : index
    %895 = vector.load %arg3[%c8_630, %c0_631, %c0_632, %c0_633] : memref<20x2x21x21xf32, #tpu.memory_space<vmem>>, vector<1x2x21x21xf32>
    %896 = vector.shape_cast %895 : vector<1x2x21x21xf32> to vector<2x21x21xf32>
    %897 = vector.broadcast %894 : f32 to vector<2x21x21xf32>
    %898 = arith.mulf %896, %897 : vector<2x21x21xf32>
    %899 = arith.addf %893, %898 : vector<2x21x21xf32>
    %c129 = arith.constant 129 : index
    %900 = memref.load %arg1[%c129] : memref<220xf32, #tpu.memory_space<smem>>
    %c9_634 = arith.constant 9 : index
    %c0_635 = arith.constant 0 : index
    %c0_636 = arith.constant 0 : index
    %c0_637 = arith.constant 0 : index
    %901 = vector.load %arg3[%c9_634, %c0_635, %c0_636, %c0_637] : memref<20x2x21x21xf32, #tpu.memory_space<vmem>>, vector<1x2x21x21xf32>
    %902 = vector.shape_cast %901 : vector<1x2x21x21xf32> to vector<2x21x21xf32>
    %903 = vector.broadcast %900 : f32 to vector<2x21x21xf32>
    %904 = arith.mulf %902, %903 : vector<2x21x21xf32>
    %905 = arith.addf %899, %904 : vector<2x21x21xf32>
    %c130 = arith.constant 130 : index
    %906 = memref.load %arg1[%c130] : memref<220xf32, #tpu.memory_space<smem>>
    %c10_638 = arith.constant 10 : index
    %c0_639 = arith.constant 0 : index
    %c0_640 = arith.constant 0 : index
    %c0_641 = arith.constant 0 : index
    %907 = vector.load %arg3[%c10_638, %c0_639, %c0_640, %c0_641] : memref<20x2x21x21xf32, #tpu.memory_space<vmem>>, vector<1x2x21x21xf32>
    %908 = vector.shape_cast %907 : vector<1x2x21x21xf32> to vector<2x21x21xf32>
    %909 = vector.broadcast %906 : f32 to vector<2x21x21xf32>
    %910 = arith.mulf %908, %909 : vector<2x21x21xf32>
    %911 = arith.addf %905, %910 : vector<2x21x21xf32>
    %c131 = arith.constant 131 : index
    %912 = memref.load %arg1[%c131] : memref<220xf32, #tpu.memory_space<smem>>
    %c11_642 = arith.constant 11 : index
    %c0_643 = arith.constant 0 : index
    %c0_644 = arith.constant 0 : index
    %c0_645 = arith.constant 0 : index
    %913 = vector.load %arg3[%c11_642, %c0_643, %c0_644, %c0_645] : memref<20x2x21x21xf32, #tpu.memory_space<vmem>>, vector<1x2x21x21xf32>
    %914 = vector.shape_cast %913 : vector<1x2x21x21xf32> to vector<2x21x21xf32>
    %915 = vector.broadcast %912 : f32 to vector<2x21x21xf32>
    %916 = arith.mulf %914, %915 : vector<2x21x21xf32>
    %917 = arith.addf %911, %916 : vector<2x21x21xf32>
    %c132 = arith.constant 132 : index
    %918 = memref.load %arg1[%c132] : memref<220xf32, #tpu.memory_space<smem>>
    %c12_646 = arith.constant 12 : index
    %c0_647 = arith.constant 0 : index
    %c0_648 = arith.constant 0 : index
    %c0_649 = arith.constant 0 : index
    %919 = vector.load %arg3[%c12_646, %c0_647, %c0_648, %c0_649] : memref<20x2x21x21xf32, #tpu.memory_space<vmem>>, vector<1x2x21x21xf32>
    %920 = vector.shape_cast %919 : vector<1x2x21x21xf32> to vector<2x21x21xf32>
    %921 = vector.broadcast %918 : f32 to vector<2x21x21xf32>
    %922 = arith.mulf %920, %921 : vector<2x21x21xf32>
    %923 = arith.addf %917, %922 : vector<2x21x21xf32>
    %c133 = arith.constant 133 : index
    %924 = memref.load %arg1[%c133] : memref<220xf32, #tpu.memory_space<smem>>
    %c13_650 = arith.constant 13 : index
    %c0_651 = arith.constant 0 : index
    %c0_652 = arith.constant 0 : index
    %c0_653 = arith.constant 0 : index
    %925 = vector.load %arg3[%c13_650, %c0_651, %c0_652, %c0_653] : memref<20x2x21x21xf32, #tpu.memory_space<vmem>>, vector<1x2x21x21xf32>
    %926 = vector.shape_cast %925 : vector<1x2x21x21xf32> to vector<2x21x21xf32>
    %927 = vector.broadcast %924 : f32 to vector<2x21x21xf32>
    %928 = arith.mulf %926, %927 : vector<2x21x21xf32>
    %929 = arith.addf %923, %928 : vector<2x21x21xf32>
    %c134 = arith.constant 134 : index
    %930 = memref.load %arg1[%c134] : memref<220xf32, #tpu.memory_space<smem>>
    %c14_654 = arith.constant 14 : index
    %c0_655 = arith.constant 0 : index
    %c0_656 = arith.constant 0 : index
    %c0_657 = arith.constant 0 : index
    %931 = vector.load %arg3[%c14_654, %c0_655, %c0_656, %c0_657] : memref<20x2x21x21xf32, #tpu.memory_space<vmem>>, vector<1x2x21x21xf32>
    %932 = vector.shape_cast %931 : vector<1x2x21x21xf32> to vector<2x21x21xf32>
    %933 = vector.broadcast %930 : f32 to vector<2x21x21xf32>
    %934 = arith.mulf %932, %933 : vector<2x21x21xf32>
    %935 = arith.addf %929, %934 : vector<2x21x21xf32>
    %c135 = arith.constant 135 : index
    %936 = memref.load %arg1[%c135] : memref<220xf32, #tpu.memory_space<smem>>
    %c15_658 = arith.constant 15 : index
    %c0_659 = arith.constant 0 : index
    %c0_660 = arith.constant 0 : index
    %c0_661 = arith.constant 0 : index
    %937 = vector.load %arg3[%c15_658, %c0_659, %c0_660, %c0_661] : memref<20x2x21x21xf32, #tpu.memory_space<vmem>>, vector<1x2x21x21xf32>
    %938 = vector.shape_cast %937 : vector<1x2x21x21xf32> to vector<2x21x21xf32>
    %939 = vector.broadcast %936 : f32 to vector<2x21x21xf32>
    %940 = arith.mulf %938, %939 : vector<2x21x21xf32>
    %941 = arith.addf %935, %940 : vector<2x21x21xf32>
    %c136 = arith.constant 136 : index
    %942 = memref.load %arg1[%c136] : memref<220xf32, #tpu.memory_space<smem>>
    %c16_662 = arith.constant 16 : index
    %c0_663 = arith.constant 0 : index
    %c0_664 = arith.constant 0 : index
    %c0_665 = arith.constant 0 : index
    %943 = vector.load %arg3[%c16_662, %c0_663, %c0_664, %c0_665] : memref<20x2x21x21xf32, #tpu.memory_space<vmem>>, vector<1x2x21x21xf32>
    %944 = vector.shape_cast %943 : vector<1x2x21x21xf32> to vector<2x21x21xf32>
    %945 = vector.broadcast %942 : f32 to vector<2x21x21xf32>
    %946 = arith.mulf %944, %945 : vector<2x21x21xf32>
    %947 = arith.addf %941, %946 : vector<2x21x21xf32>
    %c137 = arith.constant 137 : index
    %948 = memref.load %arg1[%c137] : memref<220xf32, #tpu.memory_space<smem>>
    %c17_666 = arith.constant 17 : index
    %c0_667 = arith.constant 0 : index
    %c0_668 = arith.constant 0 : index
    %c0_669 = arith.constant 0 : index
    %949 = vector.load %arg3[%c17_666, %c0_667, %c0_668, %c0_669] : memref<20x2x21x21xf32, #tpu.memory_space<vmem>>, vector<1x2x21x21xf32>
    %950 = vector.shape_cast %949 : vector<1x2x21x21xf32> to vector<2x21x21xf32>
    %951 = vector.broadcast %948 : f32 to vector<2x21x21xf32>
    %952 = arith.mulf %950, %951 : vector<2x21x21xf32>
    %953 = arith.addf %947, %952 : vector<2x21x21xf32>
    %c138 = arith.constant 138 : index
    %954 = memref.load %arg1[%c138] : memref<220xf32, #tpu.memory_space<smem>>
    %c18_670 = arith.constant 18 : index
    %c0_671 = arith.constant 0 : index
    %c0_672 = arith.constant 0 : index
    %c0_673 = arith.constant 0 : index
    %955 = vector.load %arg3[%c18_670, %c0_671, %c0_672, %c0_673] : memref<20x2x21x21xf32, #tpu.memory_space<vmem>>, vector<1x2x21x21xf32>
    %956 = vector.shape_cast %955 : vector<1x2x21x21xf32> to vector<2x21x21xf32>
    %957 = vector.broadcast %954 : f32 to vector<2x21x21xf32>
    %958 = arith.mulf %956, %957 : vector<2x21x21xf32>
    %959 = arith.addf %953, %958 : vector<2x21x21xf32>
    %c139 = arith.constant 139 : index
    %960 = memref.load %arg1[%c139] : memref<220xf32, #tpu.memory_space<smem>>
    %c19_674 = arith.constant 19 : index
    %c0_675 = arith.constant 0 : index
    %c0_676 = arith.constant 0 : index
    %c0_677 = arith.constant 0 : index
    %961 = vector.load %arg3[%c19_674, %c0_675, %c0_676, %c0_677] : memref<20x2x21x21xf32, #tpu.memory_space<vmem>>, vector<1x2x21x21xf32>
    %962 = vector.shape_cast %961 : vector<1x2x21x21xf32> to vector<2x21x21xf32>
    %963 = vector.broadcast %960 : f32 to vector<2x21x21xf32>
    %964 = arith.mulf %962, %963 : vector<2x21x21xf32>
    %965 = arith.addf %959, %964 : vector<2x21x21xf32>
    %cst_678 = arith.constant 0.000000e+00 : f32
    %966 = vector.broadcast %cst_678 : f32 to vector<2x21x21xf32>
    %967 = arith.cmpf ogt, %965, %966 : vector<2x21x21xf32>
    %cst_679 = arith.constant -1.000000e-01 : f32
    %968 = vector.broadcast %cst_679 : f32 to vector<2x21x21xf32>
    %969 = arith.mulf %965, %968 : vector<2x21x21xf32>
    %970 = arith.select %967, %965, %969 : vector<2x21x21xi1>, vector<2x21x21xf32>
    %c0_680 = arith.constant 0 : index
    %c6_681 = arith.constant 6 : index
    %c0_682 = arith.constant 0 : index
    %c0_683 = arith.constant 0 : index
    %971 = vector.load %arg2[%c0_680, %c6_681, %c0_682, %c0_683] : memref<2x11x21x21xf32, #tpu.memory_space<vmem>>, vector<2x1x21x21xf32>
    %972 = vector.shape_cast %971 : vector<2x1x21x21xf32> to vector<2x21x21xf32>
    %973 = vector.shape_cast %970 : vector<2x21x21xf32> to vector<2x1x21x21xf32>
    tpu.vector_store %arg2[%c0_680, %c6_681, %c0_682, %c0_683], %973 {strides = array<i32>} : memref<2x11x21x21xf32, #tpu.memory_space<vmem>>, vector<2x1x21x21xf32>,
    %c140 = arith.constant 140 : index
    %974 = memref.load %arg1[%c140] : memref<220xf32, #tpu.memory_space<smem>>
    %c0_684 = arith.constant 0 : index
    %c0_685 = arith.constant 0 : index
    %c0_686 = arith.constant 0 : index
    %c0_687 = arith.constant 0 : index
    %975 = vector.load %arg3[%c0_684, %c0_685, %c0_686, %c0_687] : memref<20x2x21x21xf32, #tpu.memory_space<vmem>>, vector<1x2x21x21xf32>
    %976 = vector.shape_cast %975 : vector<1x2x21x21xf32> to vector<2x21x21xf32>
    %977 = vector.broadcast %974 : f32 to vector<2x21x21xf32>
    %978 = arith.mulf %976, %977 : vector<2x21x21xf32>
    %c141 = arith.constant 141 : index
    %979 = memref.load %arg1[%c141] : memref<220xf32, #tpu.memory_space<smem>>
    %c1_688 = arith.constant 1 : index
    %c0_689 = arith.constant 0 : index
    %c0_690 = arith.constant 0 : index
    %c0_691 = arith.constant 0 : index
    %980 = vector.load %arg3[%c1_688, %c0_689, %c0_690, %c0_691] : memref<20x2x21x21xf32, #tpu.memory_space<vmem>>, vector<1x2x21x21xf32>
    %981 = vector.shape_cast %980 : vector<1x2x21x21xf32> to vector<2x21x21xf32>
    %982 = vector.broadcast %979 : f32 to vector<2x21x21xf32>
    %983 = arith.mulf %981, %982 : vector<2x21x21xf32>
    %984 = arith.addf %978, %983 : vector<2x21x21xf32>
    %c142 = arith.constant 142 : index
    %985 = memref.load %arg1[%c142] : memref<220xf32, #tpu.memory_space<smem>>
    %c2_692 = arith.constant 2 : index
    %c0_693 = arith.constant 0 : index
    %c0_694 = arith.constant 0 : index
    %c0_695 = arith.constant 0 : index
    %986 = vector.load %arg3[%c2_692, %c0_693, %c0_694, %c0_695] : memref<20x2x21x21xf32, #tpu.memory_space<vmem>>, vector<1x2x21x21xf32>
    %987 = vector.shape_cast %986 : vector<1x2x21x21xf32> to vector<2x21x21xf32>
    %988 = vector.broadcast %985 : f32 to vector<2x21x21xf32>
    %989 = arith.mulf %987, %988 : vector<2x21x21xf32>
    %990 = arith.addf %984, %989 : vector<2x21x21xf32>
    %c143 = arith.constant 143 : index
    %991 = memref.load %arg1[%c143] : memref<220xf32, #tpu.memory_space<smem>>
    %c3_696 = arith.constant 3 : index
    %c0_697 = arith.constant 0 : index
    %c0_698 = arith.constant 0 : index
    %c0_699 = arith.constant 0 : index
    %992 = vector.load %arg3[%c3_696, %c0_697, %c0_698, %c0_699] : memref<20x2x21x21xf32, #tpu.memory_space<vmem>>, vector<1x2x21x21xf32>
    %993 = vector.shape_cast %992 : vector<1x2x21x21xf32> to vector<2x21x21xf32>
    %994 = vector.broadcast %991 : f32 to vector<2x21x21xf32>
    %995 = arith.mulf %993, %994 : vector<2x21x21xf32>
    %996 = arith.addf %990, %995 : vector<2x21x21xf32>
    %c144 = arith.constant 144 : index
    %997 = memref.load %arg1[%c144] : memref<220xf32, #tpu.memory_space<smem>>
    %c4_700 = arith.constant 4 : index
    %c0_701 = arith.constant 0 : index
    %c0_702 = arith.constant 0 : index
    %c0_703 = arith.constant 0 : index
    %998 = vector.load %arg3[%c4_700, %c0_701, %c0_702, %c0_703] : memref<20x2x21x21xf32, #tpu.memory_space<vmem>>, vector<1x2x21x21xf32>
    %999 = vector.shape_cast %998 : vector<1x2x21x21xf32> to vector<2x21x21xf32>
    %1000 = vector.broadcast %997 : f32 to vector<2x21x21xf32>
    %1001 = arith.mulf %999, %1000 : vector<2x21x21xf32>
    %1002 = arith.addf %996, %1001 : vector<2x21x21xf32>
    %c145 = arith.constant 145 : index
    %1003 = memref.load %arg1[%c145] : memref<220xf32, #tpu.memory_space<smem>>
    %c5_704 = arith.constant 5 : index
    %c0_705 = arith.constant 0 : index
    %c0_706 = arith.constant 0 : index
    %c0_707 = arith.constant 0 : index
    %1004 = vector.load %arg3[%c5_704, %c0_705, %c0_706, %c0_707] : memref<20x2x21x21xf32, #tpu.memory_space<vmem>>, vector<1x2x21x21xf32>
    %1005 = vector.shape_cast %1004 : vector<1x2x21x21xf32> to vector<2x21x21xf32>
    %1006 = vector.broadcast %1003 : f32 to vector<2x21x21xf32>
    %1007 = arith.mulf %1005, %1006 : vector<2x21x21xf32>
    %1008 = arith.addf %1002, %1007 : vector<2x21x21xf32>
    %c146 = arith.constant 146 : index
    %1009 = memref.load %arg1[%c146] : memref<220xf32, #tpu.memory_space<smem>>
    %c6_708 = arith.constant 6 : index
    %c0_709 = arith.constant 0 : index
    %c0_710 = arith.constant 0 : index
    %c0_711 = arith.constant 0 : index
    %1010 = vector.load %arg3[%c6_708, %c0_709, %c0_710, %c0_711] : memref<20x2x21x21xf32, #tpu.memory_space<vmem>>, vector<1x2x21x21xf32>
    %1011 = vector.shape_cast %1010 : vector<1x2x21x21xf32> to vector<2x21x21xf32>
    %1012 = vector.broadcast %1009 : f32 to vector<2x21x21xf32>
    %1013 = arith.mulf %1011, %1012 : vector<2x21x21xf32>
    %1014 = arith.addf %1008, %1013 : vector<2x21x21xf32>
    %c147 = arith.constant 147 : index
    %1015 = memref.load %arg1[%c147] : memref<220xf32, #tpu.memory_space<smem>>
    %c7_712 = arith.constant 7 : index
    %c0_713 = arith.constant 0 : index
    %c0_714 = arith.constant 0 : index
    %c0_715 = arith.constant 0 : index
    %1016 = vector.load %arg3[%c7_712, %c0_713, %c0_714, %c0_715] : memref<20x2x21x21xf32, #tpu.memory_space<vmem>>, vector<1x2x21x21xf32>
    %1017 = vector.shape_cast %1016 : vector<1x2x21x21xf32> to vector<2x21x21xf32>
    %1018 = vector.broadcast %1015 : f32 to vector<2x21x21xf32>
    %1019 = arith.mulf %1017, %1018 : vector<2x21x21xf32>
    %1020 = arith.addf %1014, %1019 : vector<2x21x21xf32>
    %c148 = arith.constant 148 : index
    %1021 = memref.load %arg1[%c148] : memref<220xf32, #tpu.memory_space<smem>>
    %c8_716 = arith.constant 8 : index
    %c0_717 = arith.constant 0 : index
    %c0_718 = arith.constant 0 : index
    %c0_719 = arith.constant 0 : index
    %1022 = vector.load %arg3[%c8_716, %c0_717, %c0_718, %c0_719] : memref<20x2x21x21xf32, #tpu.memory_space<vmem>>, vector<1x2x21x21xf32>
    %1023 = vector.shape_cast %1022 : vector<1x2x21x21xf32> to vector<2x21x21xf32>
    %1024 = vector.broadcast %1021 : f32 to vector<2x21x21xf32>
    %1025 = arith.mulf %1023, %1024 : vector<2x21x21xf32>
    %1026 = arith.addf %1020, %1025 : vector<2x21x21xf32>
    %c149 = arith.constant 149 : index
    %1027 = memref.load %arg1[%c149] : memref<220xf32, #tpu.memory_space<smem>>
    %c9_720 = arith.constant 9 : index
    %c0_721 = arith.constant 0 : index
    %c0_722 = arith.constant 0 : index
    %c0_723 = arith.constant 0 : index
    %1028 = vector.load %arg3[%c9_720, %c0_721, %c0_722, %c0_723] : memref<20x2x21x21xf32, #tpu.memory_space<vmem>>, vector<1x2x21x21xf32>
    %1029 = vector.shape_cast %1028 : vector<1x2x21x21xf32> to vector<2x21x21xf32>
    %1030 = vector.broadcast %1027 : f32 to vector<2x21x21xf32>
    %1031 = arith.mulf %1029, %1030 : vector<2x21x21xf32>
    %1032 = arith.addf %1026, %1031 : vector<2x21x21xf32>
    %c150 = arith.constant 150 : index
    %1033 = memref.load %arg1[%c150] : memref<220xf32, #tpu.memory_space<smem>>
    %c10_724 = arith.constant 10 : index
    %c0_725 = arith.constant 0 : index
    %c0_726 = arith.constant 0 : index
    %c0_727 = arith.constant 0 : index
    %1034 = vector.load %arg3[%c10_724, %c0_725, %c0_726, %c0_727] : memref<20x2x21x21xf32, #tpu.memory_space<vmem>>, vector<1x2x21x21xf32>
    %1035 = vector.shape_cast %1034 : vector<1x2x21x21xf32> to vector<2x21x21xf32>
    %1036 = vector.broadcast %1033 : f32 to vector<2x21x21xf32>
    %1037 = arith.mulf %1035, %1036 : vector<2x21x21xf32>
    %1038 = arith.addf %1032, %1037 : vector<2x21x21xf32>
    %c151 = arith.constant 151 : index
    %1039 = memref.load %arg1[%c151] : memref<220xf32, #tpu.memory_space<smem>>
    %c11_728 = arith.constant 11 : index
    %c0_729 = arith.constant 0 : index
    %c0_730 = arith.constant 0 : index
    %c0_731 = arith.constant 0 : index
    %1040 = vector.load %arg3[%c11_728, %c0_729, %c0_730, %c0_731] : memref<20x2x21x21xf32, #tpu.memory_space<vmem>>, vector<1x2x21x21xf32>
    %1041 = vector.shape_cast %1040 : vector<1x2x21x21xf32> to vector<2x21x21xf32>
    %1042 = vector.broadcast %1039 : f32 to vector<2x21x21xf32>
    %1043 = arith.mulf %1041, %1042 : vector<2x21x21xf32>
    %1044 = arith.addf %1038, %1043 : vector<2x21x21xf32>
    %c152 = arith.constant 152 : index
    %1045 = memref.load %arg1[%c152] : memref<220xf32, #tpu.memory_space<smem>>
    %c12_732 = arith.constant 12 : index
    %c0_733 = arith.constant 0 : index
    %c0_734 = arith.constant 0 : index
    %c0_735 = arith.constant 0 : index
    %1046 = vector.load %arg3[%c12_732, %c0_733, %c0_734, %c0_735] : memref<20x2x21x21xf32, #tpu.memory_space<vmem>>, vector<1x2x21x21xf32>
    %1047 = vector.shape_cast %1046 : vector<1x2x21x21xf32> to vector<2x21x21xf32>
    %1048 = vector.broadcast %1045 : f32 to vector<2x21x21xf32>
    %1049 = arith.mulf %1047, %1048 : vector<2x21x21xf32>
    %1050 = arith.addf %1044, %1049 : vector<2x21x21xf32>
    %c153 = arith.constant 153 : index
    %1051 = memref.load %arg1[%c153] : memref<220xf32, #tpu.memory_space<smem>>
    %c13_736 = arith.constant 13 : index
    %c0_737 = arith.constant 0 : index
    %c0_738 = arith.constant 0 : index
    %c0_739 = arith.constant 0 : index
    %1052 = vector.load %arg3[%c13_736, %c0_737, %c0_738, %c0_739] : memref<20x2x21x21xf32, #tpu.memory_space<vmem>>, vector<1x2x21x21xf32>
    %1053 = vector.shape_cast %1052 : vector<1x2x21x21xf32> to vector<2x21x21xf32>
    %1054 = vector.broadcast %1051 : f32 to vector<2x21x21xf32>
    %1055 = arith.mulf %1053, %1054 : vector<2x21x21xf32>
    %1056 = arith.addf %1050, %1055 : vector<2x21x21xf32>
    %c154 = arith.constant 154 : index
    %1057 = memref.load %arg1[%c154] : memref<220xf32, #tpu.memory_space<smem>>
    %c14_740 = arith.constant 14 : index
    %c0_741 = arith.constant 0 : index
    %c0_742 = arith.constant 0 : index
    %c0_743 = arith.constant 0 : index
    %1058 = vector.load %arg3[%c14_740, %c0_741, %c0_742, %c0_743] : memref<20x2x21x21xf32, #tpu.memory_space<vmem>>, vector<1x2x21x21xf32>
    %1059 = vector.shape_cast %1058 : vector<1x2x21x21xf32> to vector<2x21x21xf32>
    %1060 = vector.broadcast %1057 : f32 to vector<2x21x21xf32>
    %1061 = arith.mulf %1059, %1060 : vector<2x21x21xf32>
    %1062 = arith.addf %1056, %1061 : vector<2x21x21xf32>
    %c155 = arith.constant 155 : index
    %1063 = memref.load %arg1[%c155] : memref<220xf32, #tpu.memory_space<smem>>
    %c15_744 = arith.constant 15 : index
    %c0_745 = arith.constant 0 : index
    %c0_746 = arith.constant 0 : index
    %c0_747 = arith.constant 0 : index
    %1064 = vector.load %arg3[%c15_744, %c0_745, %c0_746, %c0_747] : memref<20x2x21x21xf32, #tpu.memory_space<vmem>>, vector<1x2x21x21xf32>
    %1065 = vector.shape_cast %1064 : vector<1x2x21x21xf32> to vector<2x21x21xf32>
    %1066 = vector.broadcast %1063 : f32 to vector<2x21x21xf32>
    %1067 = arith.mulf %1065, %1066 : vector<2x21x21xf32>
    %1068 = arith.addf %1062, %1067 : vector<2x21x21xf32>
    %c156 = arith.constant 156 : index
    %1069 = memref.load %arg1[%c156] : memref<220xf32, #tpu.memory_space<smem>>
    %c16_748 = arith.constant 16 : index
    %c0_749 = arith.constant 0 : index
    %c0_750 = arith.constant 0 : index
    %c0_751 = arith.constant 0 : index
    %1070 = vector.load %arg3[%c16_748, %c0_749, %c0_750, %c0_751] : memref<20x2x21x21xf32, #tpu.memory_space<vmem>>, vector<1x2x21x21xf32>
    %1071 = vector.shape_cast %1070 : vector<1x2x21x21xf32> to vector<2x21x21xf32>
    %1072 = vector.broadcast %1069 : f32 to vector<2x21x21xf32>
    %1073 = arith.mulf %1071, %1072 : vector<2x21x21xf32>
    %1074 = arith.addf %1068, %1073 : vector<2x21x21xf32>
    %c157 = arith.constant 157 : index
    %1075 = memref.load %arg1[%c157] : memref<220xf32, #tpu.memory_space<smem>>
    %c17_752 = arith.constant 17 : index
    %c0_753 = arith.constant 0 : index
    %c0_754 = arith.constant 0 : index
    %c0_755 = arith.constant 0 : index
    %1076 = vector.load %arg3[%c17_752, %c0_753, %c0_754, %c0_755] : memref<20x2x21x21xf32, #tpu.memory_space<vmem>>, vector<1x2x21x21xf32>
    %1077 = vector.shape_cast %1076 : vector<1x2x21x21xf32> to vector<2x21x21xf32>
    %1078 = vector.broadcast %1075 : f32 to vector<2x21x21xf32>
    %1079 = arith.mulf %1077, %1078 : vector<2x21x21xf32>
    %1080 = arith.addf %1074, %1079 : vector<2x21x21xf32>
    %c158 = arith.constant 158 : index
    %1081 = memref.load %arg1[%c158] : memref<220xf32, #tpu.memory_space<smem>>
    %c18_756 = arith.constant 18 : index
    %c0_757 = arith.constant 0 : index
    %c0_758 = arith.constant 0 : index
    %c0_759 = arith.constant 0 : index
    %1082 = vector.load %arg3[%c18_756, %c0_757, %c0_758, %c0_759] : memref<20x2x21x21xf32, #tpu.memory_space<vmem>>, vector<1x2x21x21xf32>
    %1083 = vector.shape_cast %1082 : vector<1x2x21x21xf32> to vector<2x21x21xf32>
    %1084 = vector.broadcast %1081 : f32 to vector<2x21x21xf32>
    %1085 = arith.mulf %1083, %1084 : vector<2x21x21xf32>
    %1086 = arith.addf %1080, %1085 : vector<2x21x21xf32>
    %c159 = arith.constant 159 : index
    %1087 = memref.load %arg1[%c159] : memref<220xf32, #tpu.memory_space<smem>>
    %c19_760 = arith.constant 19 : index
    %c0_761 = arith.constant 0 : index
    %c0_762 = arith.constant 0 : index
    %c0_763 = arith.constant 0 : index
    %1088 = vector.load %arg3[%c19_760, %c0_761, %c0_762, %c0_763] : memref<20x2x21x21xf32, #tpu.memory_space<vmem>>, vector<1x2x21x21xf32>
    %1089 = vector.shape_cast %1088 : vector<1x2x21x21xf32> to vector<2x21x21xf32>
    %1090 = vector.broadcast %1087 : f32 to vector<2x21x21xf32>
    %1091 = arith.mulf %1089, %1090 : vector<2x21x21xf32>
    %1092 = arith.addf %1086, %1091 : vector<2x21x21xf32>
    %cst_764 = arith.constant 0.000000e+00 : f32
    %1093 = vector.broadcast %cst_764 : f32 to vector<2x21x21xf32>
    %1094 = arith.cmpf ogt, %1092, %1093 : vector<2x21x21xf32>
    %cst_765 = arith.constant -1.000000e-01 : f32
    %1095 = vector.broadcast %cst_765 : f32 to vector<2x21x21xf32>
    %1096 = arith.mulf %1092, %1095 : vector<2x21x21xf32>
    %1097 = arith.select %1094, %1092, %1096 : vector<2x21x21xi1>, vector<2x21x21xf32>
    %c0_766 = arith.constant 0 : index
    %c7_767 = arith.constant 7 : index
    %c0_768 = arith.constant 0 : index
    %c0_769 = arith.constant 0 : index
    %1098 = vector.load %arg2[%c0_766, %c7_767, %c0_768, %c0_769] : memref<2x11x21x21xf32, #tpu.memory_space<vmem>>, vector<2x1x21x21xf32>
    %1099 = vector.shape_cast %1098 : vector<2x1x21x21xf32> to vector<2x21x21xf32>
    %1100 = vector.shape_cast %1097 : vector<2x21x21xf32> to vector<2x1x21x21xf32>
    tpu.vector_store %arg2[%c0_766, %c7_767, %c0_768, %c0_769], %1100 {strides = array<i32>} : memref<2x11x21x21xf32, #tpu.memory_space<vmem>>, vector<2x1x21x21xf32>,
    %c160 = arith.constant 160 : index
    %1101 = memref.load %arg1[%c160] : memref<220xf32, #tpu.memory_space<smem>>
    %c0_770 = arith.constant 0 : index
    %c0_771 = arith.constant 0 : index
    %c0_772 = arith.constant 0 : index
    %c0_773 = arith.constant 0 : index
    %1102 = vector.load %arg3[%c0_770, %c0_771, %c0_772, %c0_773] : memref<20x2x21x21xf32, #tpu.memory_space<vmem>>, vector<1x2x21x21xf32>
    %1103 = vector.shape_cast %1102 : vector<1x2x21x21xf32> to vector<2x21x21xf32>
    %1104 = vector.broadcast %1101 : f32 to vector<2x21x21xf32>
    %1105 = arith.mulf %1103, %1104 : vector<2x21x21xf32>
    %c161 = arith.constant 161 : index
    %1106 = memref.load %arg1[%c161] : memref<220xf32, #tpu.memory_space<smem>>
    %c1_774 = arith.constant 1 : index
    %c0_775 = arith.constant 0 : index
    %c0_776 = arith.constant 0 : index
    %c0_777 = arith.constant 0 : index
    %1107 = vector.load %arg3[%c1_774, %c0_775, %c0_776, %c0_777] : memref<20x2x21x21xf32, #tpu.memory_space<vmem>>, vector<1x2x21x21xf32>
    %1108 = vector.shape_cast %1107 : vector<1x2x21x21xf32> to vector<2x21x21xf32>
    %1109 = vector.broadcast %1106 : f32 to vector<2x21x21xf32>
    %1110 = arith.mulf %1108, %1109 : vector<2x21x21xf32>
    %1111 = arith.addf %1105, %1110 : vector<2x21x21xf32>
    %c162 = arith.constant 162 : index
    %1112 = memref.load %arg1[%c162] : memref<220xf32, #tpu.memory_space<smem>>
    %c2_778 = arith.constant 2 : index
    %c0_779 = arith.constant 0 : index
    %c0_780 = arith.constant 0 : index
    %c0_781 = arith.constant 0 : index
    %1113 = vector.load %arg3[%c2_778, %c0_779, %c0_780, %c0_781] : memref<20x2x21x21xf32, #tpu.memory_space<vmem>>, vector<1x2x21x21xf32>
    %1114 = vector.shape_cast %1113 : vector<1x2x21x21xf32> to vector<2x21x21xf32>
    %1115 = vector.broadcast %1112 : f32 to vector<2x21x21xf32>
    %1116 = arith.mulf %1114, %1115 : vector<2x21x21xf32>
    %1117 = arith.addf %1111, %1116 : vector<2x21x21xf32>
    %c163 = arith.constant 163 : index
    %1118 = memref.load %arg1[%c163] : memref<220xf32, #tpu.memory_space<smem>>
    %c3_782 = arith.constant 3 : index
    %c0_783 = arith.constant 0 : index
    %c0_784 = arith.constant 0 : index
    %c0_785 = arith.constant 0 : index
    %1119 = vector.load %arg3[%c3_782, %c0_783, %c0_784, %c0_785] : memref<20x2x21x21xf32, #tpu.memory_space<vmem>>, vector<1x2x21x21xf32>
    %1120 = vector.shape_cast %1119 : vector<1x2x21x21xf32> to vector<2x21x21xf32>
    %1121 = vector.broadcast %1118 : f32 to vector<2x21x21xf32>
    %1122 = arith.mulf %1120, %1121 : vector<2x21x21xf32>
    %1123 = arith.addf %1117, %1122 : vector<2x21x21xf32>
    %c164 = arith.constant 164 : index
    %1124 = memref.load %arg1[%c164] : memref<220xf32, #tpu.memory_space<smem>>
    %c4_786 = arith.constant 4 : index
    %c0_787 = arith.constant 0 : index
    %c0_788 = arith.constant 0 : index
    %c0_789 = arith.constant 0 : index
    %1125 = vector.load %arg3[%c4_786, %c0_787, %c0_788, %c0_789] : memref<20x2x21x21xf32, #tpu.memory_space<vmem>>, vector<1x2x21x21xf32>
    %1126 = vector.shape_cast %1125 : vector<1x2x21x21xf32> to vector<2x21x21xf32>
    %1127 = vector.broadcast %1124 : f32 to vector<2x21x21xf32>
    %1128 = arith.mulf %1126, %1127 : vector<2x21x21xf32>
    %1129 = arith.addf %1123, %1128 : vector<2x21x21xf32>
    %c165 = arith.constant 165 : index
    %1130 = memref.load %arg1[%c165] : memref<220xf32, #tpu.memory_space<smem>>
    %c5_790 = arith.constant 5 : index
    %c0_791 = arith.constant 0 : index
    %c0_792 = arith.constant 0 : index
    %c0_793 = arith.constant 0 : index
    %1131 = vector.load %arg3[%c5_790, %c0_791, %c0_792, %c0_793] : memref<20x2x21x21xf32, #tpu.memory_space<vmem>>, vector<1x2x21x21xf32>
    %1132 = vector.shape_cast %1131 : vector<1x2x21x21xf32> to vector<2x21x21xf32>
    %1133 = vector.broadcast %1130 : f32 to vector<2x21x21xf32>
    %1134 = arith.mulf %1132, %1133 : vector<2x21x21xf32>
    %1135 = arith.addf %1129, %1134 : vector<2x21x21xf32>
    %c166 = arith.constant 166 : index
    %1136 = memref.load %arg1[%c166] : memref<220xf32, #tpu.memory_space<smem>>
    %c6_794 = arith.constant 6 : index
    %c0_795 = arith.constant 0 : index
    %c0_796 = arith.constant 0 : index
    %c0_797 = arith.constant 0 : index
    %1137 = vector.load %arg3[%c6_794, %c0_795, %c0_796, %c0_797] : memref<20x2x21x21xf32, #tpu.memory_space<vmem>>, vector<1x2x21x21xf32>
    %1138 = vector.shape_cast %1137 : vector<1x2x21x21xf32> to vector<2x21x21xf32>
    %1139 = vector.broadcast %1136 : f32 to vector<2x21x21xf32>
    %1140 = arith.mulf %1138, %1139 : vector<2x21x21xf32>
    %1141 = arith.addf %1135, %1140 : vector<2x21x21xf32>
    %c167 = arith.constant 167 : index
    %1142 = memref.load %arg1[%c167] : memref<220xf32, #tpu.memory_space<smem>>
    %c7_798 = arith.constant 7 : index
    %c0_799 = arith.constant 0 : index
    %c0_800 = arith.constant 0 : index
    %c0_801 = arith.constant 0 : index
    %1143 = vector.load %arg3[%c7_798, %c0_799, %c0_800, %c0_801] : memref<20x2x21x21xf32, #tpu.memory_space<vmem>>, vector<1x2x21x21xf32>
    %1144 = vector.shape_cast %1143 : vector<1x2x21x21xf32> to vector<2x21x21xf32>
    %1145 = vector.broadcast %1142 : f32 to vector<2x21x21xf32>
    %1146 = arith.mulf %1144, %1145 : vector<2x21x21xf32>
    %1147 = arith.addf %1141, %1146 : vector<2x21x21xf32>
    %c168 = arith.constant 168 : index
    %1148 = memref.load %arg1[%c168] : memref<220xf32, #tpu.memory_space<smem>>
    %c8_802 = arith.constant 8 : index
    %c0_803 = arith.constant 0 : index
    %c0_804 = arith.constant 0 : index
    %c0_805 = arith.constant 0 : index
    %1149 = vector.load %arg3[%c8_802, %c0_803, %c0_804, %c0_805] : memref<20x2x21x21xf32, #tpu.memory_space<vmem>>, vector<1x2x21x21xf32>
    %1150 = vector.shape_cast %1149 : vector<1x2x21x21xf32> to vector<2x21x21xf32>
    %1151 = vector.broadcast %1148 : f32 to vector<2x21x21xf32>
    %1152 = arith.mulf %1150, %1151 : vector<2x21x21xf32>
    %1153 = arith.addf %1147, %1152 : vector<2x21x21xf32>
    %c169 = arith.constant 169 : index
    %1154 = memref.load %arg1[%c169] : memref<220xf32, #tpu.memory_space<smem>>
    %c9_806 = arith.constant 9 : index
    %c0_807 = arith.constant 0 : index
    %c0_808 = arith.constant 0 : index
    %c0_809 = arith.constant 0 : index
    %1155 = vector.load %arg3[%c9_806, %c0_807, %c0_808, %c0_809] : memref<20x2x21x21xf32, #tpu.memory_space<vmem>>, vector<1x2x21x21xf32>
    %1156 = vector.shape_cast %1155 : vector<1x2x21x21xf32> to vector<2x21x21xf32>
    %1157 = vector.broadcast %1154 : f32 to vector<2x21x21xf32>
    %1158 = arith.mulf %1156, %1157 : vector<2x21x21xf32>
    %1159 = arith.addf %1153, %1158 : vector<2x21x21xf32>
    %c170 = arith.constant 170 : index
    %1160 = memref.load %arg1[%c170] : memref<220xf32, #tpu.memory_space<smem>>
    %c10_810 = arith.constant 10 : index
    %c0_811 = arith.constant 0 : index
    %c0_812 = arith.constant 0 : index
    %c0_813 = arith.constant 0 : index
    %1161 = vector.load %arg3[%c10_810, %c0_811, %c0_812, %c0_813] : memref<20x2x21x21xf32, #tpu.memory_space<vmem>>, vector<1x2x21x21xf32>
    %1162 = vector.shape_cast %1161 : vector<1x2x21x21xf32> to vector<2x21x21xf32>
    %1163 = vector.broadcast %1160 : f32 to vector<2x21x21xf32>
    %1164 = arith.mulf %1162, %1163 : vector<2x21x21xf32>
    %1165 = arith.addf %1159, %1164 : vector<2x21x21xf32>
    %c171 = arith.constant 171 : index
    %1166 = memref.load %arg1[%c171] : memref<220xf32, #tpu.memory_space<smem>>
    %c11_814 = arith.constant 11 : index
    %c0_815 = arith.constant 0 : index
    %c0_816 = arith.constant 0 : index
    %c0_817 = arith.constant 0 : index
    %1167 = vector.load %arg3[%c11_814, %c0_815, %c0_816, %c0_817] : memref<20x2x21x21xf32, #tpu.memory_space<vmem>>, vector<1x2x21x21xf32>
    %1168 = vector.shape_cast %1167 : vector<1x2x21x21xf32> to vector<2x21x21xf32>
    %1169 = vector.broadcast %1166 : f32 to vector<2x21x21xf32>
    %1170 = arith.mulf %1168, %1169 : vector<2x21x21xf32>
    %1171 = arith.addf %1165, %1170 : vector<2x21x21xf32>
    %c172 = arith.constant 172 : index
    %1172 = memref.load %arg1[%c172] : memref<220xf32, #tpu.memory_space<smem>>
    %c12_818 = arith.constant 12 : index
    %c0_819 = arith.constant 0 : index
    %c0_820 = arith.constant 0 : index
    %c0_821 = arith.constant 0 : index
    %1173 = vector.load %arg3[%c12_818, %c0_819, %c0_820, %c0_821] : memref<20x2x21x21xf32, #tpu.memory_space<vmem>>, vector<1x2x21x21xf32>
    %1174 = vector.shape_cast %1173 : vector<1x2x21x21xf32> to vector<2x21x21xf32>
    %1175 = vector.broadcast %1172 : f32 to vector<2x21x21xf32>
    %1176 = arith.mulf %1174, %1175 : vector<2x21x21xf32>
    %1177 = arith.addf %1171, %1176 : vector<2x21x21xf32>
    %c173 = arith.constant 173 : index
    %1178 = memref.load %arg1[%c173] : memref<220xf32, #tpu.memory_space<smem>>
    %c13_822 = arith.constant 13 : index
    %c0_823 = arith.constant 0 : index
    %c0_824 = arith.constant 0 : index
    %c0_825 = arith.constant 0 : index
    %1179 = vector.load %arg3[%c13_822, %c0_823, %c0_824, %c0_825] : memref<20x2x21x21xf32, #tpu.memory_space<vmem>>, vector<1x2x21x21xf32>
    %1180 = vector.shape_cast %1179 : vector<1x2x21x21xf32> to vector<2x21x21xf32>
    %1181 = vector.broadcast %1178 : f32 to vector<2x21x21xf32>
    %1182 = arith.mulf %1180, %1181 : vector<2x21x21xf32>
    %1183 = arith.addf %1177, %1182 : vector<2x21x21xf32>
    %c174 = arith.constant 174 : index
    %1184 = memref.load %arg1[%c174] : memref<220xf32, #tpu.memory_space<smem>>
    %c14_826 = arith.constant 14 : index
    %c0_827 = arith.constant 0 : index
    %c0_828 = arith.constant 0 : index
    %c0_829 = arith.constant 0 : index
    %1185 = vector.load %arg3[%c14_826, %c0_827, %c0_828, %c0_829] : memref<20x2x21x21xf32, #tpu.memory_space<vmem>>, vector<1x2x21x21xf32>
    %1186 = vector.shape_cast %1185 : vector<1x2x21x21xf32> to vector<2x21x21xf32>
    %1187 = vector.broadcast %1184 : f32 to vector<2x21x21xf32>
    %1188 = arith.mulf %1186, %1187 : vector<2x21x21xf32>
    %1189 = arith.addf %1183, %1188 : vector<2x21x21xf32>
    %c175 = arith.constant 175 : index
    %1190 = memref.load %arg1[%c175] : memref<220xf32, #tpu.memory_space<smem>>
    %c15_830 = arith.constant 15 : index
    %c0_831 = arith.constant 0 : index
    %c0_832 = arith.constant 0 : index
    %c0_833 = arith.constant 0 : index
    %1191 = vector.load %arg3[%c15_830, %c0_831, %c0_832, %c0_833] : memref<20x2x21x21xf32, #tpu.memory_space<vmem>>, vector<1x2x21x21xf32>
    %1192 = vector.shape_cast %1191 : vector<1x2x21x21xf32> to vector<2x21x21xf32>
    %1193 = vector.broadcast %1190 : f32 to vector<2x21x21xf32>
    %1194 = arith.mulf %1192, %1193 : vector<2x21x21xf32>
    %1195 = arith.addf %1189, %1194 : vector<2x21x21xf32>
    %c176 = arith.constant 176 : index
    %1196 = memref.load %arg1[%c176] : memref<220xf32, #tpu.memory_space<smem>>
    %c16_834 = arith.constant 16 : index
    %c0_835 = arith.constant 0 : index
    %c0_836 = arith.constant 0 : index
    %c0_837 = arith.constant 0 : index
    %1197 = vector.load %arg3[%c16_834, %c0_835, %c0_836, %c0_837] : memref<20x2x21x21xf32, #tpu.memory_space<vmem>>, vector<1x2x21x21xf32>
    %1198 = vector.shape_cast %1197 : vector<1x2x21x21xf32> to vector<2x21x21xf32>
    %1199 = vector.broadcast %1196 : f32 to vector<2x21x21xf32>
    %1200 = arith.mulf %1198, %1199 : vector<2x21x21xf32>
    %1201 = arith.addf %1195, %1200 : vector<2x21x21xf32>
    %c177 = arith.constant 177 : index
    %1202 = memref.load %arg1[%c177] : memref<220xf32, #tpu.memory_space<smem>>
    %c17_838 = arith.constant 17 : index
    %c0_839 = arith.constant 0 : index
    %c0_840 = arith.constant 0 : index
    %c0_841 = arith.constant 0 : index
    %1203 = vector.load %arg3[%c17_838, %c0_839, %c0_840, %c0_841] : memref<20x2x21x21xf32, #tpu.memory_space<vmem>>, vector<1x2x21x21xf32>
    %1204 = vector.shape_cast %1203 : vector<1x2x21x21xf32> to vector<2x21x21xf32>
    %1205 = vector.broadcast %1202 : f32 to vector<2x21x21xf32>
    %1206 = arith.mulf %1204, %1205 : vector<2x21x21xf32>
    %1207 = arith.addf %1201, %1206 : vector<2x21x21xf32>
    %c178 = arith.constant 178 : index
    %1208 = memref.load %arg1[%c178] : memref<220xf32, #tpu.memory_space<smem>>
    %c18_842 = arith.constant 18 : index
    %c0_843 = arith.constant 0 : index
    %c0_844 = arith.constant 0 : index
    %c0_845 = arith.constant 0 : index
    %1209 = vector.load %arg3[%c18_842, %c0_843, %c0_844, %c0_845] : memref<20x2x21x21xf32, #tpu.memory_space<vmem>>, vector<1x2x21x21xf32>
    %1210 = vector.shape_cast %1209 : vector<1x2x21x21xf32> to vector<2x21x21xf32>
    %1211 = vector.broadcast %1208 : f32 to vector<2x21x21xf32>
    %1212 = arith.mulf %1210, %1211 : vector<2x21x21xf32>
    %1213 = arith.addf %1207, %1212 : vector<2x21x21xf32>
    %c179 = arith.constant 179 : index
    %1214 = memref.load %arg1[%c179] : memref<220xf32, #tpu.memory_space<smem>>
    %c19_846 = arith.constant 19 : index
    %c0_847 = arith.constant 0 : index
    %c0_848 = arith.constant 0 : index
    %c0_849 = arith.constant 0 : index
    %1215 = vector.load %arg3[%c19_846, %c0_847, %c0_848, %c0_849] : memref<20x2x21x21xf32, #tpu.memory_space<vmem>>, vector<1x2x21x21xf32>
    %1216 = vector.shape_cast %1215 : vector<1x2x21x21xf32> to vector<2x21x21xf32>
    %1217 = vector.broadcast %1214 : f32 to vector<2x21x21xf32>
    %1218 = arith.mulf %1216, %1217 : vector<2x21x21xf32>
    %1219 = arith.addf %1213, %1218 : vector<2x21x21xf32>
    %cst_850 = arith.constant 0.000000e+00 : f32
    %1220 = vector.broadcast %cst_850 : f32 to vector<2x21x21xf32>
    %1221 = arith.cmpf ogt, %1219, %1220 : vector<2x21x21xf32>
    %cst_851 = arith.constant -1.000000e-01 : f32
    %1222 = vector.broadcast %cst_851 : f32 to vector<2x21x21xf32>
    %1223 = arith.mulf %1219, %1222 : vector<2x21x21xf32>
    %1224 = arith.select %1221, %1219, %1223 : vector<2x21x21xi1>, vector<2x21x21xf32>
    %c0_852 = arith.constant 0 : index
    %c8_853 = arith.constant 8 : index
    %c0_854 = arith.constant 0 : index
    %c0_855 = arith.constant 0 : index
    %1225 = vector.load %arg2[%c0_852, %c8_853, %c0_854, %c0_855] : memref<2x11x21x21xf32, #tpu.memory_space<vmem>>, vector<2x1x21x21xf32>
    %1226 = vector.shape_cast %1225 : vector<2x1x21x21xf32> to vector<2x21x21xf32>
    %1227 = vector.shape_cast %1224 : vector<2x21x21xf32> to vector<2x1x21x21xf32>
    tpu.vector_store %arg2[%c0_852, %c8_853, %c0_854, %c0_855], %1227 {strides = array<i32>} : memref<2x11x21x21xf32, #tpu.memory_space<vmem>>, vector<2x1x21x21xf32>,
    %c180 = arith.constant 180 : index
    %1228 = memref.load %arg1[%c180] : memref<220xf32, #tpu.memory_space<smem>>
    %c0_856 = arith.constant 0 : index
    %c0_857 = arith.constant 0 : index
    %c0_858 = arith.constant 0 : index
    %c0_859 = arith.constant 0 : index
    %1229 = vector.load %arg3[%c0_856, %c0_857, %c0_858, %c0_859] : memref<20x2x21x21xf32, #tpu.memory_space<vmem>>, vector<1x2x21x21xf32>
    %1230 = vector.shape_cast %1229 : vector<1x2x21x21xf32> to vector<2x21x21xf32>
    %1231 = vector.broadcast %1228 : f32 to vector<2x21x21xf32>
    %1232 = arith.mulf %1230, %1231 : vector<2x21x21xf32>
    %c181 = arith.constant 181 : index
    %1233 = memref.load %arg1[%c181] : memref<220xf32, #tpu.memory_space<smem>>
    %c1_860 = arith.constant 1 : index
    %c0_861 = arith.constant 0 : index
    %c0_862 = arith.constant 0 : index
    %c0_863 = arith.constant 0 : index
    %1234 = vector.load %arg3[%c1_860, %c0_861, %c0_862, %c0_863] : memref<20x2x21x21xf32, #tpu.memory_space<vmem>>, vector<1x2x21x21xf32>
    %1235 = vector.shape_cast %1234 : vector<1x2x21x21xf32> to vector<2x21x21xf32>
    %1236 = vector.broadcast %1233 : f32 to vector<2x21x21xf32>
    %1237 = arith.mulf %1235, %1236 : vector<2x21x21xf32>
    %1238 = arith.addf %1232, %1237 : vector<2x21x21xf32>
    %c182 = arith.constant 182 : index
    %1239 = memref.load %arg1[%c182] : memref<220xf32, #tpu.memory_space<smem>>
    %c2_864 = arith.constant 2 : index
    %c0_865 = arith.constant 0 : index
    %c0_866 = arith.constant 0 : index
    %c0_867 = arith.constant 0 : index
    %1240 = vector.load %arg3[%c2_864, %c0_865, %c0_866, %c0_867] : memref<20x2x21x21xf32, #tpu.memory_space<vmem>>, vector<1x2x21x21xf32>
    %1241 = vector.shape_cast %1240 : vector<1x2x21x21xf32> to vector<2x21x21xf32>
    %1242 = vector.broadcast %1239 : f32 to vector<2x21x21xf32>
    %1243 = arith.mulf %1241, %1242 : vector<2x21x21xf32>
    %1244 = arith.addf %1238, %1243 : vector<2x21x21xf32>
    %c183 = arith.constant 183 : index
    %1245 = memref.load %arg1[%c183] : memref<220xf32, #tpu.memory_space<smem>>
    %c3_868 = arith.constant 3 : index
    %c0_869 = arith.constant 0 : index
    %c0_870 = arith.constant 0 : index
    %c0_871 = arith.constant 0 : index
    %1246 = vector.load %arg3[%c3_868, %c0_869, %c0_870, %c0_871] : memref<20x2x21x21xf32, #tpu.memory_space<vmem>>, vector<1x2x21x21xf32>
    %1247 = vector.shape_cast %1246 : vector<1x2x21x21xf32> to vector<2x21x21xf32>
    %1248 = vector.broadcast %1245 : f32 to vector<2x21x21xf32>
    %1249 = arith.mulf %1247, %1248 : vector<2x21x21xf32>
    %1250 = arith.addf %1244, %1249 : vector<2x21x21xf32>
    %c184 = arith.constant 184 : index
    %1251 = memref.load %arg1[%c184] : memref<220xf32, #tpu.memory_space<smem>>
    %c4_872 = arith.constant 4 : index
    %c0_873 = arith.constant 0 : index
    %c0_874 = arith.constant 0 : index
    %c0_875 = arith.constant 0 : index
    %1252 = vector.load %arg3[%c4_872, %c0_873, %c0_874, %c0_875] : memref<20x2x21x21xf32, #tpu.memory_space<vmem>>, vector<1x2x21x21xf32>
    %1253 = vector.shape_cast %1252 : vector<1x2x21x21xf32> to vector<2x21x21xf32>
    %1254 = vector.broadcast %1251 : f32 to vector<2x21x21xf32>
    %1255 = arith.mulf %1253, %1254 : vector<2x21x21xf32>
    %1256 = arith.addf %1250, %1255 : vector<2x21x21xf32>
    %c185 = arith.constant 185 : index
    %1257 = memref.load %arg1[%c185] : memref<220xf32, #tpu.memory_space<smem>>
    %c5_876 = arith.constant 5 : index
    %c0_877 = arith.constant 0 : index
    %c0_878 = arith.constant 0 : index
    %c0_879 = arith.constant 0 : index
    %1258 = vector.load %arg3[%c5_876, %c0_877, %c0_878, %c0_879] : memref<20x2x21x21xf32, #tpu.memory_space<vmem>>, vector<1x2x21x21xf32>
    %1259 = vector.shape_cast %1258 : vector<1x2x21x21xf32> to vector<2x21x21xf32>
    %1260 = vector.broadcast %1257 : f32 to vector<2x21x21xf32>
    %1261 = arith.mulf %1259, %1260 : vector<2x21x21xf32>
    %1262 = arith.addf %1256, %1261 : vector<2x21x21xf32>
    %c186 = arith.constant 186 : index
    %1263 = memref.load %arg1[%c186] : memref<220xf32, #tpu.memory_space<smem>>
    %c6_880 = arith.constant 6 : index
    %c0_881 = arith.constant 0 : index
    %c0_882 = arith.constant 0 : index
    %c0_883 = arith.constant 0 : index
    %1264 = vector.load %arg3[%c6_880, %c0_881, %c0_882, %c0_883] : memref<20x2x21x21xf32, #tpu.memory_space<vmem>>, vector<1x2x21x21xf32>
    %1265 = vector.shape_cast %1264 : vector<1x2x21x21xf32> to vector<2x21x21xf32>
    %1266 = vector.broadcast %1263 : f32 to vector<2x21x21xf32>
    %1267 = arith.mulf %1265, %1266 : vector<2x21x21xf32>
    %1268 = arith.addf %1262, %1267 : vector<2x21x21xf32>
    %c187 = arith.constant 187 : index
    %1269 = memref.load %arg1[%c187] : memref<220xf32, #tpu.memory_space<smem>>
    %c7_884 = arith.constant 7 : index
    %c0_885 = arith.constant 0 : index
    %c0_886 = arith.constant 0 : index
    %c0_887 = arith.constant 0 : index
    %1270 = vector.load %arg3[%c7_884, %c0_885, %c0_886, %c0_887] : memref<20x2x21x21xf32, #tpu.memory_space<vmem>>, vector<1x2x21x21xf32>
    %1271 = vector.shape_cast %1270 : vector<1x2x21x21xf32> to vector<2x21x21xf32>
    %1272 = vector.broadcast %1269 : f32 to vector<2x21x21xf32>
    %1273 = arith.mulf %1271, %1272 : vector<2x21x21xf32>
    %1274 = arith.addf %1268, %1273 : vector<2x21x21xf32>
    %c188 = arith.constant 188 : index
    %1275 = memref.load %arg1[%c188] : memref<220xf32, #tpu.memory_space<smem>>
    %c8_888 = arith.constant 8 : index
    %c0_889 = arith.constant 0 : index
    %c0_890 = arith.constant 0 : index
    %c0_891 = arith.constant 0 : index
    %1276 = vector.load %arg3[%c8_888, %c0_889, %c0_890, %c0_891] : memref<20x2x21x21xf32, #tpu.memory_space<vmem>>, vector<1x2x21x21xf32>
    %1277 = vector.shape_cast %1276 : vector<1x2x21x21xf32> to vector<2x21x21xf32>
    %1278 = vector.broadcast %1275 : f32 to vector<2x21x21xf32>
    %1279 = arith.mulf %1277, %1278 : vector<2x21x21xf32>
    %1280 = arith.addf %1274, %1279 : vector<2x21x21xf32>
    %c189 = arith.constant 189 : index
    %1281 = memref.load %arg1[%c189] : memref<220xf32, #tpu.memory_space<smem>>
    %c9_892 = arith.constant 9 : index
    %c0_893 = arith.constant 0 : index
    %c0_894 = arith.constant 0 : index
    %c0_895 = arith.constant 0 : index
    %1282 = vector.load %arg3[%c9_892, %c0_893, %c0_894, %c0_895] : memref<20x2x21x21xf32, #tpu.memory_space<vmem>>, vector<1x2x21x21xf32>
    %1283 = vector.shape_cast %1282 : vector<1x2x21x21xf32> to vector<2x21x21xf32>
    %1284 = vector.broadcast %1281 : f32 to vector<2x21x21xf32>
    %1285 = arith.mulf %1283, %1284 : vector<2x21x21xf32>
    %1286 = arith.addf %1280, %1285 : vector<2x21x21xf32>
    %c190 = arith.constant 190 : index
    %1287 = memref.load %arg1[%c190] : memref<220xf32, #tpu.memory_space<smem>>
    %c10_896 = arith.constant 10 : index
    %c0_897 = arith.constant 0 : index
    %c0_898 = arith.constant 0 : index
    %c0_899 = arith.constant 0 : index
    %1288 = vector.load %arg3[%c10_896, %c0_897, %c0_898, %c0_899] : memref<20x2x21x21xf32, #tpu.memory_space<vmem>>, vector<1x2x21x21xf32>
    %1289 = vector.shape_cast %1288 : vector<1x2x21x21xf32> to vector<2x21x21xf32>
    %1290 = vector.broadcast %1287 : f32 to vector<2x21x21xf32>
    %1291 = arith.mulf %1289, %1290 : vector<2x21x21xf32>
    %1292 = arith.addf %1286, %1291 : vector<2x21x21xf32>
    %c191 = arith.constant 191 : index
    %1293 = memref.load %arg1[%c191] : memref<220xf32, #tpu.memory_space<smem>>
    %c11_900 = arith.constant 11 : index
    %c0_901 = arith.constant 0 : index
    %c0_902 = arith.constant 0 : index
    %c0_903 = arith.constant 0 : index
    %1294 = vector.load %arg3[%c11_900, %c0_901, %c0_902, %c0_903] : memref<20x2x21x21xf32, #tpu.memory_space<vmem>>, vector<1x2x21x21xf32>
    %1295 = vector.shape_cast %1294 : vector<1x2x21x21xf32> to vector<2x21x21xf32>
    %1296 = vector.broadcast %1293 : f32 to vector<2x21x21xf32>
    %1297 = arith.mulf %1295, %1296 : vector<2x21x21xf32>
    %1298 = arith.addf %1292, %1297 : vector<2x21x21xf32>
    %c192 = arith.constant 192 : index
    %1299 = memref.load %arg1[%c192] : memref<220xf32, #tpu.memory_space<smem>>
    %c12_904 = arith.constant 12 : index
    %c0_905 = arith.constant 0 : index
    %c0_906 = arith.constant 0 : index
    %c0_907 = arith.constant 0 : index
    %1300 = vector.load %arg3[%c12_904, %c0_905, %c0_906, %c0_907] : memref<20x2x21x21xf32, #tpu.memory_space<vmem>>, vector<1x2x21x21xf32>
    %1301 = vector.shape_cast %1300 : vector<1x2x21x21xf32> to vector<2x21x21xf32>
    %1302 = vector.broadcast %1299 : f32 to vector<2x21x21xf32>
    %1303 = arith.mulf %1301, %1302 : vector<2x21x21xf32>
    %1304 = arith.addf %1298, %1303 : vector<2x21x21xf32>
    %c193 = arith.constant 193 : index
    %1305 = memref.load %arg1[%c193] : memref<220xf32, #tpu.memory_space<smem>>
    %c13_908 = arith.constant 13 : index
    %c0_909 = arith.constant 0 : index
    %c0_910 = arith.constant 0 : index
    %c0_911 = arith.constant 0 : index
    %1306 = vector.load %arg3[%c13_908, %c0_909, %c0_910, %c0_911] : memref<20x2x21x21xf32, #tpu.memory_space<vmem>>, vector<1x2x21x21xf32>
    %1307 = vector.shape_cast %1306 : vector<1x2x21x21xf32> to vector<2x21x21xf32>
    %1308 = vector.broadcast %1305 : f32 to vector<2x21x21xf32>
    %1309 = arith.mulf %1307, %1308 : vector<2x21x21xf32>
    %1310 = arith.addf %1304, %1309 : vector<2x21x21xf32>
    %c194 = arith.constant 194 : index
    %1311 = memref.load %arg1[%c194] : memref<220xf32, #tpu.memory_space<smem>>
    %c14_912 = arith.constant 14 : index
    %c0_913 = arith.constant 0 : index
    %c0_914 = arith.constant 0 : index
    %c0_915 = arith.constant 0 : index
    %1312 = vector.load %arg3[%c14_912, %c0_913, %c0_914, %c0_915] : memref<20x2x21x21xf32, #tpu.memory_space<vmem>>, vector<1x2x21x21xf32>
    %1313 = vector.shape_cast %1312 : vector<1x2x21x21xf32> to vector<2x21x21xf32>
    %1314 = vector.broadcast %1311 : f32 to vector<2x21x21xf32>
    %1315 = arith.mulf %1313, %1314 : vector<2x21x21xf32>
    %1316 = arith.addf %1310, %1315 : vector<2x21x21xf32>
    %c195 = arith.constant 195 : index
    %1317 = memref.load %arg1[%c195] : memref<220xf32, #tpu.memory_space<smem>>
    %c15_916 = arith.constant 15 : index
    %c0_917 = arith.constant 0 : index
    %c0_918 = arith.constant 0 : index
    %c0_919 = arith.constant 0 : index
    %1318 = vector.load %arg3[%c15_916, %c0_917, %c0_918, %c0_919] : memref<20x2x21x21xf32, #tpu.memory_space<vmem>>, vector<1x2x21x21xf32>
    %1319 = vector.shape_cast %1318 : vector<1x2x21x21xf32> to vector<2x21x21xf32>
    %1320 = vector.broadcast %1317 : f32 to vector<2x21x21xf32>
    %1321 = arith.mulf %1319, %1320 : vector<2x21x21xf32>
    %1322 = arith.addf %1316, %1321 : vector<2x21x21xf32>
    %c196 = arith.constant 196 : index
    %1323 = memref.load %arg1[%c196] : memref<220xf32, #tpu.memory_space<smem>>
    %c16_920 = arith.constant 16 : index
    %c0_921 = arith.constant 0 : index
    %c0_922 = arith.constant 0 : index
    %c0_923 = arith.constant 0 : index
    %1324 = vector.load %arg3[%c16_920, %c0_921, %c0_922, %c0_923] : memref<20x2x21x21xf32, #tpu.memory_space<vmem>>, vector<1x2x21x21xf32>
    %1325 = vector.shape_cast %1324 : vector<1x2x21x21xf32> to vector<2x21x21xf32>
    %1326 = vector.broadcast %1323 : f32 to vector<2x21x21xf32>
    %1327 = arith.mulf %1325, %1326 : vector<2x21x21xf32>
    %1328 = arith.addf %1322, %1327 : vector<2x21x21xf32>
    %c197 = arith.constant 197 : index
    %1329 = memref.load %arg1[%c197] : memref<220xf32, #tpu.memory_space<smem>>
    %c17_924 = arith.constant 17 : index
    %c0_925 = arith.constant 0 : index
    %c0_926 = arith.constant 0 : index
    %c0_927 = arith.constant 0 : index
    %1330 = vector.load %arg3[%c17_924, %c0_925, %c0_926, %c0_927] : memref<20x2x21x21xf32, #tpu.memory_space<vmem>>, vector<1x2x21x21xf32>
    %1331 = vector.shape_cast %1330 : vector<1x2x21x21xf32> to vector<2x21x21xf32>
    %1332 = vector.broadcast %1329 : f32 to vector<2x21x21xf32>
    %1333 = arith.mulf %1331, %1332 : vector<2x21x21xf32>
    %1334 = arith.addf %1328, %1333 : vector<2x21x21xf32>
    %c198 = arith.constant 198 : index
    %1335 = memref.load %arg1[%c198] : memref<220xf32, #tpu.memory_space<smem>>
    %c18_928 = arith.constant 18 : index
    %c0_929 = arith.constant 0 : index
    %c0_930 = arith.constant 0 : index
    %c0_931 = arith.constant 0 : index
    %1336 = vector.load %arg3[%c18_928, %c0_929, %c0_930, %c0_931] : memref<20x2x21x21xf32, #tpu.memory_space<vmem>>, vector<1x2x21x21xf32>
    %1337 = vector.shape_cast %1336 : vector<1x2x21x21xf32> to vector<2x21x21xf32>
    %1338 = vector.broadcast %1335 : f32 to vector<2x21x21xf32>
    %1339 = arith.mulf %1337, %1338 : vector<2x21x21xf32>
    %1340 = arith.addf %1334, %1339 : vector<2x21x21xf32>
    %c199 = arith.constant 199 : index
    %1341 = memref.load %arg1[%c199] : memref<220xf32, #tpu.memory_space<smem>>
    %c19_932 = arith.constant 19 : index
    %c0_933 = arith.constant 0 : index
    %c0_934 = arith.constant 0 : index
    %c0_935 = arith.constant 0 : index
    %1342 = vector.load %arg3[%c19_932, %c0_933, %c0_934, %c0_935] : memref<20x2x21x21xf32, #tpu.memory_space<vmem>>, vector<1x2x21x21xf32>
    %1343 = vector.shape_cast %1342 : vector<1x2x21x21xf32> to vector<2x21x21xf32>
    %1344 = vector.broadcast %1341 : f32 to vector<2x21x21xf32>
    %1345 = arith.mulf %1343, %1344 : vector<2x21x21xf32>
    %1346 = arith.addf %1340, %1345 : vector<2x21x21xf32>
    %cst_936 = arith.constant 0.000000e+00 : f32
    %1347 = vector.broadcast %cst_936 : f32 to vector<2x21x21xf32>
    %1348 = arith.cmpf ogt, %1346, %1347 : vector<2x21x21xf32>
    %cst_937 = arith.constant -1.000000e-01 : f32
    %1349 = vector.broadcast %cst_937 : f32 to vector<2x21x21xf32>
    %1350 = arith.mulf %1346, %1349 : vector<2x21x21xf32>
    %1351 = arith.select %1348, %1346, %1350 : vector<2x21x21xi1>, vector<2x21x21xf32>
    %c0_938 = arith.constant 0 : index
    %c9_939 = arith.constant 9 : index
    %c0_940 = arith.constant 0 : index
    %c0_941 = arith.constant 0 : index
    %1352 = vector.load %arg2[%c0_938, %c9_939, %c0_940, %c0_941] : memref<2x11x21x21xf32, #tpu.memory_space<vmem>>, vector<2x1x21x21xf32>
    %1353 = vector.shape_cast %1352 : vector<2x1x21x21xf32> to vector<2x21x21xf32>
    %1354 = vector.shape_cast %1351 : vector<2x21x21xf32> to vector<2x1x21x21xf32>
    tpu.vector_store %arg2[%c0_938, %c9_939, %c0_940, %c0_941], %1354 {strides = array<i32>} : memref<2x11x21x21xf32, #tpu.memory_space<vmem>>, vector<2x1x21x21xf32>,
    %c200 = arith.constant 200 : index
    %1355 = memref.load %arg1[%c200] : memref<220xf32, #tpu.memory_space<smem>>
    %c0_942 = arith.constant 0 : index
    %c0_943 = arith.constant 0 : index
    %c0_944 = arith.constant 0 : index
    %c0_945 = arith.constant 0 : index
    %1356 = vector.load %arg3[%c0_942, %c0_943, %c0_944, %c0_945] : memref<20x2x21x21xf32, #tpu.memory_space<vmem>>, vector<1x2x21x21xf32>
    %1357 = vector.shape_cast %1356 : vector<1x2x21x21xf32> to vector<2x21x21xf32>
    %1358 = vector.broadcast %1355 : f32 to vector<2x21x21xf32>
    %1359 = arith.mulf %1357, %1358 : vector<2x21x21xf32>
    %c201 = arith.constant 201 : index
    %1360 = memref.load %arg1[%c201] : memref<220xf32, #tpu.memory_space<smem>>
    %c1_946 = arith.constant 1 : index
    %c0_947 = arith.constant 0 : index
    %c0_948 = arith.constant 0 : index
    %c0_949 = arith.constant 0 : index
    %1361 = vector.load %arg3[%c1_946, %c0_947, %c0_948, %c0_949] : memref<20x2x21x21xf32, #tpu.memory_space<vmem>>, vector<1x2x21x21xf32>
    %1362 = vector.shape_cast %1361 : vector<1x2x21x21xf32> to vector<2x21x21xf32>
    %1363 = vector.broadcast %1360 : f32 to vector<2x21x21xf32>
    %1364 = arith.mulf %1362, %1363 : vector<2x21x21xf32>
    %1365 = arith.addf %1359, %1364 : vector<2x21x21xf32>
    %c202 = arith.constant 202 : index
    %1366 = memref.load %arg1[%c202] : memref<220xf32, #tpu.memory_space<smem>>
    %c2_950 = arith.constant 2 : index
    %c0_951 = arith.constant 0 : index
    %c0_952 = arith.constant 0 : index
    %c0_953 = arith.constant 0 : index
    %1367 = vector.load %arg3[%c2_950, %c0_951, %c0_952, %c0_953] : memref<20x2x21x21xf32, #tpu.memory_space<vmem>>, vector<1x2x21x21xf32>
    %1368 = vector.shape_cast %1367 : vector<1x2x21x21xf32> to vector<2x21x21xf32>
    %1369 = vector.broadcast %1366 : f32 to vector<2x21x21xf32>
    %1370 = arith.mulf %1368, %1369 : vector<2x21x21xf32>
    %1371 = arith.addf %1365, %1370 : vector<2x21x21xf32>
    %c203 = arith.constant 203 : index
    %1372 = memref.load %arg1[%c203] : memref<220xf32, #tpu.memory_space<smem>>
    %c3_954 = arith.constant 3 : index
    %c0_955 = arith.constant 0 : index
    %c0_956 = arith.constant 0 : index
    %c0_957 = arith.constant 0 : index
    %1373 = vector.load %arg3[%c3_954, %c0_955, %c0_956, %c0_957] : memref<20x2x21x21xf32, #tpu.memory_space<vmem>>, vector<1x2x21x21xf32>
    %1374 = vector.shape_cast %1373 : vector<1x2x21x21xf32> to vector<2x21x21xf32>
    %1375 = vector.broadcast %1372 : f32 to vector<2x21x21xf32>
    %1376 = arith.mulf %1374, %1375 : vector<2x21x21xf32>
    %1377 = arith.addf %1371, %1376 : vector<2x21x21xf32>
    %c204 = arith.constant 204 : index
    %1378 = memref.load %arg1[%c204] : memref<220xf32, #tpu.memory_space<smem>>
    %c4_958 = arith.constant 4 : index
    %c0_959 = arith.constant 0 : index
    %c0_960 = arith.constant 0 : index
    %c0_961 = arith.constant 0 : index
    %1379 = vector.load %arg3[%c4_958, %c0_959, %c0_960, %c0_961] : memref<20x2x21x21xf32, #tpu.memory_space<vmem>>, vector<1x2x21x21xf32>
    %1380 = vector.shape_cast %1379 : vector<1x2x21x21xf32> to vector<2x21x21xf32>
    %1381 = vector.broadcast %1378 : f32 to vector<2x21x21xf32>
    %1382 = arith.mulf %1380, %1381 : vector<2x21x21xf32>
    %1383 = arith.addf %1377, %1382 : vector<2x21x21xf32>
    %c205 = arith.constant 205 : index
    %1384 = memref.load %arg1[%c205] : memref<220xf32, #tpu.memory_space<smem>>
    %c5_962 = arith.constant 5 : index
    %c0_963 = arith.constant 0 : index
    %c0_964 = arith.constant 0 : index
    %c0_965 = arith.constant 0 : index
    %1385 = vector.load %arg3[%c5_962, %c0_963, %c0_964, %c0_965] : memref<20x2x21x21xf32, #tpu.memory_space<vmem>>, vector<1x2x21x21xf32>
    %1386 = vector.shape_cast %1385 : vector<1x2x21x21xf32> to vector<2x21x21xf32>
    %1387 = vector.broadcast %1384 : f32 to vector<2x21x21xf32>
    %1388 = arith.mulf %1386, %1387 : vector<2x21x21xf32>
    %1389 = arith.addf %1383, %1388 : vector<2x21x21xf32>
    %c206 = arith.constant 206 : index
    %1390 = memref.load %arg1[%c206] : memref<220xf32, #tpu.memory_space<smem>>
    %c6_966 = arith.constant 6 : index
    %c0_967 = arith.constant 0 : index
    %c0_968 = arith.constant 0 : index
    %c0_969 = arith.constant 0 : index
    %1391 = vector.load %arg3[%c6_966, %c0_967, %c0_968, %c0_969] : memref<20x2x21x21xf32, #tpu.memory_space<vmem>>, vector<1x2x21x21xf32>
    %1392 = vector.shape_cast %1391 : vector<1x2x21x21xf32> to vector<2x21x21xf32>
    %1393 = vector.broadcast %1390 : f32 to vector<2x21x21xf32>
    %1394 = arith.mulf %1392, %1393 : vector<2x21x21xf32>
    %1395 = arith.addf %1389, %1394 : vector<2x21x21xf32>
    %c207 = arith.constant 207 : index
    %1396 = memref.load %arg1[%c207] : memref<220xf32, #tpu.memory_space<smem>>
    %c7_970 = arith.constant 7 : index
    %c0_971 = arith.constant 0 : index
    %c0_972 = arith.constant 0 : index
    %c0_973 = arith.constant 0 : index
    %1397 = vector.load %arg3[%c7_970, %c0_971, %c0_972, %c0_973] : memref<20x2x21x21xf32, #tpu.memory_space<vmem>>, vector<1x2x21x21xf32>
    %1398 = vector.shape_cast %1397 : vector<1x2x21x21xf32> to vector<2x21x21xf32>
    %1399 = vector.broadcast %1396 : f32 to vector<2x21x21xf32>
    %1400 = arith.mulf %1398, %1399 : vector<2x21x21xf32>
    %1401 = arith.addf %1395, %1400 : vector<2x21x21xf32>
    %c208 = arith.constant 208 : index
    %1402 = memref.load %arg1[%c208] : memref<220xf32, #tpu.memory_space<smem>>
    %c8_974 = arith.constant 8 : index
    %c0_975 = arith.constant 0 : index
    %c0_976 = arith.constant 0 : index
    %c0_977 = arith.constant 0 : index
    %1403 = vector.load %arg3[%c8_974, %c0_975, %c0_976, %c0_977] : memref<20x2x21x21xf32, #tpu.memory_space<vmem>>, vector<1x2x21x21xf32>
    %1404 = vector.shape_cast %1403 : vector<1x2x21x21xf32> to vector<2x21x21xf32>
    %1405 = vector.broadcast %1402 : f32 to vector<2x21x21xf32>
    %1406 = arith.mulf %1404, %1405 : vector<2x21x21xf32>
    %1407 = arith.addf %1401, %1406 : vector<2x21x21xf32>
    %c209 = arith.constant 209 : index
    %1408 = memref.load %arg1[%c209] : memref<220xf32, #tpu.memory_space<smem>>
    %c9_978 = arith.constant 9 : index
    %c0_979 = arith.constant 0 : index
    %c0_980 = arith.constant 0 : index
    %c0_981 = arith.constant 0 : index
    %1409 = vector.load %arg3[%c9_978, %c0_979, %c0_980, %c0_981] : memref<20x2x21x21xf32, #tpu.memory_space<vmem>>, vector<1x2x21x21xf32>
    %1410 = vector.shape_cast %1409 : vector<1x2x21x21xf32> to vector<2x21x21xf32>
    %1411 = vector.broadcast %1408 : f32 to vector<2x21x21xf32>
    %1412 = arith.mulf %1410, %1411 : vector<2x21x21xf32>
    %1413 = arith.addf %1407, %1412 : vector<2x21x21xf32>
    %c210 = arith.constant 210 : index
    %1414 = memref.load %arg1[%c210] : memref<220xf32, #tpu.memory_space<smem>>
    %c10_982 = arith.constant 10 : index
    %c0_983 = arith.constant 0 : index
    %c0_984 = arith.constant 0 : index
    %c0_985 = arith.constant 0 : index
    %1415 = vector.load %arg3[%c10_982, %c0_983, %c0_984, %c0_985] : memref<20x2x21x21xf32, #tpu.memory_space<vmem>>, vector<1x2x21x21xf32>
    %1416 = vector.shape_cast %1415 : vector<1x2x21x21xf32> to vector<2x21x21xf32>
    %1417 = vector.broadcast %1414 : f32 to vector<2x21x21xf32>
    %1418 = arith.mulf %1416, %1417 : vector<2x21x21xf32>
    %1419 = arith.addf %1413, %1418 : vector<2x21x21xf32>
    %c211 = arith.constant 211 : index
    %1420 = memref.load %arg1[%c211] : memref<220xf32, #tpu.memory_space<smem>>
    %c11_986 = arith.constant 11 : index
    %c0_987 = arith.constant 0 : index
    %c0_988 = arith.constant 0 : index
    %c0_989 = arith.constant 0 : index
    %1421 = vector.load %arg3[%c11_986, %c0_987, %c0_988, %c0_989] : memref<20x2x21x21xf32, #tpu.memory_space<vmem>>, vector<1x2x21x21xf32>
    %1422 = vector.shape_cast %1421 : vector<1x2x21x21xf32> to vector<2x21x21xf32>
    %1423 = vector.broadcast %1420 : f32 to vector<2x21x21xf32>
    %1424 = arith.mulf %1422, %1423 : vector<2x21x21xf32>
    %1425 = arith.addf %1419, %1424 : vector<2x21x21xf32>
    %c212 = arith.constant 212 : index
    %1426 = memref.load %arg1[%c212] : memref<220xf32, #tpu.memory_space<smem>>
    %c12_990 = arith.constant 12 : index
    %c0_991 = arith.constant 0 : index
    %c0_992 = arith.constant 0 : index
    %c0_993 = arith.constant 0 : index
    %1427 = vector.load %arg3[%c12_990, %c0_991, %c0_992, %c0_993] : memref<20x2x21x21xf32, #tpu.memory_space<vmem>>, vector<1x2x21x21xf32>
    %1428 = vector.shape_cast %1427 : vector<1x2x21x21xf32> to vector<2x21x21xf32>
    %1429 = vector.broadcast %1426 : f32 to vector<2x21x21xf32>
    %1430 = arith.mulf %1428, %1429 : vector<2x21x21xf32>
    %1431 = arith.addf %1425, %1430 : vector<2x21x21xf32>
    %c213 = arith.constant 213 : index
    %1432 = memref.load %arg1[%c213] : memref<220xf32, #tpu.memory_space<smem>>
    %c13_994 = arith.constant 13 : index
    %c0_995 = arith.constant 0 : index
    %c0_996 = arith.constant 0 : index
    %c0_997 = arith.constant 0 : index
    %1433 = vector.load %arg3[%c13_994, %c0_995, %c0_996, %c0_997] : memref<20x2x21x21xf32, #tpu.memory_space<vmem>>, vector<1x2x21x21xf32>
    %1434 = vector.shape_cast %1433 : vector<1x2x21x21xf32> to vector<2x21x21xf32>
    %1435 = vector.broadcast %1432 : f32 to vector<2x21x21xf32>
    %1436 = arith.mulf %1434, %1435 : vector<2x21x21xf32>
    %1437 = arith.addf %1431, %1436 : vector<2x21x21xf32>
    %c214 = arith.constant 214 : index
    %1438 = memref.load %arg1[%c214] : memref<220xf32, #tpu.memory_space<smem>>
    %c14_998 = arith.constant 14 : index
    %c0_999 = arith.constant 0 : index
    %c0_1000 = arith.constant 0 : index
    %c0_1001 = arith.constant 0 : index
    %1439 = vector.load %arg3[%c14_998, %c0_999, %c0_1000, %c0_1001] : memref<20x2x21x21xf32, #tpu.memory_space<vmem>>, vector<1x2x21x21xf32>
    %1440 = vector.shape_cast %1439 : vector<1x2x21x21xf32> to vector<2x21x21xf32>
    %1441 = vector.broadcast %1438 : f32 to vector<2x21x21xf32>
    %1442 = arith.mulf %1440, %1441 : vector<2x21x21xf32>
    %1443 = arith.addf %1437, %1442 : vector<2x21x21xf32>
    %c215 = arith.constant 215 : index
    %1444 = memref.load %arg1[%c215] : memref<220xf32, #tpu.memory_space<smem>>
    %c15_1002 = arith.constant 15 : index
    %c0_1003 = arith.constant 0 : index
    %c0_1004 = arith.constant 0 : index
    %c0_1005 = arith.constant 0 : index
    %1445 = vector.load %arg3[%c15_1002, %c0_1003, %c0_1004, %c0_1005] : memref<20x2x21x21xf32, #tpu.memory_space<vmem>>, vector<1x2x21x21xf32>
    %1446 = vector.shape_cast %1445 : vector<1x2x21x21xf32> to vector<2x21x21xf32>
    %1447 = vector.broadcast %1444 : f32 to vector<2x21x21xf32>
    %1448 = arith.mulf %1446, %1447 : vector<2x21x21xf32>
    %1449 = arith.addf %1443, %1448 : vector<2x21x21xf32>
    %c216 = arith.constant 216 : index
    %1450 = memref.load %arg1[%c216] : memref<220xf32, #tpu.memory_space<smem>>
    %c16_1006 = arith.constant 16 : index
    %c0_1007 = arith.constant 0 : index
    %c0_1008 = arith.constant 0 : index
    %c0_1009 = arith.constant 0 : index
    %1451 = vector.load %arg3[%c16_1006, %c0_1007, %c0_1008, %c0_1009] : memref<20x2x21x21xf32, #tpu.memory_space<vmem>>, vector<1x2x21x21xf32>
    %1452 = vector.shape_cast %1451 : vector<1x2x21x21xf32> to vector<2x21x21xf32>
    %1453 = vector.broadcast %1450 : f32 to vector<2x21x21xf32>
    %1454 = arith.mulf %1452, %1453 : vector<2x21x21xf32>
    %1455 = arith.addf %1449, %1454 : vector<2x21x21xf32>
    %c217 = arith.constant 217 : index
    %1456 = memref.load %arg1[%c217] : memref<220xf32, #tpu.memory_space<smem>>
    %c17_1010 = arith.constant 17 : index
    %c0_1011 = arith.constant 0 : index
    %c0_1012 = arith.constant 0 : index
    %c0_1013 = arith.constant 0 : index
    %1457 = vector.load %arg3[%c17_1010, %c0_1011, %c0_1012, %c0_1013] : memref<20x2x21x21xf32, #tpu.memory_space<vmem>>, vector<1x2x21x21xf32>
    %1458 = vector.shape_cast %1457 : vector<1x2x21x21xf32> to vector<2x21x21xf32>
    %1459 = vector.broadcast %1456 : f32 to vector<2x21x21xf32>
    %1460 = arith.mulf %1458, %1459 : vector<2x21x21xf32>
    %1461 = arith.addf %1455, %1460 : vector<2x21x21xf32>
    %c218 = arith.constant 218 : index
    %1462 = memref.load %arg1[%c218] : memref<220xf32, #tpu.memory_space<smem>>
    %c18_1014 = arith.constant 18 : index
    %c0_1015 = arith.constant 0 : index
    %c0_1016 = arith.constant 0 : index
    %c0_1017 = arith.constant 0 : index
    %1463 = vector.load %arg3[%c18_1014, %c0_1015, %c0_1016, %c0_1017] : memref<20x2x21x21xf32, #tpu.memory_space<vmem>>, vector<1x2x21x21xf32>
    %1464 = vector.shape_cast %1463 : vector<1x2x21x21xf32> to vector<2x21x21xf32>
    %1465 = vector.broadcast %1462 : f32 to vector<2x21x21xf32>
    %1466 = arith.mulf %1464, %1465 : vector<2x21x21xf32>
    %1467 = arith.addf %1461, %1466 : vector<2x21x21xf32>
    %c219 = arith.constant 219 : index
    %1468 = memref.load %arg1[%c219] : memref<220xf32, #tpu.memory_space<smem>>
    %c19_1018 = arith.constant 19 : index
    %c0_1019 = arith.constant 0 : index
    %c0_1020 = arith.constant 0 : index
    %c0_1021 = arith.constant 0 : index
    %1469 = vector.load %arg3[%c19_1018, %c0_1019, %c0_1020, %c0_1021] : memref<20x2x21x21xf32, #tpu.memory_space<vmem>>, vector<1x2x21x21xf32>
    %1470 = vector.shape_cast %1469 : vector<1x2x21x21xf32> to vector<2x21x21xf32>
    %1471 = vector.broadcast %1468 : f32 to vector<2x21x21xf32>
    %1472 = arith.mulf %1470, %1471 : vector<2x21x21xf32>
    %1473 = arith.addf %1467, %1472 : vector<2x21x21xf32>
    %cst_1022 = arith.constant 0.000000e+00 : f32
    %1474 = vector.broadcast %cst_1022 : f32 to vector<2x21x21xf32>
    %1475 = arith.cmpf ogt, %1473, %1474 : vector<2x21x21xf32>
    %cst_1023 = arith.constant -1.000000e-01 : f32
    %1476 = vector.broadcast %cst_1023 : f32 to vector<2x21x21xf32>
    %1477 = arith.mulf %1473, %1476 : vector<2x21x21xf32>
    %1478 = arith.select %1475, %1473, %1477 : vector<2x21x21xi1>, vector<2x21x21xf32>
    %c0_1024 = arith.constant 0 : index
    %c10_1025 = arith.constant 10 : index
    %c0_1026 = arith.constant 0 : index
    %c0_1027 = arith.constant 0 : index
    %1479 = vector.load %arg2[%c0_1024, %c10_1025, %c0_1026, %c0_1027] : memref<2x11x21x21xf32, #tpu.memory_space<vmem>>, vector<2x1x21x21xf32>
    %1480 = vector.shape_cast %1479 : vector<2x1x21x21xf32> to vector<2x21x21xf32>
    %1481 = vector.shape_cast %1478 : vector<2x21x21xf32> to vector<2x1x21x21xf32>
    tpu.vector_store %arg2[%c0_1024, %c10_1025, %c0_1026, %c0_1027], %1481 {strides = array<i32>} : memref<2x11x21x21xf32, #tpu.memory_space<vmem>>, vector<2x1x21x21xf32>,
    return
  }
}

</mosaic_0001>

<llo_original>
// kernel: squeeze.3
$region0: #{squeeze.3}
  %s0 = inlined_call_operand.vmem [shape: f32[1,11,4,5], index: 0, kind: input, shape index: {}]
  %s1 = inlined_call_operand.vmem [shape: f32[220], index: 1, kind: output, shape index: {}]
  $region1: #{squeeze.3} parent=0
    #allocation0 [shape = 'u8[4096]{0}', space=vmem, size = 0x1000, scoped, tag = 'scoped mem for output reshape']
    #allocation1 [shape = 'u8[45056]{0}', space=vmem, size = 0xb000, scoped, tag = 'scoped mem for input reshape']
    %s3 = ssub.s32 16, 1
    %s4 = scalar_lea.vmem %s0, 40
    %v5 = vld [vmem:[%s4] sm:%s3]
    %s6 = scalar_lea.vmem [#allocation1], 80
    %7 = vst [vmem:[%s6] sm:%s3] %v5
    %s8 = scalar_lea.vmem %s0, 36
    %v9 = vld [vmem:[%s8] sm:%s3]
    %s10 = scalar_lea.vmem [#allocation1], 72
    %11 = vst [vmem:[%s10] sm:%s3] %v9
    %s12 = scalar_lea.vmem %s0, 32
    %v13 = vld [vmem:[%s12] sm:%s3]
    %s14 = scalar_lea.vmem [#allocation1], 64
    %15 = vst [vmem:[%s14] sm:%s3] %v13
    %s16 = scalar_lea.vmem %s0, 28
    %v17 = vld [vmem:[%s16] sm:%s3]
    %s18 = scalar_lea.vmem [#allocation1], 56
    %19 = vst [vmem:[%s18] sm:%s3] %v17
    %s20 = scalar_lea.vmem %s0, 24
    %v21 = vld [vmem:[%s20] sm:%s3]
    %s22 = scalar_lea.vmem [#allocation1], 48
    %23 = vst [vmem:[%s22] sm:%s3] %v21
    %s24 = scalar_lea.vmem %s0, 20
    %v25 = vld [vmem:[%s24] sm:%s3]
    %s26 = scalar_lea.vmem [#allocation1], 40
    %27 = vst [vmem:[%s26] sm:%s3] %v25
    %s28 = scalar_lea.vmem %s0, 16
    %v29 = vld [vmem:[%s28] sm:%s3]
    %s30 = scalar_lea.vmem [#allocation1], 32
    %31 = vst [vmem:[%s30] sm:%s3] %v29
    %s32 = scalar_lea.vmem %s0, 12
    %v33 = vld [vmem:[%s32] sm:%s3]
    %s34 = scalar_lea.vmem [#allocation1], 24
    %35 = vst [vmem:[%s34] sm:%s3] %v33
    %s36 = scalar_lea.vmem %s0, 8
    %v37 = vld [vmem:[%s36] sm:%s3]
    %s38 = scalar_lea.vmem [#allocation1], 16
    %39 = vst [vmem:[%s38] sm:%s3] %v37
    %s40 = scalar_lea.vmem %s0, 4
    %v41 = vld [vmem:[%s40] sm:%s3]
    %s42 = scalar_lea.vmem [#allocation1], 8
    %43 = vst [vmem:[%s42] sm:%s3] %v41
    %v44 = vld [vmem:[%s0] sm:%s3]
    %45 = vst [vmem:[#allocation1] sm:%s3] %v44
    %v46 = vld [vmem:[#allocation1] sm:$0x1]
    %vm47 = vcmask 39936
    %48 = vst.msk [vmem:[#allocation0] sm:$0x1] %vm47, %v46
    %s49 = scalar_lea.vmem [#allocation1], 49
    %v50 = vld [vmem:[%s49] sm:$0x1]
    %s51 = scalar_lea.vmem [#allocation1], 49
    %v52 = vld [vmem:[%s51] sm:$0x1]
    %vm53 = vcmask 23552
    %v54 = vsel %vm53, %v52, %v50
    %55 = vrot.lane.b32.xlu0 %v54, 125
    %v56 = vpop.permute.xlu0 %55
    %vm57 = vcmask 15360
    %s58 = scalar_lea.vmem [#allocation0], 1
    %59 = vst.msk [vmem:[%s58] sm:$0x1] %vm57, %v56
    %vm60 = vcmask 1048552
    %61 = vst.msk [vmem:[#allocation0] sm:$0x1] %vm60, %v56
    %s62 = scalar_lea.vmem [#allocation1], 48
    %v63 = vld [vmem:[%s62] sm:$0x1]
    %64 = vrot.lane.b32.xlu0 %v63, 120
    %v65 = vpop.permute.xlu0 %64
    %vm66 = vcmask 1023936
    %67 = vst.msk [vmem:[#allocation0] sm:$0x1] %vm66, %v65
    %s68 = scalar_lea.vmem [#allocation1], 43
    %v69 = vld [vmem:[%s68] sm:$0x1]
    %70 = vrot.lane.b32.xlu0 %v69, 115
    %v71 = vpop.permute.xlu0 %70
    %vm72 = vcmask 982936
    %73 = vst.msk [vmem:[#allocation0] sm:$0x1] %vm72, %v71
    %s74 = scalar_lea.vmem [#allocation1], 42
    %v75 = vld [vmem:[%s74] sm:$0x1]
    %76 = vrot.lane.b32.xlu0 %v75, 110
    %v77 = vpop.permute.xlu0 %76
    %vm78 = vcmask 941936
    %79 = vst.msk [vmem:[#allocation0] sm:$0x1] %vm78, %v77
    %s80 = scalar_lea.vmem [#allocation1], 41
    %v81 = vld [vmem:[%s80] sm:$0x1]
    %82 = vrot.lane.b32.xlu0 %v81, 105
    %v83 = vpop.permute.xlu0 %82
    %vm84 = vcmask 900936
    %85 = vst.msk [vmem:[#allocation0] sm:$0x1] %vm84, %v83
    %s86 = scalar_lea.vmem [#allocation1], 40
    %v87 = vld [vmem:[%s86] sm:$0x1]
    %88 = vrot.lane.b32.xlu0 %v87, 100
    %v89 = vpop.permute.xlu0 %88
    %vm90 = vcmask 859936
    %91 = vst.msk [vmem:[#allocation0] sm:$0x1] %vm90, %v89
    %s92 = scalar_lea.vmem [#allocation1], 35
    %v93 = vld [vmem:[%s92] sm:$0x1]
    %94 = vrot.lane.b32.xlu0 %v93, 95
    %v95 = vpop.permute.xlu0 %94
    %vm96 = vcmask 818936
    %97 = vst.msk [vmem:[#allocation0] sm:$0x1] %vm96, %v95
    %s98 = scalar_lea.vmem [#allocation1], 34
    %v99 = vld [vmem:[%s98] sm:$0x1]
    %100 = vrot.lane.b32.xlu0 %v99, 90
    %v101 = vpop.permute.xlu0 %100
    %vm102 = vcmask 777936
    %103 = vst.msk [vmem:[#allocation0] sm:$0x1] %vm102, %v101
    %s104 = scalar_lea.vmem [#allocation1], 83
    %v105 = vld [vmem:[%s104] sm:$0x1]
    %106 = vrot.lane.b32.xlu0 %v105, 87
    %v107 = vpop.permute.xlu0 %106
    %vm108 = vcmask 753336
    %s109 = scalar_lea.vmem [#allocation0], 1
    %110 = vst.msk [vmem:[%s109] sm:$0x1] %vm108, %v107
    %s111 = scalar_lea.vmem [#allocation1], 33
    %v112 = vld [vmem:[%s111] sm:$0x1]
    %113 = vrot.lane.b32.xlu0 %v112, 85
    %v114 = vpop.permute.xlu0 %113
    %vm115 = vcmask 736936
    %116 = vst.msk [vmem:[#allocation0] sm:$0x1] %vm115, %v114
    %s117 = scalar_lea.vmem [#allocation1], 82
    %v118 = vld [vmem:[%s117] sm:$0x1]
    %119 = vrot.lane.b32.xlu0 %v118, 82
    %v120 = vpop.permute.xlu0 %119
    %vm121 = vcmask 712336
    %s122 = scalar_lea.vmem [#allocation0], 1
    %123 = vst.msk [vmem:[%s122] sm:$0x1] %vm121, %v120
    %s124 = scalar_lea.vmem [#allocation1], 32
    %v125 = vld [vmem:[%s124] sm:$0x1]
    %126 = vrot.lane.b32.xlu0 %v125, 80
    %v127 = vpop.permute.xlu0 %126
    %vm128 = vcmask 695936
    %129 = vst.msk [vmem:[#allocation0] sm:$0x1] %vm128, %v127
    %s130 = scalar_lea.vmem [#allocation1], 81
    %v131 = vld [vmem:[%s130] sm:$0x1]
    %132 = vrot.lane.b32.xlu0 %v131, 77
    %v133 = vpop.permute.xlu0 %132
    %vm134 = vcmask 671336
    %s135 = scalar_lea.vmem [#allocation0], 1
    %136 = vst.msk [vmem:[%s135] sm:$0x1] %vm134, %v133
    %s137 = scalar_lea.vmem [#allocation1], 27
    %v138 = vld [vmem:[%s137] sm:$0x1]
    %139 = vrot.lane.b32.xlu0 %v138, 75
    %v140 = vpop.permute.xlu0 %139
    %vm141 = vcmask 654936
    %142 = vst.msk [vmem:[#allocation0] sm:$0x1] %vm141, %v140
    %s143 = scalar_lea.vmem [#allocation1], 80
    %v144 = vld [vmem:[%s143] sm:$0x1]
    %145 = vrot.lane.b32.xlu0 %v144, 72
    %v146 = vpop.permute.xlu0 %145
    %vm147 = vcmask 630336
    %s148 = scalar_lea.vmem [#allocation0], 1
    %149 = vst.msk [vmem:[%s148] sm:$0x1] %vm147, %v146
    %s150 = scalar_lea.vmem [#allocation1], 26
    %v151 = vld [vmem:[%s150] sm:$0x1]
    %152 = vrot.lane.b32.xlu0 %v151, 70
    %v153 = vpop.permute.xlu0 %152
    %vm154 = vcmask 613936
    %155 = vst.msk [vmem:[#allocation0] sm:$0x1] %vm154, %v153
    %s156 = scalar_lea.vmem [#allocation1], 75
    %v157 = vld [vmem:[%s156] sm:$0x1]
    %158 = vrot.lane.b32.xlu0 %v157, 67
    %v159 = vpop.permute.xlu0 %158
    %vm160 = vcmask 589336
    %s161 = scalar_lea.vmem [#allocation0], 1
    %162 = vst.msk [vmem:[%s161] sm:$0x1] %vm160, %v159
    %s163 = scalar_lea.vmem [#allocation1], 25
    %v164 = vld [vmem:[%s163] sm:$0x1]
    %165 = vrot.lane.b32.xlu0 %v164, 65
    %v166 = vpop.permute.xlu0 %165
    %vm167 = vcmask 572936
    %168 = vst.msk [vmem:[#allocation0] sm:$0x1] %vm167, %v166
    %s169 = scalar_lea.vmem [#allocation1], 74
    %v170 = vld [vmem:[%s169] sm:$0x1]
    %171 = vrot.lane.b32.xlu0 %v170, 62
    %v172 = vpop.permute.xlu0 %171
    %vm173 = vcmask 548336
    %s174 = scalar_lea.vmem [#allocation0], 1
    %175 = vst.msk [vmem:[%s174] sm:$0x1] %vm173, %v172
    %s176 = scalar_lea.vmem [#allocation1], 24
    %v177 = vld [vmem:[%s176] sm:$0x1]
    %178 = vrot.lane.b32.xlu0 %v177, 60
    %v179 = vpop.permute.xlu0 %178
    %vm180 = vcmask 531936
    %181 = vst.msk [vmem:[#allocation0] sm:$0x1] %vm180, %v179
    %s182 = scalar_lea.vmem [#allocation1], 73
    %v183 = vld [vmem:[%s182] sm:$0x1]
    %184 = vrot.lane.b32.xlu0 %v183, 57
    %v185 = vpop.permute.xlu0 %184
    %vm186 = vcmask 507336
    %s187 = scalar_lea.vmem [#allocation0], 1
    %188 = vst.msk [vmem:[%s187] sm:$0x1] %vm186, %v185
    %s189 = scalar_lea.vmem [#allocation1], 19
    %v190 = vld [vmem:[%s189] sm:$0x1]
    %191 = vrot.lane.b32.xlu0 %v190, 55
    %v192 = vpop.permute.xlu0 %191
    %vm193 = vcmask 490936
    %194 = vst.msk [vmem:[#allocation0] sm:$0x1] %vm193, %v192
    %s195 = scalar_lea.vmem [#allocation1], 72
    %v196 = vld [vmem:[%s195] sm:$0x1]
    %197 = vrot.lane.b32.xlu0 %v196, 52
    %v198 = vpop.permute.xlu0 %197
    %vm199 = vcmask 466336
    %s200 = scalar_lea.vmem [#allocation0], 1
    %201 = vst.msk [vmem:[%s200] sm:$0x1] %vm199, %v198
    %s202 = scalar_lea.vmem [#allocation1], 18
    %v203 = vld [vmem:[%s202] sm:$0x1]
    %204 = vrot.lane.b32.xlu0 %v203, 50
    %v205 = vpop.permute.xlu0 %204
    %vm206 = vcmask 449936
    %207 = vst.msk [vmem:[#allocation0] sm:$0x1] %vm206, %v205
    %s208 = scalar_lea.vmem [#allocation1], 67
    %v209 = vld [vmem:[%s208] sm:$0x1]
    %210 = vrot.lane.b32.xlu0 %v209, 47
    %v211 = vpop.permute.xlu0 %210
    %vm212 = vcmask 425336
    %s213 = scalar_lea.vmem [#allocation0], 1
    %214 = vst.msk [vmem:[%s213] sm:$0x1] %vm212, %v211
    %s215 = scalar_lea.vmem [#allocation1], 17
    %v216 = vld [vmem:[%s215] sm:$0x1]
    %217 = vrot.lane.b32.xlu0 %v216, 45
    %v218 = vpop.permute.xlu0 %217
    %vm219 = vcmask 408936
    %220 = vst.msk [vmem:[#allocation0] sm:$0x1] %vm219, %v218
    %s221 = scalar_lea.vmem [#allocation1], 66
    %v222 = vld [vmem:[%s221] sm:$0x1]
    %223 = vrot.lane.b32.xlu0 %v222, 42
    %v224 = vpop.permute.xlu0 %223
    %vm225 = vcmask 384336
    %s226 = scalar_lea.vmem [#allocation0], 1
    %227 = vst.msk [vmem:[%s226] sm:$0x1] %vm225, %v224
    %s228 = scalar_lea.vmem [#allocation1], 16
    %v229 = vld [vmem:[%s228] sm:$0x1]
    %230 = vrot.lane.b32.xlu0 %v229, 40
    %v231 = vpop.permute.xlu0 %230
    %vm232 = vcmask 367936
    %233 = vst.msk [vmem:[#allocation0] sm:$0x1] %vm232, %v231
    %s234 = scalar_lea.vmem [#allocation1], 65
    %v235 = vld [vmem:[%s234] sm:$0x1]
    %236 = vrot.lane.b32.xlu0 %v235, 37
    %v237 = vpop.permute.xlu0 %236
    %vm238 = vcmask 343336
    %s239 = scalar_lea.vmem [#allocation0], 1
    %240 = vst.msk [vmem:[%s239] sm:$0x1] %vm238, %v237
    %s241 = scalar_lea.vmem [#allocation1], 11
    %v242 = vld [vmem:[%s241] sm:$0x1]
    %243 = vrot.lane.b32.xlu0 %v242, 35
    %v244 = vpop.permute.xlu0 %243
    %vm245 = vcmask 326936
    %246 = vst.msk [vmem:[#allocation0] sm:$0x1] %vm245, %v244
    %s247 = scalar_lea.vmem [#allocation1], 64
    %v248 = vld [vmem:[%s247] sm:$0x1]
    %249 = vrot.lane.b32.xlu0 %v248, 32
    %v250 = vpop.permute.xlu0 %249
    %vm251 = vcmask 302336
    %s252 = scalar_lea.vmem [#allocation0], 1
    %253 = vst.msk [vmem:[%s252] sm:$0x1] %vm251, %v250
    %s254 = scalar_lea.vmem [#allocation1], 10
    %v255 = vld [vmem:[%s254] sm:$0x1]
    %256 = vrot.lane.b32.xlu0 %v255, 30
    %v257 = vpop.permute.xlu0 %256
    %vm258 = vcmask 285936
    %259 = vst.msk [vmem:[#allocation0] sm:$0x1] %vm258, %v257
    %s260 = scalar_lea.vmem [#allocation1], 59
    %v261 = vld [vmem:[%s260] sm:$0x1]
    %262 = vrot.lane.b32.xlu0 %v261, 27
    %v263 = vpop.permute.xlu0 %262
    %vm264 = vcmask 261336
    %s265 = scalar_lea.vmem [#allocation0], 1
    %266 = vst.msk [vmem:[%s265] sm:$0x1] %vm264, %v263
    %s267 = scalar_lea.vmem [#allocation1], 9
    %v268 = vld [vmem:[%s267] sm:$0x1]
    %269 = vrot.lane.b32.xlu0 %v268, 25
    %v270 = vpop.permute.xlu0 %269
    %vm271 = vcmask 244936
    %272 = vst.msk [vmem:[#allocation0] sm:$0x1] %vm271, %v270
    %s273 = scalar_lea.vmem [#allocation1], 58
    %v274 = vld [vmem:[%s273] sm:$0x1]
    %275 = vrot.lane.b32.xlu0 %v274, 22
    %v276 = vpop.permute.xlu0 %275
    %vm277 = vcmask 220336
    %s278 = scalar_lea.vmem [#allocation0], 1
    %279 = vst.msk [vmem:[%s278] sm:$0x1] %vm277, %v276
    %s280 = scalar_lea.vmem [#allocation1], 8
    %v281 = vld [vmem:[%s280] sm:$0x1]
    %282 = vrot.lane.b32.xlu0 %v281, 20
    %v283 = vpop.permute.xlu0 %282
    %vm284 = vcmask 203936
    %285 = vst.msk [vmem:[#allocation0] sm:$0x1] %vm284, %v283
    %s286 = scalar_lea.vmem [#allocation1], 57
    %v287 = vld [vmem:[%s286] sm:$0x1]
    %288 = vrot.lane.b32.xlu0 %v287, 17
    %v289 = vpop.permute.xlu0 %288
    %vm290 = vcmask 179336
    %s291 = scalar_lea.vmem [#allocation0], 1
    %292 = vst.msk [vmem:[%s291] sm:$0x1] %vm290, %v289
    %s293 = scalar_lea.vmem [#allocation1], 3
    %v294 = vld [vmem:[%s293] sm:$0x1]
    %295 = vrot.lane.b32.xlu0 %v294, 15
    %v296 = vpop.permute.xlu0 %295
    %vm297 = vcmask 162936
    %298 = vst.msk [vmem:[#allocation0] sm:$0x1] %vm297, %v296
    %s299 = scalar_lea.vmem [#allocation1], 56
    %v300 = vld [vmem:[%s299] sm:$0x1]
    %301 = vrot.lane.b32.xlu0 %v300, 12
    %v302 = vpop.permute.xlu0 %301
    %vm303 = vcmask 138336
    %s304 = scalar_lea.vmem [#allocation0], 1
    %305 = vst.msk [vmem:[%s304] sm:$0x1] %vm303, %v302
    %s306 = scalar_lea.vmem [#allocation1], 2
    %v307 = vld [vmem:[%s306] sm:$0x1]
    %308 = vrot.lane.b32.xlu0 %v307, 10
    %v309 = vpop.permute.xlu0 %308
    %vm310 = vcmask 121936
    %311 = vst.msk [vmem:[#allocation0] sm:$0x1] %vm310, %v309
    %s312 = scalar_lea.vmem [#allocation1], 51
    %v313 = vld [vmem:[%s312] sm:$0x1]
    %314 = vrot.lane.b32.xlu0 %v313, 7
    %v315 = vpop.permute.xlu0 %314
    %vm316 = vcmask 97336
    %s317 = scalar_lea.vmem [#allocation0], 1
    %318 = vst.msk [vmem:[%s317] sm:$0x1] %vm316, %v315
    %s319 = scalar_lea.vmem [#allocation1], 1
    %v320 = vld [vmem:[%s319] sm:$0x1]
    %321 = vrot.lane.b32.xlu0 %v320, 5
    %v322 = vpop.permute.xlu0 %321
    %vm323 = vcmask 80936
    %324 = vst.msk [vmem:[#allocation0] sm:$0x1] %vm323, %v322
    %s325 = scalar_lea.vmem [#allocation1], 50
    %v326 = vld [vmem:[%s325] sm:$0x1]
    %327 = vrot.lane.b32.xlu0 %v326, 2
    %v328 = vpop.permute.xlu0 %327
    %vm329 = vcmask 56336
    %s330 = scalar_lea.vmem [#allocation0], 1
    %331 = vst.msk [vmem:[%s330] sm:$0x1] %vm329, %v328
    %s333 = ssub.s32 4, 1
    %v334 = vld [vmem:[#allocation0] sm:%s333]
    %s336 = ssub.s32 4, 1
    %337 = vst [vmem:[%s1] sm:%s336] %v334

// kernel: conv_transpose_model.1
$region0: #{conv_transpose_model.1}
  #allocation0 [shape = 'u32[]', space=smem, size = 0x4, offset = 0x4, fixed_abs, tag = 'smem constant byte address 0x4 - core index']
  #allocation1 [shape = 'u32[72,128]{1,0:T(1,128)}', space=vmem, size = 0x9000, scoped, tag = 'internal scratch']
  #allocation2 [shape = 'f32[20,2,21,21]{3,2,1,0:T(8,128)}', space=vmem, size = 0x78000, scoped, tag = 'scratch operand']
  %s0 = inlined_call_operand.vmem [shape: f32[2,24,25], index: 0, kind: input, shape index: {}]
  %s1 = inlined_call_operand.vmem [shape: f32[220], index: 1, kind: input, shape index: {}]
  %s2 = inlined_call_operand.vmem [shape: f32[2,11,21,21], index: 2, kind: output, shape index: {}]
  %s3 = sld [smem:[#allocation0]]
  $region22: #{conv_transpose_model.1} parent=0
    _
  %s5 = ssub.s32 1, %s3
  %s6 = scalar_select 0, %s5, %s3
  $region1: #{conv_transpose_model.1} parent=0
    #allocation3 [shape = 'u8[1024]{0}', space=smem, size = 0x400, scoped, tag = 'input window, operand 1, single buffered']
    #allocation4 [shape = 's32[1]{0}', space=sflag, size = 0x4, scoped, tag = 'scoped memory for conv_transpose_model.1']
    %7 = vsyncpa [#allocation4], 0
    // Predicated region
    $region2: #{conv_transpose_model.1} parent=1 // pred_check
      _
    $region3: #{conv_transpose_model.1} parent=1 // pred_check_branch
      %9 = sbr.rel (0) target = $region5
    $region4: #{conv_transpose_model.1} parent=1 // pred_region
      _
    $region5: #{conv_transpose_model.1} parent=1 // pred_fallthru
      _
    // Predicated region
    $region6: #{conv_transpose_model.1} parent=1 // pred_check
      _
    $region7: #{conv_transpose_model.1} parent=1 // pred_check_branch
      %11 = sbr.rel (0) target = $region9
    $region8: #{conv_transpose_model.1} parent=1 // pred_region
      %13 = vsyncadd [#allocation4], 0
      %s15 = sshll.u32 %s1, 4
      %s16 = int_to_ptr.vmem [resolvable:$true] %s15
      %18 = dma.vmem_to_smem %s16, 32, [#allocation3], [#allocation4]
    $region9: #{conv_transpose_model.1} parent=1 // pred_fallthru
      _
    // Predicated region
    $region10: #{conv_transpose_model.1} parent=1 // pred_check
      _
    $region11: #{conv_transpose_model.1} parent=1 // pred_check_branch
      %20 = sbr.rel (0) target = $region13
    $region12: #{conv_transpose_model.1} parent=1 // pred_region
      %22 = dma.done [#allocation4], 32
    $region13: #{conv_transpose_model.1} parent=1 // pred_fallthru
      _
    %23 = sfence
    %v24 = vld [vmem:[%s0] sm:$0xff]
    %v25 = vld [vmem:[%s0 + $0x8] sm:$0xff]
    %v26 = vld [vmem:[%s0 + $0x10] sm:$0xff]
    %v27 = vld [vmem:[%s0 + $0x18] sm:$0xff]
    %v28 = vld [vmem:[%s0 + $0x20] sm:$0xff]
    %v29 = vld [vmem:[%s0 + $0x28] sm:$0xff]
    %vm30 = vcmask 171008
    %31 = vst.msk [vmem:[#allocation2] sm:$0xff] %vm30, %v24
    %32 = vst.msk [vmem:[#allocation2 + $0x8] sm:$0xff] %vm30, %v25
    %vm33 = vcmask 167936
    %34 = vst.msk [vmem:[#allocation2 + $0x10] sm:$0x1f] %vm33, %v26
    %35 = vst.msk [vmem:[#allocation2 + $0x18] sm:$0xff] %vm30, %v27
    %36 = vst.msk [vmem:[#allocation2 + $0x20] sm:$0xff] %vm30, %v28
    %37 = vst.msk [vmem:[#allocation2 + $0x28] sm:$0x1f] %vm33, %v29
    %44 = vrot.lane.b32.xlu0 %v24, 127
    %v45 = vpop.permute.xlu0 %44
    %46 = vrot.lane.b32.xlu0 %v25, 127
    %v47 = vpop.permute.xlu0 %46
    %48 = vrot.lane.b32.xlu0 %v26, 127
    %v49 = vpop.permute.xlu0 %48
    %50 = vrot.lane.b32.xlu0 %v27, 127
    %v51 = vpop.permute.xlu0 %50
    %52 = vrot.lane.b32.xlu0 %v28, 127
    %v53 = vpop.permute.xlu0 %52
    %54 = vrot.lane.b32.xlu0 %v29, 127
    %v55 = vpop.permute.xlu0 %54
    %s62 = scalar_lea.vmem [#allocation2], 48
    %63 = vst.msk [vmem:[%s62] sm:$0xff] %vm30, %v45
    %64 = vst.msk [vmem:[%s62 + $0x8] sm:$0xff] %vm30, %v47
    %65 = vst.msk [vmem:[%s62 + $0x10] sm:$0x1f] %vm33, %v49
    %66 = vst.msk [vmem:[%s62 + $0x18] sm:$0xff] %vm30, %v51
    %67 = vst.msk [vmem:[%s62 + $0x20] sm:$0xff] %vm30, %v53
    %68 = vst.msk [vmem:[%s62 + $0x28] sm:$0x1f] %vm33, %v55
    %69 = vrot.lane.b32.xlu0 %v24, 126
    %v70 = vpop.permute.xlu0 %69
    %71 = vrot.lane.b32.xlu0 %v25, 126
    %v72 = vpop.permute.xlu0 %71
    %73 = vrot.lane.b32.xlu0 %v26, 126
    %v74 = vpop.permute.xlu0 %73
    %75 = vrot.lane.b32.xlu0 %v27, 126
    %v76 = vpop.permute.xlu0 %75
    %77 = vrot.lane.b32.xlu0 %v28, 126
    %v78 = vpop.permute.xlu0 %77
    %79 = vrot.lane.b32.xlu0 %v29, 126
    %v80 = vpop.permute.xlu0 %79
    %s87 = scalar_lea.vmem [#allocation2], 96
    %88 = vst.msk [vmem:[%s87] sm:$0xff] %vm30, %v70
    %89 = vst.msk [vmem:[%s87 + $0x8] sm:$0xff] %vm30, %v72
    %90 = vst.msk [vmem:[%s87 + $0x10] sm:$0x1f] %vm33, %v74
    %91 = vst.msk [vmem:[%s87 + $0x18] sm:$0xff] %vm30, %v76
    %92 = vst.msk [vmem:[%s87 + $0x20] sm:$0xff] %vm30, %v78
    %93 = vst.msk [vmem:[%s87 + $0x28] sm:$0x1f] %vm33, %v80
    %94 = vrot.lane.b32.xlu0 %v24, 125
    %v95 = vpop.permute.xlu0 %94
    %96 = vrot.lane.b32.xlu0 %v25, 125
    %v97 = vpop.permute.xlu0 %96
    %98 = vrot.lane.b32.xlu0 %v26, 125
    %v99 = vpop.permute.xlu0 %98
    %100 = vrot.lane.b32.xlu0 %v27, 125
    %v101 = vpop.permute.xlu0 %100
    %102 = vrot.lane.b32.xlu0 %v28, 125
    %v103 = vpop.permute.xlu0 %102
    %104 = vrot.lane.b32.xlu0 %v29, 125
    %v105 = vpop.permute.xlu0 %104
    %s112 = scalar_lea.vmem [#allocation2], 144
    %113 = vst.msk [vmem:[%s112] sm:$0xff] %vm30, %v95
    %114 = vst.msk [vmem:[%s112 + $0x8] sm:$0xff] %vm30, %v97
    %115 = vst.msk [vmem:[%s112 + $0x10] sm:$0x1f] %vm33, %v99
    %116 = vst.msk [vmem:[%s112 + $0x18] sm:$0xff] %vm30, %v101
    %117 = vst.msk [vmem:[%s112 + $0x20] sm:$0xff] %vm30, %v103
    %118 = vst.msk [vmem:[%s112 + $0x28] sm:$0x1f] %vm33, %v105
    %119 = vrot.lane.b32.xlu0 %v24, 124
    %v120 = vpop.permute.xlu0 %119
    %121 = vrot.lane.b32.xlu0 %v25, 124
    %v122 = vpop.permute.xlu0 %121
    %123 = vrot.lane.b32.xlu0 %v26, 124
    %v124 = vpop.permute.xlu0 %123
    %125 = vrot.lane.b32.xlu0 %v27, 124
    %v126 = vpop.permute.xlu0 %125
    %127 = vrot.lane.b32.xlu0 %v28, 124
    %v128 = vpop.permute.xlu0 %127
    %129 = vrot.lane.b32.xlu0 %v29, 124
    %v130 = vpop.permute.xlu0 %129
    %s137 = scalar_lea.vmem [#allocation2], 192
    %138 = vst.msk [vmem:[%s137] sm:$0xff] %vm30, %v120
    %139 = vst.msk [vmem:[%s137 + $0x8] sm:$0xff] %vm30, %v122
    %140 = vst.msk [vmem:[%s137 + $0x10] sm:$0x1f] %vm33, %v124
    %141 = vst.msk [vmem:[%s137 + $0x18] sm:$0xff] %vm30, %v126
    %142 = vst.msk [vmem:[%s137 + $0x20] sm:$0xff] %vm30, %v128
    %143 = vst.msk [vmem:[%s137 + $0x28] sm:$0x1f] %vm33, %v130
    %s144 = scalar_lea.vmem [#allocation2], 240
    %vm145 = vcmask 171009
    %146 = vst.msk [vmem:[%s144 - $0x1] sm:$0xfe] %vm145, %v24
    %147 = vst.msk [vmem:[%s144 + $0x7] sm:$0xff] %vm30, %v25
    %vm148 = vcmask 168960
    %149 = vst.msk [vmem:[%s144 + $0xf] sm:$0x3f] %vm148, %v26
    %150 = vst.msk [vmem:[%s144 + $0x17] sm:$0xfe] %vm145, %v27
    %151 = vst.msk [vmem:[%s144 + $0x1f] sm:$0xff] %vm30, %v28
    %152 = vst.msk [vmem:[%s144 + $0x27] sm:$0x3f] %vm148, %v29
    %s153 = scalar_lea.vmem [#allocation2], 288
    %154 = vst.msk [vmem:[%s153 - $0x1] sm:$0xfe] %vm145, %v45
    %155 = vst.msk [vmem:[%s153 + $0x7] sm:$0xff] %vm30, %v47
    %156 = vst.msk [vmem:[%s153 + $0xf] sm:$0x3f] %vm148, %v49
    %157 = vst.msk [vmem:[%s153 + $0x17] sm:$0xfe] %vm145, %v51
    %158 = vst.msk [vmem:[%s153 + $0x1f] sm:$0xff] %vm30, %v53
    %159 = vst.msk [vmem:[%s153 + $0x27] sm:$0x3f] %vm148, %v55
    %s160 = scalar_lea.vmem [#allocation2], 336
    %161 = vst.msk [vmem:[%s160 - $0x1] sm:$0xfe] %vm145, %v70
    %162 = vst.msk [vmem:[%s160 + $0x7] sm:$0xff] %vm30, %v72
    %163 = vst.msk [vmem:[%s160 + $0xf] sm:$0x3f] %vm148, %v74
    %164 = vst.msk [vmem:[%s160 + $0x17] sm:$0xfe] %vm145, %v76
    %165 = vst.msk [vmem:[%s160 + $0x1f] sm:$0xff] %vm30, %v78
    %166 = vst.msk [vmem:[%s160 + $0x27] sm:$0x3f] %vm148, %v80
    %s167 = scalar_lea.vmem [#allocation2], 384
    %168 = vst.msk [vmem:[%s167 - $0x1] sm:$0xfe] %vm145, %v95
    %169 = vst.msk [vmem:[%s167 + $0x7] sm:$0xff] %vm30, %v97
    %170 = vst.msk [vmem:[%s167 + $0xf] sm:$0x3f] %vm148, %v99
    %171 = vst.msk [vmem:[%s167 + $0x17] sm:$0xfe] %vm145, %v101
    %172 = vst.msk [vmem:[%s167 + $0x1f] sm:$0xff] %vm30, %v103
    %173 = vst.msk [vmem:[%s167 + $0x27] sm:$0x3f] %vm148, %v105
    %s174 = scalar_lea.vmem [#allocation2], 432
    %175 = vst.msk [vmem:[%s174 - $0x1] sm:$0xfe] %vm145, %v120
    %176 = vst.msk [vmem:[%s174 + $0x7] sm:$0xff] %vm30, %v122
    %177 = vst.msk [vmem:[%s174 + $0xf] sm:$0x3f] %vm148, %v124
    %178 = vst.msk [vmem:[%s174 + $0x17] sm:$0xfe] %vm145, %v126
    %179 = vst.msk [vmem:[%s174 + $0x1f] sm:$0xff] %vm30, %v128
    %180 = vst.msk [vmem:[%s174 + $0x27] sm:$0x3f] %vm148, %v130
    %s181 = scalar_lea.vmem [#allocation2], 480
    %vm182 = vcmask 171010
    %183 = vst.msk [vmem:[%s181 - $0x2] sm:$0xfc] %vm182, %v24
    %184 = vst.msk [vmem:[%s181 + $0x6] sm:$0xff] %vm30, %v25
    %vm185 = vcmask 169984
    %186 = vst.msk [vmem:[%s181 + $0xe] sm:$0x7f] %vm185, %v26
    %187 = vst.msk [vmem:[%s181 + $0x16] sm:$0xfc] %vm182, %v27
    %188 = vst.msk [vmem:[%s181 + $0x1e] sm:$0xff] %vm30, %v28
    %189 = vst.msk [vmem:[%s181 + $0x26] sm:$0x7f] %vm185, %v29
    %s190 = scalar_lea.vmem [#allocation2], 528
    %191 = vst.msk [vmem:[%s190 - $0x2] sm:$0xfc] %vm182, %v45
    %192 = vst.msk [vmem:[%s190 + $0x6] sm:$0xff] %vm30, %v47
    %193 = vst.msk [vmem:[%s190 + $0xe] sm:$0x7f] %vm185, %v49
    %194 = vst.msk [vmem:[%s190 + $0x16] sm:$0xfc] %vm182, %v51
    %195 = vst.msk [vmem:[%s190 + $0x1e] sm:$0xff] %vm30, %v53
    %196 = vst.msk [vmem:[%s190 + $0x26] sm:$0x7f] %vm185, %v55
    %s197 = scalar_lea.vmem [#allocation2], 576
    %198 = vst.msk [vmem:[%s197 - $0x2] sm:$0xfc] %vm182, %v70
    %199 = vst.msk [vmem:[%s197 + $0x6] sm:$0xff] %vm30, %v72
    %200 = vst.msk [vmem:[%s197 + $0xe] sm:$0x7f] %vm185, %v74
    %201 = vst.msk [vmem:[%s197 + $0x16] sm:$0xfc] %vm182, %v76
    %202 = vst.msk [vmem:[%s197 + $0x1e] sm:$0xff] %vm30, %v78
    %203 = vst.msk [vmem:[%s197 + $0x26] sm:$0x7f] %vm185, %v80
    %s204 = scalar_lea.vmem [#allocation2], 624
    %205 = vst.msk [vmem:[%s204 - $0x2] sm:$0xfc] %vm182, %v95
    %206 = vst.msk [vmem:[%s204 + $0x6] sm:$0xff] %vm30, %v97
    %207 = vst.msk [vmem:[%s204 + $0xe] sm:$0x7f] %vm185, %v99
    %208 = vst.msk [vmem:[%s204 + $0x16] sm:$0xfc] %vm182, %v101
    %209 = vst.msk [vmem:[%s204 + $0x1e] sm:$0xff] %vm30, %v103
    %210 = vst.msk [vmem:[%s204 + $0x26] sm:$0x7f] %vm185, %v105
    %s211 = scalar_lea.vmem [#allocation2], 672
    %212 = vst.msk [vmem:[%s211 - $0x2] sm:$0xfc] %vm182, %v120
    %213 = vst.msk [vmem:[%s211 + $0x6] sm:$0xff] %vm30, %v122
    %214 = vst.msk [vmem:[%s211 + $0xe] sm:$0x7f] %vm185, %v124
    %215 = vst.msk [vmem:[%s211 + $0x16] sm:$0xfc] %vm182, %v126
    %216 = vst.msk [vmem:[%s211 + $0x1e] sm:$0xff] %vm30, %v128
    %217 = vst.msk [vmem:[%s211 + $0x26] sm:$0x7f] %vm185, %v130
    %s218 = scalar_lea.vmem [#allocation2], 720
    %vm219 = vcmask 171011
    %220 = vst.msk [vmem:[%s218 - $0x3] sm:$0xf8] %vm219, %v24
    %221 = vst.msk [vmem:[%s218 + $0x5] sm:$0xff] %vm30, %v25
    %222 = vst.msk [vmem:[%s218 + $0xd] sm:$0xff] %vm30, %v26
    %223 = vst.msk [vmem:[%s218 + $0x15] sm:$0xf8] %vm219, %v27
    %224 = vst.msk [vmem:[%s218 + $0x1d] sm:$0xff] %vm30, %v28
    %225 = vst.msk [vmem:[%s218 + $0x25] sm:$0xff] %vm30, %v29
    %s226 = scalar_lea.vmem [#allocation2], 768
    %227 = vst.msk [vmem:[%s226 - $0x3] sm:$0xf8] %vm219, %v45
    %228 = vst.msk [vmem:[%s226 + $0x5] sm:$0xff] %vm30, %v47
    %229 = vst.msk [vmem:[%s226 + $0xd] sm:$0xff] %vm30, %v49
    %230 = vst.msk [vmem:[%s226 + $0x15] sm:$0xf8] %vm219, %v51
    %231 = vst.msk [vmem:[%s226 + $0x1d] sm:$0xff] %vm30, %v53
    %232 = vst.msk [vmem:[%s226 + $0x25] sm:$0xff] %vm30, %v55
    %s233 = scalar_lea.vmem [#allocation2], 816
    %234 = vst.msk [vmem:[%s233 - $0x3] sm:$0xf8] %vm219, %v70
    %235 = vst.msk [vmem:[%s233 + $0x5] sm:$0xff] %vm30, %v72
    %236 = vst.msk [vmem:[%s233 + $0xd] sm:$0xff] %vm30, %v74
    %237 = vst.msk [vmem:[%s233 + $0x15] sm:$0xf8] %vm219, %v76
    %238 = vst.msk [vmem:[%s233 + $0x1d] sm:$0xff] %vm30, %v78
    %239 = vst.msk [vmem:[%s233 + $0x25] sm:$0xff] %vm30, %v80
    %s240 = scalar_lea.vmem [#allocation2], 864
    %241 = vst.msk [vmem:[%s240 - $0x3] sm:$0xf8] %vm219, %v95
    %242 = vst.msk [vmem:[%s240 + $0x5] sm:$0xff] %vm30, %v97
    %243 = vst.msk [vmem:[%s240 + $0xd] sm:$0xff] %vm30, %v99
    %244 = vst.msk [vmem:[%s240 + $0x15] sm:$0xf8] %vm219, %v101
    %245 = vst.msk [vmem:[%s240 + $0x1d] sm:$0xff] %vm30, %v103
    %246 = vst.msk [vmem:[%s240 + $0x25] sm:$0xff] %vm30, %v105
    %s247 = scalar_lea.vmem [#allocation2], 912
    %248 = vst.msk [vmem:[%s247 - $0x3] sm:$0xf8] %vm219, %v120
    %249 = vst.msk [vmem:[%s247 + $0x5] sm:$0xff] %vm30, %v122
    %250 = vst.msk [vmem:[%s247 + $0xd] sm:$0xff] %vm30, %v124
    %251 = vst.msk [vmem:[%s247 + $0x15] sm:$0xf8] %vm219, %v126
    %252 = vst.msk [vmem:[%s247 + $0x1d] sm:$0xff] %vm30, %v128
    %253 = vst.msk [vmem:[%s247 + $0x25] sm:$0xff] %vm30, %v130
    %s254 = sld [smem:[#allocation3]]
    %v255 = vld [vmem:[#allocation2] sm:$0xff]
    %v256 = vld [vmem:[#allocation2 + $0x8] sm:$0xff]
    %v257 = vld [vmem:[#allocation2 + $0x10] sm:$0x1f]
    %v258 = vld [vmem:[#allocation2 + $0x18] sm:$0xff]
    %v259 = vld [vmem:[#allocation2 + $0x20] sm:$0xff]
    %v260 = vld [vmem:[#allocation2 + $0x28] sm:$0x1f]
    %v261 = vstv %s254
    %v262 = vmul.f32 %v255, %v261
    %v263 = vmul.f32 %v256, %v261
    %v264 = vmul.f32 %v257, %v261
    %v265 = vmul.f32 %v258, %v261
    %v266 = vmul.f32 %v259, %v261
    %v267 = vmul.f32 %v260, %v261
    %s268 = sld [smem:[#allocation3 + $0x1]]
    %v269 = vld [vmem:[%s62] sm:$0xff]
    %v270 = vld [vmem:[%s62 + $0x8] sm:$0xff]
    %v271 = vld [vmem:[%s62 + $0x10] sm:$0x1f]
    %v272 = vld [vmem:[%s62 + $0x18] sm:$0xff]
    %v273 = vld [vmem:[%s62 + $0x20] sm:$0xff]
    %v274 = vld [vmem:[%s62 + $0x28] sm:$0x1f]
    %v275 = vstv %s268
    %v276 = vmul.f32 %v269, %v275
    %v277 = vmul.f32 %v270, %v275
    %v278 = vmul.f32 %v271, %v275
    %v279 = vmul.f32 %v272, %v275
    %v280 = vmul.f32 %v273, %v275
    %v281 = vmul.f32 %v274, %v275
    %v282 = vadd.f32 %v262, %v276
    %v283 = vadd.f32 %v263, %v277
    %v284 = vadd.f32 %v264, %v278
    %v285 = vadd.f32 %v265, %v279
    %v286 = vadd.f32 %v266, %v280
    %v287 = vadd.f32 %v267, %v281
    %s288 = sld [smem:[#allocation3 + $0x2]]
    %v289 = vld [vmem:[%s87] sm:$0xff]
    %v290 = vld [vmem:[%s87 + $0x8] sm:$0xff]
    %v291 = vld [vmem:[%s87 + $0x10] sm:$0x1f]
    %v292 = vld [vmem:[%s87 + $0x18] sm:$0xff]
    %v293 = vld [vmem:[%s87 + $0x20] sm:$0xff]
    %v294 = vld [vmem:[%s87 + $0x28] sm:$0x1f]
    %v295 = vstv %s288
    %v296 = vmul.f32 %v289, %v295
    %v297 = vmul.f32 %v290, %v295
    %v298 = vmul.f32 %v291, %v295
    %v299 = vmul.f32 %v292, %v295
    %v300 = vmul.f32 %v293, %v295
    %v301 = vmul.f32 %v294, %v295
    %v302 = vadd.f32 %v282, %v296
    %v303 = vadd.f32 %v283, %v297
    %v304 = vadd.f32 %v284, %v298
    %v305 = vadd.f32 %v285, %v299
    %v306 = vadd.f32 %v286, %v300
    %v307 = vadd.f32 %v287, %v301
    %s308 = sld [smem:[#allocation3 + $0x3]]
    %v309 = vld [vmem:[%s112] sm:$0xff]
    %v310 = vld [vmem:[%s112 + $0x8] sm:$0xff]
    %v311 = vld [vmem:[%s112 + $0x10] sm:$0x1f]
    %v312 = vld [vmem:[%s112 + $0x18] sm:$0xff]
    %v313 = vld [vmem:[%s112 + $0x20] sm:$0xff]
    %v314 = vld [vmem:[%s112 + $0x28] sm:$0x1f]
    %v315 = vstv %s308
    %v316 = vmul.f32 %v309, %v315
    %v317 = vmul.f32 %v310, %v315
    %v318 = vmul.f32 %v311, %v315
    %v319 = vmul.f32 %v312, %v315
    %v320 = vmul.f32 %v313, %v315
    %v321 = vmul.f32 %v314, %v315
    %v322 = vadd.f32 %v302, %v316
    %v323 = vadd.f32 %v303, %v317
    %v324 = vadd.f32 %v304, %v318
    %v325 = vadd.f32 %v305, %v319
    %v326 = vadd.f32 %v306, %v320
    %v327 = vadd.f32 %v307, %v321
    %s328 = sld [smem:[#allocation3 + $0x4]]
    %v329 = vld [vmem:[%s137] sm:$0xff]
    %v330 = vld [vmem:[%s137 + $0x8] sm:$0xff]
    %v331 = vld [vmem:[%s137 + $0x10] sm:$0x1f]
    %v332 = vld [vmem:[%s137 + $0x18] sm:$0xff]
    %v333 = vld [vmem:[%s137 + $0x20] sm:$0xff]
    %v334 = vld [vmem:[%s137 + $0x28] sm:$0x1f]
    %v335 = vstv %s328
    %v336 = vmul.f32 %v329, %v335
    %v337 = vmul.f32 %v330, %v335
    %v338 = vmul.f32 %v331, %v335
    %v339 = vmul.f32 %v332, %v335
    %v340 = vmul.f32 %v333, %v335
    %v341 = vmul.f32 %v334, %v335
    %v342 = vadd.f32 %v322, %v336
    %v343 = vadd.f32 %v323, %v337
    %v344 = vadd.f32 %v324, %v338
    %v345 = vadd.f32 %v325, %v339
    %v346 = vadd.f32 %v326, %v340
    %v347 = vadd.f32 %v327, %v341
    %s348 = sld [smem:[#allocation3 + $0x5]]
    %v349 = vld [vmem:[%s144] sm:$0xff]
    %v350 = vld [vmem:[%s144 + $0x8] sm:$0xff]
    %v351 = vld [vmem:[%s144 + $0x10] sm:$0x1f]
    %v352 = vld [vmem:[%s144 + $0x18] sm:$0xff]
    %v353 = vld [vmem:[%s144 + $0x20] sm:$0xff]
    %v354 = vld [vmem:[%s144 + $0x28] sm:$0x1f]
    %v355 = vstv %s348
    %v356 = vmul.f32 %v349, %v355
    %v357 = vmul.f32 %v350, %v355
    %v358 = vmul.f32 %v351, %v355
    %v359 = vmul.f32 %v352, %v355
    %v360 = vmul.f32 %v353, %v355
    %v361 = vmul.f32 %v354, %v355
    %v362 = vadd.f32 %v342, %v356
    %v363 = vadd.f32 %v343, %v357
    %v364 = vadd.f32 %v344, %v358
    %v365 = vadd.f32 %v345, %v359
    %v366 = vadd.f32 %v346, %v360
    %v367 = vadd.f32 %v347, %v361
    %s368 = sld [smem:[#allocation3 + $0x6]]
    %v369 = vld [vmem:[%s153] sm:$0xff]
    %v370 = vld [vmem:[%s153 + $0x8] sm:$0xff]
    %v371 = vld [vmem:[%s153 + $0x10] sm:$0x1f]
    %v372 = vld [vmem:[%s153 + $0x18] sm:$0xff]
    %v373 = vld [vmem:[%s153 + $0x20] sm:$0xff]
    %v374 = vld [vmem:[%s153 + $0x28] sm:$0x1f]
    %v375 = vstv %s368
    %v376 = vmul.f32 %v369, %v375
    %v377 = vmul.f32 %v370, %v375
    %v378 = vmul.f32 %v371, %v375
    %v379 = vmul.f32 %v372, %v375
    %v380 = vmul.f32 %v373, %v375
    %v381 = vmul.f32 %v374, %v375
    %v382 = vadd.f32 %v362, %v376
    %v383 = vadd.f32 %v363, %v377
    %v384 = vadd.f32 %v364, %v378
    %v385 = vadd.f32 %v365, %v379
    %v386 = vadd.f32 %v366, %v380
    %v387 = vadd.f32 %v367, %v381
    %s388 = sld [smem:[#allocation3 + $0x7]]
    %v389 = vld [vmem:[%s160] sm:$0xff]
    %v390 = vld [vmem:[%s160 + $0x8] sm:$0xff]
    %v391 = vld [vmem:[%s160 + $0x10] sm:$0x1f]
    %v392 = vld [vmem:[%s160 + $0x18] sm:$0xff]
    %v393 = vld [vmem:[%s160 + $0x20] sm:$0xff]
    %v394 = vld [vmem:[%s160 + $0x28] sm:$0x1f]
    %v395 = vstv %s388
    %v396 = vmul.f32 %v389, %v395
    %v397 = vmul.f32 %v390, %v395
    %v398 = vmul.f32 %v391, %v395
    %v399 = vmul.f32 %v392, %v395
    %v400 = vmul.f32 %v393, %v395
    %v401 = vmul.f32 %v394, %v395
    %v402 = vadd.f32 %v382, %v396
    %v403 = vadd.f32 %v383, %v397
    %v404 = vadd.f32 %v384, %v398
    %v405 = vadd.f32 %v385, %v399
    %v406 = vadd.f32 %v386, %v400
    %v407 = vadd.f32 %v387, %v401
    %s408 = sld [smem:[#allocation3 + $0x8]]
    %v409 = vld [vmem:[%s167] sm:$0xff]
    %v410 = vld [vmem:[%s167 + $0x8] sm:$0xff]
    %v411 = vld [vmem:[%s167 + $0x10] sm:$0x1f]
    %v412 = vld [vmem:[%s167 + $0x18] sm:$0xff]
    %v413 = vld [vmem:[%s167 + $0x20] sm:$0xff]
    %v414 = vld [vmem:[%s167 + $0x28] sm:$0x1f]
    %v415 = vstv %s408
    %v416 = vmul.f32 %v409, %v415
    %v417 = vmul.f32 %v410, %v415
    %v418 = vmul.f32 %v411, %v415
    %v419 = vmul.f32 %v412, %v415
    %v420 = vmul.f32 %v413, %v415
    %v421 = vmul.f32 %v414, %v415
    %v422 = vadd.f32 %v402, %v416
    %v423 = vadd.f32 %v403, %v417
    %v424 = vadd.f32 %v404, %v418
    %v425 = vadd.f32 %v405, %v419
    %v426 = vadd.f32 %v406, %v420
    %v427 = vadd.f32 %v407, %v421
    %s428 = sld [smem:[#allocation3 + $0x9]]
    %v429 = vld [vmem:[%s174] sm:$0xff]
    %v430 = vld [vmem:[%s174 + $0x8] sm:$0xff]
    %v431 = vld [vmem:[%s174 + $0x10] sm:$0x1f]
    %v432 = vld [vmem:[%s174 + $0x18] sm:$0xff]
    %v433 = vld [vmem:[%s174 + $0x20] sm:$0xff]
    %v434 = vld [vmem:[%s174 + $0x28] sm:$0x1f]
    %v435 = vstv %s428
    %v436 = vmul.f32 %v429, %v435
    %v437 = vmul.f32 %v430, %v435
    %v438 = vmul.f32 %v431, %v435
    %v439 = vmul.f32 %v432, %v435
    %v440 = vmul.f32 %v433, %v435
    %v441 = vmul.f32 %v434, %v435
    %v442 = vadd.f32 %v422, %v436
    %v443 = vadd.f32 %v423, %v437
    %v444 = vadd.f32 %v424, %v438
    %v445 = vadd.f32 %v425, %v439
    %v446 = vadd.f32 %v426, %v440
    %v447 = vadd.f32 %v427, %v441
    %s448 = sld [smem:[#allocation3 + $0xa]]
    %v449 = vld [vmem:[%s181] sm:$0xff]
    %v450 = vld [vmem:[%s181 + $0x8] sm:$0xff]
    %v451 = vld [vmem:[%s181 + $0x10] sm:$0x1f]
    %v452 = vld [vmem:[%s181 + $0x18] sm:$0xff]
    %v453 = vld [vmem:[%s181 + $0x20] sm:$0xff]
    %v454 = vld [vmem:[%s181 + $0x28] sm:$0x1f]
    %v455 = vstv %s448
    %v456 = vmul.f32 %v449, %v455
    %v457 = vmul.f32 %v450, %v455
    %v458 = vmul.f32 %v451, %v455
    %v459 = vmul.f32 %v452, %v455
    %v460 = vmul.f32 %v453, %v455
    %v461 = vmul.f32 %v454, %v455
    %v462 = vadd.f32 %v442, %v456
    %v463 = vadd.f32 %v443, %v457
    %v464 = vadd.f32 %v444, %v458
    %v465 = vadd.f32 %v445, %v459
    %v466 = vadd.f32 %v446, %v460
    %v467 = vadd.f32 %v447, %v461
    %s468 = sld [smem:[#allocation3 + $0xb]]
    %v469 = vld [vmem:[%s190] sm:$0xff]
    %v470 = vld [vmem:[%s190 + $0x8] sm:$0xff]
    %v471 = vld [vmem:[%s190 + $0x10] sm:$0x1f]
    %v472 = vld [vmem:[%s190 + $0x18] sm:$0xff]
    %v473 = vld [vmem:[%s190 + $0x20] sm:$0xff]
    %v474 = vld [vmem:[%s190 + $0x28] sm:$0x1f]
    %v475 = vstv %s468
    %v476 = vmul.f32 %v469, %v475
    %v477 = vmul.f32 %v470, %v475
    %v478 = vmul.f32 %v471, %v475
    %v479 = vmul.f32 %v472, %v475
    %v480 = vmul.f32 %v473, %v475
    %v481 = vmul.f32 %v474, %v475
    %v482 = vadd.f32 %v462, %v476
    %v483 = vadd.f32 %v463, %v477
    %v484 = vadd.f32 %v464, %v478
    %v485 = vadd.f32 %v465, %v479
    %v486 = vadd.f32 %v466, %v480
    %v487 = vadd.f32 %v467, %v481
    %s488 = sld [smem:[#allocation3 + $0xc]]
    %v489 = vld [vmem:[%s197] sm:$0xff]
    %v490 = vld [vmem:[%s197 + $0x8] sm:$0xff]
    %v491 = vld [vmem:[%s197 + $0x10] sm:$0x1f]
    %v492 = vld [vmem:[%s197 + $0x18] sm:$0xff]
    %v493 = vld [vmem:[%s197 + $0x20] sm:$0xff]
    %v494 = vld [vmem:[%s197 + $0x28] sm:$0x1f]
    %v495 = vstv %s488
    %v496 = vmul.f32 %v489, %v495
    %v497 = vmul.f32 %v490, %v495
    %v498 = vmul.f32 %v491, %v495
    %v499 = vmul.f32 %v492, %v495
    %v500 = vmul.f32 %v493, %v495
    %v501 = vmul.f32 %v494, %v495
    %v502 = vadd.f32 %v482, %v496
    %v503 = vadd.f32 %v483, %v497
    %v504 = vadd.f32 %v484, %v498
    %v505 = vadd.f32 %v485, %v499
    %v506 = vadd.f32 %v486, %v500
    %v507 = vadd.f32 %v487, %v501
    %s508 = sld [smem:[#allocation3 + $0xd]]
    %v509 = vld [vmem:[%s204] sm:$0xff]
    %v510 = vld [vmem:[%s204 + $0x8] sm:$0xff]
    %v511 = vld [vmem:[%s204 + $0x10] sm:$0x1f]
    %v512 = vld [vmem:[%s204 + $0x18] sm:$0xff]
    %v513 = vld [vmem:[%s204 + $0x20] sm:$0xff]
    %v514 = vld [vmem:[%s204 + $0x28] sm:$0x1f]
    %v515 = vstv %s508
    %v516 = vmul.f32 %v509, %v515
    %v517 = vmul.f32 %v510, %v515
    %v518 = vmul.f32 %v511, %v515
    %v519 = vmul.f32 %v512, %v515
    %v520 = vmul.f32 %v513, %v515
    %v521 = vmul.f32 %v514, %v515
    %v522 = vadd.f32 %v502, %v516
    %v523 = vadd.f32 %v503, %v517
    %v524 = vadd.f32 %v504, %v518
    %v525 = vadd.f32 %v505, %v519
    %v526 = vadd.f32 %v506, %v520
    %v527 = vadd.f32 %v507, %v521
    %s528 = sld [smem:[#allocation3 + $0xe]]
    %v529 = vld [vmem:[%s211] sm:$0xff]
    %v530 = vld [vmem:[%s211 + $0x8] sm:$0xff]
    %v531 = vld [vmem:[%s211 + $0x10] sm:$0x1f]
    %v532 = vld [vmem:[%s211 + $0x18] sm:$0xff]
    %v533 = vld [vmem:[%s211 + $0x20] sm:$0xff]
    %v534 = vld [vmem:[%s211 + $0x28] sm:$0x1f]
    %v535 = vstv %s528
    %v536 = vmul.f32 %v529, %v535
    %v537 = vmul.f32 %v530, %v535
    %v538 = vmul.f32 %v531, %v535
    %v539 = vmul.f32 %v532, %v535
    %v540 = vmul.f32 %v533, %v535
    %v541 = vmul.f32 %v534, %v535
    %v542 = vadd.f32 %v522, %v536
    %v543 = vadd.f32 %v523, %v537
    %v544 = vadd.f32 %v524, %v538
    %v545 = vadd.f32 %v525, %v539
    %v546 = vadd.f32 %v526, %v540
    %v547 = vadd.f32 %v527, %v541
    %s548 = sld [smem:[#allocation3 + $0xf]]
    %v549 = vld [vmem:[%s218] sm:$0xff]
    %v550 = vld [vmem:[%s218 + $0x8] sm:$0xff]
    %v551 = vld [vmem:[%s218 + $0x10] sm:$0x1f]
    %v552 = vld [vmem:[%s218 + $0x18] sm:$0xff]
    %v553 = vld [vmem:[%s218 + $0x20] sm:$0xff]
    %v554 = vld [vmem:[%s218 + $0x28] sm:$0x1f]
    %v555 = vstv %s548
    %v556 = vmul.f32 %v549, %v555
    %v557 = vmul.f32 %v550, %v555
    %v558 = vmul.f32 %v551, %v555
    %v559 = vmul.f32 %v552, %v555
    %v560 = vmul.f32 %v553, %v555
    %v561 = vmul.f32 %v554, %v555
    %v562 = vadd.f32 %v542, %v556
    %v563 = vadd.f32 %v543, %v557
    %v564 = vadd.f32 %v544, %v558
    %v565 = vadd.f32 %v545, %v559
    %v566 = vadd.f32 %v546, %v560
    %v567 = vadd.f32 %v547, %v561
    %s568 = sld [smem:[#allocation3 + $0x10]]
    %v569 = vld [vmem:[%s226] sm:$0xff]
    %v570 = vld [vmem:[%s226 + $0x8] sm:$0xff]
    %v571 = vld [vmem:[%s226 + $0x10] sm:$0x1f]
    %v572 = vld [vmem:[%s226 + $0x18] sm:$0xff]
    %v573 = vld [vmem:[%s226 + $0x20] sm:$0xff]
    %v574 = vld [vmem:[%s226 + $0x28] sm:$0x1f]
    %v575 = vstv %s568
    %v576 = vmul.f32 %v569, %v575
    %v577 = vmul.f32 %v570, %v575
    %v578 = vmul.f32 %v571, %v575
    %v579 = vmul.f32 %v572, %v575
    %v580 = vmul.f32 %v573, %v575
    %v581 = vmul.f32 %v574, %v575
    %v582 = vadd.f32 %v562, %v576
    %v583 = vadd.f32 %v563, %v577
    %v584 = vadd.f32 %v564, %v578
    %v585 = vadd.f32 %v565, %v579
    %v586 = vadd.f32 %v566, %v580
    %v587 = vadd.f32 %v567, %v581
    %s588 = sld [smem:[#allocation3 + $0x11]]
    %v589 = vld [vmem:[%s233] sm:$0xff]
    %v590 = vld [vmem:[%s233 + $0x8] sm:$0xff]
    %v591 = vld [vmem:[%s233 + $0x10] sm:$0x1f]
    %v592 = vld [vmem:[%s233 + $0x18] sm:$0xff]
    %v593 = vld [vmem:[%s233 + $0x20] sm:$0xff]
    %v594 = vld [vmem:[%s233 + $0x28] sm:$0x1f]
    %v595 = vstv %s588
    %v596 = vmul.f32 %v589, %v595
    %v597 = vmul.f32 %v590, %v595
    %v598 = vmul.f32 %v591, %v595
    %v599 = vmul.f32 %v592, %v595
    %v600 = vmul.f32 %v593, %v595
    %v601 = vmul.f32 %v594, %v595
    %v602 = vadd.f32 %v582, %v596
    %v603 = vadd.f32 %v583, %v597
    %v604 = vadd.f32 %v584, %v598
    %v605 = vadd.f32 %v585, %v599
    %v606 = vadd.f32 %v586, %v600
    %v607 = vadd.f32 %v587, %v601
    %s608 = sld [smem:[#allocation3 + $0x12]]
    %v609 = vld [vmem:[%s240] sm:$0xff]
    %v610 = vld [vmem:[%s240 + $0x8] sm:$0xff]
    %v611 = vld [vmem:[%s240 + $0x10] sm:$0x1f]
    %v612 = vld [vmem:[%s240 + $0x18] sm:$0xff]
    %v613 = vld [vmem:[%s240 + $0x20] sm:$0xff]
    %v614 = vld [vmem:[%s240 + $0x28] sm:$0x1f]
    %v615 = vstv %s608
    %v616 = vmul.f32 %v609, %v615
    %v617 = vmul.f32 %v610, %v615
    %v618 = vmul.f32 %v611, %v615
    %v619 = vmul.f32 %v612, %v615
    %v620 = vmul.f32 %v613, %v615
    %v621 = vmul.f32 %v614, %v615
    %v622 = vadd.f32 %v602, %v616
    %v623 = vadd.f32 %v603, %v617
    %v624 = vadd.f32 %v604, %v618
    %v625 = vadd.f32 %v605, %v619
    %v626 = vadd.f32 %v606, %v620
    %v627 = vadd.f32 %v607, %v621
    %s628 = sld [smem:[#allocation3 + $0x13]]
    %v629 = vld [vmem:[%s247] sm:$0xff]
    %v630 = vld [vmem:[%s247 + $0x8] sm:$0xff]
    %v631 = vld [vmem:[%s247 + $0x10] sm:$0x1f]
    %v632 = vld [vmem:[%s247 + $0x18] sm:$0xff]
    %v633 = vld [vmem:[%s247 + $0x20] sm:$0xff]
    %v634 = vld [vmem:[%s247 + $0x28] sm:$0x1f]
    %v635 = vstv %s628
    %v636 = vmul.f32 %v629, %v635
    %v637 = vmul.f32 %v630, %v635
    %v638 = vmul.f32 %v631, %v635
    %v639 = vmul.f32 %v632, %v635
    %v640 = vmul.f32 %v633, %v635
    %v641 = vmul.f32 %v634, %v635
    %v642 = vadd.f32 %v622, %v636
    %v643 = vadd.f32 %v623, %v637
    %v644 = vadd.f32 %v624, %v638
    %v645 = vadd.f32 %v625, %v639
    %v646 = vadd.f32 %v626, %v640
    %v647 = vadd.f32 %v627, %v641
    %vm648 = vcmp.gt.f32.partialorder %v642, 0.0
    %vm649 = vcmp.gt.f32.partialorder %v643, 0.0
    %vm650 = vcmp.gt.f32.partialorder %v644, 0.0
    %vm651 = vcmp.gt.f32.partialorder %v645, 0.0
    %vm652 = vcmp.gt.f32.partialorder %v646, 0.0
    %vm653 = vcmp.gt.f32.partialorder %v647, 0.0
    %v654 = vmul.f32 %v642, -0.1
    %v655 = vmul.f32 %v643, -0.1
    %v656 = vmul.f32 %v644, -0.1
    %v657 = vmul.f32 %v645, -0.1
    %v658 = vmul.f32 %v646, -0.1
    %v659 = vmul.f32 %v647, -0.1
    %v660 = vsel %vm648, %v642, %v654
    %v661 = vsel %vm649, %v643, %v655
    %v662 = vsel %vm650, %v644, %v656
    %v663 = vsel %vm651, %v645, %v657
    %v664 = vsel %vm652, %v646, %v658
    %v665 = vsel %vm653, %v647, %v659
    %666 = vst.msk [vmem:[%s2] sm:$0xff] %vm30, %v660
    %667 = vst.msk [vmem:[%s2 + $0x8] sm:$0xff] %vm30, %v661
    %668 = vst.msk [vmem:[%s2 + $0x10] sm:$0x1f] %vm33, %v662
    %669 = vst.msk [vmem:[%s2 + $0x108] sm:$0xff] %vm30, %v663
    %670 = vst.msk [vmem:[%s2 + $0x110] sm:$0xff] %vm30, %v664
    %671 = vst.msk [vmem:[%s2 + $0x118] sm:$0x1f] %vm33, %v665
    %s672 = sld [smem:[#allocation3 + $0x14]]
    %v673 = vld [vmem:[#allocation2] sm:$0xff]
    %v674 = vld [vmem:[#allocation2 + $0x8] sm:$0xff]
    %v675 = vld [vmem:[#allocation2 + $0x10] sm:$0x1f]
    %v676 = vld [vmem:[#allocation2 + $0x18] sm:$0xff]
    %v677 = vld [vmem:[#allocation2 + $0x20] sm:$0xff]
    %v678 = vld [vmem:[#allocation2 + $0x28] sm:$0x1f]
    %v679 = vstv %s672
    %v680 = vmul.f32 %v673, %v679
    %v681 = vmul.f32 %v674, %v679
    %v682 = vmul.f32 %v675, %v679
    %v683 = vmul.f32 %v676, %v679
    %v684 = vmul.f32 %v677, %v679
    %v685 = vmul.f32 %v678, %v679
    %s686 = sld [smem:[#allocation3 + $0x15]]
    %v687 = vld [vmem:[%s62] sm:$0xff]
    %v688 = vld [vmem:[%s62 + $0x8] sm:$0xff]
    %v689 = vld [vmem:[%s62 + $0x10] sm:$0x1f]
    %v690 = vld [vmem:[%s62 + $0x18] sm:$0xff]
    %v691 = vld [vmem:[%s62 + $0x20] sm:$0xff]
    %v692 = vld [vmem:[%s62 + $0x28] sm:$0x1f]
    %v693 = vstv %s686
    %v694 = vmul.f32 %v687, %v693
    %v695 = vmul.f32 %v688, %v693
    %v696 = vmul.f32 %v689, %v693
    %v697 = vmul.f32 %v690, %v693
    %v698 = vmul.f32 %v691, %v693
    %v699 = vmul.f32 %v692, %v693
    %v700 = vadd.f32 %v680, %v694
    %v701 = vadd.f32 %v681, %v695
    %v702 = vadd.f32 %v682, %v696
    %v703 = vadd.f32 %v683, %v697
    %v704 = vadd.f32 %v684, %v698
    %v705 = vadd.f32 %v685, %v699
    %s706 = sld [smem:[#allocation3 + $0x16]]
    %v707 = vld [vmem:[%s87] sm:$0xff]
    %v708 = vld [vmem:[%s87 + $0x8] sm:$0xff]
    %v709 = vld [vmem:[%s87 + $0x10] sm:$0x1f]
    %v710 = vld [vmem:[%s87 + $0x18] sm:$0xff]
    %v711 = vld [vmem:[%s87 + $0x20] sm:$0xff]
    %v712 = vld [vmem:[%s87 + $0x28] sm:$0x1f]
    %v713 = vstv %s706
    %v714 = vmul.f32 %v707, %v713
    %v715 = vmul.f32 %v708, %v713
    %v716 = vmul.f32 %v709, %v713
    %v717 = vmul.f32 %v710, %v713
    %v718 = vmul.f32 %v711, %v713
    %v719 = vmul.f32 %v712, %v713
    %v720 = vadd.f32 %v700, %v714
    %v721 = vadd.f32 %v701, %v715
    %v722 = vadd.f32 %v702, %v716
    %v723 = vadd.f32 %v703, %v717
    %v724 = vadd.f32 %v704, %v718
    %v725 = vadd.f32 %v705, %v719
    %s726 = sld [smem:[#allocation3 + $0x17]]
    %v727 = vld [vmem:[%s112] sm:$0xff]
    %v728 = vld [vmem:[%s112 + $0x8] sm:$0xff]
    %v729 = vld [vmem:[%s112 + $0x10] sm:$0x1f]
    %v730 = vld [vmem:[%s112 + $0x18] sm:$0xff]
    %v731 = vld [vmem:[%s112 + $0x20] sm:$0xff]
    %v732 = vld [vmem:[%s112 + $0x28] sm:$0x1f]
    %v733 = vstv %s726
    %v734 = vmul.f32 %v727, %v733
    %v735 = vmul.f32 %v728, %v733
    %v736 = vmul.f32 %v729, %v733
    %v737 = vmul.f32 %v730, %v733
    %v738 = vmul.f32 %v731, %v733
    %v739 = vmul.f32 %v732, %v733
    %v740 = vadd.f32 %v720, %v734
    %v741 = vadd.f32 %v721, %v735
    %v742 = vadd.f32 %v722, %v736
    %v743 = vadd.f32 %v723, %v737
    %v744 = vadd.f32 %v724, %v738
    %v745 = vadd.f32 %v725, %v739
    %s746 = sld [smem:[#allocation3 + $0x18]]
    %v747 = vld [vmem:[%s137] sm:$0xff]
    %v748 = vld [vmem:[%s137 + $0x8] sm:$0xff]
    %v749 = vld [vmem:[%s137 + $0x10] sm:$0x1f]
    %v750 = vld [vmem:[%s137 + $0x18] sm:$0xff]
    %v751 = vld [vmem:[%s137 + $0x20] sm:$0xff]
    %v752 = vld [vmem:[%s137 + $0x28] sm:$0x1f]
    %v753 = vstv %s746
    %v754 = vmul.f32 %v747, %v753
    %v755 = vmul.f32 %v748, %v753
    %v756 = vmul.f32 %v749, %v753
    %v757 = vmul.f32 %v750, %v753
    %v758 = vmul.f32 %v751, %v753
    %v759 = vmul.f32 %v752, %v753
    %v760 = vadd.f32 %v740, %v754
    %v761 = vadd.f32 %v741, %v755
    %v762 = vadd.f32 %v742, %v756
    %v763 = vadd.f32 %v743, %v757
    %v764 = vadd.f32 %v744, %v758
    %v765 = vadd.f32 %v745, %v759
    %s766 = sld [smem:[#allocation3 + $0x19]]
    %v767 = vld [vmem:[%s144] sm:$0xff]
    %v768 = vld [vmem:[%s144 + $0x8] sm:$0xff]
    %v769 = vld [vmem:[%s144 + $0x10] sm:$0x1f]
    %v770 = vld [vmem:[%s144 + $0x18] sm:$0xff]
    %v771 = vld [vmem:[%s144 + $0x20] sm:$0xff]
    %v772 = vld [vmem:[%s144 + $0x28] sm:$0x1f]
    %v773 = vstv %s766
    %v774 = vmul.f32 %v767, %v773
    %v775 = vmul.f32 %v768, %v773
    %v776 = vmul.f32 %v769, %v773
    %v777 = vmul.f32 %v770, %v773
    %v778 = vmul.f32 %v771, %v773
    %v779 = vmul.f32 %v772, %v773
    %v780 = vadd.f32 %v760, %v774
    %v781 = vadd.f32 %v761, %v775
    %v782 = vadd.f32 %v762, %v776
    %v783 = vadd.f32 %v763, %v777
    %v784 = vadd.f32 %v764, %v778
    %v785 = vadd.f32 %v765, %v779
    %s786 = sld [smem:[#allocation3 + $0x1a]]
    %v787 = vld [vmem:[%s153] sm:$0xff]
    %v788 = vld [vmem:[%s153 + $0x8] sm:$0xff]
    %v789 = vld [vmem:[%s153 + $0x10] sm:$0x1f]
    %v790 = vld [vmem:[%s153 + $0x18] sm:$0xff]
    %v791 = vld [vmem:[%s153 + $0x20] sm:$0xff]
    %v792 = vld [vmem:[%s153 + $0x28] sm:$0x1f]
    %v793 = vstv %s786
    %v794 = vmul.f32 %v787, %v793
    %v795 = vmul.f32 %v788, %v793
    %v796 = vmul.f32 %v789, %v793
    %v797 = vmul.f32 %v790, %v793
    %v798 = vmul.f32 %v791, %v793
    %v799 = vmul.f32 %v792, %v793
    %v800 = vadd.f32 %v780, %v794
    %v801 = vadd.f32 %v781, %v795
    %v802 = vadd.f32 %v782, %v796
    %v803 = vadd.f32 %v783, %v797
    %v804 = vadd.f32 %v784, %v798
    %v805 = vadd.f32 %v785, %v799
    %s806 = sld [smem:[#allocation3 + $0x1b]]
    %v807 = vld [vmem:[%s160] sm:$0xff]
    %v808 = vld [vmem:[%s160 + $0x8] sm:$0xff]
    %v809 = vld [vmem:[%s160 + $0x10] sm:$0x1f]
    %v810 = vld [vmem:[%s160 + $0x18] sm:$0xff]
    %v811 = vld [vmem:[%s160 + $0x20] sm:$0xff]
    %v812 = vld [vmem:[%s160 + $0x28] sm:$0x1f]
    %v813 = vstv %s806
    %v814 = vmul.f32 %v807, %v813
    %v815 = vmul.f32 %v808, %v813
    %v816 = vmul.f32 %v809, %v813
    %v817 = vmul.f32 %v810, %v813
    %v818 = vmul.f32 %v811, %v813
    %v819 = vmul.f32 %v812, %v813
    %v820 = vadd.f32 %v800, %v814
    %v821 = vadd.f32 %v801, %v815
    %v822 = vadd.f32 %v802, %v816
    %v823 = vadd.f32 %v803, %v817
    %v824 = vadd.f32 %v804, %v818
    %v825 = vadd.f32 %v805, %v819
    %s826 = sld [smem:[#allocation3 + $0x1c]]
    %v827 = vld [vmem:[%s167] sm:$0xff]
    %v828 = vld [vmem:[%s167 + $0x8] sm:$0xff]
    %v829 = vld [vmem:[%s167 + $0x10] sm:$0x1f]
    %v830 = vld [vmem:[%s167 + $0x18] sm:$0xff]
    %v831 = vld [vmem:[%s167 + $0x20] sm:$0xff]
    %v832 = vld [vmem:[%s167 + $0x28] sm:$0x1f]
    %v833 = vstv %s826
    %v834 = vmul.f32 %v827, %v833
    %v835 = vmul.f32 %v828, %v833
    %v836 = vmul.f32 %v829, %v833
    %v837 = vmul.f32 %v830, %v833
    %v838 = vmul.f32 %v831, %v833
    %v839 = vmul.f32 %v832, %v833
    %v840 = vadd.f32 %v820, %v834
    %v841 = vadd.f32 %v821, %v835
    %v842 = vadd.f32 %v822, %v836
    %v843 = vadd.f32 %v823, %v837
    %v844 = vadd.f32 %v824, %v838
    %v845 = vadd.f32 %v825, %v839
    %s846 = sld [smem:[#allocation3 + $0x1d]]
    %v847 = vld [vmem:[%s174] sm:$0xff]
    %v848 = vld [vmem:[%s174 + $0x8] sm:$0xff]
    %v849 = vld [vmem:[%s174 + $0x10] sm:$0x1f]
    %v850 = vld [vmem:[%s174 + $0x18] sm:$0xff]
    %v851 = vld [vmem:[%s174 + $0x20] sm:$0xff]
    %v852 = vld [vmem:[%s174 + $0x28] sm:$0x1f]
    %v853 = vstv %s846
    %v854 = vmul.f32 %v847, %v853
    %v855 = vmul.f32 %v848, %v853
    %v856 = vmul.f32 %v849, %v853
    %v857 = vmul.f32 %v850, %v853
    %v858 = vmul.f32 %v851, %v853
    %v859 = vmul.f32 %v852, %v853
    %v860 = vadd.f32 %v840, %v854
    %v861 = vadd.f32 %v841, %v855
    %v862 = vadd.f32 %v842, %v856
    %v863 = vadd.f32 %v843, %v857
    %v864 = vadd.f32 %v844, %v858
    %v865 = vadd.f32 %v845, %v859
    %s866 = sld [smem:[#allocation3 + $0x1e]]
    %v867 = vld [vmem:[%s181] sm:$0xff]
    %v868 = vld [vmem:[%s181 + $0x8] sm:$0xff]
    %v869 = vld [vmem:[%s181 + $0x10] sm:$0x1f]
    %v870 = vld [vmem:[%s181 + $0x18] sm:$0xff]
    %v871 = vld [vmem:[%s181 + $0x20] sm:$0xff]
    %v872 = vld [vmem:[%s181 + $0x28] sm:$0x1f]
    %v873 = vstv %s866
    %v874 = vmul.f32 %v867, %v873
    %v875 = vmul.f32 %v868, %v873
    %v876 = vmul.f32 %v869, %v873
    %v877 = vmul.f32 %v870, %v873
    %v878 = vmul.f32 %v871, %v873
    %v879 = vmul.f32 %v872, %v873
    %v880 = vadd.f32 %v860, %v874
    %v881 = vadd.f32 %v861, %v875
    %v882 = vadd.f32 %v862, %v876
    %v883 = vadd.f32 %v863, %v877
    %v884 = vadd.f32 %v864, %v878
    %v885 = vadd.f32 %v865, %v879
    %s886 = sld [smem:[#allocation3 + $0x1f]]
    %v887 = vld [vmem:[%s190] sm:$0xff]
    %v888 = vld [vmem:[%s190 + $0x8] sm:$0xff]
    %v889 = vld [vmem:[%s190 + $0x10] sm:$0x1f]
    %v890 = vld [vmem:[%s190 + $0x18] sm:$0xff]
    %v891 = vld [vmem:[%s190 + $0x20] sm:$0xff]
    %v892 = vld [vmem:[%s190 + $0x28] sm:$0x1f]
    %v893 = vstv %s886
    %v894 = vmul.f32 %v887, %v893
    %v895 = vmul.f32 %v888, %v893
    %v896 = vmul.f32 %v889, %v893
    %v897 = vmul.f32 %v890, %v893
    %v898 = vmul.f32 %v891, %v893
    %v899 = vmul.f32 %v892, %v893
    %v900 = vadd.f32 %v880, %v894
    %v901 = vadd.f32 %v881, %v895
    %v902 = vadd.f32 %v882, %v896
    %v903 = vadd.f32 %v883, %v897
    %v904 = vadd.f32 %v884, %v898
    %v905 = vadd.f32 %v885, %v899
    %s906 = sld [smem:[#allocation3 + $0x20]]
    %v907 = vld [vmem:[%s197] sm:$0xff]
    %v908 = vld [vmem:[%s197 + $0x8] sm:$0xff]
    %v909 = vld [vmem:[%s197 + $0x10] sm:$0x1f]
    %v910 = vld [vmem:[%s197 + $0x18] sm:$0xff]
    %v911 = vld [vmem:[%s197 + $0x20] sm:$0xff]
    %v912 = vld [vmem:[%s197 + $0x28] sm:$0x1f]
    %v913 = vstv %s906
    %v914 = vmul.f32 %v907, %v913
    %v915 = vmul.f32 %v908, %v913
    %v916 = vmul.f32 %v909, %v913
    %v917 = vmul.f32 %v910, %v913
    %v918 = vmul.f32 %v911, %v913
    %v919 = vmul.f32 %v912, %v913
    %v920 = vadd.f32 %v900, %v914
    %v921 = vadd.f32 %v901, %v915
    %v922 = vadd.f32 %v902, %v916
    %v923 = vadd.f32 %v903, %v917
    %v924 = vadd.f32 %v904, %v918
    %v925 = vadd.f32 %v905, %v919
    %s926 = sld [smem:[#allocation3 + $0x21]]
    %v927 = vld [vmem:[%s204] sm:$0xff]
    %v928 = vld [vmem:[%s204 + $0x8] sm:$0xff]
    %v929 = vld [vmem:[%s204 + $0x10] sm:$0x1f]
    %v930 = vld [vmem:[%s204 + $0x18] sm:$0xff]
    %v931 = vld [vmem:[%s204 + $0x20] sm:$0xff]
    %v932 = vld [vmem:[%s204 + $0x28] sm:$0x1f]
    %v933 = vstv %s926
    %v934 = vmul.f32 %v927, %v933
    %v935 = vmul.f32 %v928, %v933
    %v936 = vmul.f32 %v929, %v933
    %v937 = vmul.f32 %v930, %v933
    %v938 = vmul.f32 %v931, %v933
    %v939 = vmul.f32 %v932, %v933
    %v940 = vadd.f32 %v920, %v934
    %v941 = vadd.f32 %v921, %v935
    %v942 = vadd.f32 %v922, %v936
    %v943 = vadd.f32 %v923, %v937
    %v944 = vadd.f32 %v924, %v938
    %v945 = vadd.f32 %v925, %v939
    %s946 = sld [smem:[#allocation3 + $0x22]]
    %v947 = vld [vmem:[%s211] sm:$0xff]
    %v948 = vld [vmem:[%s211 + $0x8] sm:$0xff]
    %v949 = vld [vmem:[%s211 + $0x10] sm:$0x1f]
    %v950 = vld [vmem:[%s211 + $0x18] sm:$0xff]
    %v951 = vld [vmem:[%s211 + $0x20] sm:$0xff]
    %v952 = vld [vmem:[%s211 + $0x28] sm:$0x1f]
    %v953 = vstv %s946
    %v954 = vmul.f32 %v947, %v953
    %v955 = vmul.f32 %v948, %v953
    %v956 = vmul.f32 %v949, %v953
    %v957 = vmul.f32 %v950, %v953
    %v958 = vmul.f32 %v951, %v953
    %v959 = vmul.f32 %v952, %v953
    %v960 = vadd.f32 %v940, %v954
    %v961 = vadd.f32 %v941, %v955
    %v962 = vadd.f32 %v942, %v956
    %v963 = vadd.f32 %v943, %v957
    %v964 = vadd.f32 %v944, %v958
    %v965 = vadd.f32 %v945, %v959
    %s966 = sld [smem:[#allocation3 + $0x23]]
    %v967 = vld [vmem:[%s218] sm:$0xff]
    %v968 = vld [vmem:[%s218 + $0x8] sm:$0xff]
    %v969 = vld [vmem:[%s218 + $0x10] sm:$0x1f]
    %v970 = vld [vmem:[%s218 + $0x18] sm:$0xff]
    %v971 = vld [vmem:[%s218 + $0x20] sm:$0xff]
    %v972 = vld [vmem:[%s218 + $0x28] sm:$0x1f]
    %v973 = vstv %s966
    %v974 = vmul.f32 %v967, %v973
    %v975 = vmul.f32 %v968, %v973
    %v976 = vmul.f32 %v969, %v973
    %v977 = vmul.f32 %v970, %v973
    %v978 = vmul.f32 %v971, %v973
    %v979 = vmul.f32 %v972, %v973
    %v980 = vadd.f32 %v960, %v974
    %v981 = vadd.f32 %v961, %v975
    %v982 = vadd.f32 %v962, %v976
    %v983 = vadd.f32 %v963, %v977
    %v984 = vadd.f32 %v964, %v978
    %v985 = vadd.f32 %v965, %v979
    %s986 = sld [smem:[#allocation3 + $0x24]]
    %v987 = vld [vmem:[%s226] sm:$0xff]
    %v988 = vld [vmem:[%s226 + $0x8] sm:$0xff]
    %v989 = vld [vmem:[%s226 + $0x10] sm:$0x1f]
    %v990 = vld [vmem:[%s226 + $0x18] sm:$0xff]
    %v991 = vld [vmem:[%s226 + $0x20] sm:$0xff]
    %v992 = vld [vmem:[%s226 + $0x28] sm:$0x1f]
    %v993 = vstv %s986
    %v994 = vmul.f32 %v987, %v993
    %v995 = vmul.f32 %v988, %v993
    %v996 = vmul.f32 %v989, %v993
    %v997 = vmul.f32 %v990, %v993
    %v998 = vmul.f32 %v991, %v993
    %v999 = vmul.f32 %v992, %v993
    %v1000 = vadd.f32 %v980, %v994
    %v1001 = vadd.f32 %v981, %v995
    %v1002 = vadd.f32 %v982, %v996
    %v1003 = vadd.f32 %v983, %v997
    %v1004 = vadd.f32 %v984, %v998
    %v1005 = vadd.f32 %v985, %v999
    %s1006 = sld [smem:[#allocation3 + $0x25]]
    %v1007 = vld [vmem:[%s233] sm:$0xff]
    %v1008 = vld [vmem:[%s233 + $0x8] sm:$0xff]
    %v1009 = vld [vmem:[%s233 + $0x10] sm:$0x1f]
    %v1010 = vld [vmem:[%s233 + $0x18] sm:$0xff]
    %v1011 = vld [vmem:[%s233 + $0x20] sm:$0xff]
    %v1012 = vld [vmem:[%s233 + $0x28] sm:$0x1f]
    %v1013 = vstv %s1006
    %v1014 = vmul.f32 %v1007, %v1013
    %v1015 = vmul.f32 %v1008, %v1013
    %v1016 = vmul.f32 %v1009, %v1013
    %v1017 = vmul.f32 %v1010, %v1013
    %v1018 = vmul.f32 %v1011, %v1013
    %v1019 = vmul.f32 %v1012, %v1013
    %v1020 = vadd.f32 %v1000, %v1014
    %v1021 = vadd.f32 %v1001, %v1015
    %v1022 = vadd.f32 %v1002, %v1016
    %v1023 = vadd.f32 %v1003, %v1017
    %v1024 = vadd.f32 %v1004, %v1018
    %v1025 = vadd.f32 %v1005, %v1019
    %s1026 = sld [smem:[#allocation3 + $0x26]]
    %v1027 = vld [vmem:[%s240] sm:$0xff]
    %v1028 = vld [vmem:[%s240 + $0x8] sm:$0xff]
    %v1029 = vld [vmem:[%s240 + $0x10] sm:$0x1f]
    %v1030 = vld [vmem:[%s240 + $0x18] sm:$0xff]
    %v1031 = vld [vmem:[%s240 + $0x20] sm:$0xff]
    %v1032 = vld [vmem:[%s240 + $0x28] sm:$0x1f]
    %v1033 = vstv %s1026
    %v1034 = vmul.f32 %v1027, %v1033
    %v1035 = vmul.f32 %v1028, %v1033
    %v1036 = vmul.f32 %v1029, %v1033
    %v1037 = vmul.f32 %v1030, %v1033
    %v1038 = vmul.f32 %v1031, %v1033
    %v1039 = vmul.f32 %v1032, %v1033
    %v1040 = vadd.f32 %v1020, %v1034
    %v1041 = vadd.f32 %v1021, %v1035
    %v1042 = vadd.f32 %v1022, %v1036
    %v1043 = vadd.f32 %v1023, %v1037
    %v1044 = vadd.f32 %v1024, %v1038
    %v1045 = vadd.f32 %v1025, %v1039
    %s1046 = sld [smem:[#allocation3 + $0x27]]
    %v1047 = vld [vmem:[%s247] sm:$0xff]
    %v1048 = vld [vmem:[%s247 + $0x8] sm:$0xff]
    %v1049 = vld [vmem:[%s247 + $0x10] sm:$0x1f]
    %v1050 = vld [vmem:[%s247 + $0x18] sm:$0xff]
    %v1051 = vld [vmem:[%s247 + $0x20] sm:$0xff]
    %v1052 = vld [vmem:[%s247 + $0x28] sm:$0x1f]
    %v1053 = vstv %s1046
    %v1054 = vmul.f32 %v1047, %v1053
    %v1055 = vmul.f32 %v1048, %v1053
    %v1056 = vmul.f32 %v1049, %v1053
    %v1057 = vmul.f32 %v1050, %v1053
    %v1058 = vmul.f32 %v1051, %v1053
    %v1059 = vmul.f32 %v1052, %v1053
    %v1060 = vadd.f32 %v1040, %v1054
    %v1061 = vadd.f32 %v1041, %v1055
    %v1062 = vadd.f32 %v1042, %v1056
    %v1063 = vadd.f32 %v1043, %v1057
    %v1064 = vadd.f32 %v1044, %v1058
    %v1065 = vadd.f32 %v1045, %v1059
    %vm1066 = vcmp.gt.f32.partialorder %v1060, 0.0
    %vm1067 = vcmp.gt.f32.partialorder %v1061, 0.0
    %vm1068 = vcmp.gt.f32.partialorder %v1062, 0.0
    %vm1069 = vcmp.gt.f32.partialorder %v1063, 0.0
    %vm1070 = vcmp.gt.f32.partialorder %v1064, 0.0
    %vm1071 = vcmp.gt.f32.partialorder %v1065, 0.0
    %v1072 = vmul.f32 %v1060, -0.1
    %v1073 = vmul.f32 %v1061, -0.1
    %v1074 = vmul.f32 %v1062, -0.1
    %v1075 = vmul.f32 %v1063, -0.1
    %v1076 = vmul.f32 %v1064, -0.1
    %v1077 = vmul.f32 %v1065, -0.1
    %v1078 = vsel %vm1066, %v1060, %v1072
    %v1079 = vsel %vm1067, %v1061, %v1073
    %v1080 = vsel %vm1068, %v1062, %v1074
    %v1081 = vsel %vm1069, %v1063, %v1075
    %v1082 = vsel %vm1070, %v1064, %v1076
    %v1083 = vsel %vm1071, %v1065, %v1077
    %s1084 = scalar_lea.vmem %s2, 24
    %1085 = vst.msk [vmem:[%s1084] sm:$0xff] %vm30, %v1078
    %1086 = vst.msk [vmem:[%s1084 + $0x8] sm:$0xff] %vm30, %v1079
    %1087 = vst.msk [vmem:[%s1084 + $0x10] sm:$0x1f] %vm33, %v1080
    %1088 = vst.msk [vmem:[%s1084 + $0x108] sm:$0xff] %vm30, %v1081
    %1089 = vst.msk [vmem:[%s1084 + $0x110] sm:$0xff] %vm30, %v1082
    %1090 = vst.msk [vmem:[%s1084 + $0x118] sm:$0x1f] %vm33, %v1083
    %s1091 = sld [smem:[#allocation3 + $0x28]]
    %v1092 = vld [vmem:[#allocation2] sm:$0xff]
    %v1093 = vld [vmem:[#allocation2 + $0x8] sm:$0xff]
    %v1094 = vld [vmem:[#allocation2 + $0x10] sm:$0x1f]
    %v1095 = vld [vmem:[#allocation2 + $0x18] sm:$0xff]
    %v1096 = vld [vmem:[#allocation2 + $0x20] sm:$0xff]
    %v1097 = vld [vmem:[#allocation2 + $0x28] sm:$0x1f]
    %v1098 = vstv %s1091
    %v1099 = vmul.f32 %v1092, %v1098
    %v1100 = vmul.f32 %v1093, %v1098
    %v1101 = vmul.f32 %v1094, %v1098
    %v1102 = vmul.f32 %v1095, %v1098
    %v1103 = vmul.f32 %v1096, %v1098
    %v1104 = vmul.f32 %v1097, %v1098
    %s1105 = sld [smem:[#allocation3 + $0x29]]
    %v1106 = vld [vmem:[%s62] sm:$0xff]
    %v1107 = vld [vmem:[%s62 + $0x8] sm:$0xff]
    %v1108 = vld [vmem:[%s62 + $0x10] sm:$0x1f]
    %v1109 = vld [vmem:[%s62 + $0x18] sm:$0xff]
    %v1110 = vld [vmem:[%s62 + $0x20] sm:$0xff]
    %v1111 = vld [vmem:[%s62 + $0x28] sm:$0x1f]
    %v1112 = vstv %s1105
    %v1113 = vmul.f32 %v1106, %v1112
    %v1114 = vmul.f32 %v1107, %v1112
    %v1115 = vmul.f32 %v1108, %v1112
    %v1116 = vmul.f32 %v1109, %v1112
    %v1117 = vmul.f32 %v1110, %v1112
    %v1118 = vmul.f32 %v1111, %v1112
    %v1119 = vadd.f32 %v1099, %v1113
    %v1120 = vadd.f32 %v1100, %v1114
    %v1121 = vadd.f32 %v1101, %v1115
    %v1122 = vadd.f32 %v1102, %v1116
    %v1123 = vadd.f32 %v1103, %v1117
    %v1124 = vadd.f32 %v1104, %v1118
    %s1125 = sld [smem:[#allocation3 + $0x2a]]
    %v1126 = vld [vmem:[%s87] sm:$0xff]
    %v1127 = vld [vmem:[%s87 + $0x8] sm:$0xff]
    %v1128 = vld [vmem:[%s87 + $0x10] sm:$0x1f]
    %v1129 = vld [vmem:[%s87 + $0x18] sm:$0xff]
    %v1130 = vld [vmem:[%s87 + $0x20] sm:$0xff]
    %v1131 = vld [vmem:[%s87 + $0x28] sm:$0x1f]
    %v1132 = vstv %s1125
    %v1133 = vmul.f32 %v1126, %v1132
    %v1134 = vmul.f32 %v1127, %v1132
    %v1135 = vmul.f32 %v1128, %v1132
    %v1136 = vmul.f32 %v1129, %v1132
    %v1137 = vmul.f32 %v1130, %v1132
    %v1138 = vmul.f32 %v1131, %v1132
    %v1139 = vadd.f32 %v1119, %v1133
    %v1140 = vadd.f32 %v1120, %v1134
    %v1141 = vadd.f32 %v1121, %v1135
    %v1142 = vadd.f32 %v1122, %v1136
    %v1143 = vadd.f32 %v1123, %v1137
    %v1144 = vadd.f32 %v1124, %v1138
    %s1145 = sld [smem:[#allocation3 + $0x2b]]
    %v1146 = vld [vmem:[%s112] sm:$0xff]
    %v1147 = vld [vmem:[%s112 + $0x8] sm:$0xff]
    %v1148 = vld [vmem:[%s112 + $0x10] sm:$0x1f]
    %v1149 = vld [vmem:[%s112 + $0x18] sm:$0xff]
    %v1150 = vld [vmem:[%s112 + $0x20] sm:$0xff]
    %v1151 = vld [vmem:[%s112 + $0x28] sm:$0x1f]
    %v1152 = vstv %s1145
    %v1153 = vmul.f32 %v1146, %v1152
    %v1154 = vmul.f32 %v1147, %v1152
    %v1155 = vmul.f32 %v1148, %v1152
    %v1156 = vmul.f32 %v1149, %v1152
    %v1157 = vmul.f32 %v1150, %v1152
    %v1158 = vmul.f32 %v1151, %v1152
    %v1159 = vadd.f32 %v1139, %v1153
    %v1160 = vadd.f32 %v1140, %v1154
    %v1161 = vadd.f32 %v1141, %v1155
    %v1162 = vadd.f32 %v1142, %v1156
    %v1163 = vadd.f32 %v1143, %v1157
    %v1164 = vadd.f32 %v1144, %v1158
    %s1165 = sld [smem:[#allocation3 + $0x2c]]
    %v1166 = vld [vmem:[%s137] sm:$0xff]
    %v1167 = vld [vmem:[%s137 + $0x8] sm:$0xff]
    %v1168 = vld [vmem:[%s137 + $0x10] sm:$0x1f]
    %v1169 = vld [vmem:[%s137 + $0x18] sm:$0xff]
    %v1170 = vld [vmem:[%s137 + $0x20] sm:$0xff]
    %v1171 = vld [vmem:[%s137 + $0x28] sm:$0x1f]
    %v1172 = vstv %s1165
    %v1173 = vmul.f32 %v1166, %v1172
    %v1174 = vmul.f32 %v1167, %v1172
    %v1175 = vmul.f32 %v1168, %v1172
    %v1176 = vmul.f32 %v1169, %v1172
    %v1177 = vmul.f32 %v1170, %v1172
    %v1178 = vmul.f32 %v1171, %v1172
    %v1179 = vadd.f32 %v1159, %v1173
    %v1180 = vadd.f32 %v1160, %v1174
    %v1181 = vadd.f32 %v1161, %v1175
    %v1182 = vadd.f32 %v1162, %v1176
    %v1183 = vadd.f32 %v1163, %v1177
    %v1184 = vadd.f32 %v1164, %v1178
    %s1185 = sld [smem:[#allocation3 + $0x2d]]
    %v1186 = vld [vmem:[%s144] sm:$0xff]
    %v1187 = vld [vmem:[%s144 + $0x8] sm:$0xff]
    %v1188 = vld [vmem:[%s144 + $0x10] sm:$0x1f]
    %v1189 = vld [vmem:[%s144 + $0x18] sm:$0xff]
    %v1190 = vld [vmem:[%s144 + $0x20] sm:$0xff]
    %v1191 = vld [vmem:[%s144 + $0x28] sm:$0x1f]
    %v1192 = vstv %s1185
    %v1193 = vmul.f32 %v1186, %v1192
    %v1194 = vmul.f32 %v1187, %v1192
    %v1195 = vmul.f32 %v1188, %v1192
    %v1196 = vmul.f32 %v1189, %v1192
    %v1197 = vmul.f32 %v1190, %v1192
    %v1198 = vmul.f32 %v1191, %v1192
    %v1199 = vadd.f32 %v1179, %v1193
    %v1200 = vadd.f32 %v1180, %v1194
    %v1201 = vadd.f32 %v1181, %v1195
    %v1202 = vadd.f32 %v1182, %v1196
    %v1203 = vadd.f32 %v1183, %v1197
    %v1204 = vadd.f32 %v1184, %v1198
    %s1205 = sld [smem:[#allocation3 + $0x2e]]
    %v1206 = vld [vmem:[%s153] sm:$0xff]
    %v1207 = vld [vmem:[%s153 + $0x8] sm:$0xff]
    %v1208 = vld [vmem:[%s153 + $0x10] sm:$0x1f]
    %v1209 = vld [vmem:[%s153 + $0x18] sm:$0xff]
    %v1210 = vld [vmem:[%s153 + $0x20] sm:$0xff]
    %v1211 = vld [vmem:[%s153 + $0x28] sm:$0x1f]
    %v1212 = vstv %s1205
    %v1213 = vmul.f32 %v1206, %v1212
    %v1214 = vmul.f32 %v1207, %v1212
    %v1215 = vmul.f32 %v1208, %v1212
    %v1216 = vmul.f32 %v1209, %v1212
    %v1217 = vmul.f32 %v1210, %v1212
    %v1218 = vmul.f32 %v1211, %v1212
    %v1219 = vadd.f32 %v1199, %v1213
    %v1220 = vadd.f32 %v1200, %v1214
    %v1221 = vadd.f32 %v1201, %v1215
    %v1222 = vadd.f32 %v1202, %v1216
    %v1223 = vadd.f32 %v1203, %v1217
    %v1224 = vadd.f32 %v1204, %v1218
    %s1225 = sld [smem:[#allocation3 + $0x2f]]
    %v1226 = vld [vmem:[%s160] sm:$0xff]
    %v1227 = vld [vmem:[%s160 + $0x8] sm:$0xff]
    %v1228 = vld [vmem:[%s160 + $0x10] sm:$0x1f]
    %v1229 = vld [vmem:[%s160 + $0x18] sm:$0xff]
    %v1230 = vld [vmem:[%s160 + $0x20] sm:$0xff]
    %v1231 = vld [vmem:[%s160 + $0x28] sm:$0x1f]
    %v1232 = vstv %s1225
    %v1233 = vmul.f32 %v1226, %v1232
    %v1234 = vmul.f32 %v1227, %v1232
    %v1235 = vmul.f32 %v1228, %v1232
    %v1236 = vmul.f32 %v1229, %v1232
    %v1237 = vmul.f32 %v1230, %v1232
    %v1238 = vmul.f32 %v1231, %v1232
    %v1239 = vadd.f32 %v1219, %v1233
    %v1240 = vadd.f32 %v1220, %v1234
    %v1241 = vadd.f32 %v1221, %v1235
    %v1242 = vadd.f32 %v1222, %v1236
    %v1243 = vadd.f32 %v1223, %v1237
    %v1244 = vadd.f32 %v1224, %v1238
    %s1245 = sld [smem:[#allocation3 + $0x30]]
    %v1246 = vld [vmem:[%s167] sm:$0xff]
    %v1247 = vld [vmem:[%s167 + $0x8] sm:$0xff]
    %v1248 = vld [vmem:[%s167 + $0x10] sm:$0x1f]
    %v1249 = vld [vmem:[%s167 + $0x18] sm:$0xff]
    %v1250 = vld [vmem:[%s167 + $0x20] sm:$0xff]
    %v1251 = vld [vmem:[%s167 + $0x28] sm:$0x1f]
    %v1252 = vstv %s1245
    %v1253 = vmul.f32 %v1246, %v1252
    %v1254 = vmul.f32 %v1247, %v1252
    %v1255 = vmul.f32 %v1248, %v1252
    %v1256 = vmul.f32 %v1249, %v1252
    %v1257 = vmul.f32 %v1250, %v1252
    %v1258 = vmul.f32 %v1251, %v1252
    %v1259 = vadd.f32 %v1239, %v1253
    %v1260 = vadd.f32 %v1240, %v1254
    %v1261 = vadd.f32 %v1241, %v1255
    %v1262 = vadd.f32 %v1242, %v1256
    %v1263 = vadd.f32 %v1243, %v1257
    %v1264 = vadd.f32 %v1244, %v1258
    %s1265 = sld [smem:[#allocation3 + $0x31]]
    %v1266 = vld [vmem:[%s174] sm:$0xff]
    %v1267 = vld [vmem:[%s174 + $0x8] sm:$0xff]
    %v1268 = vld [vmem:[%s174 + $0x10] sm:$0x1f]
    %v1269 = vld [vmem:[%s174 + $0x18] sm:$0xff]
    %v1270 = vld [vmem:[%s174 + $0x20] sm:$0xff]
    %v1271 = vld [vmem:[%s174 + $0x28] sm:$0x1f]
    %v1272 = vstv %s1265
    %v1273 = vmul.f32 %v1266, %v1272
    %v1274 = vmul.f32 %v1267, %v1272
    %v1275 = vmul.f32 %v1268, %v1272
    %v1276 = vmul.f32 %v1269, %v1272
    %v1277 = vmul.f32 %v1270, %v1272
    %v1278 = vmul.f32 %v1271, %v1272
    %v1279 = vadd.f32 %v1259, %v1273
    %v1280 = vadd.f32 %v1260, %v1274
    %v1281 = vadd.f32 %v1261, %v1275
    %v1282 = vadd.f32 %v1262, %v1276
    %v1283 = vadd.f32 %v1263, %v1277
    %v1284 = vadd.f32 %v1264, %v1278
    %s1285 = sld [smem:[#allocation3 + $0x32]]
    %v1286 = vld [vmem:[%s181] sm:$0xff]
    %v1287 = vld [vmem:[%s181 + $0x8] sm:$0xff]
    %v1288 = vld [vmem:[%s181 + $0x10] sm:$0x1f]
    %v1289 = vld [vmem:[%s181 + $0x18] sm:$0xff]
    %v1290 = vld [vmem:[%s181 + $0x20] sm:$0xff]
    %v1291 = vld [vmem:[%s181 + $0x28] sm:$0x1f]
    %v1292 = vstv %s1285
    %v1293 = vmul.f32 %v1286, %v1292
    %v1294 = vmul.f32 %v1287, %v1292
    %v1295 = vmul.f32 %v1288, %v1292
    %v1296 = vmul.f32 %v1289, %v1292
    %v1297 = vmul.f32 %v1290, %v1292
    %v1298 = vmul.f32 %v1291, %v1292
    %v1299 = vadd.f32 %v1279, %v1293
    %v1300 = vadd.f32 %v1280, %v1294
    %v1301 = vadd.f32 %v1281, %v1295
    %v1302 = vadd.f32 %v1282, %v1296
    %v1303 = vadd.f32 %v1283, %v1297
    %v1304 = vadd.f32 %v1284, %v1298
    %s1305 = sld [smem:[#allocation3 + $0x33]]
    %v1306 = vld [vmem:[%s190] sm:$0xff]
    %v1307 = vld [vmem:[%s190 + $0x8] sm:$0xff]
    %v1308 = vld [vmem:[%s190 + $0x10] sm:$0x1f]
    %v1309 = vld [vmem:[%s190 + $0x18] sm:$0xff]
    %v1310 = vld [vmem:[%s190 + $0x20] sm:$0xff]
    %v1311 = vld [vmem:[%s190 + $0x28] sm:$0x1f]
    %v1312 = vstv %s1305
    %v1313 = vmul.f32 %v1306, %v1312
    %v1314 = vmul.f32 %v1307, %v1312
    %v1315 = vmul.f32 %v1308, %v1312
    %v1316 = vmul.f32 %v1309, %v1312
    %v1317 = vmul.f32 %v1310, %v1312
    %v1318 = vmul.f32 %v1311, %v1312
    %v1319 = vadd.f32 %v1299, %v1313
    %v1320 = vadd.f32 %v1300, %v1314
    %v1321 = vadd.f32 %v1301, %v1315
    %v1322 = vadd.f32 %v1302, %v1316
    %v1323 = vadd.f32 %v1303, %v1317
    %v1324 = vadd.f32 %v1304, %v1318
    %s1325 = sld [smem:[#allocation3 + $0x34]]
    %v1326 = vld [vmem:[%s197] sm:$0xff]
    %v1327 = vld [vmem:[%s197 + $0x8] sm:$0xff]
    %v1328 = vld [vmem:[%s197 + $0x10] sm:$0x1f]
    %v1329 = vld [vmem:[%s197 + $0x18] sm:$0xff]
    %v1330 = vld [vmem:[%s197 + $0x20] sm:$0xff]
    %v1331 = vld [vmem:[%s197 + $0x28] sm:$0x1f]
    %v1332 = vstv %s1325
    %v1333 = vmul.f32 %v1326, %v1332
    %v1334 = vmul.f32 %v1327, %v1332
    %v1335 = vmul.f32 %v1328, %v1332
    %v1336 = vmul.f32 %v1329, %v1332
    %v1337 = vmul.f32 %v1330, %v1332
    %v1338 = vmul.f32 %v1331, %v1332
    %v1339 = vadd.f32 %v1319, %v1333
    %v1340 = vadd.f32 %v1320, %v1334
    %v1341 = vadd.f32 %v1321, %v1335
    %v1342 = vadd.f32 %v1322, %v1336
    %v1343 = vadd.f32 %v1323, %v1337
    %v1344 = vadd.f32 %v1324, %v1338
    %s1345 = sld [smem:[#allocation3 + $0x35]]
    %v1346 = vld [vmem:[%s204] sm:$0xff]
    %v1347 = vld [vmem:[%s204 + $0x8] sm:$0xff]
    %v1348 = vld [vmem:[%s204 + $0x10] sm:$0x1f]
    %v1349 = vld [vmem:[%s204 + $0x18] sm:$0xff]
    %v1350 = vld [vmem:[%s204 + $0x20] sm:$0xff]
    %v1351 = vld [vmem:[%s204 + $0x28] sm:$0x1f]
    %v1352 = vstv %s1345
    %v1353 = vmul.f32 %v1346, %v1352
    %v1354 = vmul.f32 %v1347, %v1352
    %v1355 = vmul.f32 %v1348, %v1352
    %v1356 = vmul.f32 %v1349, %v1352
    %v1357 = vmul.f32 %v1350, %v1352
    %v1358 = vmul.f32 %v1351, %v1352
    %v1359 = vadd.f32 %v1339, %v1353
    %v1360 = vadd.f32 %v1340, %v1354
    %v1361 = vadd.f32 %v1341, %v1355
    %v1362 = vadd.f32 %v1342, %v1356
    %v1363 = vadd.f32 %v1343, %v1357
    %v1364 = vadd.f32 %v1344, %v1358
    %s1365 = sld [smem:[#allocation3 + $0x36]]
    %v1366 = vld [vmem:[%s211] sm:$0xff]
    %v1367 = vld [vmem:[%s211 + $0x8] sm:$0xff]
    %v1368 = vld [vmem:[%s211 + $0x10] sm:$0x1f]
    %v1369 = vld [vmem:[%s211 + $0x18] sm:$0xff]
    %v1370 = vld [vmem:[%s211 + $0x20] sm:$0xff]
    %v1371 = vld [vmem:[%s211 + $0x28] sm:$0x1f]
    %v1372 = vstv %s1365
    %v1373 = vmul.f32 %v1366, %v1372
    %v1374 = vmul.f32 %v1367, %v1372
    %v1375 = vmul.f32 %v1368, %v1372
    %v1376 = vmul.f32 %v1369, %v1372
    %v1377 = vmul.f32 %v1370, %v1372
    %v1378 = vmul.f32 %v1371, %v1372
    %v1379 = vadd.f32 %v1359, %v1373
    %v1380 = vadd.f32 %v1360, %v1374
    %v1381 = vadd.f32 %v1361, %v1375
    %v1382 = vadd.f32 %v1362, %v1376
    %v1383 = vadd.f32 %v1363, %v1377
    %v1384 = vadd.f32 %v1364, %v1378
    %s1385 = sld [smem:[#allocation3 + $0x37]]
    %v1386 = vld [vmem:[%s218] sm:$0xff]
    %v1387 = vld [vmem:[%s218 + $0x8] sm:$0xff]
    %v1388 = vld [vmem:[%s218 + $0x10] sm:$0x1f]
    %v1389 = vld [vmem:[%s218 + $0x18] sm:$0xff]
    %v1390 = vld [vmem:[%s218 + $0x20] sm:$0xff]
    %v1391 = vld [vmem:[%s218 + $0x28] sm:$0x1f]
    %v1392 = vstv %s1385
    %v1393 = vmul.f32 %v1386, %v1392
    %v1394 = vmul.f32 %v1387, %v1392
    %v1395 = vmul.f32 %v1388, %v1392
    %v1396 = vmul.f32 %v1389, %v1392
    %v1397 = vmul.f32 %v1390, %v1392
    %v1398 = vmul.f32 %v1391, %v1392
    %v1399 = vadd.f32 %v1379, %v1393
    %v1400 = vadd.f32 %v1380, %v1394
    %v1401 = vadd.f32 %v1381, %v1395
    %v1402 = vadd.f32 %v1382, %v1396
    %v1403 = vadd.f32 %v1383, %v1397
    %v1404 = vadd.f32 %v1384, %v1398
    %s1405 = sld [smem:[#allocation3 + $0x38]]
    %v1406 = vld [vmem:[%s226] sm:$0xff]
    %v1407 = vld [vmem:[%s226 + $0x8] sm:$0xff]
    %v1408 = vld [vmem:[%s226 + $0x10] sm:$0x1f]
    %v1409 = vld [vmem:[%s226 + $0x18] sm:$0xff]
    %v1410 = vld [vmem:[%s226 + $0x20] sm:$0xff]
    %v1411 = vld [vmem:[%s226 + $0x28] sm:$0x1f]
    %v1412 = vstv %s1405
    %v1413 = vmul.f32 %v1406, %v1412
    %v1414 = vmul.f32 %v1407, %v1412
    %v1415 = vmul.f32 %v1408, %v1412
    %v1416 = vmul.f32 %v1409, %v1412
    %v1417 = vmul.f32 %v1410, %v1412
    %v1418 = vmul.f32 %v1411, %v1412
    %v1419 = vadd.f32 %v1399, %v1413
    %v1420 = vadd.f32 %v1400, %v1414
    %v1421 = vadd.f32 %v1401, %v1415
    %v1422 = vadd.f32 %v1402, %v1416
    %v1423 = vadd.f32 %v1403, %v1417
    %v1424 = vadd.f32 %v1404, %v1418
    %s1425 = sld [smem:[#allocation3 + $0x39]]
    %v1426 = vld [vmem:[%s233] sm:$0xff]
    %v1427 = vld [vmem:[%s233 + $0x8] sm:$0xff]
    %v1428 = vld [vmem:[%s233 + $0x10] sm:$0x1f]
    %v1429 = vld [vmem:[%s233 + $0x18] sm:$0xff]
    %v1430 = vld [vmem:[%s233 + $0x20] sm:$0xff]
    %v1431 = vld [vmem:[%s233 + $0x28] sm:$0x1f]
    %v1432 = vstv %s1425
    %v1433 = vmul.f32 %v1426, %v1432
    %v1434 = vmul.f32 %v1427, %v1432
    %v1435 = vmul.f32 %v1428, %v1432
    %v1436 = vmul.f32 %v1429, %v1432
    %v1437 = vmul.f32 %v1430, %v1432
    %v1438 = vmul.f32 %v1431, %v1432
    %v1439 = vadd.f32 %v1419, %v1433
    %v1440 = vadd.f32 %v1420, %v1434
    %v1441 = vadd.f32 %v1421, %v1435
    %v1442 = vadd.f32 %v1422, %v1436
    %v1443 = vadd.f32 %v1423, %v1437
    %v1444 = vadd.f32 %v1424, %v1438
    %s1445 = sld [smem:[#allocation3 + $0x3a]]
    %v1446 = vld [vmem:[%s240] sm:$0xff]
    %v1447 = vld [vmem:[%s240 + $0x8] sm:$0xff]
    %v1448 = vld [vmem:[%s240 + $0x10] sm:$0x1f]
    %v1449 = vld [vmem:[%s240 + $0x18] sm:$0xff]
    %v1450 = vld [vmem:[%s240 + $0x20] sm:$0xff]
    %v1451 = vld [vmem:[%s240 + $0x28] sm:$0x1f]
    %v1452 = vstv %s1445
    %v1453 = vmul.f32 %v1446, %v1452
    %v1454 = vmul.f32 %v1447, %v1452
    %v1455 = vmul.f32 %v1448, %v1452
    %v1456 = vmul.f32 %v1449, %v1452
    %v1457 = vmul.f32 %v1450, %v1452
    %v1458 = vmul.f32 %v1451, %v1452
    %v1459 = vadd.f32 %v1439, %v1453
    %v1460 = vadd.f32 %v1440, %v1454
    %v1461 = vadd.f32 %v1441, %v1455
    %v1462 = vadd.f32 %v1442, %v1456
    %v1463 = vadd.f32 %v1443, %v1457
    %v1464 = vadd.f32 %v1444, %v1458
    %s1465 = sld [smem:[#allocation3 + $0x3b]]
    %v1466 = vld [vmem:[%s247] sm:$0xff]
    %v1467 = vld [vmem:[%s247 + $0x8] sm:$0xff]
    %v1468 = vld [vmem:[%s247 + $0x10] sm:$0x1f]
    %v1469 = vld [vmem:[%s247 + $0x18] sm:$0xff]
    %v1470 = vld [vmem:[%s247 + $0x20] sm:$0xff]
    %v1471 = vld [vmem:[%s247 + $0x28] sm:$0x1f]
    %v1472 = vstv %s1465
    %v1473 = vmul.f32 %v1466, %v1472
    %v1474 = vmul.f32 %v1467, %v1472
    %v1475 = vmul.f32 %v1468, %v1472
    %v1476 = vmul.f32 %v1469, %v1472
    %v1477 = vmul.f32 %v1470, %v1472
    %v1478 = vmul.f32 %v1471, %v1472
    %v1479 = vadd.f32 %v1459, %v1473
    %v1480 = vadd.f32 %v1460, %v1474
    %v1481 = vadd.f32 %v1461, %v1475
    %v1482 = vadd.f32 %v1462, %v1476
    %v1483 = vadd.f32 %v1463, %v1477
    %v1484 = vadd.f32 %v1464, %v1478
    %vm1485 = vcmp.gt.f32.partialorder %v1479, 0.0
    %vm1486 = vcmp.gt.f32.partialorder %v1480, 0.0
    %vm1487 = vcmp.gt.f32.partialorder %v1481, 0.0
    %vm1488 = vcmp.gt.f32.partialorder %v1482, 0.0
    %vm1489 = vcmp.gt.f32.partialorder %v1483, 0.0
    %vm1490 = vcmp.gt.f32.partialorder %v1484, 0.0
    %v1491 = vmul.f32 %v1479, -0.1
    %v1492 = vmul.f32 %v1480, -0.1
    %v1493 = vmul.f32 %v1481, -0.1
    %v1494 = vmul.f32 %v1482, -0.1
    %v1495 = vmul.f32 %v1483, -0.1
    %v1496 = vmul.f32 %v1484, -0.1
    %v1497 = vsel %vm1485, %v1479, %v1491
    %v1498 = vsel %vm1486, %v1480, %v1492
    %v1499 = vsel %vm1487, %v1481, %v1493
    %v1500 = vsel %vm1488, %v1482, %v1494
    %v1501 = vsel %vm1489, %v1483, %v1495
    %v1502 = vsel %vm1490, %v1484, %v1496
    %s1503 = scalar_lea.vmem %s2, 48
    %1504 = vst.msk [vmem:[%s1503] sm:$0xff] %vm30, %v1497
    %1505 = vst.msk [vmem:[%s1503 + $0x8] sm:$0xff] %vm30, %v1498
    %1506 = vst.msk [vmem:[%s1503 + $0x10] sm:$0x1f] %vm33, %v1499
    %1507 = vst.msk [vmem:[%s1503 + $0x108] sm:$0xff] %vm30, %v1500
    %1508 = vst.msk [vmem:[%s1503 + $0x110] sm:$0xff] %vm30, %v1501
    %1509 = vst.msk [vmem:[%s1503 + $0x118] sm:$0x1f] %vm33, %v1502
    %s1510 = sld [smem:[#allocation3 + $0x3c]]
    %v1511 = vld [vmem:[#allocation2] sm:$0xff]
    %v1512 = vld [vmem:[#allocation2 + $0x8] sm:$0xff]
    %v1513 = vld [vmem:[#allocation2 + $0x10] sm:$0x1f]
    %v1514 = vld [vmem:[#allocation2 + $0x18] sm:$0xff]
    %v1515 = vld [vmem:[#allocation2 + $0x20] sm:$0xff]
    %v1516 = vld [vmem:[#allocation2 + $0x28] sm:$0x1f]
    %v1517 = vstv %s1510
    %v1518 = vmul.f32 %v1511, %v1517
    %v1519 = vmul.f32 %v1512, %v1517
    %v1520 = vmul.f32 %v1513, %v1517
    %v1521 = vmul.f32 %v1514, %v1517
    %v1522 = vmul.f32 %v1515, %v1517
    %v1523 = vmul.f32 %v1516, %v1517
    %s1524 = sld [smem:[#allocation3 + $0x3d]]
    %v1525 = vld [vmem:[%s62] sm:$0xff]
    %v1526 = vld [vmem:[%s62 + $0x8] sm:$0xff]
    %v1527 = vld [vmem:[%s62 + $0x10] sm:$0x1f]
    %v1528 = vld [vmem:[%s62 + $0x18] sm:$0xff]
    %v1529 = vld [vmem:[%s62 + $0x20] sm:$0xff]
    %v1530 = vld [vmem:[%s62 + $0x28] sm:$0x1f]
    %v1531 = vstv %s1524
    %v1532 = vmul.f32 %v1525, %v1531
    %v1533 = vmul.f32 %v1526, %v1531
    %v1534 = vmul.f32 %v1527, %v1531
    %v1535 = vmul.f32 %v1528, %v1531
    %v1536 = vmul.f32 %v1529, %v1531
    %v1537 = vmul.f32 %v1530, %v1531
    %v1538 = vadd.f32 %v1518, %v1532
    %v1539 = vadd.f32 %v1519, %v1533
    %v1540 = vadd.f32 %v1520, %v1534
    %v1541 = vadd.f32 %v1521, %v1535
    %v1542 = vadd.f32 %v1522, %v1536
    %v1543 = vadd.f32 %v1523, %v1537
    %s1544 = sld [smem:[#allocation3 + $0x3e]]
    %v1545 = vld [vmem:[%s87] sm:$0xff]
    %v1546 = vld [vmem:[%s87 + $0x8] sm:$0xff]
    %v1547 = vld [vmem:[%s87 + $0x10] sm:$0x1f]
    %v1548 = vld [vmem:[%s87 + $0x18] sm:$0xff]
    %v1549 = vld [vmem:[%s87 + $0x20] sm:$0xff]
    %v1550 = vld [vmem:[%s87 + $0x28] sm:$0x1f]
    %v1551 = vstv %s1544
    %v1552 = vmul.f32 %v1545, %v1551
    %v1553 = vmul.f32 %v1546, %v1551
    %v1554 = vmul.f32 %v1547, %v1551
    %v1555 = vmul.f32 %v1548, %v1551
    %v1556 = vmul.f32 %v1549, %v1551
    %v1557 = vmul.f32 %v1550, %v1551
    %v1558 = vadd.f32 %v1538, %v1552
    %v1559 = vadd.f32 %v1539, %v1553
    %v1560 = vadd.f32 %v1540, %v1554
    %v1561 = vadd.f32 %v1541, %v1555
    %v1562 = vadd.f32 %v1542, %v1556
    %v1563 = vadd.f32 %v1543, %v1557
    %s1564 = sld [smem:[#allocation3 + $0x3f]]
    %v1565 = vld [vmem:[%s112] sm:$0xff]
    %v1566 = vld [vmem:[%s112 + $0x8] sm:$0xff]
    %v1567 = vld [vmem:[%s112 + $0x10] sm:$0x1f]
    %v1568 = vld [vmem:[%s112 + $0x18] sm:$0xff]
    %v1569 = vld [vmem:[%s112 + $0x20] sm:$0xff]
    %v1570 = vld [vmem:[%s112 + $0x28] sm:$0x1f]
    %v1571 = vstv %s1564
    %v1572 = vmul.f32 %v1565, %v1571
    %v1573 = vmul.f32 %v1566, %v1571
    %v1574 = vmul.f32 %v1567, %v1571
    %v1575 = vmul.f32 %v1568, %v1571
    %v1576 = vmul.f32 %v1569, %v1571
    %v1577 = vmul.f32 %v1570, %v1571
    %v1578 = vadd.f32 %v1558, %v1572
    %v1579 = vadd.f32 %v1559, %v1573
    %v1580 = vadd.f32 %v1560, %v1574
    %v1581 = vadd.f32 %v1561, %v1575
    %v1582 = vadd.f32 %v1562, %v1576
    %v1583 = vadd.f32 %v1563, %v1577
    %s1584 = sld [smem:[#allocation3 + $0x40]]
    %v1585 = vld [vmem:[%s137] sm:$0xff]
    %v1586 = vld [vmem:[%s137 + $0x8] sm:$0xff]
    %v1587 = vld [vmem:[%s137 + $0x10] sm:$0x1f]
    %v1588 = vld [vmem:[%s137 + $0x18] sm:$0xff]
    %v1589 = vld [vmem:[%s137 + $0x20] sm:$0xff]
    %v1590 = vld [vmem:[%s137 + $0x28] sm:$0x1f]
    %v1591 = vstv %s1584
    %v1592 = vmul.f32 %v1585, %v1591
    %v1593 = vmul.f32 %v1586, %v1591
    %v1594 = vmul.f32 %v1587, %v1591
    %v1595 = vmul.f32 %v1588, %v1591
    %v1596 = vmul.f32 %v1589, %v1591
    %v1597 = vmul.f32 %v1590, %v1591
    %v1598 = vadd.f32 %v1578, %v1592
    %v1599 = vadd.f32 %v1579, %v1593
    %v1600 = vadd.f32 %v1580, %v1594
    %v1601 = vadd.f32 %v1581, %v1595
    %v1602 = vadd.f32 %v1582, %v1596
    %v1603 = vadd.f32 %v1583, %v1597
    %s1604 = sld [smem:[#allocation3 + $0x41]]
    %v1605 = vld [vmem:[%s144] sm:$0xff]
    %v1606 = vld [vmem:[%s144 + $0x8] sm:$0xff]
    %v1607 = vld [vmem:[%s144 + $0x10] sm:$0x1f]
    %v1608 = vld [vmem:[%s144 + $0x18] sm:$0xff]
    %v1609 = vld [vmem:[%s144 + $0x20] sm:$0xff]
    %v1610 = vld [vmem:[%s144 + $0x28] sm:$0x1f]
    %v1611 = vstv %s1604
    %v1612 = vmul.f32 %v1605, %v1611
    %v1613 = vmul.f32 %v1606, %v1611
    %v1614 = vmul.f32 %v1607, %v1611
    %v1615 = vmul.f32 %v1608, %v1611
    %v1616 = vmul.f32 %v1609, %v1611
    %v1617 = vmul.f32 %v1610, %v1611
    %v1618 = vadd.f32 %v1598, %v1612
    %v1619 = vadd.f32 %v1599, %v1613
    %v1620 = vadd.f32 %v1600, %v1614
    %v1621 = vadd.f32 %v1601, %v1615
    %v1622 = vadd.f32 %v1602, %v1616
    %v1623 = vadd.f32 %v1603, %v1617
    %s1624 = sld [smem:[#allocation3 + $0x42]]
    %v1625 = vld [vmem:[%s153] sm:$0xff]
    %v1626 = vld [vmem:[%s153 + $0x8] sm:$0xff]
    %v1627 = vld [vmem:[%s153 + $0x10] sm:$0x1f]
    %v1628 = vld [vmem:[%s153 + $0x18] sm:$0xff]
    %v1629 = vld [vmem:[%s153 + $0x20] sm:$0xff]
    %v1630 = vld [vmem:[%s153 + $0x28] sm:$0x1f]
    %v1631 = vstv %s1624
    %v1632 = vmul.f32 %v1625, %v1631
    %v1633 = vmul.f32 %v1626, %v1631
    %v1634 = vmul.f32 %v1627, %v1631
    %v1635 = vmul.f32 %v1628, %v1631
    %v1636 = vmul.f32 %v1629, %v1631
    %v1637 = vmul.f32 %v1630, %v1631
    %v1638 = vadd.f32 %v1618, %v1632
    %v1639 = vadd.f32 %v1619, %v1633
    %v1640 = vadd.f32 %v1620, %v1634
    %v1641 = vadd.f32 %v1621, %v1635
    %v1642 = vadd.f32 %v1622, %v1636
    %v1643 = vadd.f32 %v1623, %v1637
    %s1644 = sld [smem:[#allocation3 + $0x43]]
    %v1645 = vld [vmem:[%s160] sm:$0xff]
    %v1646 = vld [vmem:[%s160 + $0x8] sm:$0xff]
    %v1647 = vld [vmem:[%s160 + $0x10] sm:$0x1f]
    %v1648 = vld [vmem:[%s160 + $0x18] sm:$0xff]
    %v1649 = vld [vmem:[%s160 + $0x20] sm:$0xff]
    %v1650 = vld [vmem:[%s160 + $0x28] sm:$0x1f]
    %v1651 = vstv %s1644
    %v1652 = vmul.f32 %v1645, %v1651
    %v1653 = vmul.f32 %v1646, %v1651
    %v1654 = vmul.f32 %v1647, %v1651
    %v1655 = vmul.f32 %v1648, %v1651
    %v1656 = vmul.f32 %v1649, %v1651
    %v1657 = vmul.f32 %v1650, %v1651
    %v1658 = vadd.f32 %v1638, %v1652
    %v1659 = vadd.f32 %v1639, %v1653
    %v1660 = vadd.f32 %v1640, %v1654
    %v1661 = vadd.f32 %v1641, %v1655
    %v1662 = vadd.f32 %v1642, %v1656
    %v1663 = vadd.f32 %v1643, %v1657
    %s1664 = sld [smem:[#allocation3 + $0x44]]
    %v1665 = vld [vmem:[%s167] sm:$0xff]
    %v1666 = vld [vmem:[%s167 + $0x8] sm:$0xff]
    %v1667 = vld [vmem:[%s167 + $0x10] sm:$0x1f]
    %v1668 = vld [vmem:[%s167 + $0x18] sm:$0xff]
    %v1669 = vld [vmem:[%s167 + $0x20] sm:$0xff]
    %v1670 = vld [vmem:[%s167 + $0x28] sm:$0x1f]
    %v1671 = vstv %s1664
    %v1672 = vmul.f32 %v1665, %v1671
    %v1673 = vmul.f32 %v1666, %v1671
    %v1674 = vmul.f32 %v1667, %v1671
    %v1675 = vmul.f32 %v1668, %v1671
    %v1676 = vmul.f32 %v1669, %v1671
    %v1677 = vmul.f32 %v1670, %v1671
    %v1678 = vadd.f32 %v1658, %v1672
    %v1679 = vadd.f32 %v1659, %v1673
    %v1680 = vadd.f32 %v1660, %v1674
    %v1681 = vadd.f32 %v1661, %v1675
    %v1682 = vadd.f32 %v1662, %v1676
    %v1683 = vadd.f32 %v1663, %v1677
    %s1684 = sld [smem:[#allocation3 + $0x45]]
    %v1685 = vld [vmem:[%s174] sm:$0xff]
    %v1686 = vld [vmem:[%s174 + $0x8] sm:$0xff]
    %v1687 = vld [vmem:[%s174 + $0x10] sm:$0x1f]
    %v1688 = vld [vmem:[%s174 + $0x18] sm:$0xff]
    %v1689 = vld [vmem:[%s174 + $0x20] sm:$0xff]
    %v1690 = vld [vmem:[%s174 + $0x28] sm:$0x1f]
    %v1691 = vstv %s1684
    %v1692 = vmul.f32 %v1685, %v1691
    %v1693 = vmul.f32 %v1686, %v1691
    %v1694 = vmul.f32 %v1687, %v1691
    %v1695 = vmul.f32 %v1688, %v1691
    %v1696 = vmul.f32 %v1689, %v1691
    %v1697 = vmul.f32 %v1690, %v1691
    %v1698 = vadd.f32 %v1678, %v1692
    %v1699 = vadd.f32 %v1679, %v1693
    %v1700 = vadd.f32 %v1680, %v1694
    %v1701 = vadd.f32 %v1681, %v1695
    %v1702 = vadd.f32 %v1682, %v1696
    %v1703 = vadd.f32 %v1683, %v1697
    %s1704 = sld [smem:[#allocation3 + $0x46]]
    %v1705 = vld [vmem:[%s181] sm:$0xff]
    %v1706 = vld [vmem:[%s181 + $0x8] sm:$0xff]
    %v1707 = vld [vmem:[%s181 + $0x10] sm:$0x1f]
    %v1708 = vld [vmem:[%s181 + $0x18] sm:$0xff]
    %v1709 = vld [vmem:[%s181 + $0x20] sm:$0xff]
    %v1710 = vld [vmem:[%s181 + $0x28] sm:$0x1f]
    %v1711 = vstv %s1704
    %v1712 = vmul.f32 %v1705, %v1711
    %v1713 = vmul.f32 %v1706, %v1711
    %v1714 = vmul.f32 %v1707, %v1711
    %v1715 = vmul.f32 %v1708, %v1711
    %v1716 = vmul.f32 %v1709, %v1711
    %v1717 = vmul.f32 %v1710, %v1711
    %v1718 = vadd.f32 %v1698, %v1712
    %v1719 = vadd.f32 %v1699, %v1713
    %v1720 = vadd.f32 %v1700, %v1714
    %v1721 = vadd.f32 %v1701, %v1715
    %v1722 = vadd.f32 %v1702, %v1716
    %v1723 = vadd.f32 %v1703, %v1717
    %s1724 = sld [smem:[#allocation3 + $0x47]]
    %v1725 = vld [vmem:[%s190] sm:$0xff]
    %v1726 = vld [vmem:[%s190 + $0x8] sm:$0xff]
    %v1727 = vld [vmem:[%s190 + $0x10] sm:$0x1f]
    %v1728 = vld [vmem:[%s190 + $0x18] sm:$0xff]
    %v1729 = vld [vmem:[%s190 + $0x20] sm:$0xff]
    %v1730 = vld [vmem:[%s190 + $0x28] sm:$0x1f]
    %v1731 = vstv %s1724
    %v1732 = vmul.f32 %v1725, %v1731
    %v1733 = vmul.f32 %v1726, %v1731
    %v1734 = vmul.f32 %v1727, %v1731
    %v1735 = vmul.f32 %v1728, %v1731
    %v1736 = vmul.f32 %v1729, %v1731
    %v1737 = vmul.f32 %v1730, %v1731
    %v1738 = vadd.f32 %v1718, %v1732
    %v1739 = vadd.f32 %v1719, %v1733
    %v1740 = vadd.f32 %v1720, %v1734
    %v1741 = vadd.f32 %v1721, %v1735
    %v1742 = vadd.f32 %v1722, %v1736
    %v1743 = vadd.f32 %v1723, %v1737
    %s1744 = sld [smem:[#allocation3 + $0x48]]
    %v1745 = vld [vmem:[%s197] sm:$0xff]
    %v1746 = vld [vmem:[%s197 + $0x8] sm:$0xff]
    %v1747 = vld [vmem:[%s197 + $0x10] sm:$0x1f]
    %v1748 = vld [vmem:[%s197 + $0x18] sm:$0xff]
    %v1749 = vld [vmem:[%s197 + $0x20] sm:$0xff]
    %v1750 = vld [vmem:[%s197 + $0x28] sm:$0x1f]
    %v1751 = vstv %s1744
    %v1752 = vmul.f32 %v1745, %v1751
    %v1753 = vmul.f32 %v1746, %v1751
    %v1754 = vmul.f32 %v1747, %v1751
    %v1755 = vmul.f32 %v1748, %v1751
    %v1756 = vmul.f32 %v1749, %v1751
    %v1757 = vmul.f32 %v1750, %v1751
    %v1758 = vadd.f32 %v1738, %v1752
    %v1759 = vadd.f32 %v1739, %v1753
    %v1760 = vadd.f32 %v1740, %v1754
    %v1761 = vadd.f32 %v1741, %v1755
    %v1762 = vadd.f32 %v1742, %v1756
    %v1763 = vadd.f32 %v1743, %v1757
    %s1764 = sld [smem:[#allocation3 + $0x49]]
    %v1765 = vld [vmem:[%s204] sm:$0xff]
    %v1766 = vld [vmem:[%s204 + $0x8] sm:$0xff]
    %v1767 = vld [vmem:[%s204 + $0x10] sm:$0x1f]
    %v1768 = vld [vmem:[%s204 + $0x18] sm:$0xff]
    %v1769 = vld [vmem:[%s204 + $0x20] sm:$0xff]
    %v1770 = vld [vmem:[%s204 + $0x28] sm:$0x1f]
    %v1771 = vstv %s1764
    %v1772 = vmul.f32 %v1765, %v1771
    %v1773 = vmul.f32 %v1766, %v1771
    %v1774 = vmul.f32 %v1767, %v1771
    %v1775 = vmul.f32 %v1768, %v1771
    %v1776 = vmul.f32 %v1769, %v1771
    %v1777 = vmul.f32 %v1770, %v1771
    %v1778 = vadd.f32 %v1758, %v1772
    %v1779 = vadd.f32 %v1759, %v1773
    %v1780 = vadd.f32 %v1760, %v1774
    %v1781 = vadd.f32 %v1761, %v1775
    %v1782 = vadd.f32 %v1762, %v1776
    %v1783 = vadd.f32 %v1763, %v1777
    %s1784 = sld [smem:[#allocation3 + $0x4a]]
    %v1785 = vld [vmem:[%s211] sm:$0xff]
    %v1786 = vld [vmem:[%s211 + $0x8] sm:$0xff]
    %v1787 = vld [vmem:[%s211 + $0x10] sm:$0x1f]
    %v1788 = vld [vmem:[%s211 + $0x18] sm:$0xff]
    %v1789 = vld [vmem:[%s211 + $0x20] sm:$0xff]
    %v1790 = vld [vmem:[%s211 + $0x28] sm:$0x1f]
    %v1791 = vstv %s1784
    %v1792 = vmul.f32 %v1785, %v1791
    %v1793 = vmul.f32 %v1786, %v1791
    %v1794 = vmul.f32 %v1787, %v1791
    %v1795 = vmul.f32 %v1788, %v1791
    %v1796 = vmul.f32 %v1789, %v1791
    %v1797 = vmul.f32 %v1790, %v1791
    %v1798 = vadd.f32 %v1778, %v1792
    %v1799 = vadd.f32 %v1779, %v1793
    %v1800 = vadd.f32 %v1780, %v1794
    %v1801 = vadd.f32 %v1781, %v1795
    %v1802 = vadd.f32 %v1782, %v1796
    %v1803 = vadd.f32 %v1783, %v1797
    %s1804 = sld [smem:[#allocation3 + $0x4b]]
    %v1805 = vld [vmem:[%s218] sm:$0xff]
    %v1806 = vld [vmem:[%s218 + $0x8] sm:$0xff]
    %v1807 = vld [vmem:[%s218 + $0x10] sm:$0x1f]
    %v1808 = vld [vmem:[%s218 + $0x18] sm:$0xff]
    %v1809 = vld [vmem:[%s218 + $0x20] sm:$0xff]
    %v1810 = vld [vmem:[%s218 + $0x28] sm:$0x1f]
    %v1811 = vstv %s1804
    %v1812 = vmul.f32 %v1805, %v1811
    %v1813 = vmul.f32 %v1806, %v1811
    %v1814 = vmul.f32 %v1807, %v1811
    %v1815 = vmul.f32 %v1808, %v1811
    %v1816 = vmul.f32 %v1809, %v1811
    %v1817 = vmul.f32 %v1810, %v1811
    %v1818 = vadd.f32 %v1798, %v1812
    %v1819 = vadd.f32 %v1799, %v1813
    %v1820 = vadd.f32 %v1800, %v1814
    %v1821 = vadd.f32 %v1801, %v1815
    %v1822 = vadd.f32 %v1802, %v1816
    %v1823 = vadd.f32 %v1803, %v1817
    %s1824 = sld [smem:[#allocation3 + $0x4c]]
    %v1825 = vld [vmem:[%s226] sm:$0xff]
    %v1826 = vld [vmem:[%s226 + $0x8] sm:$0xff]
    %v1827 = vld [vmem:[%s226 + $0x10] sm:$0x1f]
    %v1828 = vld [vmem:[%s226 + $0x18] sm:$0xff]
    %v1829 = vld [vmem:[%s226 + $0x20] sm:$0xff]
    %v1830 = vld [vmem:[%s226 + $0x28] sm:$0x1f]
    %v1831 = vstv %s1824
    %v1832 = vmul.f32 %v1825, %v1831
    %v1833 = vmul.f32 %v1826, %v1831
    %v1834 = vmul.f32 %v1827, %v1831
    %v1835 = vmul.f32 %v1828, %v1831
    %v1836 = vmul.f32 %v1829, %v1831
    %v1837 = vmul.f32 %v1830, %v1831
    %v1838 = vadd.f32 %v1818, %v1832
    %v1839 = vadd.f32 %v1819, %v1833
    %v1840 = vadd.f32 %v1820, %v1834
    %v1841 = vadd.f32 %v1821, %v1835
    %v1842 = vadd.f32 %v1822, %v1836
    %v1843 = vadd.f32 %v1823, %v1837
    %s1844 = sld [smem:[#allocation3 + $0x4d]]
    %v1845 = vld [vmem:[%s233] sm:$0xff]
    %v1846 = vld [vmem:[%s233 + $0x8] sm:$0xff]
    %v1847 = vld [vmem:[%s233 + $0x10] sm:$0x1f]
    %v1848 = vld [vmem:[%s233 + $0x18] sm:$0xff]
    %v1849 = vld [vmem:[%s233 + $0x20] sm:$0xff]
    %v1850 = vld [vmem:[%s233 + $0x28] sm:$0x1f]
    %v1851 = vstv %s1844
    %v1852 = vmul.f32 %v1845, %v1851
    %v1853 = vmul.f32 %v1846, %v1851
    %v1854 = vmul.f32 %v1847, %v1851
    %v1855 = vmul.f32 %v1848, %v1851
    %v1856 = vmul.f32 %v1849, %v1851
    %v1857 = vmul.f32 %v1850, %v1851
    %v1858 = vadd.f32 %v1838, %v1852
    %v1859 = vadd.f32 %v1839, %v1853
    %v1860 = vadd.f32 %v1840, %v1854
    %v1861 = vadd.f32 %v1841, %v1855
    %v1862 = vadd.f32 %v1842, %v1856
    %v1863 = vadd.f32 %v1843, %v1857
    %s1864 = sld [smem:[#allocation3 + $0x4e]]
    %v1865 = vld [vmem:[%s240] sm:$0xff]
    %v1866 = vld [vmem:[%s240 + $0x8] sm:$0xff]
    %v1867 = vld [vmem:[%s240 + $0x10] sm:$0x1f]
    %v1868 = vld [vmem:[%s240 + $0x18] sm:$0xff]
    %v1869 = vld [vmem:[%s240 + $0x20] sm:$0xff]
    %v1870 = vld [vmem:[%s240 + $0x28] sm:$0x1f]
    %v1871 = vstv %s1864
    %v1872 = vmul.f32 %v1865, %v1871
    %v1873 = vmul.f32 %v1866, %v1871
    %v1874 = vmul.f32 %v1867, %v1871
    %v1875 = vmul.f32 %v1868, %v1871
    %v1876 = vmul.f32 %v1869, %v1871
    %v1877 = vmul.f32 %v1870, %v1871
    %v1878 = vadd.f32 %v1858, %v1872
    %v1879 = vadd.f32 %v1859, %v1873
    %v1880 = vadd.f32 %v1860, %v1874
    %v1881 = vadd.f32 %v1861, %v1875
    %v1882 = vadd.f32 %v1862, %v1876
    %v1883 = vadd.f32 %v1863, %v1877
    %s1884 = sld [smem:[#allocation3 + $0x4f]]
    %v1885 = vld [vmem:[%s247] sm:$0xff]
    %v1886 = vld [vmem:[%s247 + $0x8] sm:$0xff]
    %v1887 = vld [vmem:[%s247 + $0x10] sm:$0x1f]
    %v1888 = vld [vmem:[%s247 + $0x18] sm:$0xff]
    %v1889 = vld [vmem:[%s247 + $0x20] sm:$0xff]
    %v1890 = vld [vmem:[%s247 + $0x28] sm:$0x1f]
    %v1891 = vstv %s1884
    %v1892 = vmul.f32 %v1885, %v1891
    %v1893 = vmul.f32 %v1886, %v1891
    %v1894 = vmul.f32 %v1887, %v1891
    %v1895 = vmul.f32 %v1888, %v1891
    %v1896 = vmul.f32 %v1889, %v1891
    %v1897 = vmul.f32 %v1890, %v1891
    %v1898 = vadd.f32 %v1878, %v1892
    %v1899 = vadd.f32 %v1879, %v1893
    %v1900 = vadd.f32 %v1880, %v1894
    %v1901 = vadd.f32 %v1881, %v1895
    %v1902 = vadd.f32 %v1882, %v1896
    %v1903 = vadd.f32 %v1883, %v1897
    %vm1904 = vcmp.gt.f32.partialorder %v1898, 0.0
    %vm1905 = vcmp.gt.f32.partialorder %v1899, 0.0
    %vm1906 = vcmp.gt.f32.partialorder %v1900, 0.0
    %vm1907 = vcmp.gt.f32.partialorder %v1901, 0.0
    %vm1908 = vcmp.gt.f32.partialorder %v1902, 0.0
    %vm1909 = vcmp.gt.f32.partialorder %v1903, 0.0
    %v1910 = vmul.f32 %v1898, -0.1
    %v1911 = vmul.f32 %v1899, -0.1
    %v1912 = vmul.f32 %v1900, -0.1
    %v1913 = vmul.f32 %v1901, -0.1
    %v1914 = vmul.f32 %v1902, -0.1
    %v1915 = vmul.f32 %v1903, -0.1
    %v1916 = vsel %vm1904, %v1898, %v1910
    %v1917 = vsel %vm1905, %v1899, %v1911
    %v1918 = vsel %vm1906, %v1900, %v1912
    %v1919 = vsel %vm1907, %v1901, %v1913
    %v1920 = vsel %vm1908, %v1902, %v1914
    %v1921 = vsel %vm1909, %v1903, %v1915
    %s1922 = scalar_lea.vmem %s2, 72
    %1923 = vst.msk [vmem:[%s1922] sm:$0xff] %vm30, %v1916
    %1924 = vst.msk [vmem:[%s1922 + $0x8] sm:$0xff] %vm30, %v1917
    %1925 = vst.msk [vmem:[%s1922 + $0x10] sm:$0x1f] %vm33, %v1918
    %1926 = vst.msk [vmem:[%s1922 + $0x108] sm:$0xff] %vm30, %v1919
    %1927 = vst.msk [vmem:[%s1922 + $0x110] sm:$0xff] %vm30, %v1920
    %1928 = vst.msk [vmem:[%s1922 + $0x118] sm:$0x1f] %vm33, %v1921
    %s1929 = sld [smem:[#allocation3 + $0x50]]
    %v1930 = vld [vmem:[#allocation2] sm:$0xff]
    %v1931 = vld [vmem:[#allocation2 + $0x8] sm:$0xff]
    %v1932 = vld [vmem:[#allocation2 + $0x10] sm:$0x1f]
    %v1933 = vld [vmem:[#allocation2 + $0x18] sm:$0xff]
    %v1934 = vld [vmem:[#allocation2 + $0x20] sm:$0xff]
    %v1935 = vld [vmem:[#allocation2 + $0x28] sm:$0x1f]
    %v1936 = vstv %s1929
    %v1937 = vmul.f32 %v1930, %v1936
    %v1938 = vmul.f32 %v1931, %v1936
    %v1939 = vmul.f32 %v1932, %v1936
    %v1940 = vmul.f32 %v1933, %v1936
    %v1941 = vmul.f32 %v1934, %v1936
    %v1942 = vmul.f32 %v1935, %v1936
    %s1943 = sld [smem:[#allocation3 + $0x51]]
    %v1944 = vld [vmem:[%s62] sm:$0xff]
    %v1945 = vld [vmem:[%s62 + $0x8] sm:$0xff]
    %v1946 = vld [vmem:[%s62 + $0x10] sm:$0x1f]
    %v1947 = vld [vmem:[%s62 + $0x18] sm:$0xff]
    %v1948 = vld [vmem:[%s62 + $0x20] sm:$0xff]
    %v1949 = vld [vmem:[%s62 + $0x28] sm:$0x1f]
    %v1950 = vstv %s1943
    %v1951 = vmul.f32 %v1944, %v1950
    %v1952 = vmul.f32 %v1945, %v1950
    %v1953 = vmul.f32 %v1946, %v1950
    %v1954 = vmul.f32 %v1947, %v1950
    %v1955 = vmul.f32 %v1948, %v1950
    %v1956 = vmul.f32 %v1949, %v1950
    %v1957 = vadd.f32 %v1937, %v1951
    %v1958 = vadd.f32 %v1938, %v1952
    %v1959 = vadd.f32 %v1939, %v1953
    %v1960 = vadd.f32 %v1940, %v1954
    %v1961 = vadd.f32 %v1941, %v1955
    %v1962 = vadd.f32 %v1942, %v1956
    %s1963 = sld [smem:[#allocation3 + $0x52]]
    %v1964 = vld [vmem:[%s87] sm:$0xff]
    %v1965 = vld [vmem:[%s87 + $0x8] sm:$0xff]
    %v1966 = vld [vmem:[%s87 + $0x10] sm:$0x1f]
    %v1967 = vld [vmem:[%s87 + $0x18] sm:$0xff]
    %v1968 = vld [vmem:[%s87 + $0x20] sm:$0xff]
    %v1969 = vld [vmem:[%s87 + $0x28] sm:$0x1f]
    %v1970 = vstv %s1963
    %v1971 = vmul.f32 %v1964, %v1970
    %v1972 = vmul.f32 %v1965, %v1970
    %v1973 = vmul.f32 %v1966, %v1970
    %v1974 = vmul.f32 %v1967, %v1970
    %v1975 = vmul.f32 %v1968, %v1970
    %v1976 = vmul.f32 %v1969, %v1970
    %v1977 = vadd.f32 %v1957, %v1971
    %v1978 = vadd.f32 %v1958, %v1972
    %v1979 = vadd.f32 %v1959, %v1973
    %v1980 = vadd.f32 %v1960, %v1974
    %v1981 = vadd.f32 %v1961, %v1975
    %v1982 = vadd.f32 %v1962, %v1976
    %s1983 = sld [smem:[#allocation3 + $0x53]]
    %v1984 = vld [vmem:[%s112] sm:$0xff]
    %v1985 = vld [vmem:[%s112 + $0x8] sm:$0xff]
    %v1986 = vld [vmem:[%s112 + $0x10] sm:$0x1f]
    %v1987 = vld [vmem:[%s112 + $0x18] sm:$0xff]
    %v1988 = vld [vmem:[%s112 + $0x20] sm:$0xff]
    %v1989 = vld [vmem:[%s112 + $0x28] sm:$0x1f]
    %v1990 = vstv %s1983
    %v1991 = vmul.f32 %v1984, %v1990
    %v1992 = vmul.f32 %v1985, %v1990
    %v1993 = vmul.f32 %v1986, %v1990
    %v1994 = vmul.f32 %v1987, %v1990
    %v1995 = vmul.f32 %v1988, %v1990
    %v1996 = vmul.f32 %v1989, %v1990
    %v1997 = vadd.f32 %v1977, %v1991
    %v1998 = vadd.f32 %v1978, %v1992
    %v1999 = vadd.f32 %v1979, %v1993
    %v2000 = vadd.f32 %v1980, %v1994
    %v2001 = vadd.f32 %v1981, %v1995
    %v2002 = vadd.f32 %v1982, %v1996
    %s2003 = sld [smem:[#allocation3 + $0x54]]
    %v2004 = vld [vmem:[%s137] sm:$0xff]
    %v2005 = vld [vmem:[%s137 + $0x8] sm:$0xff]
    %v2006 = vld [vmem:[%s137 + $0x10] sm:$0x1f]
    %v2007 = vld [vmem:[%s137 + $0x18] sm:$0xff]
    %v2008 = vld [vmem:[%s137 + $0x20] sm:$0xff]
    %v2009 = vld [vmem:[%s137 + $0x28] sm:$0x1f]
    %v2010 = vstv %s2003
    %v2011 = vmul.f32 %v2004, %v2010
    %v2012 = vmul.f32 %v2005, %v2010
    %v2013 = vmul.f32 %v2006, %v2010
    %v2014 = vmul.f32 %v2007, %v2010
    %v2015 = vmul.f32 %v2008, %v2010
    %v2016 = vmul.f32 %v2009, %v2010
    %v2017 = vadd.f32 %v1997, %v2011
    %v2018 = vadd.f32 %v1998, %v2012
    %v2019 = vadd.f32 %v1999, %v2013
    %v2020 = vadd.f32 %v2000, %v2014
    %v2021 = vadd.f32 %v2001, %v2015
    %v2022 = vadd.f32 %v2002, %v2016
    %s2023 = sld [smem:[#allocation3 + $0x55]]
    %v2024 = vld [vmem:[%s144] sm:$0xff]
    %v2025 = vld [vmem:[%s144 + $0x8] sm:$0xff]
    %v2026 = vld [vmem:[%s144 + $0x10] sm:$0x1f]
    %v2027 = vld [vmem:[%s144 + $0x18] sm:$0xff]
    %v2028 = vld [vmem:[%s144 + $0x20] sm:$0xff]
    %v2029 = vld [vmem:[%s144 + $0x28] sm:$0x1f]
    %v2030 = vstv %s2023
    %v2031 = vmul.f32 %v2024, %v2030
    %v2032 = vmul.f32 %v2025, %v2030
    %v2033 = vmul.f32 %v2026, %v2030
    %v2034 = vmul.f32 %v2027, %v2030
    %v2035 = vmul.f32 %v2028, %v2030
    %v2036 = vmul.f32 %v2029, %v2030
    %v2037 = vadd.f32 %v2017, %v2031
    %v2038 = vadd.f32 %v2018, %v2032
    %v2039 = vadd.f32 %v2019, %v2033
    %v2040 = vadd.f32 %v2020, %v2034
    %v2041 = vadd.f32 %v2021, %v2035
    %v2042 = vadd.f32 %v2022, %v2036
    %s2043 = sld [smem:[#allocation3 + $0x56]]
    %v2044 = vld [vmem:[%s153] sm:$0xff]
    %v2045 = vld [vmem:[%s153 + $0x8] sm:$0xff]
    %v2046 = vld [vmem:[%s153 + $0x10] sm:$0x1f]
    %v2047 = vld [vmem:[%s153 + $0x18] sm:$0xff]
    %v2048 = vld [vmem:[%s153 + $0x20] sm:$0xff]
    %v2049 = vld [vmem:[%s153 + $0x28] sm:$0x1f]
    %v2050 = vstv %s2043
    %v2051 = vmul.f32 %v2044, %v2050
    %v2052 = vmul.f32 %v2045, %v2050
    %v2053 = vmul.f32 %v2046, %v2050
    %v2054 = vmul.f32 %v2047, %v2050
    %v2055 = vmul.f32 %v2048, %v2050
    %v2056 = vmul.f32 %v2049, %v2050
    %v2057 = vadd.f32 %v2037, %v2051
    %v2058 = vadd.f32 %v2038, %v2052
    %v2059 = vadd.f32 %v2039, %v2053
    %v2060 = vadd.f32 %v2040, %v2054
    %v2061 = vadd.f32 %v2041, %v2055
    %v2062 = vadd.f32 %v2042, %v2056
    %s2063 = sld [smem:[#allocation3 + $0x57]]
    %v2064 = vld [vmem:[%s160] sm:$0xff]
    %v2065 = vld [vmem:[%s160 + $0x8] sm:$0xff]
    %v2066 = vld [vmem:[%s160 + $0x10] sm:$0x1f]
    %v2067 = vld [vmem:[%s160 + $0x18] sm:$0xff]
    %v2068 = vld [vmem:[%s160 + $0x20] sm:$0xff]
    %v2069 = vld [vmem:[%s160 + $0x28] sm:$0x1f]
    %v2070 = vstv %s2063
    %v2071 = vmul.f32 %v2064, %v2070
    %v2072 = vmul.f32 %v2065, %v2070
    %v2073 = vmul.f32 %v2066, %v2070
    %v2074 = vmul.f32 %v2067, %v2070
    %v2075 = vmul.f32 %v2068, %v2070
    %v2076 = vmul.f32 %v2069, %v2070
    %v2077 = vadd.f32 %v2057, %v2071
    %v2078 = vadd.f32 %v2058, %v2072
    %v2079 = vadd.f32 %v2059, %v2073
    %v2080 = vadd.f32 %v2060, %v2074
    %v2081 = vadd.f32 %v2061, %v2075
    %v2082 = vadd.f32 %v2062, %v2076
    %s2083 = sld [smem:[#allocation3 + $0x58]]
    %v2084 = vld [vmem:[%s167] sm:$0xff]
    %v2085 = vld [vmem:[%s167 + $0x8] sm:$0xff]
    %v2086 = vld [vmem:[%s167 + $0x10] sm:$0x1f]
    %v2087 = vld [vmem:[%s167 + $0x18] sm:$0xff]
    %v2088 = vld [vmem:[%s167 + $0x20] sm:$0xff]
    %v2089 = vld [vmem:[%s167 + $0x28] sm:$0x1f]
    %v2090 = vstv %s2083
    %v2091 = vmul.f32 %v2084, %v2090
    %v2092 = vmul.f32 %v2085, %v2090
    %v2093 = vmul.f32 %v2086, %v2090
    %v2094 = vmul.f32 %v2087, %v2090
    %v2095 = vmul.f32 %v2088, %v2090
    %v2096 = vmul.f32 %v2089, %v2090
    %v2097 = vadd.f32 %v2077, %v2091
    %v2098 = vadd.f32 %v2078, %v2092
    %v2099 = vadd.f32 %v2079, %v2093
    %v2100 = vadd.f32 %v2080, %v2094
    %v2101 = vadd.f32 %v2081, %v2095
    %v2102 = vadd.f32 %v2082, %v2096
    %s2103 = sld [smem:[#allocation3 + $0x59]]
    %v2104 = vld [vmem:[%s174] sm:$0xff]
    %v2105 = vld [vmem:[%s174 + $0x8] sm:$0xff]
    %v2106 = vld [vmem:[%s174 + $0x10] sm:$0x1f]
    %v2107 = vld [vmem:[%s174 + $0x18] sm:$0xff]
    %v2108 = vld [vmem:[%s174 + $0x20] sm:$0xff]
    %v2109 = vld [vmem:[%s174 + $0x28] sm:$0x1f]
    %v2110 = vstv %s2103
    %v2111 = vmul.f32 %v2104, %v2110
    %v2112 = vmul.f32 %v2105, %v2110
    %v2113 = vmul.f32 %v2106, %v2110
    %v2114 = vmul.f32 %v2107, %v2110
    %v2115 = vmul.f32 %v2108, %v2110
    %v2116 = vmul.f32 %v2109, %v2110
    %v2117 = vadd.f32 %v2097, %v2111
    %v2118 = vadd.f32 %v2098, %v2112
    %v2119 = vadd.f32 %v2099, %v2113
    %v2120 = vadd.f32 %v2100, %v2114
    %v2121 = vadd.f32 %v2101, %v2115
    %v2122 = vadd.f32 %v2102, %v2116
    %s2123 = sld [smem:[#allocation3 + $0x5a]]
    %v2124 = vld [vmem:[%s181] sm:$0xff]
    %v2125 = vld [vmem:[%s181 + $0x8] sm:$0xff]
    %v2126 = vld [vmem:[%s181 + $0x10] sm:$0x1f]
    %v2127 = vld [vmem:[%s181 + $0x18] sm:$0xff]
    %v2128 = vld [vmem:[%s181 + $0x20] sm:$0xff]
    %v2129 = vld [vmem:[%s181 + $0x28] sm:$0x1f]
    %v2130 = vstv %s2123
    %v2131 = vmul.f32 %v2124, %v2130
    %v2132 = vmul.f32 %v2125, %v2130
    %v2133 = vmul.f32 %v2126, %v2130
    %v2134 = vmul.f32 %v2127, %v2130
    %v2135 = vmul.f32 %v2128, %v2130
    %v2136 = vmul.f32 %v2129, %v2130
    %v2137 = vadd.f32 %v2117, %v2131
    %v2138 = vadd.f32 %v2118, %v2132
    %v2139 = vadd.f32 %v2119, %v2133
    %v2140 = vadd.f32 %v2120, %v2134
    %v2141 = vadd.f32 %v2121, %v2135
    %v2142 = vadd.f32 %v2122, %v2136
    %s2143 = sld [smem:[#allocation3 + $0x5b]]
    %v2144 = vld [vmem:[%s190] sm:$0xff]
    %v2145 = vld [vmem:[%s190 + $0x8] sm:$0xff]
    %v2146 = vld [vmem:[%s190 + $0x10] sm:$0x1f]
    %v2147 = vld [vmem:[%s190 + $0x18] sm:$0xff]
    %v2148 = vld [vmem:[%s190 + $0x20] sm:$0xff]
    %v2149 = vld [vmem:[%s190 + $0x28] sm:$0x1f]
    %v2150 = vstv %s2143
    %v2151 = vmul.f32 %v2144, %v2150
    %v2152 = vmul.f32 %v2145, %v2150
    %v2153 = vmul.f32 %v2146, %v2150
    %v2154 = vmul.f32 %v2147, %v2150
    %v2155 = vmul.f32 %v2148, %v2150
    %v2156 = vmul.f32 %v2149, %v2150
    %v2157 = vadd.f32 %v2137, %v2151
    %v2158 = vadd.f32 %v2138, %v2152
    %v2159 = vadd.f32 %v2139, %v2153
    %v2160 = vadd.f32 %v2140, %v2154
    %v2161 = vadd.f32 %v2141, %v2155
    %v2162 = vadd.f32 %v2142, %v2156
    %s2163 = sld [smem:[#allocation3 + $0x5c]]
    %v2164 = vld [vmem:[%s197] sm:$0xff]
    %v2165 = vld [vmem:[%s197 + $0x8] sm:$0xff]
    %v2166 = vld [vmem:[%s197 + $0x10] sm:$0x1f]
    %v2167 = vld [vmem:[%s197 + $0x18] sm:$0xff]
    %v2168 = vld [vmem:[%s197 + $0x20] sm:$0xff]
    %v2169 = vld [vmem:[%s197 + $0x28] sm:$0x1f]
    %v2170 = vstv %s2163
    %v2171 = vmul.f32 %v2164, %v2170
    %v2172 = vmul.f32 %v2165, %v2170
    %v2173 = vmul.f32 %v2166, %v2170
    %v2174 = vmul.f32 %v2167, %v2170
    %v2175 = vmul.f32 %v2168, %v2170
    %v2176 = vmul.f32 %v2169, %v2170
    %v2177 = vadd.f32 %v2157, %v2171
    %v2178 = vadd.f32 %v2158, %v2172
    %v2179 = vadd.f32 %v2159, %v2173
    %v2180 = vadd.f32 %v2160, %v2174
    %v2181 = vadd.f32 %v2161, %v2175
    %v2182 = vadd.f32 %v2162, %v2176
    %s2183 = sld [smem:[#allocation3 + $0x5d]]
    %v2184 = vld [vmem:[%s204] sm:$0xff]
    %v2185 = vld [vmem:[%s204 + $0x8] sm:$0xff]
    %v2186 = vld [vmem:[%s204 + $0x10] sm:$0x1f]
    %v2187 = vld [vmem:[%s204 + $0x18] sm:$0xff]
    %v2188 = vld [vmem:[%s204 + $0x20] sm:$0xff]
    %v2189 = vld [vmem:[%s204 + $0x28] sm:$0x1f]
    %v2190 = vstv %s2183
    %v2191 = vmul.f32 %v2184, %v2190
    %v2192 = vmul.f32 %v2185, %v2190
    %v2193 = vmul.f32 %v2186, %v2190
    %v2194 = vmul.f32 %v2187, %v2190
    %v2195 = vmul.f32 %v2188, %v2190
    %v2196 = vmul.f32 %v2189, %v2190
    %v2197 = vadd.f32 %v2177, %v2191
    %v2198 = vadd.f32 %v2178, %v2192
    %v2199 = vadd.f32 %v2179, %v2193
    %v2200 = vadd.f32 %v2180, %v2194
    %v2201 = vadd.f32 %v2181, %v2195
    %v2202 = vadd.f32 %v2182, %v2196
    %s2203 = sld [smem:[#allocation3 + $0x5e]]
    %v2204 = vld [vmem:[%s211] sm:$0xff]
    %v2205 = vld [vmem:[%s211 + $0x8] sm:$0xff]
    %v2206 = vld [vmem:[%s211 + $0x10] sm:$0x1f]
    %v2207 = vld [vmem:[%s211 + $0x18] sm:$0xff]
    %v2208 = vld [vmem:[%s211 + $0x20] sm:$0xff]
    %v2209 = vld [vmem:[%s211 + $0x28] sm:$0x1f]
    %v2210 = vstv %s2203
    %v2211 = vmul.f32 %v2204, %v2210
    %v2212 = vmul.f32 %v2205, %v2210
    %v2213 = vmul.f32 %v2206, %v2210
    %v2214 = vmul.f32 %v2207, %v2210
    %v2215 = vmul.f32 %v2208, %v2210
    %v2216 = vmul.f32 %v2209, %v2210
    %v2217 = vadd.f32 %v2197, %v2211
    %v2218 = vadd.f32 %v2198, %v2212
    %v2219 = vadd.f32 %v2199, %v2213
    %v2220 = vadd.f32 %v2200, %v2214
    %v2221 = vadd.f32 %v2201, %v2215
    %v2222 = vadd.f32 %v2202, %v2216
    %s2223 = sld [smem:[#allocation3 + $0x5f]]
    %v2224 = vld [vmem:[%s218] sm:$0xff]
    %v2225 = vld [vmem:[%s218 + $0x8] sm:$0xff]
    %v2226 = vld [vmem:[%s218 + $0x10] sm:$0x1f]
    %v2227 = vld [vmem:[%s218 + $0x18] sm:$0xff]
    %v2228 = vld [vmem:[%s218 + $0x20] sm:$0xff]
    %v2229 = vld [vmem:[%s218 + $0x28] sm:$0x1f]
    %v2230 = vstv %s2223
    %v2231 = vmul.f32 %v2224, %v2230
    %v2232 = vmul.f32 %v2225, %v2230
    %v2233 = vmul.f32 %v2226, %v2230
    %v2234 = vmul.f32 %v2227, %v2230
    %v2235 = vmul.f32 %v2228, %v2230
    %v2236 = vmul.f32 %v2229, %v2230
    %v2237 = vadd.f32 %v2217, %v2231
    %v2238 = vadd.f32 %v2218, %v2232
    %v2239 = vadd.f32 %v2219, %v2233
    %v2240 = vadd.f32 %v2220, %v2234
    %v2241 = vadd.f32 %v2221, %v2235
    %v2242 = vadd.f32 %v2222, %v2236
    %s2243 = sld [smem:[#allocation3 + $0x60]]
    %v2244 = vld [vmem:[%s226] sm:$0xff]
    %v2245 = vld [vmem:[%s226 + $0x8] sm:$0xff]
    %v2246 = vld [vmem:[%s226 + $0x10] sm:$0x1f]
    %v2247 = vld [vmem:[%s226 + $0x18] sm:$0xff]
    %v2248 = vld [vmem:[%s226 + $0x20] sm:$0xff]
    %v2249 = vld [vmem:[%s226 + $0x28] sm:$0x1f]
    %v2250 = vstv %s2243
    %v2251 = vmul.f32 %v2244, %v2250
    %v2252 = vmul.f32 %v2245, %v2250
    %v2253 = vmul.f32 %v2246, %v2250
    %v2254 = vmul.f32 %v2247, %v2250
    %v2255 = vmul.f32 %v2248, %v2250
    %v2256 = vmul.f32 %v2249, %v2250
    %v2257 = vadd.f32 %v2237, %v2251
    %v2258 = vadd.f32 %v2238, %v2252
    %v2259 = vadd.f32 %v2239, %v2253
    %v2260 = vadd.f32 %v2240, %v2254
    %v2261 = vadd.f32 %v2241, %v2255
    %v2262 = vadd.f32 %v2242, %v2256
    %s2263 = sld [smem:[#allocation3 + $0x61]]
    %v2264 = vld [vmem:[%s233] sm:$0xff]
    %v2265 = vld [vmem:[%s233 + $0x8] sm:$0xff]
    %v2266 = vld [vmem:[%s233 + $0x10] sm:$0x1f]
    %v2267 = vld [vmem:[%s233 + $0x18] sm:$0xff]
    %v2268 = vld [vmem:[%s233 + $0x20] sm:$0xff]
    %v2269 = vld [vmem:[%s233 + $0x28] sm:$0x1f]
    %v2270 = vstv %s2263
    %v2271 = vmul.f32 %v2264, %v2270
    %v2272 = vmul.f32 %v2265, %v2270
    %v2273 = vmul.f32 %v2266, %v2270
    %v2274 = vmul.f32 %v2267, %v2270
    %v2275 = vmul.f32 %v2268, %v2270
    %v2276 = vmul.f32 %v2269, %v2270
    %v2277 = vadd.f32 %v2257, %v2271
    %v2278 = vadd.f32 %v2258, %v2272
    %v2279 = vadd.f32 %v2259, %v2273
    %v2280 = vadd.f32 %v2260, %v2274
    %v2281 = vadd.f32 %v2261, %v2275
    %v2282 = vadd.f32 %v2262, %v2276
    %s2283 = sld [smem:[#allocation3 + $0x62]]
    %v2284 = vld [vmem:[%s240] sm:$0xff]
    %v2285 = vld [vmem:[%s240 + $0x8] sm:$0xff]
    %v2286 = vld [vmem:[%s240 + $0x10] sm:$0x1f]
    %v2287 = vld [vmem:[%s240 + $0x18] sm:$0xff]
    %v2288 = vld [vmem:[%s240 + $0x20] sm:$0xff]
    %v2289 = vld [vmem:[%s240 + $0x28] sm:$0x1f]
    %v2290 = vstv %s2283
    %v2291 = vmul.f32 %v2284, %v2290
    %v2292 = vmul.f32 %v2285, %v2290
    %v2293 = vmul.f32 %v2286, %v2290
    %v2294 = vmul.f32 %v2287, %v2290
    %v2295 = vmul.f32 %v2288, %v2290
    %v2296 = vmul.f32 %v2289, %v2290
    %v2297 = vadd.f32 %v2277, %v2291
    %v2298 = vadd.f32 %v2278, %v2292
    %v2299 = vadd.f32 %v2279, %v2293
    %v2300 = vadd.f32 %v2280, %v2294
    %v2301 = vadd.f32 %v2281, %v2295
    %v2302 = vadd.f32 %v2282, %v2296
    %s2303 = sld [smem:[#allocation3 + $0x63]]
    %v2304 = vld [vmem:[%s247] sm:$0xff]
    %v2305 = vld [vmem:[%s247 + $0x8] sm:$0xff]
    %v2306 = vld [vmem:[%s247 + $0x10] sm:$0x1f]
    %v2307 = vld [vmem:[%s247 + $0x18] sm:$0xff]
    %v2308 = vld [vmem:[%s247 + $0x20] sm:$0xff]
    %v2309 = vld [vmem:[%s247 + $0x28] sm:$0x1f]
    %v2310 = vstv %s2303
    %v2311 = vmul.f32 %v2304, %v2310
    %v2312 = vmul.f32 %v2305, %v2310
    %v2313 = vmul.f32 %v2306, %v2310
    %v2314 = vmul.f32 %v2307, %v2310
    %v2315 = vmul.f32 %v2308, %v2310
    %v2316 = vmul.f32 %v2309, %v2310
    %v2317 = vadd.f32 %v2297, %v2311
    %v2318 = vadd.f32 %v2298, %v2312
    %v2319 = vadd.f32 %v2299, %v2313
    %v2320 = vadd.f32 %v2300, %v2314
    %v2321 = vadd.f32 %v2301, %v2315
    %v2322 = vadd.f32 %v2302, %v2316
    %vm2323 = vcmp.gt.f32.partialorder %v2317, 0.0
    %vm2324 = vcmp.gt.f32.partialorder %v2318, 0.0
    %vm2325 = vcmp.gt.f32.partialorder %v2319, 0.0
    %vm2326 = vcmp.gt.f32.partialorder %v2320, 0.0
    %vm2327 = vcmp.gt.f32.partialorder %v2321, 0.0
    %vm2328 = vcmp.gt.f32.partialorder %v2322, 0.0
    %v2329 = vmul.f32 %v2317, -0.1
    %v2330 = vmul.f32 %v2318, -0.1
    %v2331 = vmul.f32 %v2319, -0.1
    %v2332 = vmul.f32 %v2320, -0.1
    %v2333 = vmul.f32 %v2321, -0.1
    %v2334 = vmul.f32 %v2322, -0.1
    %v2335 = vsel %vm2323, %v2317, %v2329
    %v2336 = vsel %vm2324, %v2318, %v2330
    %v2337 = vsel %vm2325, %v2319, %v2331
    %v2338 = vsel %vm2326, %v2320, %v2332
    %v2339 = vsel %vm2327, %v2321, %v2333
    %v2340 = vsel %vm2328, %v2322, %v2334
    %s2341 = scalar_lea.vmem %s2, 96
    %2342 = vst.msk [vmem:[%s2341] sm:$0xff] %vm30, %v2335
    %2343 = vst.msk [vmem:[%s2341 + $0x8] sm:$0xff] %vm30, %v2336
    %2344 = vst.msk [vmem:[%s2341 + $0x10] sm:$0x1f] %vm33, %v2337
    %2345 = vst.msk [vmem:[%s2341 + $0x108] sm:$0xff] %vm30, %v2338
    %2346 = vst.msk [vmem:[%s2341 + $0x110] sm:$0xff] %vm30, %v2339
    %2347 = vst.msk [vmem:[%s2341 + $0x118] sm:$0x1f] %vm33, %v2340
    %s2348 = sld [smem:[#allocation3 + $0x64]]
    %v2349 = vld [vmem:[#allocation2] sm:$0xff]
    %v2350 = vld [vmem:[#allocation2 + $0x8] sm:$0xff]
    %v2351 = vld [vmem:[#allocation2 + $0x10] sm:$0x1f]
    %v2352 = vld [vmem:[#allocation2 + $0x18] sm:$0xff]
    %v2353 = vld [vmem:[#allocation2 + $0x20] sm:$0xff]
    %v2354 = vld [vmem:[#allocation2 + $0x28] sm:$0x1f]
    %v2355 = vstv %s2348
    %v2356 = vmul.f32 %v2349, %v2355
    %v2357 = vmul.f32 %v2350, %v2355
    %v2358 = vmul.f32 %v2351, %v2355
    %v2359 = vmul.f32 %v2352, %v2355
    %v2360 = vmul.f32 %v2353, %v2355
    %v2361 = vmul.f32 %v2354, %v2355
    %s2362 = sld [smem:[#allocation3 + $0x65]]
    %v2363 = vld [vmem:[%s62] sm:$0xff]
    %v2364 = vld [vmem:[%s62 + $0x8] sm:$0xff]
    %v2365 = vld [vmem:[%s62 + $0x10] sm:$0x1f]
    %v2366 = vld [vmem:[%s62 + $0x18] sm:$0xff]
    %v2367 = vld [vmem:[%s62 + $0x20] sm:$0xff]
    %v2368 = vld [vmem:[%s62 + $0x28] sm:$0x1f]
    %v2369 = vstv %s2362
    %v2370 = vmul.f32 %v2363, %v2369
    %v2371 = vmul.f32 %v2364, %v2369
    %v2372 = vmul.f32 %v2365, %v2369
    %v2373 = vmul.f32 %v2366, %v2369
    %v2374 = vmul.f32 %v2367, %v2369
    %v2375 = vmul.f32 %v2368, %v2369
    %v2376 = vadd.f32 %v2356, %v2370
    %v2377 = vadd.f32 %v2357, %v2371
    %v2378 = vadd.f32 %v2358, %v2372
    %v2379 = vadd.f32 %v2359, %v2373
    %v2380 = vadd.f32 %v2360, %v2374
    %v2381 = vadd.f32 %v2361, %v2375
    %s2382 = sld [smem:[#allocation3 + $0x66]]
    %v2383 = vld [vmem:[%s87] sm:$0xff]
    %v2384 = vld [vmem:[%s87 + $0x8] sm:$0xff]
    %v2385 = vld [vmem:[%s87 + $0x10] sm:$0x1f]
    %v2386 = vld [vmem:[%s87 + $0x18] sm:$0xff]
    %v2387 = vld [vmem:[%s87 + $0x20] sm:$0xff]
    %v2388 = vld [vmem:[%s87 + $0x28] sm:$0x1f]
    %v2389 = vstv %s2382
    %v2390 = vmul.f32 %v2383, %v2389
    %v2391 = vmul.f32 %v2384, %v2389
    %v2392 = vmul.f32 %v2385, %v2389
    %v2393 = vmul.f32 %v2386, %v2389
    %v2394 = vmul.f32 %v2387, %v2389
    %v2395 = vmul.f32 %v2388, %v2389
    %v2396 = vadd.f32 %v2376, %v2390
    %v2397 = vadd.f32 %v2377, %v2391
    %v2398 = vadd.f32 %v2378, %v2392
    %v2399 = vadd.f32 %v2379, %v2393
    %v2400 = vadd.f32 %v2380, %v2394
    %v2401 = vadd.f32 %v2381, %v2395
    %s2402 = sld [smem:[#allocation3 + $0x67]]
    %v2403 = vld [vmem:[%s112] sm:$0xff]
    %v2404 = vld [vmem:[%s112 + $0x8] sm:$0xff]
    %v2405 = vld [vmem:[%s112 + $0x10] sm:$0x1f]
    %v2406 = vld [vmem:[%s112 + $0x18] sm:$0xff]
    %v2407 = vld [vmem:[%s112 + $0x20] sm:$0xff]
    %v2408 = vld [vmem:[%s112 + $0x28] sm:$0x1f]
    %v2409 = vstv %s2402
    %v2410 = vmul.f32 %v2403, %v2409
    %v2411 = vmul.f32 %v2404, %v2409
    %v2412 = vmul.f32 %v2405, %v2409
    %v2413 = vmul.f32 %v2406, %v2409
    %v2414 = vmul.f32 %v2407, %v2409
    %v2415 = vmul.f32 %v2408, %v2409
    %v2416 = vadd.f32 %v2396, %v2410
    %v2417 = vadd.f32 %v2397, %v2411
    %v2418 = vadd.f32 %v2398, %v2412
    %v2419 = vadd.f32 %v2399, %v2413
    %v2420 = vadd.f32 %v2400, %v2414
    %v2421 = vadd.f32 %v2401, %v2415
    %s2422 = sld [smem:[#allocation3 + $0x68]]
    %v2423 = vld [vmem:[%s137] sm:$0xff]
    %v2424 = vld [vmem:[%s137 + $0x8] sm:$0xff]
    %v2425 = vld [vmem:[%s137 + $0x10] sm:$0x1f]
    %v2426 = vld [vmem:[%s137 + $0x18] sm:$0xff]
    %v2427 = vld [vmem:[%s137 + $0x20] sm:$0xff]
    %v2428 = vld [vmem:[%s137 + $0x28] sm:$0x1f]
    %v2429 = vstv %s2422
    %v2430 = vmul.f32 %v2423, %v2429
    %v2431 = vmul.f32 %v2424, %v2429
    %v2432 = vmul.f32 %v2425, %v2429
    %v2433 = vmul.f32 %v2426, %v2429
    %v2434 = vmul.f32 %v2427, %v2429
    %v2435 = vmul.f32 %v2428, %v2429
    %v2436 = vadd.f32 %v2416, %v2430
    %v2437 = vadd.f32 %v2417, %v2431
    %v2438 = vadd.f32 %v2418, %v2432
    %v2439 = vadd.f32 %v2419, %v2433
    %v2440 = vadd.f32 %v2420, %v2434
    %v2441 = vadd.f32 %v2421, %v2435
    %s2442 = sld [smem:[#allocation3 + $0x69]]
    %v2443 = vld [vmem:[%s144] sm:$0xff]
    %v2444 = vld [vmem:[%s144 + $0x8] sm:$0xff]
    %v2445 = vld [vmem:[%s144 + $0x10] sm:$0x1f]
    %v2446 = vld [vmem:[%s144 + $0x18] sm:$0xff]
    %v2447 = vld [vmem:[%s144 + $0x20] sm:$0xff]
    %v2448 = vld [vmem:[%s144 + $0x28] sm:$0x1f]
    %v2449 = vstv %s2442
    %v2450 = vmul.f32 %v2443, %v2449
    %v2451 = vmul.f32 %v2444, %v2449
    %v2452 = vmul.f32 %v2445, %v2449
    %v2453 = vmul.f32 %v2446, %v2449
    %v2454 = vmul.f32 %v2447, %v2449
    %v2455 = vmul.f32 %v2448, %v2449
    %v2456 = vadd.f32 %v2436, %v2450
    %v2457 = vadd.f32 %v2437, %v2451
    %v2458 = vadd.f32 %v2438, %v2452
    %v2459 = vadd.f32 %v2439, %v2453
    %v2460 = vadd.f32 %v2440, %v2454
    %v2461 = vadd.f32 %v2441, %v2455
    %s2462 = sld [smem:[#allocation3 + $0x6a]]
    %v2463 = vld [vmem:[%s153] sm:$0xff]
    %v2464 = vld [vmem:[%s153 + $0x8] sm:$0xff]
    %v2465 = vld [vmem:[%s153 + $0x10] sm:$0x1f]
    %v2466 = vld [vmem:[%s153 + $0x18] sm:$0xff]
    %v2467 = vld [vmem:[%s153 + $0x20] sm:$0xff]
    %v2468 = vld [vmem:[%s153 + $0x28] sm:$0x1f]
    %v2469 = vstv %s2462
    %v2470 = vmul.f32 %v2463, %v2469
    %v2471 = vmul.f32 %v2464, %v2469
    %v2472 = vmul.f32 %v2465, %v2469
    %v2473 = vmul.f32 %v2466, %v2469
    %v2474 = vmul.f32 %v2467, %v2469
    %v2475 = vmul.f32 %v2468, %v2469
    %v2476 = vadd.f32 %v2456, %v2470
    %v2477 = vadd.f32 %v2457, %v2471
    %v2478 = vadd.f32 %v2458, %v2472
    %v2479 = vadd.f32 %v2459, %v2473
    %v2480 = vadd.f32 %v2460, %v2474
    %v2481 = vadd.f32 %v2461, %v2475
    %s2482 = sld [smem:[#allocation3 + $0x6b]]
    %v2483 = vld [vmem:[%s160] sm:$0xff]
    %v2484 = vld [vmem:[%s160 + $0x8] sm:$0xff]
    %v2485 = vld [vmem:[%s160 + $0x10] sm:$0x1f]
    %v2486 = vld [vmem:[%s160 + $0x18] sm:$0xff]
    %v2487 = vld [vmem:[%s160 + $0x20] sm:$0xff]
    %v2488 = vld [vmem:[%s160 + $0x28] sm:$0x1f]
    %v2489 = vstv %s2482
    %v2490 = vmul.f32 %v2483, %v2489
    %v2491 = vmul.f32 %v2484, %v2489
    %v2492 = vmul.f32 %v2485, %v2489
    %v2493 = vmul.f32 %v2486, %v2489
    %v2494 = vmul.f32 %v2487, %v2489
    %v2495 = vmul.f32 %v2488, %v2489
    %v2496 = vadd.f32 %v2476, %v2490
    %v2497 = vadd.f32 %v2477, %v2491
    %v2498 = vadd.f32 %v2478, %v2492
    %v2499 = vadd.f32 %v2479, %v2493
    %v2500 = vadd.f32 %v2480, %v2494
    %v2501 = vadd.f32 %v2481, %v2495
    %s2502 = sld [smem:[#allocation3 + $0x6c]]
    %v2503 = vld [vmem:[%s167] sm:$0xff]
    %v2504 = vld [vmem:[%s167 + $0x8] sm:$0xff]
    %v2505 = vld [vmem:[%s167 + $0x10] sm:$0x1f]
    %v2506 = vld [vmem:[%s167 + $0x18] sm:$0xff]
    %v2507 = vld [vmem:[%s167 + $0x20] sm:$0xff]
    %v2508 = vld [vmem:[%s167 + $0x28] sm:$0x1f]
    %v2509 = vstv %s2502
    %v2510 = vmul.f32 %v2503, %v2509
    %v2511 = vmul.f32 %v2504, %v2509
    %v2512 = vmul.f32 %v2505, %v2509
    %v2513 = vmul.f32 %v2506, %v2509
    %v2514 = vmul.f32 %v2507, %v2509
    %v2515 = vmul.f32 %v2508, %v2509
    %v2516 = vadd.f32 %v2496, %v2510
    %v2517 = vadd.f32 %v2497, %v2511
    %v2518 = vadd.f32 %v2498, %v2512
    %v2519 = vadd.f32 %v2499, %v2513
    %v2520 = vadd.f32 %v2500, %v2514
    %v2521 = vadd.f32 %v2501, %v2515
    %s2522 = sld [smem:[#allocation3 + $0x6d]]
    %v2523 = vld [vmem:[%s174] sm:$0xff]
    %v2524 = vld [vmem:[%s174 + $0x8] sm:$0xff]
    %v2525 = vld [vmem:[%s174 + $0x10] sm:$0x1f]
    %v2526 = vld [vmem:[%s174 + $0x18] sm:$0xff]
    %v2527 = vld [vmem:[%s174 + $0x20] sm:$0xff]
    %v2528 = vld [vmem:[%s174 + $0x28] sm:$0x1f]
    %v2529 = vstv %s2522
    %v2530 = vmul.f32 %v2523, %v2529
    %v2531 = vmul.f32 %v2524, %v2529
    %v2532 = vmul.f32 %v2525, %v2529
    %v2533 = vmul.f32 %v2526, %v2529
    %v2534 = vmul.f32 %v2527, %v2529
    %v2535 = vmul.f32 %v2528, %v2529
    %v2536 = vadd.f32 %v2516, %v2530
    %v2537 = vadd.f32 %v2517, %v2531
    %v2538 = vadd.f32 %v2518, %v2532
    %v2539 = vadd.f32 %v2519, %v2533
    %v2540 = vadd.f32 %v2520, %v2534
    %v2541 = vadd.f32 %v2521, %v2535
    %s2542 = sld [smem:[#allocation3 + $0x6e]]
    %v2543 = vld [vmem:[%s181] sm:$0xff]
    %v2544 = vld [vmem:[%s181 + $0x8] sm:$0xff]
    %v2545 = vld [vmem:[%s181 + $0x10] sm:$0x1f]
    %v2546 = vld [vmem:[%s181 + $0x18] sm:$0xff]
    %v2547 = vld [vmem:[%s181 + $0x20] sm:$0xff]
    %v2548 = vld [vmem:[%s181 + $0x28] sm:$0x1f]
    %v2549 = vstv %s2542
    %v2550 = vmul.f32 %v2543, %v2549
    %v2551 = vmul.f32 %v2544, %v2549
    %v2552 = vmul.f32 %v2545, %v2549
    %v2553 = vmul.f32 %v2546, %v2549
    %v2554 = vmul.f32 %v2547, %v2549
    %v2555 = vmul.f32 %v2548, %v2549
    %v2556 = vadd.f32 %v2536, %v2550
    %v2557 = vadd.f32 %v2537, %v2551
    %v2558 = vadd.f32 %v2538, %v2552
    %v2559 = vadd.f32 %v2539, %v2553
    %v2560 = vadd.f32 %v2540, %v2554
    %v2561 = vadd.f32 %v2541, %v2555
    %s2562 = sld [smem:[#allocation3 + $0x6f]]
    %v2563 = vld [vmem:[%s190] sm:$0xff]
    %v2564 = vld [vmem:[%s190 + $0x8] sm:$0xff]
    %v2565 = vld [vmem:[%s190 + $0x10] sm:$0x1f]
    %v2566 = vld [vmem:[%s190 + $0x18] sm:$0xff]
    %v2567 = vld [vmem:[%s190 + $0x20] sm:$0xff]
    %v2568 = vld [vmem:[%s190 + $0x28] sm:$0x1f]
    %v2569 = vstv %s2562
    %v2570 = vmul.f32 %v2563, %v2569
    %v2571 = vmul.f32 %v2564, %v2569
    %v2572 = vmul.f32 %v2565, %v2569
    %v2573 = vmul.f32 %v2566, %v2569
    %v2574 = vmul.f32 %v2567, %v2569
    %v2575 = vmul.f32 %v2568, %v2569
    %v2576 = vadd.f32 %v2556, %v2570
    %v2577 = vadd.f32 %v2557, %v2571
    %v2578 = vadd.f32 %v2558, %v2572
    %v2579 = vadd.f32 %v2559, %v2573
    %v2580 = vadd.f32 %v2560, %v2574
    %v2581 = vadd.f32 %v2561, %v2575
    %s2582 = sld [smem:[#allocation3 + $0x70]]
    %v2583 = vld [vmem:[%s197] sm:$0xff]
    %v2584 = vld [vmem:[%s197 + $0x8] sm:$0xff]
    %v2585 = vld [vmem:[%s197 + $0x10] sm:$0x1f]
    %v2586 = vld [vmem:[%s197 + $0x18] sm:$0xff]
    %v2587 = vld [vmem:[%s197 + $0x20] sm:$0xff]
    %v2588 = vld [vmem:[%s197 + $0x28] sm:$0x1f]
    %v2589 = vstv %s2582
    %v2590 = vmul.f32 %v2583, %v2589
    %v2591 = vmul.f32 %v2584, %v2589
    %v2592 = vmul.f32 %v2585, %v2589
    %v2593 = vmul.f32 %v2586, %v2589
    %v2594 = vmul.f32 %v2587, %v2589
    %v2595 = vmul.f32 %v2588, %v2589
    %v2596 = vadd.f32 %v2576, %v2590
    %v2597 = vadd.f32 %v2577, %v2591
    %v2598 = vadd.f32 %v2578, %v2592
    %v2599 = vadd.f32 %v2579, %v2593
    %v2600 = vadd.f32 %v2580, %v2594
    %v2601 = vadd.f32 %v2581, %v2595
    %s2602 = sld [smem:[#allocation3 + $0x71]]
    %v2603 = vld [vmem:[%s204] sm:$0xff]
    %v2604 = vld [vmem:[%s204 + $0x8] sm:$0xff]
    %v2605 = vld [vmem:[%s204 + $0x10] sm:$0x1f]
    %v2606 = vld [vmem:[%s204 + $0x18] sm:$0xff]
    %v2607 = vld [vmem:[%s204 + $0x20] sm:$0xff]
    %v2608 = vld [vmem:[%s204 + $0x28] sm:$0x1f]
    %v2609 = vstv %s2602
    %v2610 = vmul.f32 %v2603, %v2609
    %v2611 = vmul.f32 %v2604, %v2609
    %v2612 = vmul.f32 %v2605, %v2609
    %v2613 = vmul.f32 %v2606, %v2609
    %v2614 = vmul.f32 %v2607, %v2609
    %v2615 = vmul.f32 %v2608, %v2609
    %v2616 = vadd.f32 %v2596, %v2610
    %v2617 = vadd.f32 %v2597, %v2611
    %v2618 = vadd.f32 %v2598, %v2612
    %v2619 = vadd.f32 %v2599, %v2613
    %v2620 = vadd.f32 %v2600, %v2614
    %v2621 = vadd.f32 %v2601, %v2615
    %s2622 = sld [smem:[#allocation3 + $0x72]]
    %v2623 = vld [vmem:[%s211] sm:$0xff]
    %v2624 = vld [vmem:[%s211 + $0x8] sm:$0xff]
    %v2625 = vld [vmem:[%s211 + $0x10] sm:$0x1f]
    %v2626 = vld [vmem:[%s211 + $0x18] sm:$0xff]
    %v2627 = vld [vmem:[%s211 + $0x20] sm:$0xff]
    %v2628 = vld [vmem:[%s211 + $0x28] sm:$0x1f]
    %v2629 = vstv %s2622
    %v2630 = vmul.f32 %v2623, %v2629
    %v2631 = vmul.f32 %v2624, %v2629
    %v2632 = vmul.f32 %v2625, %v2629
    %v2633 = vmul.f32 %v2626, %v2629
    %v2634 = vmul.f32 %v2627, %v2629
    %v2635 = vmul.f32 %v2628, %v2629
    %v2636 = vadd.f32 %v2616, %v2630
    %v2637 = vadd.f32 %v2617, %v2631
    %v2638 = vadd.f32 %v2618, %v2632
    %v2639 = vadd.f32 %v2619, %v2633
    %v2640 = vadd.f32 %v2620, %v2634
    %v2641 = vadd.f32 %v2621, %v2635
    %s2642 = sld [smem:[#allocation3 + $0x73]]
    %v2643 = vld [vmem:[%s218] sm:$0xff]
    %v2644 = vld [vmem:[%s218 + $0x8] sm:$0xff]
    %v2645 = vld [vmem:[%s218 + $0x10] sm:$0x1f]
    %v2646 = vld [vmem:[%s218 + $0x18] sm:$0xff]
    %v2647 = vld [vmem:[%s218 + $0x20] sm:$0xff]
    %v2648 = vld [vmem:[%s218 + $0x28] sm:$0x1f]
    %v2649 = vstv %s2642
    %v2650 = vmul.f32 %v2643, %v2649
    %v2651 = vmul.f32 %v2644, %v2649
    %v2652 = vmul.f32 %v2645, %v2649
    %v2653 = vmul.f32 %v2646, %v2649
    %v2654 = vmul.f32 %v2647, %v2649
    %v2655 = vmul.f32 %v2648, %v2649
    %v2656 = vadd.f32 %v2636, %v2650
    %v2657 = vadd.f32 %v2637, %v2651
    %v2658 = vadd.f32 %v2638, %v2652
    %v2659 = vadd.f32 %v2639, %v2653
    %v2660 = vadd.f32 %v2640, %v2654
    %v2661 = vadd.f32 %v2641, %v2655
    %s2662 = sld [smem:[#allocation3 + $0x74]]
    %v2663 = vld [vmem:[%s226] sm:$0xff]
    %v2664 = vld [vmem:[%s226 + $0x8] sm:$0xff]
    %v2665 = vld [vmem:[%s226 + $0x10] sm:$0x1f]
    %v2666 = vld [vmem:[%s226 + $0x18] sm:$0xff]
    %v2667 = vld [vmem:[%s226 + $0x20] sm:$0xff]
    %v2668 = vld [vmem:[%s226 + $0x28] sm:$0x1f]
    %v2669 = vstv %s2662
    %v2670 = vmul.f32 %v2663, %v2669
    %v2671 = vmul.f32 %v2664, %v2669
    %v2672 = vmul.f32 %v2665, %v2669
    %v2673 = vmul.f32 %v2666, %v2669
    %v2674 = vmul.f32 %v2667, %v2669
    %v2675 = vmul.f32 %v2668, %v2669
    %v2676 = vadd.f32 %v2656, %v2670
    %v2677 = vadd.f32 %v2657, %v2671
    %v2678 = vadd.f32 %v2658, %v2672
    %v2679 = vadd.f32 %v2659, %v2673
    %v2680 = vadd.f32 %v2660, %v2674
    %v2681 = vadd.f32 %v2661, %v2675
    %s2682 = sld [smem:[#allocation3 + $0x75]]
    %v2683 = vld [vmem:[%s233] sm:$0xff]
    %v2684 = vld [vmem:[%s233 + $0x8] sm:$0xff]
    %v2685 = vld [vmem:[%s233 + $0x10] sm:$0x1f]
    %v2686 = vld [vmem:[%s233 + $0x18] sm:$0xff]
    %v2687 = vld [vmem:[%s233 + $0x20] sm:$0xff]
    %v2688 = vld [vmem:[%s233 + $0x28] sm:$0x1f]
    %v2689 = vstv %s2682
    %v2690 = vmul.f32 %v2683, %v2689
    %v2691 = vmul.f32 %v2684, %v2689
    %v2692 = vmul.f32 %v2685, %v2689
    %v2693 = vmul.f32 %v2686, %v2689
    %v2694 = vmul.f32 %v2687, %v2689
    %v2695 = vmul.f32 %v2688, %v2689
    %v2696 = vadd.f32 %v2676, %v2690
    %v2697 = vadd.f32 %v2677, %v2691
    %v2698 = vadd.f32 %v2678, %v2692
    %v2699 = vadd.f32 %v2679, %v2693
    %v2700 = vadd.f32 %v2680, %v2694
    %v2701 = vadd.f32 %v2681, %v2695
    %s2702 = sld [smem:[#allocation3 + $0x76]]
    %v2703 = vld [vmem:[%s240] sm:$0xff]
    %v2704 = vld [vmem:[%s240 + $0x8] sm:$0xff]
    %v2705 = vld [vmem:[%s240 + $0x10] sm:$0x1f]
    %v2706 = vld [vmem:[%s240 + $0x18] sm:$0xff]
    %v2707 = vld [vmem:[%s240 + $0x20] sm:$0xff]
    %v2708 = vld [vmem:[%s240 + $0x28] sm:$0x1f]
    %v2709 = vstv %s2702
    %v2710 = vmul.f32 %v2703, %v2709
    %v2711 = vmul.f32 %v2704, %v2709
    %v2712 = vmul.f32 %v2705, %v2709
    %v2713 = vmul.f32 %v2706, %v2709
    %v2714 = vmul.f32 %v2707, %v2709
    %v2715 = vmul.f32 %v2708, %v2709
    %v2716 = vadd.f32 %v2696, %v2710
    %v2717 = vadd.f32 %v2697, %v2711
    %v2718 = vadd.f32 %v2698, %v2712
    %v2719 = vadd.f32 %v2699, %v2713
    %v2720 = vadd.f32 %v2700, %v2714
    %v2721 = vadd.f32 %v2701, %v2715
    %s2722 = sld [smem:[#allocation3 + $0x77]]
    %v2723 = vld [vmem:[%s247] sm:$0xff]
    %v2724 = vld [vmem:[%s247 + $0x8] sm:$0xff]
    %v2725 = vld [vmem:[%s247 + $0x10] sm:$0x1f]
    %v2726 = vld [vmem:[%s247 + $0x18] sm:$0xff]
    %v2727 = vld [vmem:[%s247 + $0x20] sm:$0xff]
    %v2728 = vld [vmem:[%s247 + $0x28] sm:$0x1f]
    %v2729 = vstv %s2722
    %v2730 = vmul.f32 %v2723, %v2729
    %v2731 = vmul.f32 %v2724, %v2729
    %v2732 = vmul.f32 %v2725, %v2729
    %v2733 = vmul.f32 %v2726, %v2729
    %v2734 = vmul.f32 %v2727, %v2729
    %v2735 = vmul.f32 %v2728, %v2729
    %v2736 = vadd.f32 %v2716, %v2730
    %v2737 = vadd.f32 %v2717, %v2731
    %v2738 = vadd.f32 %v2718, %v2732
    %v2739 = vadd.f32 %v2719, %v2733
    %v2740 = vadd.f32 %v2720, %v2734
    %v2741 = vadd.f32 %v2721, %v2735
    %vm2742 = vcmp.gt.f32.partialorder %v2736, 0.0
    %vm2743 = vcmp.gt.f32.partialorder %v2737, 0.0
    %vm2744 = vcmp.gt.f32.partialorder %v2738, 0.0
    %vm2745 = vcmp.gt.f32.partialorder %v2739, 0.0
    %vm2746 = vcmp.gt.f32.partialorder %v2740, 0.0
    %vm2747 = vcmp.gt.f32.partialorder %v2741, 0.0
    %v2748 = vmul.f32 %v2736, -0.1
    %v2749 = vmul.f32 %v2737, -0.1
    %v2750 = vmul.f32 %v2738, -0.1
    %v2751 = vmul.f32 %v2739, -0.1
    %v2752 = vmul.f32 %v2740, -0.1
    %v2753 = vmul.f32 %v2741, -0.1
    %v2754 = vsel %vm2742, %v2736, %v2748
    %v2755 = vsel %vm2743, %v2737, %v2749
    %v2756 = vsel %vm2744, %v2738, %v2750
    %v2757 = vsel %vm2745, %v2739, %v2751
    %v2758 = vsel %vm2746, %v2740, %v2752
    %v2759 = vsel %vm2747, %v2741, %v2753
    %s2760 = scalar_lea.vmem %s2, 120
    %2761 = vst.msk [vmem:[%s2760] sm:$0xff] %vm30, %v2754
    %2762 = vst.msk [vmem:[%s2760 + $0x8] sm:$0xff] %vm30, %v2755
    %2763 = vst.msk [vmem:[%s2760 + $0x10] sm:$0x1f] %vm33, %v2756
    %2764 = vst.msk [vmem:[%s2760 + $0x108] sm:$0xff] %vm30, %v2757
    %2765 = vst.msk [vmem:[%s2760 + $0x110] sm:$0xff] %vm30, %v2758
    %2766 = vst.msk [vmem:[%s2760 + $0x118] sm:$0x1f] %vm33, %v2759
    %s2767 = sld [smem:[#allocation3 + $0x78]]
    %v2768 = vld [vmem:[#allocation2] sm:$0xff]
    %v2769 = vld [vmem:[#allocation2 + $0x8] sm:$0xff]
    %v2770 = vld [vmem:[#allocation2 + $0x10] sm:$0x1f]
    %v2771 = vld [vmem:[#allocation2 + $0x18] sm:$0xff]
    %v2772 = vld [vmem:[#allocation2 + $0x20] sm:$0xff]
    %v2773 = vld [vmem:[#allocation2 + $0x28] sm:$0x1f]
    %v2774 = vstv %s2767
    %v2775 = vmul.f32 %v2768, %v2774
    %v2776 = vmul.f32 %v2769, %v2774
    %v2777 = vmul.f32 %v2770, %v2774
    %v2778 = vmul.f32 %v2771, %v2774
    %v2779 = vmul.f32 %v2772, %v2774
    %v2780 = vmul.f32 %v2773, %v2774
    %s2781 = sld [smem:[#allocation3 + $0x79]]
    %v2782 = vld [vmem:[%s62] sm:$0xff]
    %v2783 = vld [vmem:[%s62 + $0x8] sm:$0xff]
    %v2784 = vld [vmem:[%s62 + $0x10] sm:$0x1f]
    %v2785 = vld [vmem:[%s62 + $0x18] sm:$0xff]
    %v2786 = vld [vmem:[%s62 + $0x20] sm:$0xff]
    %v2787 = vld [vmem:[%s62 + $0x28] sm:$0x1f]
    %v2788 = vstv %s2781
    %v2789 = vmul.f32 %v2782, %v2788
    %v2790 = vmul.f32 %v2783, %v2788
    %v2791 = vmul.f32 %v2784, %v2788
    %v2792 = vmul.f32 %v2785, %v2788
    %v2793 = vmul.f32 %v2786, %v2788
    %v2794 = vmul.f32 %v2787, %v2788
    %v2795 = vadd.f32 %v2775, %v2789
    %v2796 = vadd.f32 %v2776, %v2790
    %v2797 = vadd.f32 %v2777, %v2791
    %v2798 = vadd.f32 %v2778, %v2792
    %v2799 = vadd.f32 %v2779, %v2793
    %v2800 = vadd.f32 %v2780, %v2794
    %s2801 = sld [smem:[#allocation3 + $0x7a]]
    %v2802 = vld [vmem:[%s87] sm:$0xff]
    %v2803 = vld [vmem:[%s87 + $0x8] sm:$0xff]
    %v2804 = vld [vmem:[%s87 + $0x10] sm:$0x1f]
    %v2805 = vld [vmem:[%s87 + $0x18] sm:$0xff]
    %v2806 = vld [vmem:[%s87 + $0x20] sm:$0xff]
    %v2807 = vld [vmem:[%s87 + $0x28] sm:$0x1f]
    %v2808 = vstv %s2801
    %v2809 = vmul.f32 %v2802, %v2808
    %v2810 = vmul.f32 %v2803, %v2808
    %v2811 = vmul.f32 %v2804, %v2808
    %v2812 = vmul.f32 %v2805, %v2808
    %v2813 = vmul.f32 %v2806, %v2808
    %v2814 = vmul.f32 %v2807, %v2808
    %v2815 = vadd.f32 %v2795, %v2809
    %v2816 = vadd.f32 %v2796, %v2810
    %v2817 = vadd.f32 %v2797, %v2811
    %v2818 = vadd.f32 %v2798, %v2812
    %v2819 = vadd.f32 %v2799, %v2813
    %v2820 = vadd.f32 %v2800, %v2814
    %s2821 = sld [smem:[#allocation3 + $0x7b]]
    %v2822 = vld [vmem:[%s112] sm:$0xff]
    %v2823 = vld [vmem:[%s112 + $0x8] sm:$0xff]
    %v2824 = vld [vmem:[%s112 + $0x10] sm:$0x1f]
    %v2825 = vld [vmem:[%s112 + $0x18] sm:$0xff]
    %v2826 = vld [vmem:[%s112 + $0x20] sm:$0xff]
    %v2827 = vld [vmem:[%s112 + $0x28] sm:$0x1f]
    %v2828 = vstv %s2821
    %v2829 = vmul.f32 %v2822, %v2828
    %v2830 = vmul.f32 %v2823, %v2828
    %v2831 = vmul.f32 %v2824, %v2828
    %v2832 = vmul.f32 %v2825, %v2828
    %v2833 = vmul.f32 %v2826, %v2828
    %v2834 = vmul.f32 %v2827, %v2828
    %v2835 = vadd.f32 %v2815, %v2829
    %v2836 = vadd.f32 %v2816, %v2830
    %v2837 = vadd.f32 %v2817, %v2831
    %v2838 = vadd.f32 %v2818, %v2832
    %v2839 = vadd.f32 %v2819, %v2833
    %v2840 = vadd.f32 %v2820, %v2834
    %s2841 = sld [smem:[#allocation3 + $0x7c]]
    %v2842 = vld [vmem:[%s137] sm:$0xff]
    %v2843 = vld [vmem:[%s137 + $0x8] sm:$0xff]
    %v2844 = vld [vmem:[%s137 + $0x10] sm:$0x1f]
    %v2845 = vld [vmem:[%s137 + $0x18] sm:$0xff]
    %v2846 = vld [vmem:[%s137 + $0x20] sm:$0xff]
    %v2847 = vld [vmem:[%s137 + $0x28] sm:$0x1f]
    %v2848 = vstv %s2841
    %v2849 = vmul.f32 %v2842, %v2848
    %v2850 = vmul.f32 %v2843, %v2848
    %v2851 = vmul.f32 %v2844, %v2848
    %v2852 = vmul.f32 %v2845, %v2848
    %v2853 = vmul.f32 %v2846, %v2848
    %v2854 = vmul.f32 %v2847, %v2848
    %v2855 = vadd.f32 %v2835, %v2849
    %v2856 = vadd.f32 %v2836, %v2850
    %v2857 = vadd.f32 %v2837, %v2851
    %v2858 = vadd.f32 %v2838, %v2852
    %v2859 = vadd.f32 %v2839, %v2853
    %v2860 = vadd.f32 %v2840, %v2854
    %s2861 = sld [smem:[#allocation3 + $0x7d]]
    %v2862 = vld [vmem:[%s144] sm:$0xff]
    %v2863 = vld [vmem:[%s144 + $0x8] sm:$0xff]
    %v2864 = vld [vmem:[%s144 + $0x10] sm:$0x1f]
    %v2865 = vld [vmem:[%s144 + $0x18] sm:$0xff]
    %v2866 = vld [vmem:[%s144 + $0x20] sm:$0xff]
    %v2867 = vld [vmem:[%s144 + $0x28] sm:$0x1f]
    %v2868 = vstv %s2861
    %v2869 = vmul.f32 %v2862, %v2868
    %v2870 = vmul.f32 %v2863, %v2868
    %v2871 = vmul.f32 %v2864, %v2868
    %v2872 = vmul.f32 %v2865, %v2868
    %v2873 = vmul.f32 %v2866, %v2868
    %v2874 = vmul.f32 %v2867, %v2868
    %v2875 = vadd.f32 %v2855, %v2869
    %v2876 = vadd.f32 %v2856, %v2870
    %v2877 = vadd.f32 %v2857, %v2871
    %v2878 = vadd.f32 %v2858, %v2872
    %v2879 = vadd.f32 %v2859, %v2873
    %v2880 = vadd.f32 %v2860, %v2874
    %s2881 = sld [smem:[#allocation3 + $0x7e]]
    %v2882 = vld [vmem:[%s153] sm:$0xff]
    %v2883 = vld [vmem:[%s153 + $0x8] sm:$0xff]
    %v2884 = vld [vmem:[%s153 + $0x10] sm:$0x1f]
    %v2885 = vld [vmem:[%s153 + $0x18] sm:$0xff]
    %v2886 = vld [vmem:[%s153 + $0x20] sm:$0xff]
    %v2887 = vld [vmem:[%s153 + $0x28] sm:$0x1f]
    %v2888 = vstv %s2881
    %v2889 = vmul.f32 %v2882, %v2888
    %v2890 = vmul.f32 %v2883, %v2888
    %v2891 = vmul.f32 %v2884, %v2888
    %v2892 = vmul.f32 %v2885, %v2888
    %v2893 = vmul.f32 %v2886, %v2888
    %v2894 = vmul.f32 %v2887, %v2888
    %v2895 = vadd.f32 %v2875, %v2889
    %v2896 = vadd.f32 %v2876, %v2890
    %v2897 = vadd.f32 %v2877, %v2891
    %v2898 = vadd.f32 %v2878, %v2892
    %v2899 = vadd.f32 %v2879, %v2893
    %v2900 = vadd.f32 %v2880, %v2894
    %s2901 = sld [smem:[#allocation3 + $0x7f]]
    %v2902 = vld [vmem:[%s160] sm:$0xff]
    %v2903 = vld [vmem:[%s160 + $0x8] sm:$0xff]
    %v2904 = vld [vmem:[%s160 + $0x10] sm:$0x1f]
    %v2905 = vld [vmem:[%s160 + $0x18] sm:$0xff]
    %v2906 = vld [vmem:[%s160 + $0x20] sm:$0xff]
    %v2907 = vld [vmem:[%s160 + $0x28] sm:$0x1f]
    %v2908 = vstv %s2901
    %v2909 = vmul.f32 %v2902, %v2908
    %v2910 = vmul.f32 %v2903, %v2908
    %v2911 = vmul.f32 %v2904, %v2908
    %v2912 = vmul.f32 %v2905, %v2908
    %v2913 = vmul.f32 %v2906, %v2908
    %v2914 = vmul.f32 %v2907, %v2908
    %v2915 = vadd.f32 %v2895, %v2909
    %v2916 = vadd.f32 %v2896, %v2910
    %v2917 = vadd.f32 %v2897, %v2911
    %v2918 = vadd.f32 %v2898, %v2912
    %v2919 = vadd.f32 %v2899, %v2913
    %v2920 = vadd.f32 %v2900, %v2914
    %s2921 = sld [smem:[#allocation3 + $0x80]]
    %v2922 = vld [vmem:[%s167] sm:$0xff]
    %v2923 = vld [vmem:[%s167 + $0x8] sm:$0xff]
    %v2924 = vld [vmem:[%s167 + $0x10] sm:$0x1f]
    %v2925 = vld [vmem:[%s167 + $0x18] sm:$0xff]
    %v2926 = vld [vmem:[%s167 + $0x20] sm:$0xff]
    %v2927 = vld [vmem:[%s167 + $0x28] sm:$0x1f]
    %v2928 = vstv %s2921
    %v2929 = vmul.f32 %v2922, %v2928
    %v2930 = vmul.f32 %v2923, %v2928
    %v2931 = vmul.f32 %v2924, %v2928
    %v2932 = vmul.f32 %v2925, %v2928
    %v2933 = vmul.f32 %v2926, %v2928
    %v2934 = vmul.f32 %v2927, %v2928
    %v2935 = vadd.f32 %v2915, %v2929
    %v2936 = vadd.f32 %v2916, %v2930
    %v2937 = vadd.f32 %v2917, %v2931
    %v2938 = vadd.f32 %v2918, %v2932
    %v2939 = vadd.f32 %v2919, %v2933
    %v2940 = vadd.f32 %v2920, %v2934
    %s2941 = sld [smem:[#allocation3 + $0x81]]
    %v2942 = vld [vmem:[%s174] sm:$0xff]
    %v2943 = vld [vmem:[%s174 + $0x8] sm:$0xff]
    %v2944 = vld [vmem:[%s174 + $0x10] sm:$0x1f]
    %v2945 = vld [vmem:[%s174 + $0x18] sm:$0xff]
    %v2946 = vld [vmem:[%s174 + $0x20] sm:$0xff]
    %v2947 = vld [vmem:[%s174 + $0x28] sm:$0x1f]
    %v2948 = vstv %s2941
    %v2949 = vmul.f32 %v2942, %v2948
    %v2950 = vmul.f32 %v2943, %v2948
    %v2951 = vmul.f32 %v2944, %v2948
    %v2952 = vmul.f32 %v2945, %v2948
    %v2953 = vmul.f32 %v2946, %v2948
    %v2954 = vmul.f32 %v2947, %v2948
    %v2955 = vadd.f32 %v2935, %v2949
    %v2956 = vadd.f32 %v2936, %v2950
    %v2957 = vadd.f32 %v2937, %v2951
    %v2958 = vadd.f32 %v2938, %v2952
    %v2959 = vadd.f32 %v2939, %v2953
    %v2960 = vadd.f32 %v2940, %v2954
    %s2961 = sld [smem:[#allocation3 + $0x82]]
    %v2962 = vld [vmem:[%s181] sm:$0xff]
    %v2963 = vld [vmem:[%s181 + $0x8] sm:$0xff]
    %v2964 = vld [vmem:[%s181 + $0x10] sm:$0x1f]
    %v2965 = vld [vmem:[%s181 + $0x18] sm:$0xff]
    %v2966 = vld [vmem:[%s181 + $0x20] sm:$0xff]
    %v2967 = vld [vmem:[%s181 + $0x28] sm:$0x1f]
    %v2968 = vstv %s2961
    %v2969 = vmul.f32 %v2962, %v2968
    %v2970 = vmul.f32 %v2963, %v2968
    %v2971 = vmul.f32 %v2964, %v2968
    %v2972 = vmul.f32 %v2965, %v2968
    %v2973 = vmul.f32 %v2966, %v2968
    %v2974 = vmul.f32 %v2967, %v2968
    %v2975 = vadd.f32 %v2955, %v2969
    %v2976 = vadd.f32 %v2956, %v2970
    %v2977 = vadd.f32 %v2957, %v2971
    %v2978 = vadd.f32 %v2958, %v2972
    %v2979 = vadd.f32 %v2959, %v2973
    %v2980 = vadd.f32 %v2960, %v2974
    %s2981 = sld [smem:[#allocation3 + $0x83]]
    %v2982 = vld [vmem:[%s190] sm:$0xff]
    %v2983 = vld [vmem:[%s190 + $0x8] sm:$0xff]
    %v2984 = vld [vmem:[%s190 + $0x10] sm:$0x1f]
    %v2985 = vld [vmem:[%s190 + $0x18] sm:$0xff]
    %v2986 = vld [vmem:[%s190 + $0x20] sm:$0xff]
    %v2987 = vld [vmem:[%s190 + $0x28] sm:$0x1f]
    %v2988 = vstv %s2981
    %v2989 = vmul.f32 %v2982, %v2988
    %v2990 = vmul.f32 %v2983, %v2988
    %v2991 = vmul.f32 %v2984, %v2988
    %v2992 = vmul.f32 %v2985, %v2988
    %v2993 = vmul.f32 %v2986, %v2988
    %v2994 = vmul.f32 %v2987, %v2988
    %v2995 = vadd.f32 %v2975, %v2989
    %v2996 = vadd.f32 %v2976, %v2990
    %v2997 = vadd.f32 %v2977, %v2991
    %v2998 = vadd.f32 %v2978, %v2992
    %v2999 = vadd.f32 %v2979, %v2993
    %v3000 = vadd.f32 %v2980, %v2994
    %s3001 = sld [smem:[#allocation3 + $0x84]]
    %v3002 = vld [vmem:[%s197] sm:$0xff]
    %v3003 = vld [vmem:[%s197 + $0x8] sm:$0xff]
    %v3004 = vld [vmem:[%s197 + $0x10] sm:$0x1f]
    %v3005 = vld [vmem:[%s197 + $0x18] sm:$0xff]
    %v3006 = vld [vmem:[%s197 + $0x20] sm:$0xff]
    %v3007 = vld [vmem:[%s197 + $0x28] sm:$0x1f]
    %v3008 = vstv %s3001
    %v3009 = vmul.f32 %v3002, %v3008
    %v3010 = vmul.f32 %v3003, %v3008
    %v3011 = vmul.f32 %v3004, %v3008
    %v3012 = vmul.f32 %v3005, %v3008
    %v3013 = vmul.f32 %v3006, %v3008
    %v3014 = vmul.f32 %v3007, %v3008
    %v3015 = vadd.f32 %v2995, %v3009
    %v3016 = vadd.f32 %v2996, %v3010
    %v3017 = vadd.f32 %v2997, %v3011
    %v3018 = vadd.f32 %v2998, %v3012
    %v3019 = vadd.f32 %v2999, %v3013
    %v3020 = vadd.f32 %v3000, %v3014
    %s3021 = sld [smem:[#allocation3 + $0x85]]
    %v3022 = vld [vmem:[%s204] sm:$0xff]
    %v3023 = vld [vmem:[%s204 + $0x8] sm:$0xff]
    %v3024 = vld [vmem:[%s204 + $0x10] sm:$0x1f]
    %v3025 = vld [vmem:[%s204 + $0x18] sm:$0xff]
    %v3026 = vld [vmem:[%s204 + $0x20] sm:$0xff]
    %v3027 = vld [vmem:[%s204 + $0x28] sm:$0x1f]
    %v3028 = vstv %s3021
    %v3029 = vmul.f32 %v3022, %v3028
    %v3030 = vmul.f32 %v3023, %v3028
    %v3031 = vmul.f32 %v3024, %v3028
    %v3032 = vmul.f32 %v3025, %v3028
    %v3033 = vmul.f32 %v3026, %v3028
    %v3034 = vmul.f32 %v3027, %v3028
    %v3035 = vadd.f32 %v3015, %v3029
    %v3036 = vadd.f32 %v3016, %v3030
    %v3037 = vadd.f32 %v3017, %v3031
    %v3038 = vadd.f32 %v3018, %v3032
    %v3039 = vadd.f32 %v3019, %v3033
    %v3040 = vadd.f32 %v3020, %v3034
    %s3041 = sld [smem:[#allocation3 + $0x86]]
    %v3042 = vld [vmem:[%s211] sm:$0xff]
    %v3043 = vld [vmem:[%s211 + $0x8] sm:$0xff]
    %v3044 = vld [vmem:[%s211 + $0x10] sm:$0x1f]
    %v3045 = vld [vmem:[%s211 + $0x18] sm:$0xff]
    %v3046 = vld [vmem:[%s211 + $0x20] sm:$0xff]
    %v3047 = vld [vmem:[%s211 + $0x28] sm:$0x1f]
    %v3048 = vstv %s3041
    %v3049 = vmul.f32 %v3042, %v3048
    %v3050 = vmul.f32 %v3043, %v3048
    %v3051 = vmul.f32 %v3044, %v3048
    %v3052 = vmul.f32 %v3045, %v3048
    %v3053 = vmul.f32 %v3046, %v3048
    %v3054 = vmul.f32 %v3047, %v3048
    %v3055 = vadd.f32 %v3035, %v3049
    %v3056 = vadd.f32 %v3036, %v3050
    %v3057 = vadd.f32 %v3037, %v3051
    %v3058 = vadd.f32 %v3038, %v3052
    %v3059 = vadd.f32 %v3039, %v3053
    %v3060 = vadd.f32 %v3040, %v3054
    %s3061 = sld [smem:[#allocation3 + $0x87]]
    %v3062 = vld [vmem:[%s218] sm:$0xff]
    %v3063 = vld [vmem:[%s218 + $0x8] sm:$0xff]
    %v3064 = vld [vmem:[%s218 + $0x10] sm:$0x1f]
    %v3065 = vld [vmem:[%s218 + $0x18] sm:$0xff]
    %v3066 = vld [vmem:[%s218 + $0x20] sm:$0xff]
    %v3067 = vld [vmem:[%s218 + $0x28] sm:$0x1f]
    %v3068 = vstv %s3061
    %v3069 = vmul.f32 %v3062, %v3068
    %v3070 = vmul.f32 %v3063, %v3068
    %v3071 = vmul.f32 %v3064, %v3068
    %v3072 = vmul.f32 %v3065, %v3068
    %v3073 = vmul.f32 %v3066, %v3068
    %v3074 = vmul.f32 %v3067, %v3068
    %v3075 = vadd.f32 %v3055, %v3069
    %v3076 = vadd.f32 %v3056, %v3070
    %v3077 = vadd.f32 %v3057, %v3071
    %v3078 = vadd.f32 %v3058, %v3072
    %v3079 = vadd.f32 %v3059, %v3073
    %v3080 = vadd.f32 %v3060, %v3074
    %s3081 = sld [smem:[#allocation3 + $0x88]]
    %v3082 = vld [vmem:[%s226] sm:$0xff]
    %v3083 = vld [vmem:[%s226 + $0x8] sm:$0xff]
    %v3084 = vld [vmem:[%s226 + $0x10] sm:$0x1f]
    %v3085 = vld [vmem:[%s226 + $0x18] sm:$0xff]
    %v3086 = vld [vmem:[%s226 + $0x20] sm:$0xff]
    %v3087 = vld [vmem:[%s226 + $0x28] sm:$0x1f]
    %v3088 = vstv %s3081
    %v3089 = vmul.f32 %v3082, %v3088
    %v3090 = vmul.f32 %v3083, %v3088
    %v3091 = vmul.f32 %v3084, %v3088
    %v3092 = vmul.f32 %v3085, %v3088
    %v3093 = vmul.f32 %v3086, %v3088
    %v3094 = vmul.f32 %v3087, %v3088
    %v3095 = vadd.f32 %v3075, %v3089
    %v3096 = vadd.f32 %v3076, %v3090
    %v3097 = vadd.f32 %v3077, %v3091
    %v3098 = vadd.f32 %v3078, %v3092
    %v3099 = vadd.f32 %v3079, %v3093
    %v3100 = vadd.f32 %v3080, %v3094
    %s3101 = sld [smem:[#allocation3 + $0x89]]
    %v3102 = vld [vmem:[%s233] sm:$0xff]
    %v3103 = vld [vmem:[%s233 + $0x8] sm:$0xff]
    %v3104 = vld [vmem:[%s233 + $0x10] sm:$0x1f]
    %v3105 = vld [vmem:[%s233 + $0x18] sm:$0xff]
    %v3106 = vld [vmem:[%s233 + $0x20] sm:$0xff]
    %v3107 = vld [vmem:[%s233 + $0x28] sm:$0x1f]
    %v3108 = vstv %s3101
    %v3109 = vmul.f32 %v3102, %v3108
    %v3110 = vmul.f32 %v3103, %v3108
    %v3111 = vmul.f32 %v3104, %v3108
    %v3112 = vmul.f32 %v3105, %v3108
    %v3113 = vmul.f32 %v3106, %v3108
    %v3114 = vmul.f32 %v3107, %v3108
    %v3115 = vadd.f32 %v3095, %v3109
    %v3116 = vadd.f32 %v3096, %v3110
    %v3117 = vadd.f32 %v3097, %v3111
    %v3118 = vadd.f32 %v3098, %v3112
    %v3119 = vadd.f32 %v3099, %v3113
    %v3120 = vadd.f32 %v3100, %v3114
    %s3121 = sld [smem:[#allocation3 + $0x8a]]
    %v3122 = vld [vmem:[%s240] sm:$0xff]
    %v3123 = vld [vmem:[%s240 + $0x8] sm:$0xff]
    %v3124 = vld [vmem:[%s240 + $0x10] sm:$0x1f]
    %v3125 = vld [vmem:[%s240 + $0x18] sm:$0xff]
    %v3126 = vld [vmem:[%s240 + $0x20] sm:$0xff]
    %v3127 = vld [vmem:[%s240 + $0x28] sm:$0x1f]
    %v3128 = vstv %s3121
    %v3129 = vmul.f32 %v3122, %v3128
    %v3130 = vmul.f32 %v3123, %v3128
    %v3131 = vmul.f32 %v3124, %v3128
    %v3132 = vmul.f32 %v3125, %v3128
    %v3133 = vmul.f32 %v3126, %v3128
    %v3134 = vmul.f32 %v3127, %v3128
    %v3135 = vadd.f32 %v3115, %v3129
    %v3136 = vadd.f32 %v3116, %v3130
    %v3137 = vadd.f32 %v3117, %v3131
    %v3138 = vadd.f32 %v3118, %v3132
    %v3139 = vadd.f32 %v3119, %v3133
    %v3140 = vadd.f32 %v3120, %v3134
    %s3141 = sld [smem:[#allocation3 + $0x8b]]
    %v3142 = vld [vmem:[%s247] sm:$0xff]
    %v3143 = vld [vmem:[%s247 + $0x8] sm:$0xff]
    %v3144 = vld [vmem:[%s247 + $0x10] sm:$0x1f]
    %v3145 = vld [vmem:[%s247 + $0x18] sm:$0xff]
    %v3146 = vld [vmem:[%s247 + $0x20] sm:$0xff]
    %v3147 = vld [vmem:[%s247 + $0x28] sm:$0x1f]
    %v3148 = vstv %s3141
    %v3149 = vmul.f32 %v3142, %v3148
    %v3150 = vmul.f32 %v3143, %v3148
    %v3151 = vmul.f32 %v3144, %v3148
    %v3152 = vmul.f32 %v3145, %v3148
    %v3153 = vmul.f32 %v3146, %v3148
    %v3154 = vmul.f32 %v3147, %v3148
    %v3155 = vadd.f32 %v3135, %v3149
    %v3156 = vadd.f32 %v3136, %v3150
    %v3157 = vadd.f32 %v3137, %v3151
    %v3158 = vadd.f32 %v3138, %v3152
    %v3159 = vadd.f32 %v3139, %v3153
    %v3160 = vadd.f32 %v3140, %v3154
    %vm3161 = vcmp.gt.f32.partialorder %v3155, 0.0
    %vm3162 = vcmp.gt.f32.partialorder %v3156, 0.0
    %vm3163 = vcmp.gt.f32.partialorder %v3157, 0.0
    %vm3164 = vcmp.gt.f32.partialorder %v3158, 0.0
    %vm3165 = vcmp.gt.f32.partialorder %v3159, 0.0
    %vm3166 = vcmp.gt.f32.partialorder %v3160, 0.0
    %v3167 = vmul.f32 %v3155, -0.1
    %v3168 = vmul.f32 %v3156, -0.1
    %v3169 = vmul.f32 %v3157, -0.1
    %v3170 = vmul.f32 %v3158, -0.1
    %v3171 = vmul.f32 %v3159, -0.1
    %v3172 = vmul.f32 %v3160, -0.1
    %v3173 = vsel %vm3161, %v3155, %v3167
    %v3174 = vsel %vm3162, %v3156, %v3168
    %v3175 = vsel %vm3163, %v3157, %v3169
    %v3176 = vsel %vm3164, %v3158, %v3170
    %v3177 = vsel %vm3165, %v3159, %v3171
    %v3178 = vsel %vm3166, %v3160, %v3172
    %s3179 = scalar_lea.vmem %s2, 144
    %3180 = vst.msk [vmem:[%s3179] sm:$0xff] %vm30, %v3173
    %3181 = vst.msk [vmem:[%s3179 + $0x8] sm:$0xff] %vm30, %v3174
    %3182 = vst.msk [vmem:[%s3179 + $0x10] sm:$0x1f] %vm33, %v3175
    %3183 = vst.msk [vmem:[%s3179 + $0x108] sm:$0xff] %vm30, %v3176
    %3184 = vst.msk [vmem:[%s3179 + $0x110] sm:$0xff] %vm30, %v3177
    %3185 = vst.msk [vmem:[%s3179 + $0x118] sm:$0x1f] %vm33, %v3178
    %s3186 = sld [smem:[#allocation3 + $0x8c]]
    %v3187 = vld [vmem:[#allocation2] sm:$0xff]
    %v3188 = vld [vmem:[#allocation2 + $0x8] sm:$0xff]
    %v3189 = vld [vmem:[#allocation2 + $0x10] sm:$0x1f]
    %v3190 = vld [vmem:[#allocation2 + $0x18] sm:$0xff]
    %v3191 = vld [vmem:[#allocation2 + $0x20] sm:$0xff]
    %v3192 = vld [vmem:[#allocation2 + $0x28] sm:$0x1f]
    %v3193 = vstv %s3186
    %v3194 = vmul.f32 %v3187, %v3193
    %v3195 = vmul.f32 %v3188, %v3193
    %v3196 = vmul.f32 %v3189, %v3193
    %v3197 = vmul.f32 %v3190, %v3193
    %v3198 = vmul.f32 %v3191, %v3193
    %v3199 = vmul.f32 %v3192, %v3193
    %s3200 = sld [smem:[#allocation3 + $0x8d]]
    %v3201 = vld [vmem:[%s62] sm:$0xff]
    %v3202 = vld [vmem:[%s62 + $0x8] sm:$0xff]
    %v3203 = vld [vmem:[%s62 + $0x10] sm:$0x1f]
    %v3204 = vld [vmem:[%s62 + $0x18] sm:$0xff]
    %v3205 = vld [vmem:[%s62 + $0x20] sm:$0xff]
    %v3206 = vld [vmem:[%s62 + $0x28] sm:$0x1f]
    %v3207 = vstv %s3200
    %v3208 = vmul.f32 %v3201, %v3207
    %v3209 = vmul.f32 %v3202, %v3207
    %v3210 = vmul.f32 %v3203, %v3207
    %v3211 = vmul.f32 %v3204, %v3207
    %v3212 = vmul.f32 %v3205, %v3207
    %v3213 = vmul.f32 %v3206, %v3207
    %v3214 = vadd.f32 %v3194, %v3208
    %v3215 = vadd.f32 %v3195, %v3209
    %v3216 = vadd.f32 %v3196, %v3210
    %v3217 = vadd.f32 %v3197, %v3211
    %v3218 = vadd.f32 %v3198, %v3212
    %v3219 = vadd.f32 %v3199, %v3213
    %s3220 = sld [smem:[#allocation3 + $0x8e]]
    %v3221 = vld [vmem:[%s87] sm:$0xff]
    %v3222 = vld [vmem:[%s87 + $0x8] sm:$0xff]
    %v3223 = vld [vmem:[%s87 + $0x10] sm:$0x1f]
    %v3224 = vld [vmem:[%s87 + $0x18] sm:$0xff]
    %v3225 = vld [vmem:[%s87 + $0x20] sm:$0xff]
    %v3226 = vld [vmem:[%s87 + $0x28] sm:$0x1f]
    %v3227 = vstv %s3220
    %v3228 = vmul.f32 %v3221, %v3227
    %v3229 = vmul.f32 %v3222, %v3227
    %v3230 = vmul.f32 %v3223, %v3227
    %v3231 = vmul.f32 %v3224, %v3227
    %v3232 = vmul.f32 %v3225, %v3227
    %v3233 = vmul.f32 %v3226, %v3227
    %v3234 = vadd.f32 %v3214, %v3228
    %v3235 = vadd.f32 %v3215, %v3229
    %v3236 = vadd.f32 %v3216, %v3230
    %v3237 = vadd.f32 %v3217, %v3231
    %v3238 = vadd.f32 %v3218, %v3232
    %v3239 = vadd.f32 %v3219, %v3233
    %s3240 = sld [smem:[#allocation3 + $0x8f]]
    %v3241 = vld [vmem:[%s112] sm:$0xff]
    %v3242 = vld [vmem:[%s112 + $0x8] sm:$0xff]
    %v3243 = vld [vmem:[%s112 + $0x10] sm:$0x1f]
    %v3244 = vld [vmem:[%s112 + $0x18] sm:$0xff]
    %v3245 = vld [vmem:[%s112 + $0x20] sm:$0xff]
    %v3246 = vld [vmem:[%s112 + $0x28] sm:$0x1f]
    %v3247 = vstv %s3240
    %v3248 = vmul.f32 %v3241, %v3247
    %v3249 = vmul.f32 %v3242, %v3247
    %v3250 = vmul.f32 %v3243, %v3247
    %v3251 = vmul.f32 %v3244, %v3247
    %v3252 = vmul.f32 %v3245, %v3247
    %v3253 = vmul.f32 %v3246, %v3247
    %v3254 = vadd.f32 %v3234, %v3248
    %v3255 = vadd.f32 %v3235, %v3249
    %v3256 = vadd.f32 %v3236, %v3250
    %v3257 = vadd.f32 %v3237, %v3251
    %v3258 = vadd.f32 %v3238, %v3252
    %v3259 = vadd.f32 %v3239, %v3253
    %s3260 = sld [smem:[#allocation3 + $0x90]]
    %v3261 = vld [vmem:[%s137] sm:$0xff]
    %v3262 = vld [vmem:[%s137 + $0x8] sm:$0xff]
    %v3263 = vld [vmem:[%s137 + $0x10] sm:$0x1f]
    %v3264 = vld [vmem:[%s137 + $0x18] sm:$0xff]
    %v3265 = vld [vmem:[%s137 + $0x20] sm:$0xff]
    %v3266 = vld [vmem:[%s137 + $0x28] sm:$0x1f]
    %v3267 = vstv %s3260
    %v3268 = vmul.f32 %v3261, %v3267
    %v3269 = vmul.f32 %v3262, %v3267
    %v3270 = vmul.f32 %v3263, %v3267
    %v3271 = vmul.f32 %v3264, %v3267
    %v3272 = vmul.f32 %v3265, %v3267
    %v3273 = vmul.f32 %v3266, %v3267
    %v3274 = vadd.f32 %v3254, %v3268
    %v3275 = vadd.f32 %v3255, %v3269
    %v3276 = vadd.f32 %v3256, %v3270
    %v3277 = vadd.f32 %v3257, %v3271
    %v3278 = vadd.f32 %v3258, %v3272
    %v3279 = vadd.f32 %v3259, %v3273
    %s3280 = sld [smem:[#allocation3 + $0x91]]
    %v3281 = vld [vmem:[%s144] sm:$0xff]
    %v3282 = vld [vmem:[%s144 + $0x8] sm:$0xff]
    %v3283 = vld [vmem:[%s144 + $0x10] sm:$0x1f]
    %v3284 = vld [vmem:[%s144 + $0x18] sm:$0xff]
    %v3285 = vld [vmem:[%s144 + $0x20] sm:$0xff]
    %v3286 = vld [vmem:[%s144 + $0x28] sm:$0x1f]
    %v3287 = vstv %s3280
    %v3288 = vmul.f32 %v3281, %v3287
    %v3289 = vmul.f32 %v3282, %v3287
    %v3290 = vmul.f32 %v3283, %v3287
    %v3291 = vmul.f32 %v3284, %v3287
    %v3292 = vmul.f32 %v3285, %v3287
    %v3293 = vmul.f32 %v3286, %v3287
    %v3294 = vadd.f32 %v3274, %v3288
    %v3295 = vadd.f32 %v3275, %v3289
    %v3296 = vadd.f32 %v3276, %v3290
    %v3297 = vadd.f32 %v3277, %v3291
    %v3298 = vadd.f32 %v3278, %v3292
    %v3299 = vadd.f32 %v3279, %v3293
    %s3300 = sld [smem:[#allocation3 + $0x92]]
    %v3301 = vld [vmem:[%s153] sm:$0xff]
    %v3302 = vld [vmem:[%s153 + $0x8] sm:$0xff]
    %v3303 = vld [vmem:[%s153 + $0x10] sm:$0x1f]
    %v3304 = vld [vmem:[%s153 + $0x18] sm:$0xff]
    %v3305 = vld [vmem:[%s153 + $0x20] sm:$0xff]
    %v3306 = vld [vmem:[%s153 + $0x28] sm:$0x1f]
    %v3307 = vstv %s3300
    %v3308 = vmul.f32 %v3301, %v3307
    %v3309 = vmul.f32 %v3302, %v3307
    %v3310 = vmul.f32 %v3303, %v3307
    %v3311 = vmul.f32 %v3304, %v3307
    %v3312 = vmul.f32 %v3305, %v3307
    %v3313 = vmul.f32 %v3306, %v3307
    %v3314 = vadd.f32 %v3294, %v3308
    %v3315 = vadd.f32 %v3295, %v3309
    %v3316 = vadd.f32 %v3296, %v3310
    %v3317 = vadd.f32 %v3297, %v3311
    %v3318 = vadd.f32 %v3298, %v3312
    %v3319 = vadd.f32 %v3299, %v3313
    %s3320 = sld [smem:[#allocation3 + $0x93]]
    %v3321 = vld [vmem:[%s160] sm:$0xff]
    %v3322 = vld [vmem:[%s160 + $0x8] sm:$0xff]
    %v3323 = vld [vmem:[%s160 + $0x10] sm:$0x1f]
    %v3324 = vld [vmem:[%s160 + $0x18] sm:$0xff]
    %v3325 = vld [vmem:[%s160 + $0x20] sm:$0xff]
    %v3326 = vld [vmem:[%s160 + $0x28] sm:$0x1f]
    %v3327 = vstv %s3320
    %v3328 = vmul.f32 %v3321, %v3327
    %v3329 = vmul.f32 %v3322, %v3327
    %v3330 = vmul.f32 %v3323, %v3327
    %v3331 = vmul.f32 %v3324, %v3327
    %v3332 = vmul.f32 %v3325, %v3327
    %v3333 = vmul.f32 %v3326, %v3327
    %v3334 = vadd.f32 %v3314, %v3328
    %v3335 = vadd.f32 %v3315, %v3329
    %v3336 = vadd.f32 %v3316, %v3330
    %v3337 = vadd.f32 %v3317, %v3331
    %v3338 = vadd.f32 %v3318, %v3332
    %v3339 = vadd.f32 %v3319, %v3333
    %s3340 = sld [smem:[#allocation3 + $0x94]]
    %v3341 = vld [vmem:[%s167] sm:$0xff]
    %v3342 = vld [vmem:[%s167 + $0x8] sm:$0xff]
    %v3343 = vld [vmem:[%s167 + $0x10] sm:$0x1f]
    %v3344 = vld [vmem:[%s167 + $0x18] sm:$0xff]
    %v3345 = vld [vmem:[%s167 + $0x20] sm:$0xff]
    %v3346 = vld [vmem:[%s167 + $0x28] sm:$0x1f]
    %v3347 = vstv %s3340
    %v3348 = vmul.f32 %v3341, %v3347
    %v3349 = vmul.f32 %v3342, %v3347
    %v3350 = vmul.f32 %v3343, %v3347
    %v3351 = vmul.f32 %v3344, %v3347
    %v3352 = vmul.f32 %v3345, %v3347
    %v3353 = vmul.f32 %v3346, %v3347
    %v3354 = vadd.f32 %v3334, %v3348
    %v3355 = vadd.f32 %v3335, %v3349
    %v3356 = vadd.f32 %v3336, %v3350
    %v3357 = vadd.f32 %v3337, %v3351
    %v3358 = vadd.f32 %v3338, %v3352
    %v3359 = vadd.f32 %v3339, %v3353
    %s3360 = sld [smem:[#allocation3 + $0x95]]
    %v3361 = vld [vmem:[%s174] sm:$0xff]
    %v3362 = vld [vmem:[%s174 + $0x8] sm:$0xff]
    %v3363 = vld [vmem:[%s174 + $0x10] sm:$0x1f]
    %v3364 = vld [vmem:[%s174 + $0x18] sm:$0xff]
    %v3365 = vld [vmem:[%s174 + $0x20] sm:$0xff]
    %v3366 = vld [vmem:[%s174 + $0x28] sm:$0x1f]
    %v3367 = vstv %s3360
    %v3368 = vmul.f32 %v3361, %v3367
    %v3369 = vmul.f32 %v3362, %v3367
    %v3370 = vmul.f32 %v3363, %v3367
    %v3371 = vmul.f32 %v3364, %v3367
    %v3372 = vmul.f32 %v3365, %v3367
    %v3373 = vmul.f32 %v3366, %v3367
    %v3374 = vadd.f32 %v3354, %v3368
    %v3375 = vadd.f32 %v3355, %v3369
    %v3376 = vadd.f32 %v3356, %v3370
    %v3377 = vadd.f32 %v3357, %v3371
    %v3378 = vadd.f32 %v3358, %v3372
    %v3379 = vadd.f32 %v3359, %v3373
    %s3380 = sld [smem:[#allocation3 + $0x96]]
    %v3381 = vld [vmem:[%s181] sm:$0xff]
    %v3382 = vld [vmem:[%s181 + $0x8] sm:$0xff]
    %v3383 = vld [vmem:[%s181 + $0x10] sm:$0x1f]
    %v3384 = vld [vmem:[%s181 + $0x18] sm:$0xff]
    %v3385 = vld [vmem:[%s181 + $0x20] sm:$0xff]
    %v3386 = vld [vmem:[%s181 + $0x28] sm:$0x1f]
    %v3387 = vstv %s3380
    %v3388 = vmul.f32 %v3381, %v3387
    %v3389 = vmul.f32 %v3382, %v3387
    %v3390 = vmul.f32 %v3383, %v3387
    %v3391 = vmul.f32 %v3384, %v3387
    %v3392 = vmul.f32 %v3385, %v3387
    %v3393 = vmul.f32 %v3386, %v3387
    %v3394 = vadd.f32 %v3374, %v3388
    %v3395 = vadd.f32 %v3375, %v3389
    %v3396 = vadd.f32 %v3376, %v3390
    %v3397 = vadd.f32 %v3377, %v3391
    %v3398 = vadd.f32 %v3378, %v3392
    %v3399 = vadd.f32 %v3379, %v3393
    %s3400 = sld [smem:[#allocation3 + $0x97]]
    %v3401 = vld [vmem:[%s190] sm:$0xff]
    %v3402 = vld [vmem:[%s190 + $0x8] sm:$0xff]
    %v3403 = vld [vmem:[%s190 + $0x10] sm:$0x1f]
    %v3404 = vld [vmem:[%s190 + $0x18] sm:$0xff]
    %v3405 = vld [vmem:[%s190 + $0x20] sm:$0xff]
    %v3406 = vld [vmem:[%s190 + $0x28] sm:$0x1f]
    %v3407 = vstv %s3400
    %v3408 = vmul.f32 %v3401, %v3407
    %v3409 = vmul.f32 %v3402, %v3407
    %v3410 = vmul.f32 %v3403, %v3407
    %v3411 = vmul.f32 %v3404, %v3407
    %v3412 = vmul.f32 %v3405, %v3407
    %v3413 = vmul.f32 %v3406, %v3407
    %v3414 = vadd.f32 %v3394, %v3408
    %v3415 = vadd.f32 %v3395, %v3409
    %v3416 = vadd.f32 %v3396, %v3410
    %v3417 = vadd.f32 %v3397, %v3411
    %v3418 = vadd.f32 %v3398, %v3412
    %v3419 = vadd.f32 %v3399, %v3413
    %s3420 = sld [smem:[#allocation3 + $0x98]]
    %v3421 = vld [vmem:[%s197] sm:$0xff]
    %v3422 = vld [vmem:[%s197 + $0x8] sm:$0xff]
    %v3423 = vld [vmem:[%s197 + $0x10] sm:$0x1f]
    %v3424 = vld [vmem:[%s197 + $0x18] sm:$0xff]
    %v3425 = vld [vmem:[%s197 + $0x20] sm:$0xff]
    %v3426 = vld [vmem:[%s197 + $0x28] sm:$0x1f]
    %v3427 = vstv %s3420
    %v3428 = vmul.f32 %v3421, %v3427
    %v3429 = vmul.f32 %v3422, %v3427
    %v3430 = vmul.f32 %v3423, %v3427
    %v3431 = vmul.f32 %v3424, %v3427
    %v3432 = vmul.f32 %v3425, %v3427
    %v3433 = vmul.f32 %v3426, %v3427
    %v3434 = vadd.f32 %v3414, %v3428
    %v3435 = vadd.f32 %v3415, %v3429
    %v3436 = vadd.f32 %v3416, %v3430
    %v3437 = vadd.f32 %v3417, %v3431
    %v3438 = vadd.f32 %v3418, %v3432
    %v3439 = vadd.f32 %v3419, %v3433
    %s3440 = sld [smem:[#allocation3 + $0x99]]
    %v3441 = vld [vmem:[%s204] sm:$0xff]
    %v3442 = vld [vmem:[%s204 + $0x8] sm:$0xff]
    %v3443 = vld [vmem:[%s204 + $0x10] sm:$0x1f]
    %v3444 = vld [vmem:[%s204 + $0x18] sm:$0xff]
    %v3445 = vld [vmem:[%s204 + $0x20] sm:$0xff]
    %v3446 = vld [vmem:[%s204 + $0x28] sm:$0x1f]
    %v3447 = vstv %s3440
    %v3448 = vmul.f32 %v3441, %v3447
    %v3449 = vmul.f32 %v3442, %v3447
    %v3450 = vmul.f32 %v3443, %v3447
    %v3451 = vmul.f32 %v3444, %v3447
    %v3452 = vmul.f32 %v3445, %v3447
    %v3453 = vmul.f32 %v3446, %v3447
    %v3454 = vadd.f32 %v3434, %v3448
    %v3455 = vadd.f32 %v3435, %v3449
    %v3456 = vadd.f32 %v3436, %v3450
    %v3457 = vadd.f32 %v3437, %v3451
    %v3458 = vadd.f32 %v3438, %v3452
    %v3459 = vadd.f32 %v3439, %v3453
    %s3460 = sld [smem:[#allocation3 + $0x9a]]
    %v3461 = vld [vmem:[%s211] sm:$0xff]
    %v3462 = vld [vmem:[%s211 + $0x8] sm:$0xff]
    %v3463 = vld [vmem:[%s211 + $0x10] sm:$0x1f]
    %v3464 = vld [vmem:[%s211 + $0x18] sm:$0xff]
    %v3465 = vld [vmem:[%s211 + $0x20] sm:$0xff]
    %v3466 = vld [vmem:[%s211 + $0x28] sm:$0x1f]
    %v3467 = vstv %s3460
    %v3468 = vmul.f32 %v3461, %v3467
    %v3469 = vmul.f32 %v3462, %v3467
    %v3470 = vmul.f32 %v3463, %v3467
    %v3471 = vmul.f32 %v3464, %v3467
    %v3472 = vmul.f32 %v3465, %v3467
    %v3473 = vmul.f32 %v3466, %v3467
    %v3474 = vadd.f32 %v3454, %v3468
    %v3475 = vadd.f32 %v3455, %v3469
    %v3476 = vadd.f32 %v3456, %v3470
    %v3477 = vadd.f32 %v3457, %v3471
    %v3478 = vadd.f32 %v3458, %v3472
    %v3479 = vadd.f32 %v3459, %v3473
    %s3480 = sld [smem:[#allocation3 + $0x9b]]
    %v3481 = vld [vmem:[%s218] sm:$0xff]
    %v3482 = vld [vmem:[%s218 + $0x8] sm:$0xff]
    %v3483 = vld [vmem:[%s218 + $0x10] sm:$0x1f]
    %v3484 = vld [vmem:[%s218 + $0x18] sm:$0xff]
    %v3485 = vld [vmem:[%s218 + $0x20] sm:$0xff]
    %v3486 = vld [vmem:[%s218 + $0x28] sm:$0x1f]
    %v3487 = vstv %s3480
    %v3488 = vmul.f32 %v3481, %v3487
    %v3489 = vmul.f32 %v3482, %v3487
    %v3490 = vmul.f32 %v3483, %v3487
    %v3491 = vmul.f32 %v3484, %v3487
    %v3492 = vmul.f32 %v3485, %v3487
    %v3493 = vmul.f32 %v3486, %v3487
    %v3494 = vadd.f32 %v3474, %v3488
    %v3495 = vadd.f32 %v3475, %v3489
    %v3496 = vadd.f32 %v3476, %v3490
    %v3497 = vadd.f32 %v3477, %v3491
    %v3498 = vadd.f32 %v3478, %v3492
    %v3499 = vadd.f32 %v3479, %v3493
    %s3500 = sld [smem:[#allocation3 + $0x9c]]
    %v3501 = vld [vmem:[%s226] sm:$0xff]
    %v3502 = vld [vmem:[%s226 + $0x8] sm:$0xff]
    %v3503 = vld [vmem:[%s226 + $0x10] sm:$0x1f]
    %v3504 = vld [vmem:[%s226 + $0x18] sm:$0xff]
    %v3505 = vld [vmem:[%s226 + $0x20] sm:$0xff]
    %v3506 = vld [vmem:[%s226 + $0x28] sm:$0x1f]
    %v3507 = vstv %s3500
    %v3508 = vmul.f32 %v3501, %v3507
    %v3509 = vmul.f32 %v3502, %v3507
    %v3510 = vmul.f32 %v3503, %v3507
    %v3511 = vmul.f32 %v3504, %v3507
    %v3512 = vmul.f32 %v3505, %v3507
    %v3513 = vmul.f32 %v3506, %v3507
    %v3514 = vadd.f32 %v3494, %v3508
    %v3515 = vadd.f32 %v3495, %v3509
    %v3516 = vadd.f32 %v3496, %v3510
    %v3517 = vadd.f32 %v3497, %v3511
    %v3518 = vadd.f32 %v3498, %v3512
    %v3519 = vadd.f32 %v3499, %v3513
    %s3520 = sld [smem:[#allocation3 + $0x9d]]
    %v3521 = vld [vmem:[%s233] sm:$0xff]
    %v3522 = vld [vmem:[%s233 + $0x8] sm:$0xff]
    %v3523 = vld [vmem:[%s233 + $0x10] sm:$0x1f]
    %v3524 = vld [vmem:[%s233 + $0x18] sm:$0xff]
    %v3525 = vld [vmem:[%s233 + $0x20] sm:$0xff]
    %v3526 = vld [vmem:[%s233 + $0x28] sm:$0x1f]
    %v3527 = vstv %s3520
    %v3528 = vmul.f32 %v3521, %v3527
    %v3529 = vmul.f32 %v3522, %v3527
    %v3530 = vmul.f32 %v3523, %v3527
    %v3531 = vmul.f32 %v3524, %v3527
    %v3532 = vmul.f32 %v3525, %v3527
    %v3533 = vmul.f32 %v3526, %v3527
    %v3534 = vadd.f32 %v3514, %v3528
    %v3535 = vadd.f32 %v3515, %v3529
    %v3536 = vadd.f32 %v3516, %v3530
    %v3537 = vadd.f32 %v3517, %v3531
    %v3538 = vadd.f32 %v3518, %v3532
    %v3539 = vadd.f32 %v3519, %v3533
    %s3540 = sld [smem:[#allocation3 + $0x9e]]
    %v3541 = vld [vmem:[%s240] sm:$0xff]
    %v3542 = vld [vmem:[%s240 + $0x8] sm:$0xff]
    %v3543 = vld [vmem:[%s240 + $0x10] sm:$0x1f]
    %v3544 = vld [vmem:[%s240 + $0x18] sm:$0xff]
    %v3545 = vld [vmem:[%s240 + $0x20] sm:$0xff]
    %v3546 = vld [vmem:[%s240 + $0x28] sm:$0x1f]
    %v3547 = vstv %s3540
    %v3548 = vmul.f32 %v3541, %v3547
    %v3549 = vmul.f32 %v3542, %v3547
    %v3550 = vmul.f32 %v3543, %v3547
    %v3551 = vmul.f32 %v3544, %v3547
    %v3552 = vmul.f32 %v3545, %v3547
    %v3553 = vmul.f32 %v3546, %v3547
    %v3554 = vadd.f32 %v3534, %v3548
    %v3555 = vadd.f32 %v3535, %v3549
    %v3556 = vadd.f32 %v3536, %v3550
    %v3557 = vadd.f32 %v3537, %v3551
    %v3558 = vadd.f32 %v3538, %v3552
    %v3559 = vadd.f32 %v3539, %v3553
    %s3560 = sld [smem:[#allocation3 + $0x9f]]
    %v3561 = vld [vmem:[%s247] sm:$0xff]
    %v3562 = vld [vmem:[%s247 + $0x8] sm:$0xff]
    %v3563 = vld [vmem:[%s247 + $0x10] sm:$0x1f]
    %v3564 = vld [vmem:[%s247 + $0x18] sm:$0xff]
    %v3565 = vld [vmem:[%s247 + $0x20] sm:$0xff]
    %v3566 = vld [vmem:[%s247 + $0x28] sm:$0x1f]
    %v3567 = vstv %s3560
    %v3568 = vmul.f32 %v3561, %v3567
    %v3569 = vmul.f32 %v3562, %v3567
    %v3570 = vmul.f32 %v3563, %v3567
    %v3571 = vmul.f32 %v3564, %v3567
    %v3572 = vmul.f32 %v3565, %v3567
    %v3573 = vmul.f32 %v3566, %v3567
    %v3574 = vadd.f32 %v3554, %v3568
    %v3575 = vadd.f32 %v3555, %v3569
    %v3576 = vadd.f32 %v3556, %v3570
    %v3577 = vadd.f32 %v3557, %v3571
    %v3578 = vadd.f32 %v3558, %v3572
    %v3579 = vadd.f32 %v3559, %v3573
    %vm3580 = vcmp.gt.f32.partialorder %v3574, 0.0
    %vm3581 = vcmp.gt.f32.partialorder %v3575, 0.0
    %vm3582 = vcmp.gt.f32.partialorder %v3576, 0.0
    %vm3583 = vcmp.gt.f32.partialorder %v3577, 0.0
    %vm3584 = vcmp.gt.f32.partialorder %v3578, 0.0
    %vm3585 = vcmp.gt.f32.partialorder %v3579, 0.0
    %v3586 = vmul.f32 %v3574, -0.1
    %v3587 = vmul.f32 %v3575, -0.1
    %v3588 = vmul.f32 %v3576, -0.1
    %v3589 = vmul.f32 %v3577, -0.1
    %v3590 = vmul.f32 %v3578, -0.1
    %v3591 = vmul.f32 %v3579, -0.1
    %v3592 = vsel %vm3580, %v3574, %v3586
    %v3593 = vsel %vm3581, %v3575, %v3587
    %v3594 = vsel %vm3582, %v3576, %v3588
    %v3595 = vsel %vm3583, %v3577, %v3589
    %v3596 = vsel %vm3584, %v3578, %v3590
    %v3597 = vsel %vm3585, %v3579, %v3591
    %s3598 = scalar_lea.vmem %s2, 168
    %3599 = vst.msk [vmem:[%s3598] sm:$0xff] %vm30, %v3592
    %3600 = vst.msk [vmem:[%s3598 + $0x8] sm:$0xff] %vm30, %v3593
    %3601 = vst.msk [vmem:[%s3598 + $0x10] sm:$0x1f] %vm33, %v3594
    %3602 = vst.msk [vmem:[%s3598 + $0x108] sm:$0xff] %vm30, %v3595
    %3603 = vst.msk [vmem:[%s3598 + $0x110] sm:$0xff] %vm30, %v3596
    %3604 = vst.msk [vmem:[%s3598 + $0x118] sm:$0x1f] %vm33, %v3597
    %s3605 = sld [smem:[#allocation3 + $0xa0]]
    %v3606 = vld [vmem:[#allocation2] sm:$0xff]
    %v3607 = vld [vmem:[#allocation2 + $0x8] sm:$0xff]
    %v3608 = vld [vmem:[#allocation2 + $0x10] sm:$0x1f]
    %v3609 = vld [vmem:[#allocation2 + $0x18] sm:$0xff]
    %v3610 = vld [vmem:[#allocation2 + $0x20] sm:$0xff]
    %v3611 = vld [vmem:[#allocation2 + $0x28] sm:$0x1f]
    %v3612 = vstv %s3605
    %v3613 = vmul.f32 %v3606, %v3612
    %v3614 = vmul.f32 %v3607, %v3612
    %v3615 = vmul.f32 %v3608, %v3612
    %v3616 = vmul.f32 %v3609, %v3612
    %v3617 = vmul.f32 %v3610, %v3612
    %v3618 = vmul.f32 %v3611, %v3612
    %s3619 = sld [smem:[#allocation3 + $0xa1]]
    %v3620 = vld [vmem:[%s62] sm:$0xff]
    %v3621 = vld [vmem:[%s62 + $0x8] sm:$0xff]
    %v3622 = vld [vmem:[%s62 + $0x10] sm:$0x1f]
    %v3623 = vld [vmem:[%s62 + $0x18] sm:$0xff]
    %v3624 = vld [vmem:[%s62 + $0x20] sm:$0xff]
    %v3625 = vld [vmem:[%s62 + $0x28] sm:$0x1f]
    %v3626 = vstv %s3619
    %v3627 = vmul.f32 %v3620, %v3626
    %v3628 = vmul.f32 %v3621, %v3626
    %v3629 = vmul.f32 %v3622, %v3626
    %v3630 = vmul.f32 %v3623, %v3626
    %v3631 = vmul.f32 %v3624, %v3626
    %v3632 = vmul.f32 %v3625, %v3626
    %v3633 = vadd.f32 %v3613, %v3627
    %v3634 = vadd.f32 %v3614, %v3628
    %v3635 = vadd.f32 %v3615, %v3629
    %v3636 = vadd.f32 %v3616, %v3630
    %v3637 = vadd.f32 %v3617, %v3631
    %v3638 = vadd.f32 %v3618, %v3632
    %s3639 = sld [smem:[#allocation3 + $0xa2]]
    %v3640 = vld [vmem:[%s87] sm:$0xff]
    %v3641 = vld [vmem:[%s87 + $0x8] sm:$0xff]
    %v3642 = vld [vmem:[%s87 + $0x10] sm:$0x1f]
    %v3643 = vld [vmem:[%s87 + $0x18] sm:$0xff]
    %v3644 = vld [vmem:[%s87 + $0x20] sm:$0xff]
    %v3645 = vld [vmem:[%s87 + $0x28] sm:$0x1f]
    %v3646 = vstv %s3639
    %v3647 = vmul.f32 %v3640, %v3646
    %v3648 = vmul.f32 %v3641, %v3646
    %v3649 = vmul.f32 %v3642, %v3646
    %v3650 = vmul.f32 %v3643, %v3646
    %v3651 = vmul.f32 %v3644, %v3646
    %v3652 = vmul.f32 %v3645, %v3646
    %v3653 = vadd.f32 %v3633, %v3647
    %v3654 = vadd.f32 %v3634, %v3648
    %v3655 = vadd.f32 %v3635, %v3649
    %v3656 = vadd.f32 %v3636, %v3650
    %v3657 = vadd.f32 %v3637, %v3651
    %v3658 = vadd.f32 %v3638, %v3652
    %s3659 = sld [smem:[#allocation3 + $0xa3]]
    %v3660 = vld [vmem:[%s112] sm:$0xff]
    %v3661 = vld [vmem:[%s112 + $0x8] sm:$0xff]
    %v3662 = vld [vmem:[%s112 + $0x10] sm:$0x1f]
    %v3663 = vld [vmem:[%s112 + $0x18] sm:$0xff]
    %v3664 = vld [vmem:[%s112 + $0x20] sm:$0xff]
    %v3665 = vld [vmem:[%s112 + $0x28] sm:$0x1f]
    %v3666 = vstv %s3659
    %v3667 = vmul.f32 %v3660, %v3666
    %v3668 = vmul.f32 %v3661, %v3666
    %v3669 = vmul.f32 %v3662, %v3666
    %v3670 = vmul.f32 %v3663, %v3666
    %v3671 = vmul.f32 %v3664, %v3666
    %v3672 = vmul.f32 %v3665, %v3666
    %v3673 = vadd.f32 %v3653, %v3667
    %v3674 = vadd.f32 %v3654, %v3668
    %v3675 = vadd.f32 %v3655, %v3669
    %v3676 = vadd.f32 %v3656, %v3670
    %v3677 = vadd.f32 %v3657, %v3671
    %v3678 = vadd.f32 %v3658, %v3672
    %s3679 = sld [smem:[#allocation3 + $0xa4]]
    %v3680 = vld [vmem:[%s137] sm:$0xff]
    %v3681 = vld [vmem:[%s137 + $0x8] sm:$0xff]
    %v3682 = vld [vmem:[%s137 + $0x10] sm:$0x1f]
    %v3683 = vld [vmem:[%s137 + $0x18] sm:$0xff]
    %v3684 = vld [vmem:[%s137 + $0x20] sm:$0xff]
    %v3685 = vld [vmem:[%s137 + $0x28] sm:$0x1f]
    %v3686 = vstv %s3679
    %v3687 = vmul.f32 %v3680, %v3686
    %v3688 = vmul.f32 %v3681, %v3686
    %v3689 = vmul.f32 %v3682, %v3686
    %v3690 = vmul.f32 %v3683, %v3686
    %v3691 = vmul.f32 %v3684, %v3686
    %v3692 = vmul.f32 %v3685, %v3686
    %v3693 = vadd.f32 %v3673, %v3687
    %v3694 = vadd.f32 %v3674, %v3688
    %v3695 = vadd.f32 %v3675, %v3689
    %v3696 = vadd.f32 %v3676, %v3690
    %v3697 = vadd.f32 %v3677, %v3691
    %v3698 = vadd.f32 %v3678, %v3692
    %s3699 = sld [smem:[#allocation3 + $0xa5]]
    %v3700 = vld [vmem:[%s144] sm:$0xff]
    %v3701 = vld [vmem:[%s144 + $0x8] sm:$0xff]
    %v3702 = vld [vmem:[%s144 + $0x10] sm:$0x1f]
    %v3703 = vld [vmem:[%s144 + $0x18] sm:$0xff]
    %v3704 = vld [vmem:[%s144 + $0x20] sm:$0xff]
    %v3705 = vld [vmem:[%s144 + $0x28] sm:$0x1f]
    %v3706 = vstv %s3699
    %v3707 = vmul.f32 %v3700, %v3706
    %v3708 = vmul.f32 %v3701, %v3706
    %v3709 = vmul.f32 %v3702, %v3706
    %v3710 = vmul.f32 %v3703, %v3706
    %v3711 = vmul.f32 %v3704, %v3706
    %v3712 = vmul.f32 %v3705, %v3706
    %v3713 = vadd.f32 %v3693, %v3707
    %v3714 = vadd.f32 %v3694, %v3708
    %v3715 = vadd.f32 %v3695, %v3709
    %v3716 = vadd.f32 %v3696, %v3710
    %v3717 = vadd.f32 %v3697, %v3711
    %v3718 = vadd.f32 %v3698, %v3712
    %s3719 = sld [smem:[#allocation3 + $0xa6]]
    %v3720 = vld [vmem:[%s153] sm:$0xff]
    %v3721 = vld [vmem:[%s153 + $0x8] sm:$0xff]
    %v3722 = vld [vmem:[%s153 + $0x10] sm:$0x1f]
    %v3723 = vld [vmem:[%s153 + $0x18] sm:$0xff]
    %v3724 = vld [vmem:[%s153 + $0x20] sm:$0xff]
    %v3725 = vld [vmem:[%s153 + $0x28] sm:$0x1f]
    %v3726 = vstv %s3719
    %v3727 = vmul.f32 %v3720, %v3726
    %v3728 = vmul.f32 %v3721, %v3726
    %v3729 = vmul.f32 %v3722, %v3726
    %v3730 = vmul.f32 %v3723, %v3726
    %v3731 = vmul.f32 %v3724, %v3726
    %v3732 = vmul.f32 %v3725, %v3726
    %v3733 = vadd.f32 %v3713, %v3727
    %v3734 = vadd.f32 %v3714, %v3728
    %v3735 = vadd.f32 %v3715, %v3729
    %v3736 = vadd.f32 %v3716, %v3730
    %v3737 = vadd.f32 %v3717, %v3731
    %v3738 = vadd.f32 %v3718, %v3732
    %s3739 = sld [smem:[#allocation3 + $0xa7]]
    %v3740 = vld [vmem:[%s160] sm:$0xff]
    %v3741 = vld [vmem:[%s160 + $0x8] sm:$0xff]
    %v3742 = vld [vmem:[%s160 + $0x10] sm:$0x1f]
    %v3743 = vld [vmem:[%s160 + $0x18] sm:$0xff]
    %v3744 = vld [vmem:[%s160 + $0x20] sm:$0xff]
    %v3745 = vld [vmem:[%s160 + $0x28] sm:$0x1f]
    %v3746 = vstv %s3739
    %v3747 = vmul.f32 %v3740, %v3746
    %v3748 = vmul.f32 %v3741, %v3746
    %v3749 = vmul.f32 %v3742, %v3746
    %v3750 = vmul.f32 %v3743, %v3746
    %v3751 = vmul.f32 %v3744, %v3746
    %v3752 = vmul.f32 %v3745, %v3746
    %v3753 = vadd.f32 %v3733, %v3747
    %v3754 = vadd.f32 %v3734, %v3748
    %v3755 = vadd.f32 %v3735, %v3749
    %v3756 = vadd.f32 %v3736, %v3750
    %v3757 = vadd.f32 %v3737, %v3751
    %v3758 = vadd.f32 %v3738, %v3752
    %s3759 = sld [smem:[#allocation3 + $0xa8]]
    %v3760 = vld [vmem:[%s167] sm:$0xff]
    %v3761 = vld [vmem:[%s167 + $0x8] sm:$0xff]
    %v3762 = vld [vmem:[%s167 + $0x10] sm:$0x1f]
    %v3763 = vld [vmem:[%s167 + $0x18] sm:$0xff]
    %v3764 = vld [vmem:[%s167 + $0x20] sm:$0xff]
    %v3765 = vld [vmem:[%s167 + $0x28] sm:$0x1f]
    %v3766 = vstv %s3759
    %v3767 = vmul.f32 %v3760, %v3766
    %v3768 = vmul.f32 %v3761, %v3766
    %v3769 = vmul.f32 %v3762, %v3766
    %v3770 = vmul.f32 %v3763, %v3766
    %v3771 = vmul.f32 %v3764, %v3766
    %v3772 = vmul.f32 %v3765, %v3766
    %v3773 = vadd.f32 %v3753, %v3767
    %v3774 = vadd.f32 %v3754, %v3768
    %v3775 = vadd.f32 %v3755, %v3769
    %v3776 = vadd.f32 %v3756, %v3770
    %v3777 = vadd.f32 %v3757, %v3771
    %v3778 = vadd.f32 %v3758, %v3772
    %s3779 = sld [smem:[#allocation3 + $0xa9]]
    %v3780 = vld [vmem:[%s174] sm:$0xff]
    %v3781 = vld [vmem:[%s174 + $0x8] sm:$0xff]
    %v3782 = vld [vmem:[%s174 + $0x10] sm:$0x1f]
    %v3783 = vld [vmem:[%s174 + $0x18] sm:$0xff]
    %v3784 = vld [vmem:[%s174 + $0x20] sm:$0xff]
    %v3785 = vld [vmem:[%s174 + $0x28] sm:$0x1f]
    %v3786 = vstv %s3779
    %v3787 = vmul.f32 %v3780, %v3786
    %v3788 = vmul.f32 %v3781, %v3786
    %v3789 = vmul.f32 %v3782, %v3786
    %v3790 = vmul.f32 %v3783, %v3786
    %v3791 = vmul.f32 %v3784, %v3786
    %v3792 = vmul.f32 %v3785, %v3786
    %v3793 = vadd.f32 %v3773, %v3787
    %v3794 = vadd.f32 %v3774, %v3788
    %v3795 = vadd.f32 %v3775, %v3789
    %v3796 = vadd.f32 %v3776, %v3790
    %v3797 = vadd.f32 %v3777, %v3791
    %v3798 = vadd.f32 %v3778, %v3792
    %s3799 = sld [smem:[#allocation3 + $0xaa]]
    %v3800 = vld [vmem:[%s181] sm:$0xff]
    %v3801 = vld [vmem:[%s181 + $0x8] sm:$0xff]
    %v3802 = vld [vmem:[%s181 + $0x10] sm:$0x1f]
    %v3803 = vld [vmem:[%s181 + $0x18] sm:$0xff]
    %v3804 = vld [vmem:[%s181 + $0x20] sm:$0xff]
    %v3805 = vld [vmem:[%s181 + $0x28] sm:$0x1f]
    %v3806 = vstv %s3799
    %v3807 = vmul.f32 %v3800, %v3806
    %v3808 = vmul.f32 %v3801, %v3806
    %v3809 = vmul.f32 %v3802, %v3806
    %v3810 = vmul.f32 %v3803, %v3806
    %v3811 = vmul.f32 %v3804, %v3806
    %v3812 = vmul.f32 %v3805, %v3806
    %v3813 = vadd.f32 %v3793, %v3807
    %v3814 = vadd.f32 %v3794, %v3808
    %v3815 = vadd.f32 %v3795, %v3809
    %v3816 = vadd.f32 %v3796, %v3810
    %v3817 = vadd.f32 %v3797, %v3811
    %v3818 = vadd.f32 %v3798, %v3812
    %s3819 = sld [smem:[#allocation3 + $0xab]]
    %v3820 = vld [vmem:[%s190] sm:$0xff]
    %v3821 = vld [vmem:[%s190 + $0x8] sm:$0xff]
    %v3822 = vld [vmem:[%s190 + $0x10] sm:$0x1f]
    %v3823 = vld [vmem:[%s190 + $0x18] sm:$0xff]
    %v3824 = vld [vmem:[%s190 + $0x20] sm:$0xff]
    %v3825 = vld [vmem:[%s190 + $0x28] sm:$0x1f]
    %v3826 = vstv %s3819
    %v3827 = vmul.f32 %v3820, %v3826
    %v3828 = vmul.f32 %v3821, %v3826
    %v3829 = vmul.f32 %v3822, %v3826
    %v3830 = vmul.f32 %v3823, %v3826
    %v3831 = vmul.f32 %v3824, %v3826
    %v3832 = vmul.f32 %v3825, %v3826
    %v3833 = vadd.f32 %v3813, %v3827
    %v3834 = vadd.f32 %v3814, %v3828
    %v3835 = vadd.f32 %v3815, %v3829
    %v3836 = vadd.f32 %v3816, %v3830
    %v3837 = vadd.f32 %v3817, %v3831
    %v3838 = vadd.f32 %v3818, %v3832
    %s3839 = sld [smem:[#allocation3 + $0xac]]
    %v3840 = vld [vmem:[%s197] sm:$0xff]
    %v3841 = vld [vmem:[%s197 + $0x8] sm:$0xff]
    %v3842 = vld [vmem:[%s197 + $0x10] sm:$0x1f]
    %v3843 = vld [vmem:[%s197 + $0x18] sm:$0xff]
    %v3844 = vld [vmem:[%s197 + $0x20] sm:$0xff]
    %v3845 = vld [vmem:[%s197 + $0x28] sm:$0x1f]
    %v3846 = vstv %s3839
    %v3847 = vmul.f32 %v3840, %v3846
    %v3848 = vmul.f32 %v3841, %v3846
    %v3849 = vmul.f32 %v3842, %v3846
    %v3850 = vmul.f32 %v3843, %v3846
    %v3851 = vmul.f32 %v3844, %v3846
    %v3852 = vmul.f32 %v3845, %v3846
    %v3853 = vadd.f32 %v3833, %v3847
    %v3854 = vadd.f32 %v3834, %v3848
    %v3855 = vadd.f32 %v3835, %v3849
    %v3856 = vadd.f32 %v3836, %v3850
    %v3857 = vadd.f32 %v3837, %v3851
    %v3858 = vadd.f32 %v3838, %v3852
    %s3859 = sld [smem:[#allocation3 + $0xad]]
    %v3860 = vld [vmem:[%s204] sm:$0xff]
    %v3861 = vld [vmem:[%s204 + $0x8] sm:$0xff]
    %v3862 = vld [vmem:[%s204 + $0x10] sm:$0x1f]
    %v3863 = vld [vmem:[%s204 + $0x18] sm:$0xff]
    %v3864 = vld [vmem:[%s204 + $0x20] sm:$0xff]
    %v3865 = vld [vmem:[%s204 + $0x28] sm:$0x1f]
    %v3866 = vstv %s3859
    %v3867 = vmul.f32 %v3860, %v3866
    %v3868 = vmul.f32 %v3861, %v3866
    %v3869 = vmul.f32 %v3862, %v3866
    %v3870 = vmul.f32 %v3863, %v3866
    %v3871 = vmul.f32 %v3864, %v3866
    %v3872 = vmul.f32 %v3865, %v3866
    %v3873 = vadd.f32 %v3853, %v3867
    %v3874 = vadd.f32 %v3854, %v3868
    %v3875 = vadd.f32 %v3855, %v3869
    %v3876 = vadd.f32 %v3856, %v3870
    %v3877 = vadd.f32 %v3857, %v3871
    %v3878 = vadd.f32 %v3858, %v3872
    %s3879 = sld [smem:[#allocation3 + $0xae]]
    %v3880 = vld [vmem:[%s211] sm:$0xff]
    %v3881 = vld [vmem:[%s211 + $0x8] sm:$0xff]
    %v3882 = vld [vmem:[%s211 + $0x10] sm:$0x1f]
    %v3883 = vld [vmem:[%s211 + $0x18] sm:$0xff]
    %v3884 = vld [vmem:[%s211 + $0x20] sm:$0xff]
    %v3885 = vld [vmem:[%s211 + $0x28] sm:$0x1f]
    %v3886 = vstv %s3879
    %v3887 = vmul.f32 %v3880, %v3886
    %v3888 = vmul.f32 %v3881, %v3886
    %v3889 = vmul.f32 %v3882, %v3886
    %v3890 = vmul.f32 %v3883, %v3886
    %v3891 = vmul.f32 %v3884, %v3886
    %v3892 = vmul.f32 %v3885, %v3886
    %v3893 = vadd.f32 %v3873, %v3887
    %v3894 = vadd.f32 %v3874, %v3888
    %v3895 = vadd.f32 %v3875, %v3889
    %v3896 = vadd.f32 %v3876, %v3890
    %v3897 = vadd.f32 %v3877, %v3891
    %v3898 = vadd.f32 %v3878, %v3892
    %s3899 = sld [smem:[#allocation3 + $0xaf]]
    %v3900 = vld [vmem:[%s218] sm:$0xff]
    %v3901 = vld [vmem:[%s218 + $0x8] sm:$0xff]
    %v3902 = vld [vmem:[%s218 + $0x10] sm:$0x1f]
    %v3903 = vld [vmem:[%s218 + $0x18] sm:$0xff]
    %v3904 = vld [vmem:[%s218 + $0x20] sm:$0xff]
    %v3905 = vld [vmem:[%s218 + $0x28] sm:$0x1f]
    %v3906 = vstv %s3899
    %v3907 = vmul.f32 %v3900, %v3906
    %v3908 = vmul.f32 %v3901, %v3906
    %v3909 = vmul.f32 %v3902, %v3906
    %v3910 = vmul.f32 %v3903, %v3906
    %v3911 = vmul.f32 %v3904, %v3906
    %v3912 = vmul.f32 %v3905, %v3906
    %v3913 = vadd.f32 %v3893, %v3907
    %v3914 = vadd.f32 %v3894, %v3908
    %v3915 = vadd.f32 %v3895, %v3909
    %v3916 = vadd.f32 %v3896, %v3910
    %v3917 = vadd.f32 %v3897, %v3911
    %v3918 = vadd.f32 %v3898, %v3912
    %s3919 = sld [smem:[#allocation3 + $0xb0]]
    %v3920 = vld [vmem:[%s226] sm:$0xff]
    %v3921 = vld [vmem:[%s226 + $0x8] sm:$0xff]
    %v3922 = vld [vmem:[%s226 + $0x10] sm:$0x1f]
    %v3923 = vld [vmem:[%s226 + $0x18] sm:$0xff]
    %v3924 = vld [vmem:[%s226 + $0x20] sm:$0xff]
    %v3925 = vld [vmem:[%s226 + $0x28] sm:$0x1f]
    %v3926 = vstv %s3919
    %v3927 = vmul.f32 %v3920, %v3926
    %v3928 = vmul.f32 %v3921, %v3926
    %v3929 = vmul.f32 %v3922, %v3926
    %v3930 = vmul.f32 %v3923, %v3926
    %v3931 = vmul.f32 %v3924, %v3926
    %v3932 = vmul.f32 %v3925, %v3926
    %v3933 = vadd.f32 %v3913, %v3927
    %v3934 = vadd.f32 %v3914, %v3928
    %v3935 = vadd.f32 %v3915, %v3929
    %v3936 = vadd.f32 %v3916, %v3930
    %v3937 = vadd.f32 %v3917, %v3931
    %v3938 = vadd.f32 %v3918, %v3932
    %s3939 = sld [smem:[#allocation3 + $0xb1]]
    %v3940 = vld [vmem:[%s233] sm:$0xff]
    %v3941 = vld [vmem:[%s233 + $0x8] sm:$0xff]
    %v3942 = vld [vmem:[%s233 + $0x10] sm:$0x1f]
    %v3943 = vld [vmem:[%s233 + $0x18] sm:$0xff]
    %v3944 = vld [vmem:[%s233 + $0x20] sm:$0xff]
    %v3945 = vld [vmem:[%s233 + $0x28] sm:$0x1f]
    %v3946 = vstv %s3939
    %v3947 = vmul.f32 %v3940, %v3946
    %v3948 = vmul.f32 %v3941, %v3946
    %v3949 = vmul.f32 %v3942, %v3946
    %v3950 = vmul.f32 %v3943, %v3946
    %v3951 = vmul.f32 %v3944, %v3946
    %v3952 = vmul.f32 %v3945, %v3946
    %v3953 = vadd.f32 %v3933, %v3947
    %v3954 = vadd.f32 %v3934, %v3948
    %v3955 = vadd.f32 %v3935, %v3949
    %v3956 = vadd.f32 %v3936, %v3950
    %v3957 = vadd.f32 %v3937, %v3951
    %v3958 = vadd.f32 %v3938, %v3952
    %s3959 = sld [smem:[#allocation3 + $0xb2]]
    %v3960 = vld [vmem:[%s240] sm:$0xff]
    %v3961 = vld [vmem:[%s240 + $0x8] sm:$0xff]
    %v3962 = vld [vmem:[%s240 + $0x10] sm:$0x1f]
    %v3963 = vld [vmem:[%s240 + $0x18] sm:$0xff]
    %v3964 = vld [vmem:[%s240 + $0x20] sm:$0xff]
    %v3965 = vld [vmem:[%s240 + $0x28] sm:$0x1f]
    %v3966 = vstv %s3959
    %v3967 = vmul.f32 %v3960, %v3966
    %v3968 = vmul.f32 %v3961, %v3966
    %v3969 = vmul.f32 %v3962, %v3966
    %v3970 = vmul.f32 %v3963, %v3966
    %v3971 = vmul.f32 %v3964, %v3966
    %v3972 = vmul.f32 %v3965, %v3966
    %v3973 = vadd.f32 %v3953, %v3967
    %v3974 = vadd.f32 %v3954, %v3968
    %v3975 = vadd.f32 %v3955, %v3969
    %v3976 = vadd.f32 %v3956, %v3970
    %v3977 = vadd.f32 %v3957, %v3971
    %v3978 = vadd.f32 %v3958, %v3972
    %s3979 = sld [smem:[#allocation3 + $0xb3]]
    %v3980 = vld [vmem:[%s247] sm:$0xff]
    %v3981 = vld [vmem:[%s247 + $0x8] sm:$0xff]
    %v3982 = vld [vmem:[%s247 + $0x10] sm:$0x1f]
    %v3983 = vld [vmem:[%s247 + $0x18] sm:$0xff]
    %v3984 = vld [vmem:[%s247 + $0x20] sm:$0xff]
    %v3985 = vld [vmem:[%s247 + $0x28] sm:$0x1f]
    %v3986 = vstv %s3979
    %v3987 = vmul.f32 %v3980, %v3986
    %v3988 = vmul.f32 %v3981, %v3986
    %v3989 = vmul.f32 %v3982, %v3986
    %v3990 = vmul.f32 %v3983, %v3986
    %v3991 = vmul.f32 %v3984, %v3986
    %v3992 = vmul.f32 %v3985, %v3986
    %v3993 = vadd.f32 %v3973, %v3987
    %v3994 = vadd.f32 %v3974, %v3988
    %v3995 = vadd.f32 %v3975, %v3989
    %v3996 = vadd.f32 %v3976, %v3990
    %v3997 = vadd.f32 %v3977, %v3991
    %v3998 = vadd.f32 %v3978, %v3992
    %vm3999 = vcmp.gt.f32.partialorder %v3993, 0.0
    %vm4000 = vcmp.gt.f32.partialorder %v3994, 0.0
    %vm4001 = vcmp.gt.f32.partialorder %v3995, 0.0
    %vm4002 = vcmp.gt.f32.partialorder %v3996, 0.0
    %vm4003 = vcmp.gt.f32.partialorder %v3997, 0.0
    %vm4004 = vcmp.gt.f32.partialorder %v3998, 0.0
    %v4005 = vmul.f32 %v3993, -0.1
    %v4006 = vmul.f32 %v3994, -0.1
    %v4007 = vmul.f32 %v3995, -0.1
    %v4008 = vmul.f32 %v3996, -0.1
    %v4009 = vmul.f32 %v3997, -0.1
    %v4010 = vmul.f32 %v3998, -0.1
    %v4011 = vsel %vm3999, %v3993, %v4005
    %v4012 = vsel %vm4000, %v3994, %v4006
    %v4013 = vsel %vm4001, %v3995, %v4007
    %v4014 = vsel %vm4002, %v3996, %v4008
    %v4015 = vsel %vm4003, %v3997, %v4009
    %v4016 = vsel %vm4004, %v3998, %v4010
    %s4017 = scalar_lea.vmem %s2, 192
    %4018 = vst.msk [vmem:[%s4017] sm:$0xff] %vm30, %v4011
    %4019 = vst.msk [vmem:[%s4017 + $0x8] sm:$0xff] %vm30, %v4012
    %4020 = vst.msk [vmem:[%s4017 + $0x10] sm:$0x1f] %vm33, %v4013
    %4021 = vst.msk [vmem:[%s4017 + $0x108] sm:$0xff] %vm30, %v4014
    %4022 = vst.msk [vmem:[%s4017 + $0x110] sm:$0xff] %vm30, %v4015
    %4023 = vst.msk [vmem:[%s4017 + $0x118] sm:$0x1f] %vm33, %v4016
    %s4024 = sld [smem:[#allocation3 + $0xb4]]
    %v4025 = vld [vmem:[#allocation2] sm:$0xff]
    %v4026 = vld [vmem:[#allocation2 + $0x8] sm:$0xff]
    %v4027 = vld [vmem:[#allocation2 + $0x10] sm:$0x1f]
    %v4028 = vld [vmem:[#allocation2 + $0x18] sm:$0xff]
    %v4029 = vld [vmem:[#allocation2 + $0x20] sm:$0xff]
    %v4030 = vld [vmem:[#allocation2 + $0x28] sm:$0x1f]
    %v4031 = vstv %s4024
    %v4032 = vmul.f32 %v4025, %v4031
    %v4033 = vmul.f32 %v4026, %v4031
    %v4034 = vmul.f32 %v4027, %v4031
    %v4035 = vmul.f32 %v4028, %v4031
    %v4036 = vmul.f32 %v4029, %v4031
    %v4037 = vmul.f32 %v4030, %v4031
    %s4038 = sld [smem:[#allocation3 + $0xb5]]
    %v4039 = vld [vmem:[%s62] sm:$0xff]
    %v4040 = vld [vmem:[%s62 + $0x8] sm:$0xff]
    %v4041 = vld [vmem:[%s62 + $0x10] sm:$0x1f]
    %v4042 = vld [vmem:[%s62 + $0x18] sm:$0xff]
    %v4043 = vld [vmem:[%s62 + $0x20] sm:$0xff]
    %v4044 = vld [vmem:[%s62 + $0x28] sm:$0x1f]
    %v4045 = vstv %s4038
    %v4046 = vmul.f32 %v4039, %v4045
    %v4047 = vmul.f32 %v4040, %v4045
    %v4048 = vmul.f32 %v4041, %v4045
    %v4049 = vmul.f32 %v4042, %v4045
    %v4050 = vmul.f32 %v4043, %v4045
    %v4051 = vmul.f32 %v4044, %v4045
    %v4052 = vadd.f32 %v4032, %v4046
    %v4053 = vadd.f32 %v4033, %v4047
    %v4054 = vadd.f32 %v4034, %v4048
    %v4055 = vadd.f32 %v4035, %v4049
    %v4056 = vadd.f32 %v4036, %v4050
    %v4057 = vadd.f32 %v4037, %v4051
    %s4058 = sld [smem:[#allocation3 + $0xb6]]
    %v4059 = vld [vmem:[%s87] sm:$0xff]
    %v4060 = vld [vmem:[%s87 + $0x8] sm:$0xff]
    %v4061 = vld [vmem:[%s87 + $0x10] sm:$0x1f]
    %v4062 = vld [vmem:[%s87 + $0x18] sm:$0xff]
    %v4063 = vld [vmem:[%s87 + $0x20] sm:$0xff]
    %v4064 = vld [vmem:[%s87 + $0x28] sm:$0x1f]
    %v4065 = vstv %s4058
    %v4066 = vmul.f32 %v4059, %v4065
    %v4067 = vmul.f32 %v4060, %v4065
    %v4068 = vmul.f32 %v4061, %v4065
    %v4069 = vmul.f32 %v4062, %v4065
    %v4070 = vmul.f32 %v4063, %v4065
    %v4071 = vmul.f32 %v4064, %v4065
    %v4072 = vadd.f32 %v4052, %v4066
    %v4073 = vadd.f32 %v4053, %v4067
    %v4074 = vadd.f32 %v4054, %v4068
    %v4075 = vadd.f32 %v4055, %v4069
    %v4076 = vadd.f32 %v4056, %v4070
    %v4077 = vadd.f32 %v4057, %v4071
    %s4078 = sld [smem:[#allocation3 + $0xb7]]
    %v4079 = vld [vmem:[%s112] sm:$0xff]
    %v4080 = vld [vmem:[%s112 + $0x8] sm:$0xff]
    %v4081 = vld [vmem:[%s112 + $0x10] sm:$0x1f]
    %v4082 = vld [vmem:[%s112 + $0x18] sm:$0xff]
    %v4083 = vld [vmem:[%s112 + $0x20] sm:$0xff]
    %v4084 = vld [vmem:[%s112 + $0x28] sm:$0x1f]
    %v4085 = vstv %s4078
    %v4086 = vmul.f32 %v4079, %v4085
    %v4087 = vmul.f32 %v4080, %v4085
    %v4088 = vmul.f32 %v4081, %v4085
    %v4089 = vmul.f32 %v4082, %v4085
    %v4090 = vmul.f32 %v4083, %v4085
    %v4091 = vmul.f32 %v4084, %v4085
    %v4092 = vadd.f32 %v4072, %v4086
    %v4093 = vadd.f32 %v4073, %v4087
    %v4094 = vadd.f32 %v4074, %v4088
    %v4095 = vadd.f32 %v4075, %v4089
    %v4096 = vadd.f32 %v4076, %v4090
    %v4097 = vadd.f32 %v4077, %v4091
    %s4098 = sld [smem:[#allocation3 + $0xb8]]
    %v4099 = vld [vmem:[%s137] sm:$0xff]
    %v4100 = vld [vmem:[%s137 + $0x8] sm:$0xff]
    %v4101 = vld [vmem:[%s137 + $0x10] sm:$0x1f]
    %v4102 = vld [vmem:[%s137 + $0x18] sm:$0xff]
    %v4103 = vld [vmem:[%s137 + $0x20] sm:$0xff]
    %v4104 = vld [vmem:[%s137 + $0x28] sm:$0x1f]
    %v4105 = vstv %s4098
    %v4106 = vmul.f32 %v4099, %v4105
    %v4107 = vmul.f32 %v4100, %v4105
    %v4108 = vmul.f32 %v4101, %v4105
    %v4109 = vmul.f32 %v4102, %v4105
    %v4110 = vmul.f32 %v4103, %v4105
    %v4111 = vmul.f32 %v4104, %v4105
    %v4112 = vadd.f32 %v4092, %v4106
    %v4113 = vadd.f32 %v4093, %v4107
    %v4114 = vadd.f32 %v4094, %v4108
    %v4115 = vadd.f32 %v4095, %v4109
    %v4116 = vadd.f32 %v4096, %v4110
    %v4117 = vadd.f32 %v4097, %v4111
    %s4118 = sld [smem:[#allocation3 + $0xb9]]
    %v4119 = vld [vmem:[%s144] sm:$0xff]
    %v4120 = vld [vmem:[%s144 + $0x8] sm:$0xff]
    %v4121 = vld [vmem:[%s144 + $0x10] sm:$0x1f]
    %v4122 = vld [vmem:[%s144 + $0x18] sm:$0xff]
    %v4123 = vld [vmem:[%s144 + $0x20] sm:$0xff]
    %v4124 = vld [vmem:[%s144 + $0x28] sm:$0x1f]
    %v4125 = vstv %s4118
    %v4126 = vmul.f32 %v4119, %v4125
    %v4127 = vmul.f32 %v4120, %v4125
    %v4128 = vmul.f32 %v4121, %v4125
    %v4129 = vmul.f32 %v4122, %v4125
    %v4130 = vmul.f32 %v4123, %v4125
    %v4131 = vmul.f32 %v4124, %v4125
    %v4132 = vadd.f32 %v4112, %v4126
    %v4133 = vadd.f32 %v4113, %v4127
    %v4134 = vadd.f32 %v4114, %v4128
    %v4135 = vadd.f32 %v4115, %v4129
    %v4136 = vadd.f32 %v4116, %v4130
    %v4137 = vadd.f32 %v4117, %v4131
    %s4138 = sld [smem:[#allocation3 + $0xba]]
    %v4139 = vld [vmem:[%s153] sm:$0xff]
    %v4140 = vld [vmem:[%s153 + $0x8] sm:$0xff]
    %v4141 = vld [vmem:[%s153 + $0x10] sm:$0x1f]
    %v4142 = vld [vmem:[%s153 + $0x18] sm:$0xff]
    %v4143 = vld [vmem:[%s153 + $0x20] sm:$0xff]
    %v4144 = vld [vmem:[%s153 + $0x28] sm:$0x1f]
    %v4145 = vstv %s4138
    %v4146 = vmul.f32 %v4139, %v4145
    %v4147 = vmul.f32 %v4140, %v4145
    %v4148 = vmul.f32 %v4141, %v4145
    %v4149 = vmul.f32 %v4142, %v4145
    %v4150 = vmul.f32 %v4143, %v4145
    %v4151 = vmul.f32 %v4144, %v4145
    %v4152 = vadd.f32 %v4132, %v4146
    %v4153 = vadd.f32 %v4133, %v4147
    %v4154 = vadd.f32 %v4134, %v4148
    %v4155 = vadd.f32 %v4135, %v4149
    %v4156 = vadd.f32 %v4136, %v4150
    %v4157 = vadd.f32 %v4137, %v4151
    %s4158 = sld [smem:[#allocation3 + $0xbb]]
    %v4159 = vld [vmem:[%s160] sm:$0xff]
    %v4160 = vld [vmem:[%s160 + $0x8] sm:$0xff]
    %v4161 = vld [vmem:[%s160 + $0x10] sm:$0x1f]
    %v4162 = vld [vmem:[%s160 + $0x18] sm:$0xff]
    %v4163 = vld [vmem:[%s160 + $0x20] sm:$0xff]
    %v4164 = vld [vmem:[%s160 + $0x28] sm:$0x1f]
    %v4165 = vstv %s4158
    %v4166 = vmul.f32 %v4159, %v4165
    %v4167 = vmul.f32 %v4160, %v4165
    %v4168 = vmul.f32 %v4161, %v4165
    %v4169 = vmul.f32 %v4162, %v4165
    %v4170 = vmul.f32 %v4163, %v4165
    %v4171 = vmul.f32 %v4164, %v4165
    %v4172 = vadd.f32 %v4152, %v4166
    %v4173 = vadd.f32 %v4153, %v4167
    %v4174 = vadd.f32 %v4154, %v4168
    %v4175 = vadd.f32 %v4155, %v4169
    %v4176 = vadd.f32 %v4156, %v4170
    %v4177 = vadd.f32 %v4157, %v4171
    %s4178 = sld [smem:[#allocation3 + $0xbc]]
    %v4179 = vld [vmem:[%s167] sm:$0xff]
    %v4180 = vld [vmem:[%s167 + $0x8] sm:$0xff]
    %v4181 = vld [vmem:[%s167 + $0x10] sm:$0x1f]
    %v4182 = vld [vmem:[%s167 + $0x18] sm:$0xff]
    %v4183 = vld [vmem:[%s167 + $0x20] sm:$0xff]
    %v4184 = vld [vmem:[%s167 + $0x28] sm:$0x1f]
    %v4185 = vstv %s4178
    %v4186 = vmul.f32 %v4179, %v4185
    %v4187 = vmul.f32 %v4180, %v4185
    %v4188 = vmul.f32 %v4181, %v4185
    %v4189 = vmul.f32 %v4182, %v4185
    %v4190 = vmul.f32 %v4183, %v4185
    %v4191 = vmul.f32 %v4184, %v4185
    %v4192 = vadd.f32 %v4172, %v4186
    %v4193 = vadd.f32 %v4173, %v4187
    %v4194 = vadd.f32 %v4174, %v4188
    %v4195 = vadd.f32 %v4175, %v4189
    %v4196 = vadd.f32 %v4176, %v4190
    %v4197 = vadd.f32 %v4177, %v4191
    %s4198 = sld [smem:[#allocation3 + $0xbd]]
    %v4199 = vld [vmem:[%s174] sm:$0xff]
    %v4200 = vld [vmem:[%s174 + $0x8] sm:$0xff]
    %v4201 = vld [vmem:[%s174 + $0x10] sm:$0x1f]
    %v4202 = vld [vmem:[%s174 + $0x18] sm:$0xff]
    %v4203 = vld [vmem:[%s174 + $0x20] sm:$0xff]
    %v4204 = vld [vmem:[%s174 + $0x28] sm:$0x1f]
    %v4205 = vstv %s4198
    %v4206 = vmul.f32 %v4199, %v4205
    %v4207 = vmul.f32 %v4200, %v4205
    %v4208 = vmul.f32 %v4201, %v4205
    %v4209 = vmul.f32 %v4202, %v4205
    %v4210 = vmul.f32 %v4203, %v4205
    %v4211 = vmul.f32 %v4204, %v4205
    %v4212 = vadd.f32 %v4192, %v4206
    %v4213 = vadd.f32 %v4193, %v4207
    %v4214 = vadd.f32 %v4194, %v4208
    %v4215 = vadd.f32 %v4195, %v4209
    %v4216 = vadd.f32 %v4196, %v4210
    %v4217 = vadd.f32 %v4197, %v4211
    %s4218 = sld [smem:[#allocation3 + $0xbe]]
    %v4219 = vld [vmem:[%s181] sm:$0xff]
    %v4220 = vld [vmem:[%s181 + $0x8] sm:$0xff]
    %v4221 = vld [vmem:[%s181 + $0x10] sm:$0x1f]
    %v4222 = vld [vmem:[%s181 + $0x18] sm:$0xff]
    %v4223 = vld [vmem:[%s181 + $0x20] sm:$0xff]
    %v4224 = vld [vmem:[%s181 + $0x28] sm:$0x1f]
    %v4225 = vstv %s4218
    %v4226 = vmul.f32 %v4219, %v4225
    %v4227 = vmul.f32 %v4220, %v4225
    %v4228 = vmul.f32 %v4221, %v4225
    %v4229 = vmul.f32 %v4222, %v4225
    %v4230 = vmul.f32 %v4223, %v4225
    %v4231 = vmul.f32 %v4224, %v4225
    %v4232 = vadd.f32 %v4212, %v4226
    %v4233 = vadd.f32 %v4213, %v4227
    %v4234 = vadd.f32 %v4214, %v4228
    %v4235 = vadd.f32 %v4215, %v4229
    %v4236 = vadd.f32 %v4216, %v4230
    %v4237 = vadd.f32 %v4217, %v4231
    %s4238 = sld [smem:[#allocation3 + $0xbf]]
    %v4239 = vld [vmem:[%s190] sm:$0xff]
    %v4240 = vld [vmem:[%s190 + $0x8] sm:$0xff]
    %v4241 = vld [vmem:[%s190 + $0x10] sm:$0x1f]
    %v4242 = vld [vmem:[%s190 + $0x18] sm:$0xff]
    %v4243 = vld [vmem:[%s190 + $0x20] sm:$0xff]
    %v4244 = vld [vmem:[%s190 + $0x28] sm:$0x1f]
    %v4245 = vstv %s4238
    %v4246 = vmul.f32 %v4239, %v4245
    %v4247 = vmul.f32 %v4240, %v4245
    %v4248 = vmul.f32 %v4241, %v4245
    %v4249 = vmul.f32 %v4242, %v4245
    %v4250 = vmul.f32 %v4243, %v4245
    %v4251 = vmul.f32 %v4244, %v4245
    %v4252 = vadd.f32 %v4232, %v4246
    %v4253 = vadd.f32 %v4233, %v4247
    %v4254 = vadd.f32 %v4234, %v4248
    %v4255 = vadd.f32 %v4235, %v4249
    %v4256 = vadd.f32 %v4236, %v4250
    %v4257 = vadd.f32 %v4237, %v4251
    %s4258 = sld [smem:[#allocation3 + $0xc0]]
    %v4259 = vld [vmem:[%s197] sm:$0xff]
    %v4260 = vld [vmem:[%s197 + $0x8] sm:$0xff]
    %v4261 = vld [vmem:[%s197 + $0x10] sm:$0x1f]
    %v4262 = vld [vmem:[%s197 + $0x18] sm:$0xff]
    %v4263 = vld [vmem:[%s197 + $0x20] sm:$0xff]
    %v4264 = vld [vmem:[%s197 + $0x28] sm:$0x1f]
    %v4265 = vstv %s4258
    %v4266 = vmul.f32 %v4259, %v4265
    %v4267 = vmul.f32 %v4260, %v4265
    %v4268 = vmul.f32 %v4261, %v4265
    %v4269 = vmul.f32 %v4262, %v4265
    %v4270 = vmul.f32 %v4263, %v4265
    %v4271 = vmul.f32 %v4264, %v4265
    %v4272 = vadd.f32 %v4252, %v4266
    %v4273 = vadd.f32 %v4253, %v4267
    %v4274 = vadd.f32 %v4254, %v4268
    %v4275 = vadd.f32 %v4255, %v4269
    %v4276 = vadd.f32 %v4256, %v4270
    %v4277 = vadd.f32 %v4257, %v4271
    %s4278 = sld [smem:[#allocation3 + $0xc1]]
    %v4279 = vld [vmem:[%s204] sm:$0xff]
    %v4280 = vld [vmem:[%s204 + $0x8] sm:$0xff]
    %v4281 = vld [vmem:[%s204 + $0x10] sm:$0x1f]
    %v4282 = vld [vmem:[%s204 + $0x18] sm:$0xff]
    %v4283 = vld [vmem:[%s204 + $0x20] sm:$0xff]
    %v4284 = vld [vmem:[%s204 + $0x28] sm:$0x1f]
    %v4285 = vstv %s4278
    %v4286 = vmul.f32 %v4279, %v4285
    %v4287 = vmul.f32 %v4280, %v4285
    %v4288 = vmul.f32 %v4281, %v4285
    %v4289 = vmul.f32 %v4282, %v4285
    %v4290 = vmul.f32 %v4283, %v4285
    %v4291 = vmul.f32 %v4284, %v4285
    %v4292 = vadd.f32 %v4272, %v4286
    %v4293 = vadd.f32 %v4273, %v4287
    %v4294 = vadd.f32 %v4274, %v4288
    %v4295 = vadd.f32 %v4275, %v4289
    %v4296 = vadd.f32 %v4276, %v4290
    %v4297 = vadd.f32 %v4277, %v4291
    %s4298 = sld [smem:[#allocation3 + $0xc2]]
    %v4299 = vld [vmem:[%s211] sm:$0xff]
    %v4300 = vld [vmem:[%s211 + $0x8] sm:$0xff]
    %v4301 = vld [vmem:[%s211 + $0x10] sm:$0x1f]
    %v4302 = vld [vmem:[%s211 + $0x18] sm:$0xff]
    %v4303 = vld [vmem:[%s211 + $0x20] sm:$0xff]
    %v4304 = vld [vmem:[%s211 + $0x28] sm:$0x1f]
    %v4305 = vstv %s4298
    %v4306 = vmul.f32 %v4299, %v4305
    %v4307 = vmul.f32 %v4300, %v4305
    %v4308 = vmul.f32 %v4301, %v4305
    %v4309 = vmul.f32 %v4302, %v4305
    %v4310 = vmul.f32 %v4303, %v4305
    %v4311 = vmul.f32 %v4304, %v4305
    %v4312 = vadd.f32 %v4292, %v4306
    %v4313 = vadd.f32 %v4293, %v4307
    %v4314 = vadd.f32 %v4294, %v4308
    %v4315 = vadd.f32 %v4295, %v4309
    %v4316 = vadd.f32 %v4296, %v4310
    %v4317 = vadd.f32 %v4297, %v4311
    %s4318 = sld [smem:[#allocation3 + $0xc3]]
    %v4319 = vld [vmem:[%s218] sm:$0xff]
    %v4320 = vld [vmem:[%s218 + $0x8] sm:$0xff]
    %v4321 = vld [vmem:[%s218 + $0x10] sm:$0x1f]
    %v4322 = vld [vmem:[%s218 + $0x18] sm:$0xff]
    %v4323 = vld [vmem:[%s218 + $0x20] sm:$0xff]
    %v4324 = vld [vmem:[%s218 + $0x28] sm:$0x1f]
    %v4325 = vstv %s4318
    %v4326 = vmul.f32 %v4319, %v4325
    %v4327 = vmul.f32 %v4320, %v4325
    %v4328 = vmul.f32 %v4321, %v4325
    %v4329 = vmul.f32 %v4322, %v4325
    %v4330 = vmul.f32 %v4323, %v4325
    %v4331 = vmul.f32 %v4324, %v4325
    %v4332 = vadd.f32 %v4312, %v4326
    %v4333 = vadd.f32 %v4313, %v4327
    %v4334 = vadd.f32 %v4314, %v4328
    %v4335 = vadd.f32 %v4315, %v4329
    %v4336 = vadd.f32 %v4316, %v4330
    %v4337 = vadd.f32 %v4317, %v4331
    %s4338 = sld [smem:[#allocation3 + $0xc4]]
    %v4339 = vld [vmem:[%s226] sm:$0xff]
    %v4340 = vld [vmem:[%s226 + $0x8] sm:$0xff]
    %v4341 = vld [vmem:[%s226 + $0x10] sm:$0x1f]
    %v4342 = vld [vmem:[%s226 + $0x18] sm:$0xff]
    %v4343 = vld [vmem:[%s226 + $0x20] sm:$0xff]
    %v4344 = vld [vmem:[%s226 + $0x28] sm:$0x1f]
    %v4345 = vstv %s4338
    %v4346 = vmul.f32 %v4339, %v4345
    %v4347 = vmul.f32 %v4340, %v4345
    %v4348 = vmul.f32 %v4341, %v4345
    %v4349 = vmul.f32 %v4342, %v4345
    %v4350 = vmul.f32 %v4343, %v4345
    %v4351 = vmul.f32 %v4344, %v4345
    %v4352 = vadd.f32 %v4332, %v4346
    %v4353 = vadd.f32 %v4333, %v4347
    %v4354 = vadd.f32 %v4334, %v4348
    %v4355 = vadd.f32 %v4335, %v4349
    %v4356 = vadd.f32 %v4336, %v4350
    %v4357 = vadd.f32 %v4337, %v4351
    %s4358 = sld [smem:[#allocation3 + $0xc5]]
    %v4359 = vld [vmem:[%s233] sm:$0xff]
    %v4360 = vld [vmem:[%s233 + $0x8] sm:$0xff]
    %v4361 = vld [vmem:[%s233 + $0x10] sm:$0x1f]
    %v4362 = vld [vmem:[%s233 + $0x18] sm:$0xff]
    %v4363 = vld [vmem:[%s233 + $0x20] sm:$0xff]
    %v4364 = vld [vmem:[%s233 + $0x28] sm:$0x1f]
    %v4365 = vstv %s4358
    %v4366 = vmul.f32 %v4359, %v4365
    %v4367 = vmul.f32 %v4360, %v4365
    %v4368 = vmul.f32 %v4361, %v4365
    %v4369 = vmul.f32 %v4362, %v4365
    %v4370 = vmul.f32 %v4363, %v4365
    %v4371 = vmul.f32 %v4364, %v4365
    %v4372 = vadd.f32 %v4352, %v4366
    %v4373 = vadd.f32 %v4353, %v4367
    %v4374 = vadd.f32 %v4354, %v4368
    %v4375 = vadd.f32 %v4355, %v4369
    %v4376 = vadd.f32 %v4356, %v4370
    %v4377 = vadd.f32 %v4357, %v4371
    %s4378 = sld [smem:[#allocation3 + $0xc6]]
    %v4379 = vld [vmem:[%s240] sm:$0xff]
    %v4380 = vld [vmem:[%s240 + $0x8] sm:$0xff]
    %v4381 = vld [vmem:[%s240 + $0x10] sm:$0x1f]
    %v4382 = vld [vmem:[%s240 + $0x18] sm:$0xff]
    %v4383 = vld [vmem:[%s240 + $0x20] sm:$0xff]
    %v4384 = vld [vmem:[%s240 + $0x28] sm:$0x1f]
    %v4385 = vstv %s4378
    %v4386 = vmul.f32 %v4379, %v4385
    %v4387 = vmul.f32 %v4380, %v4385
    %v4388 = vmul.f32 %v4381, %v4385
    %v4389 = vmul.f32 %v4382, %v4385
    %v4390 = vmul.f32 %v4383, %v4385
    %v4391 = vmul.f32 %v4384, %v4385
    %v4392 = vadd.f32 %v4372, %v4386
    %v4393 = vadd.f32 %v4373, %v4387
    %v4394 = vadd.f32 %v4374, %v4388
    %v4395 = vadd.f32 %v4375, %v4389
    %v4396 = vadd.f32 %v4376, %v4390
    %v4397 = vadd.f32 %v4377, %v4391
    %s4398 = sld [smem:[#allocation3 + $0xc7]]
    %v4399 = vld [vmem:[%s247] sm:$0xff]
    %v4400 = vld [vmem:[%s247 + $0x8] sm:$0xff]
    %v4401 = vld [vmem:[%s247 + $0x10] sm:$0x1f]
    %v4402 = vld [vmem:[%s247 + $0x18] sm:$0xff]
    %v4403 = vld [vmem:[%s247 + $0x20] sm:$0xff]
    %v4404 = vld [vmem:[%s247 + $0x28] sm:$0x1f]
    %v4405 = vstv %s4398
    %v4406 = vmul.f32 %v4399, %v4405
    %v4407 = vmul.f32 %v4400, %v4405
    %v4408 = vmul.f32 %v4401, %v4405
    %v4409 = vmul.f32 %v4402, %v4405
    %v4410 = vmul.f32 %v4403, %v4405
    %v4411 = vmul.f32 %v4404, %v4405
    %v4412 = vadd.f32 %v4392, %v4406
    %v4413 = vadd.f32 %v4393, %v4407
    %v4414 = vadd.f32 %v4394, %v4408
    %v4415 = vadd.f32 %v4395, %v4409
    %v4416 = vadd.f32 %v4396, %v4410
    %v4417 = vadd.f32 %v4397, %v4411
    %vm4418 = vcmp.gt.f32.partialorder %v4412, 0.0
    %vm4419 = vcmp.gt.f32.partialorder %v4413, 0.0
    %vm4420 = vcmp.gt.f32.partialorder %v4414, 0.0
    %vm4421 = vcmp.gt.f32.partialorder %v4415, 0.0
    %vm4422 = vcmp.gt.f32.partialorder %v4416, 0.0
    %vm4423 = vcmp.gt.f32.partialorder %v4417, 0.0
    %v4424 = vmul.f32 %v4412, -0.1
    %v4425 = vmul.f32 %v4413, -0.1
    %v4426 = vmul.f32 %v4414, -0.1
    %v4427 = vmul.f32 %v4415, -0.1
    %v4428 = vmul.f32 %v4416, -0.1
    %v4429 = vmul.f32 %v4417, -0.1
    %v4430 = vsel %vm4418, %v4412, %v4424
    %v4431 = vsel %vm4419, %v4413, %v4425
    %v4432 = vsel %vm4420, %v4414, %v4426
    %v4433 = vsel %vm4421, %v4415, %v4427
    %v4434 = vsel %vm4422, %v4416, %v4428
    %v4435 = vsel %vm4423, %v4417, %v4429
    %s4436 = scalar_lea.vmem %s2, 216
    %4437 = vst.msk [vmem:[%s4436] sm:$0xff] %vm30, %v4430
    %4438 = vst.msk [vmem:[%s4436 + $0x8] sm:$0xff] %vm30, %v4431
    %4439 = vst.msk [vmem:[%s4436 + $0x10] sm:$0x1f] %vm33, %v4432
    %4440 = vst.msk [vmem:[%s4436 + $0x108] sm:$0xff] %vm30, %v4433
    %4441 = vst.msk [vmem:[%s4436 + $0x110] sm:$0xff] %vm30, %v4434
    %4442 = vst.msk [vmem:[%s4436 + $0x118] sm:$0x1f] %vm33, %v4435
    %s4443 = sld [smem:[#allocation3 + $0xc8]]
    %v4444 = vld [vmem:[#allocation2] sm:$0xff]
    %v4445 = vld [vmem:[#allocation2 + $0x8] sm:$0xff]
    %v4446 = vld [vmem:[#allocation2 + $0x10] sm:$0x1f]
    %v4447 = vld [vmem:[#allocation2 + $0x18] sm:$0xff]
    %v4448 = vld [vmem:[#allocation2 + $0x20] sm:$0xff]
    %v4449 = vld [vmem:[#allocation2 + $0x28] sm:$0x1f]
    %v4450 = vstv %s4443
    %v4451 = vmul.f32 %v4444, %v4450
    %v4452 = vmul.f32 %v4445, %v4450
    %v4453 = vmul.f32 %v4446, %v4450
    %v4454 = vmul.f32 %v4447, %v4450
    %v4455 = vmul.f32 %v4448, %v4450
    %v4456 = vmul.f32 %v4449, %v4450
    %s4457 = sld [smem:[#allocation3 + $0xc9]]
    %v4458 = vld [vmem:[%s62] sm:$0xff]
    %v4459 = vld [vmem:[%s62 + $0x8] sm:$0xff]
    %v4460 = vld [vmem:[%s62 + $0x10] sm:$0x1f]
    %v4461 = vld [vmem:[%s62 + $0x18] sm:$0xff]
    %v4462 = vld [vmem:[%s62 + $0x20] sm:$0xff]
    %v4463 = vld [vmem:[%s62 + $0x28] sm:$0x1f]
    %v4464 = vstv %s4457
    %v4465 = vmul.f32 %v4458, %v4464
    %v4466 = vmul.f32 %v4459, %v4464
    %v4467 = vmul.f32 %v4460, %v4464
    %v4468 = vmul.f32 %v4461, %v4464
    %v4469 = vmul.f32 %v4462, %v4464
    %v4470 = vmul.f32 %v4463, %v4464
    %v4471 = vadd.f32 %v4451, %v4465
    %v4472 = vadd.f32 %v4452, %v4466
    %v4473 = vadd.f32 %v4453, %v4467
    %v4474 = vadd.f32 %v4454, %v4468
    %v4475 = vadd.f32 %v4455, %v4469
    %v4476 = vadd.f32 %v4456, %v4470
    %s4477 = sld [smem:[#allocation3 + $0xca]]
    %v4478 = vld [vmem:[%s87] sm:$0xff]
    %v4479 = vld [vmem:[%s87 + $0x8] sm:$0xff]
    %v4480 = vld [vmem:[%s87 + $0x10] sm:$0x1f]
    %v4481 = vld [vmem:[%s87 + $0x18] sm:$0xff]
    %v4482 = vld [vmem:[%s87 + $0x20] sm:$0xff]
    %v4483 = vld [vmem:[%s87 + $0x28] sm:$0x1f]
    %v4484 = vstv %s4477
    %v4485 = vmul.f32 %v4478, %v4484
    %v4486 = vmul.f32 %v4479, %v4484
    %v4487 = vmul.f32 %v4480, %v4484
    %v4488 = vmul.f32 %v4481, %v4484
    %v4489 = vmul.f32 %v4482, %v4484
    %v4490 = vmul.f32 %v4483, %v4484
    %v4491 = vadd.f32 %v4471, %v4485
    %v4492 = vadd.f32 %v4472, %v4486
    %v4493 = vadd.f32 %v4473, %v4487
    %v4494 = vadd.f32 %v4474, %v4488
    %v4495 = vadd.f32 %v4475, %v4489
    %v4496 = vadd.f32 %v4476, %v4490
    %s4497 = sld [smem:[#allocation3 + $0xcb]]
    %v4498 = vld [vmem:[%s112] sm:$0xff]
    %v4499 = vld [vmem:[%s112 + $0x8] sm:$0xff]
    %v4500 = vld [vmem:[%s112 + $0x10] sm:$0x1f]
    %v4501 = vld [vmem:[%s112 + $0x18] sm:$0xff]
    %v4502 = vld [vmem:[%s112 + $0x20] sm:$0xff]
    %v4503 = vld [vmem:[%s112 + $0x28] sm:$0x1f]
    %v4504 = vstv %s4497
    %v4505 = vmul.f32 %v4498, %v4504
    %v4506 = vmul.f32 %v4499, %v4504
    %v4507 = vmul.f32 %v4500, %v4504
    %v4508 = vmul.f32 %v4501, %v4504
    %v4509 = vmul.f32 %v4502, %v4504
    %v4510 = vmul.f32 %v4503, %v4504
    %v4511 = vadd.f32 %v4491, %v4505
    %v4512 = vadd.f32 %v4492, %v4506
    %v4513 = vadd.f32 %v4493, %v4507
    %v4514 = vadd.f32 %v4494, %v4508
    %v4515 = vadd.f32 %v4495, %v4509
    %v4516 = vadd.f32 %v4496, %v4510
    %s4517 = sld [smem:[#allocation3 + $0xcc]]
    %v4518 = vld [vmem:[%s137] sm:$0xff]
    %v4519 = vld [vmem:[%s137 + $0x8] sm:$0xff]
    %v4520 = vld [vmem:[%s137 + $0x10] sm:$0x1f]
    %v4521 = vld [vmem:[%s137 + $0x18] sm:$0xff]
    %v4522 = vld [vmem:[%s137 + $0x20] sm:$0xff]
    %v4523 = vld [vmem:[%s137 + $0x28] sm:$0x1f]
    %v4524 = vstv %s4517
    %v4525 = vmul.f32 %v4518, %v4524
    %v4526 = vmul.f32 %v4519, %v4524
    %v4527 = vmul.f32 %v4520, %v4524
    %v4528 = vmul.f32 %v4521, %v4524
    %v4529 = vmul.f32 %v4522, %v4524
    %v4530 = vmul.f32 %v4523, %v4524
    %v4531 = vadd.f32 %v4511, %v4525
    %v4532 = vadd.f32 %v4512, %v4526
    %v4533 = vadd.f32 %v4513, %v4527
    %v4534 = vadd.f32 %v4514, %v4528
    %v4535 = vadd.f32 %v4515, %v4529
    %v4536 = vadd.f32 %v4516, %v4530
    %s4537 = sld [smem:[#allocation3 + $0xcd]]
    %v4538 = vld [vmem:[%s144] sm:$0xff]
    %v4539 = vld [vmem:[%s144 + $0x8] sm:$0xff]
    %v4540 = vld [vmem:[%s144 + $0x10] sm:$0x1f]
    %v4541 = vld [vmem:[%s144 + $0x18] sm:$0xff]
    %v4542 = vld [vmem:[%s144 + $0x20] sm:$0xff]
    %v4543 = vld [vmem:[%s144 + $0x28] sm:$0x1f]
    %v4544 = vstv %s4537
    %v4545 = vmul.f32 %v4538, %v4544
    %v4546 = vmul.f32 %v4539, %v4544
    %v4547 = vmul.f32 %v4540, %v4544
    %v4548 = vmul.f32 %v4541, %v4544
    %v4549 = vmul.f32 %v4542, %v4544
    %v4550 = vmul.f32 %v4543, %v4544
    %v4551 = vadd.f32 %v4531, %v4545
    %v4552 = vadd.f32 %v4532, %v4546
    %v4553 = vadd.f32 %v4533, %v4547
    %v4554 = vadd.f32 %v4534, %v4548
    %v4555 = vadd.f32 %v4535, %v4549
    %v4556 = vadd.f32 %v4536, %v4550
    %s4557 = sld [smem:[#allocation3 + $0xce]]
    %v4558 = vld [vmem:[%s153] sm:$0xff]
    %v4559 = vld [vmem:[%s153 + $0x8] sm:$0xff]
    %v4560 = vld [vmem:[%s153 + $0x10] sm:$0x1f]
    %v4561 = vld [vmem:[%s153 + $0x18] sm:$0xff]
    %v4562 = vld [vmem:[%s153 + $0x20] sm:$0xff]
    %v4563 = vld [vmem:[%s153 + $0x28] sm:$0x1f]
    %v4564 = vstv %s4557
    %v4565 = vmul.f32 %v4558, %v4564
    %v4566 = vmul.f32 %v4559, %v4564
    %v4567 = vmul.f32 %v4560, %v4564
    %v4568 = vmul.f32 %v4561, %v4564
    %v4569 = vmul.f32 %v4562, %v4564
    %v4570 = vmul.f32 %v4563, %v4564
    %v4571 = vadd.f32 %v4551, %v4565
    %v4572 = vadd.f32 %v4552, %v4566
    %v4573 = vadd.f32 %v4553, %v4567
    %v4574 = vadd.f32 %v4554, %v4568
    %v4575 = vadd.f32 %v4555, %v4569
    %v4576 = vadd.f32 %v4556, %v4570
    %s4577 = sld [smem:[#allocation3 + $0xcf]]
    %v4578 = vld [vmem:[%s160] sm:$0xff]
    %v4579 = vld [vmem:[%s160 + $0x8] sm:$0xff]
    %v4580 = vld [vmem:[%s160 + $0x10] sm:$0x1f]
    %v4581 = vld [vmem:[%s160 + $0x18] sm:$0xff]
    %v4582 = vld [vmem:[%s160 + $0x20] sm:$0xff]
    %v4583 = vld [vmem:[%s160 + $0x28] sm:$0x1f]
    %v4584 = vstv %s4577
    %v4585 = vmul.f32 %v4578, %v4584
    %v4586 = vmul.f32 %v4579, %v4584
    %v4587 = vmul.f32 %v4580, %v4584
    %v4588 = vmul.f32 %v4581, %v4584
    %v4589 = vmul.f32 %v4582, %v4584
    %v4590 = vmul.f32 %v4583, %v4584
    %v4591 = vadd.f32 %v4571, %v4585
    %v4592 = vadd.f32 %v4572, %v4586
    %v4593 = vadd.f32 %v4573, %v4587
    %v4594 = vadd.f32 %v4574, %v4588
    %v4595 = vadd.f32 %v4575, %v4589
    %v4596 = vadd.f32 %v4576, %v4590
    %s4597 = sld [smem:[#allocation3 + $0xd0]]
    %v4598 = vld [vmem:[%s167] sm:$0xff]
    %v4599 = vld [vmem:[%s167 + $0x8] sm:$0xff]
    %v4600 = vld [vmem:[%s167 + $0x10] sm:$0x1f]
    %v4601 = vld [vmem:[%s167 + $0x18] sm:$0xff]
    %v4602 = vld [vmem:[%s167 + $0x20] sm:$0xff]
    %v4603 = vld [vmem:[%s167 + $0x28] sm:$0x1f]
    %v4604 = vstv %s4597
    %v4605 = vmul.f32 %v4598, %v4604
    %v4606 = vmul.f32 %v4599, %v4604
    %v4607 = vmul.f32 %v4600, %v4604
    %v4608 = vmul.f32 %v4601, %v4604
    %v4609 = vmul.f32 %v4602, %v4604
    %v4610 = vmul.f32 %v4603, %v4604
    %v4611 = vadd.f32 %v4591, %v4605
    %v4612 = vadd.f32 %v4592, %v4606
    %v4613 = vadd.f32 %v4593, %v4607
    %v4614 = vadd.f32 %v4594, %v4608
    %v4615 = vadd.f32 %v4595, %v4609
    %v4616 = vadd.f32 %v4596, %v4610
    %s4617 = sld [smem:[#allocation3 + $0xd1]]
    %v4618 = vld [vmem:[%s174] sm:$0xff]
    %v4619 = vld [vmem:[%s174 + $0x8] sm:$0xff]
    %v4620 = vld [vmem:[%s174 + $0x10] sm:$0x1f]
    %v4621 = vld [vmem:[%s174 + $0x18] sm:$0xff]
    %v4622 = vld [vmem:[%s174 + $0x20] sm:$0xff]
    %v4623 = vld [vmem:[%s174 + $0x28] sm:$0x1f]
    %v4624 = vstv %s4617
    %v4625 = vmul.f32 %v4618, %v4624
    %v4626 = vmul.f32 %v4619, %v4624
    %v4627 = vmul.f32 %v4620, %v4624
    %v4628 = vmul.f32 %v4621, %v4624
    %v4629 = vmul.f32 %v4622, %v4624
    %v4630 = vmul.f32 %v4623, %v4624
    %v4631 = vadd.f32 %v4611, %v4625
    %v4632 = vadd.f32 %v4612, %v4626
    %v4633 = vadd.f32 %v4613, %v4627
    %v4634 = vadd.f32 %v4614, %v4628
    %v4635 = vadd.f32 %v4615, %v4629
    %v4636 = vadd.f32 %v4616, %v4630
    %s4637 = sld [smem:[#allocation3 + $0xd2]]
    %v4638 = vld [vmem:[%s181] sm:$0xff]
    %v4639 = vld [vmem:[%s181 + $0x8] sm:$0xff]
    %v4640 = vld [vmem:[%s181 + $0x10] sm:$0x1f]
    %v4641 = vld [vmem:[%s181 + $0x18] sm:$0xff]
    %v4642 = vld [vmem:[%s181 + $0x20] sm:$0xff]
    %v4643 = vld [vmem:[%s181 + $0x28] sm:$0x1f]
    %v4644 = vstv %s4637
    %v4645 = vmul.f32 %v4638, %v4644
    %v4646 = vmul.f32 %v4639, %v4644
    %v4647 = vmul.f32 %v4640, %v4644
    %v4648 = vmul.f32 %v4641, %v4644
    %v4649 = vmul.f32 %v4642, %v4644
    %v4650 = vmul.f32 %v4643, %v4644
    %v4651 = vadd.f32 %v4631, %v4645
    %v4652 = vadd.f32 %v4632, %v4646
    %v4653 = vadd.f32 %v4633, %v4647
    %v4654 = vadd.f32 %v4634, %v4648
    %v4655 = vadd.f32 %v4635, %v4649
    %v4656 = vadd.f32 %v4636, %v4650
    %s4657 = sld [smem:[#allocation3 + $0xd3]]
    %v4658 = vld [vmem:[%s190] sm:$0xff]
    %v4659 = vld [vmem:[%s190 + $0x8] sm:$0xff]
    %v4660 = vld [vmem:[%s190 + $0x10] sm:$0x1f]
    %v4661 = vld [vmem:[%s190 + $0x18] sm:$0xff]
    %v4662 = vld [vmem:[%s190 + $0x20] sm:$0xff]
    %v4663 = vld [vmem:[%s190 + $0x28] sm:$0x1f]
    %v4664 = vstv %s4657
    %v4665 = vmul.f32 %v4658, %v4664
    %v4666 = vmul.f32 %v4659, %v4664
    %v4667 = vmul.f32 %v4660, %v4664
    %v4668 = vmul.f32 %v4661, %v4664
    %v4669 = vmul.f32 %v4662, %v4664
    %v4670 = vmul.f32 %v4663, %v4664
    %v4671 = vadd.f32 %v4651, %v4665
    %v4672 = vadd.f32 %v4652, %v4666
    %v4673 = vadd.f32 %v4653, %v4667
    %v4674 = vadd.f32 %v4654, %v4668
    %v4675 = vadd.f32 %v4655, %v4669
    %v4676 = vadd.f32 %v4656, %v4670
    %s4677 = sld [smem:[#allocation3 + $0xd4]]
    %v4678 = vld [vmem:[%s197] sm:$0xff]
    %v4679 = vld [vmem:[%s197 + $0x8] sm:$0xff]
    %v4680 = vld [vmem:[%s197 + $0x10] sm:$0x1f]
    %v4681 = vld [vmem:[%s197 + $0x18] sm:$0xff]
    %v4682 = vld [vmem:[%s197 + $0x20] sm:$0xff]
    %v4683 = vld [vmem:[%s197 + $0x28] sm:$0x1f]
    %v4684 = vstv %s4677
    %v4685 = vmul.f32 %v4678, %v4684
    %v4686 = vmul.f32 %v4679, %v4684
    %v4687 = vmul.f32 %v4680, %v4684
    %v4688 = vmul.f32 %v4681, %v4684
    %v4689 = vmul.f32 %v4682, %v4684
    %v4690 = vmul.f32 %v4683, %v4684
    %v4691 = vadd.f32 %v4671, %v4685
    %v4692 = vadd.f32 %v4672, %v4686
    %v4693 = vadd.f32 %v4673, %v4687
    %v4694 = vadd.f32 %v4674, %v4688
    %v4695 = vadd.f32 %v4675, %v4689
    %v4696 = vadd.f32 %v4676, %v4690
    %s4697 = sld [smem:[#allocation3 + $0xd5]]
    %v4698 = vld [vmem:[%s204] sm:$0xff]
    %v4699 = vld [vmem:[%s204 + $0x8] sm:$0xff]
    %v4700 = vld [vmem:[%s204 + $0x10] sm:$0x1f]
    %v4701 = vld [vmem:[%s204 + $0x18] sm:$0xff]
    %v4702 = vld [vmem:[%s204 + $0x20] sm:$0xff]
    %v4703 = vld [vmem:[%s204 + $0x28] sm:$0x1f]
    %v4704 = vstv %s4697
    %v4705 = vmul.f32 %v4698, %v4704
    %v4706 = vmul.f32 %v4699, %v4704
    %v4707 = vmul.f32 %v4700, %v4704
    %v4708 = vmul.f32 %v4701, %v4704
    %v4709 = vmul.f32 %v4702, %v4704
    %v4710 = vmul.f32 %v4703, %v4704
    %v4711 = vadd.f32 %v4691, %v4705
    %v4712 = vadd.f32 %v4692, %v4706
    %v4713 = vadd.f32 %v4693, %v4707
    %v4714 = vadd.f32 %v4694, %v4708
    %v4715 = vadd.f32 %v4695, %v4709
    %v4716 = vadd.f32 %v4696, %v4710
    %s4717 = sld [smem:[#allocation3 + $0xd6]]
    %v4718 = vld [vmem:[%s211] sm:$0xff]
    %v4719 = vld [vmem:[%s211 + $0x8] sm:$0xff]
    %v4720 = vld [vmem:[%s211 + $0x10] sm:$0x1f]
    %v4721 = vld [vmem:[%s211 + $0x18] sm:$0xff]
    %v4722 = vld [vmem:[%s211 + $0x20] sm:$0xff]
    %v4723 = vld [vmem:[%s211 + $0x28] sm:$0x1f]
    %v4724 = vstv %s4717
    %v4725 = vmul.f32 %v4718, %v4724
    %v4726 = vmul.f32 %v4719, %v4724
    %v4727 = vmul.f32 %v4720, %v4724
    %v4728 = vmul.f32 %v4721, %v4724
    %v4729 = vmul.f32 %v4722, %v4724
    %v4730 = vmul.f32 %v4723, %v4724
    %v4731 = vadd.f32 %v4711, %v4725
    %v4732 = vadd.f32 %v4712, %v4726
    %v4733 = vadd.f32 %v4713, %v4727
    %v4734 = vadd.f32 %v4714, %v4728
    %v4735 = vadd.f32 %v4715, %v4729
    %v4736 = vadd.f32 %v4716, %v4730
    %s4737 = sld [smem:[#allocation3 + $0xd7]]
    %v4738 = vld [vmem:[%s218] sm:$0xff]
    %v4739 = vld [vmem:[%s218 + $0x8] sm:$0xff]
    %v4740 = vld [vmem:[%s218 + $0x10] sm:$0x1f]
    %v4741 = vld [vmem:[%s218 + $0x18] sm:$0xff]
    %v4742 = vld [vmem:[%s218 + $0x20] sm:$0xff]
    %v4743 = vld [vmem:[%s218 + $0x28] sm:$0x1f]
    %v4744 = vstv %s4737
    %v4745 = vmul.f32 %v4738, %v4744
    %v4746 = vmul.f32 %v4739, %v4744
    %v4747 = vmul.f32 %v4740, %v4744
    %v4748 = vmul.f32 %v4741, %v4744
    %v4749 = vmul.f32 %v4742, %v4744
    %v4750 = vmul.f32 %v4743, %v4744
    %v4751 = vadd.f32 %v4731, %v4745
    %v4752 = vadd.f32 %v4732, %v4746
    %v4753 = vadd.f32 %v4733, %v4747
    %v4754 = vadd.f32 %v4734, %v4748
    %v4755 = vadd.f32 %v4735, %v4749
    %v4756 = vadd.f32 %v4736, %v4750
    %s4757 = sld [smem:[#allocation3 + $0xd8]]
    %v4758 = vld [vmem:[%s226] sm:$0xff]
    %v4759 = vld [vmem:[%s226 + $0x8] sm:$0xff]
    %v4760 = vld [vmem:[%s226 + $0x10] sm:$0x1f]
    %v4761 = vld [vmem:[%s226 + $0x18] sm:$0xff]
    %v4762 = vld [vmem:[%s226 + $0x20] sm:$0xff]
    %v4763 = vld [vmem:[%s226 + $0x28] sm:$0x1f]
    %v4764 = vstv %s4757
    %v4765 = vmul.f32 %v4758, %v4764
    %v4766 = vmul.f32 %v4759, %v4764
    %v4767 = vmul.f32 %v4760, %v4764
    %v4768 = vmul.f32 %v4761, %v4764
    %v4769 = vmul.f32 %v4762, %v4764
    %v4770 = vmul.f32 %v4763, %v4764
    %v4771 = vadd.f32 %v4751, %v4765
    %v4772 = vadd.f32 %v4752, %v4766
    %v4773 = vadd.f32 %v4753, %v4767
    %v4774 = vadd.f32 %v4754, %v4768
    %v4775 = vadd.f32 %v4755, %v4769
    %v4776 = vadd.f32 %v4756, %v4770
    %s4777 = sld [smem:[#allocation3 + $0xd9]]
    %v4778 = vld [vmem:[%s233] sm:$0xff]
    %v4779 = vld [vmem:[%s233 + $0x8] sm:$0xff]
    %v4780 = vld [vmem:[%s233 + $0x10] sm:$0x1f]
    %v4781 = vld [vmem:[%s233 + $0x18] sm:$0xff]
    %v4782 = vld [vmem:[%s233 + $0x20] sm:$0xff]
    %v4783 = vld [vmem:[%s233 + $0x28] sm:$0x1f]
    %v4784 = vstv %s4777
    %v4785 = vmul.f32 %v4778, %v4784
    %v4786 = vmul.f32 %v4779, %v4784
    %v4787 = vmul.f32 %v4780, %v4784
    %v4788 = vmul.f32 %v4781, %v4784
    %v4789 = vmul.f32 %v4782, %v4784
    %v4790 = vmul.f32 %v4783, %v4784
    %v4791 = vadd.f32 %v4771, %v4785
    %v4792 = vadd.f32 %v4772, %v4786
    %v4793 = vadd.f32 %v4773, %v4787
    %v4794 = vadd.f32 %v4774, %v4788
    %v4795 = vadd.f32 %v4775, %v4789
    %v4796 = vadd.f32 %v4776, %v4790
    %s4797 = sld [smem:[#allocation3 + $0xda]]
    %v4798 = vld [vmem:[%s240] sm:$0xff]
    %v4799 = vld [vmem:[%s240 + $0x8] sm:$0xff]
    %v4800 = vld [vmem:[%s240 + $0x10] sm:$0x1f]
    %v4801 = vld [vmem:[%s240 + $0x18] sm:$0xff]
    %v4802 = vld [vmem:[%s240 + $0x20] sm:$0xff]
    %v4803 = vld [vmem:[%s240 + $0x28] sm:$0x1f]
    %v4804 = vstv %s4797
    %v4805 = vmul.f32 %v4798, %v4804
    %v4806 = vmul.f32 %v4799, %v4804
    %v4807 = vmul.f32 %v4800, %v4804
    %v4808 = vmul.f32 %v4801, %v4804
    %v4809 = vmul.f32 %v4802, %v4804
    %v4810 = vmul.f32 %v4803, %v4804
    %v4811 = vadd.f32 %v4791, %v4805
    %v4812 = vadd.f32 %v4792, %v4806
    %v4813 = vadd.f32 %v4793, %v4807
    %v4814 = vadd.f32 %v4794, %v4808
    %v4815 = vadd.f32 %v4795, %v4809
    %v4816 = vadd.f32 %v4796, %v4810
    %s4817 = sld [smem:[#allocation3 + $0xdb]]
    %v4818 = vld [vmem:[%s247] sm:$0xff]
    %v4819 = vld [vmem:[%s247 + $0x8] sm:$0xff]
    %v4820 = vld [vmem:[%s247 + $0x10] sm:$0x1f]
    %v4821 = vld [vmem:[%s247 + $0x18] sm:$0xff]
    %v4822 = vld [vmem:[%s247 + $0x20] sm:$0xff]
    %v4823 = vld [vmem:[%s247 + $0x28] sm:$0x1f]
    %v4824 = vstv %s4817
    %v4825 = vmul.f32 %v4818, %v4824
    %v4826 = vmul.f32 %v4819, %v4824
    %v4827 = vmul.f32 %v4820, %v4824
    %v4828 = vmul.f32 %v4821, %v4824
    %v4829 = vmul.f32 %v4822, %v4824
    %v4830 = vmul.f32 %v4823, %v4824
    %v4831 = vadd.f32 %v4811, %v4825
    %v4832 = vadd.f32 %v4812, %v4826
    %v4833 = vadd.f32 %v4813, %v4827
    %v4834 = vadd.f32 %v4814, %v4828
    %v4835 = vadd.f32 %v4815, %v4829
    %v4836 = vadd.f32 %v4816, %v4830
    %vm4837 = vcmp.gt.f32.partialorder %v4831, 0.0
    %vm4838 = vcmp.gt.f32.partialorder %v4832, 0.0
    %vm4839 = vcmp.gt.f32.partialorder %v4833, 0.0
    %vm4840 = vcmp.gt.f32.partialorder %v4834, 0.0
    %vm4841 = vcmp.gt.f32.partialorder %v4835, 0.0
    %vm4842 = vcmp.gt.f32.partialorder %v4836, 0.0
    %v4843 = vmul.f32 %v4831, -0.1
    %v4844 = vmul.f32 %v4832, -0.1
    %v4845 = vmul.f32 %v4833, -0.1
    %v4846 = vmul.f32 %v4834, -0.1
    %v4847 = vmul.f32 %v4835, -0.1
    %v4848 = vmul.f32 %v4836, -0.1
    %v4849 = vsel %vm4837, %v4831, %v4843
    %v4850 = vsel %vm4838, %v4832, %v4844
    %v4851 = vsel %vm4839, %v4833, %v4845
    %v4852 = vsel %vm4840, %v4834, %v4846
    %v4853 = vsel %vm4841, %v4835, %v4847
    %v4854 = vsel %vm4842, %v4836, %v4848
    %s4855 = scalar_lea.vmem %s2, 240
    %4856 = vst.msk [vmem:[%s4855] sm:$0xff] %vm30, %v4849
    %4857 = vst.msk [vmem:[%s4855 + $0x8] sm:$0xff] %vm30, %v4850
    %4858 = vst.msk [vmem:[%s4855 + $0x10] sm:$0x1f] %vm33, %v4851
    %4859 = vst.msk [vmem:[%s4855 + $0x108] sm:$0xff] %vm30, %v4852
    %4860 = vst.msk [vmem:[%s4855 + $0x110] sm:$0xff] %vm30, %v4853
    %4861 = vst.msk [vmem:[%s4855 + $0x118] sm:$0x1f] %vm33, %v4854
    // Predicated region
    $region14: #{conv_transpose_model.1} parent=1 // pred_check
      _
    $region15: #{conv_transpose_model.1} parent=1 // pred_check_branch
      %4863 = sbr.rel (0) target = $region17
    $region16: #{conv_transpose_model.1} parent=1 // pred_region
      _
    $region17: #{conv_transpose_model.1} parent=1 // pred_fallthru
      _
    // Predicated region
    $region18: #{conv_transpose_model.1} parent=1 // pred_check
      _
    $region19: #{conv_transpose_model.1} parent=1 // pred_check_branch
      %4865 = sbr.rel (0) target = $region21
    $region20: #{conv_transpose_model.1} parent=1 // pred_region
      _
    $region21: #{conv_transpose_model.1} parent=1 // pred_fallthru
      _
    %4866 = vsyncpa [#allocation4], 1

</llo_original>
